<compile_context>
chip_gen: v7x
topology: tpu7x:2x2x1
jax: 0.10.0
libtpu: 0.0.40
codegen_flags: <defaults>
</compile_context>

<pallas_src>
import functools
import math

import jax
import jax.numpy as jnp
import numpy as np
from jax.experimental import pallas as pl
from jax.experimental.pallas import tpu as pltpu


def _round_up(v, m):
    return ((v + m - 1) // m) * m


def _batches_per_step(batch):
    """Batch elements handled per grid step.

    v7x has 2 TensorCores: keep >=2 'parallel' grid steps so both cores get work.
    Single-TC generations (v5e/v6e) fold the whole batch into one grid step to avoid
    ~0.35us/step pipeline overhead on sub-microsecond bodies.
    """
    try:
        kind = jax.devices()[0].device_kind.lower()
    except Exception:  # pragma: no cover
        kind = ""
    multi_tc = ("v7" in kind) or ("7x" in kind)
    if multi_tc and batch % 2 == 0:
        return batch // 2
    return batch


# -----------------------------------------------------------------------------
# Generic tiled matmul + bias (bf16 operands, f32 accumulation)
# -----------------------------------------------------------------------------
def _matmul_bias_kernel(x_ref, w_ref, b_ref, o_ref):
    acc = jnp.dot(x_ref[...], w_ref[...], preferred_element_type=jnp.float32)
    o_ref[...] = (acc + b_ref[...]).astype(o_ref.dtype)


def matmul_bias(x, w, b):
    """(M, K) @ (K, N) + (N,) -> (M, N).  M and N are zero-padded to multiples of 128
    (unmasked stores / no whole-array fallback) and the pad is sliced off afterwards."""
    M, K = x.shape
    N = w.shape[1]
    Mp = _round_up(M, 128)
    Np = _round_up(N, 128)
    xp = x if Mp == M else jnp.pad(x, ((0, Mp - M), (0, 0)))
    wp = w if Np == N else jnp.pad(w, ((0, 0), (0, Np - N)))
    bp = b if Np == N else jnp.pad(b, (0, Np - N))
    xb = xp.astype(jnp.bfloat16)
    wb = wp.astype(jnp.bfloat16)
    b2 = bp.reshape(1, Np).astype(jnp.float32)
    tm = next(t for t in (512, 256, 128) if Mp % t == 0)
    out = pl.pallas_call(
        _matmul_bias_kernel,
        out_shape=jax.ShapeDtypeStruct((Mp, Np), jnp.float32),
        grid=(Mp // tm,),
        in_specs=[
            pl.BlockSpec((tm, K), lambda i: (i, 0)),
            pl.BlockSpec((K, Np), lambda i: (0, 0)),
            pl.BlockSpec((1, Np), lambda i: (0, 0)),
        ],
        out_specs=pl.BlockSpec((tm, Np), lambda i: (i, 0)),
        compiler_params=pltpu.CompilerParams(dimension_semantics=("parallel",)),
    )(xb, wb, b2)
    return out[:M, :N]


# -----------------------------------------------------------------------------
# Fused per-batch kernel: 3x3 conv_out + attention (+ combine_heads + attn_out)
# -----------------------------------------------------------------------------
def _fused_attn_conv_kernel(q_ref, k_ref, v_ref, rel_ref, xp_ref, w9_ref, cb_ref,
                            wao_ref, bao_ref, conv_ref, attn_ref,
                            *, bb, fast_epilogue):
    Nh, L, dkh = q_ref.shape[1], q_ref.shape[2], q_ref.shape[3]
    dvh = v_ref.shape[3]
    dv = Nh * dvh
    Hp, Wp, C = xp_ref.shape[1], xp_ref.shape[2], xp_ref.shape[3]
    H, W = Hp - 2, Wp - 2

    for bi in range(bb):
        # ---------------- conv_out: 3x3 'same' conv on NHWC rows -----------------
        xp = xp_ref[bi]                                           # (H+2, W+2, C) bf16
        taps = [xp[i:i + H, j:j + W, :].reshape(H * W, C)
                for i in range(3) for j in range(3)]
        if fast_epilogue:
            # im2col in VMEM -> one K = 9*C MXU matmul
            cols = jnp.concatenate(taps, axis=-1)                 # (HW, 9C) bf16
            conv = jnp.dot(cols, w9_ref[...], preferred_element_type=jnp.float32)
        else:
            conv = jnp.zeros((H * W, conv_ref.shape[2]), jnp.float32)
            for t, tap in enumerate(taps):
                conv = conv + jnp.dot(tap, w9_ref[t * C:(t + 1) * C, :],
                                      preferred_element_type=jnp.float32)
        conv_ref[bi] = (conv + cb_ref[...]).astype(conv_ref.dtype)

        # ---------------- multi-head attention (bf16 MXU, f32 softmax) -----------
        q = q_ref[bi]                                             # (Nh, L, dkh) bf16, pre-scaled
        k = k_ref[bi]
        v = v_ref[bi]
        logits = jnp.einsum('nld,nmd->nlm', q, k,
                            preferred_element_type=jnp.float32)  # (Nh, L, L) f32
        logits = logits + rel_ref[bi].astype(jnp.float32)        # pre-summed qr_h + qr_w
        m = jnp.max(logits, axis=-1, keepdims=True)
        p = jnp.exp(logits - m)
        s = jnp.sum(p, axis=-1, keepdims=True)
        wgt = (p * pl.reciprocal(s, approx=True)).astype(jnp.bfloat16)
        out = jnp.einsum('nlm,nmd->nld', wgt, v,
                         preferred_element_type=jnp.float32)     # (Nh, L, dvh) f32

        if fast_epilogue:
            # combine_heads_2d in the reference is a *raw* row-major reshape of the
            # (Nh, HW, dvh) buffer into (Nh*dvh, HW); do it in VMEM and fuse the
            # attn_out 1x1 conv, storing a lane-dense channel-major (dv, HW) block.
            combined = out.reshape(dv, L).astype(jnp.bfloat16)   # (dv, L)
            attn = jnp.dot(wao_ref[...], combined,
                           preferred_element_type=jnp.float32)   # (dv, L)
            attn_ref[bi] = (attn + bao_ref[...]).astype(attn_ref.dtype)
        else:
            attn_ref[bi] = out.astype(attn_ref.dtype)


def fused_attn_conv(qf, kf, vf, rel, xpad, w9, conv_b, wao, bao, *, fast_epilogue, bb):
    B, Nh, L, dkh = qf.shape
    dvh = vf.shape[-1]
    dv = Nh * dvh
    Hp, Wp, C = xpad.shape[1], xpad.shape[2], xpad.shape[3]
    Oc = w9.shape[1]
    assert B % bb == 0
    grid = (B // bb,)

    if fast_epilogue:
        attn_shape = (B, dv, L)
        attn_spec = pl.BlockSpec((bb, dv, L), lambda i: (i, 0, 0))
    else:
        attn_shape = (B, Nh, L, dvh)
        attn_spec = pl.BlockSpec((bb, Nh, L, dvh), lambda i: (i, 0, 0, 0))

    kernel = functools.partial(_fused_attn_conv_kernel, bb=bb, fast_epilogue=fast_epilogue)
    return pl.pallas_call(
        kernel,
        out_shape=(jax.ShapeDtypeStruct((B, L, Oc), jnp.float32),
                   jax.ShapeDtypeStruct(attn_shape, jnp.float32)),
        grid=grid,
        in_specs=[
            pl.BlockSpec((bb, Nh, L, dkh), lambda i: (i, 0, 0, 0)),
            pl.BlockSpec((bb, Nh, L, dkh), lambda i: (i, 0, 0, 0)),
            pl.BlockSpec((bb, Nh, L, dvh), lambda i: (i, 0, 0, 0)),
            pl.BlockSpec((bb, Nh, L, L), lambda i: (i, 0, 0, 0)),
            pl.BlockSpec((bb, Hp, Wp, C), lambda i: (i, 0, 0, 0)),
            pl.BlockSpec((9 * C, Oc), lambda i: (0, 0)),
            pl.BlockSpec((1, Oc), lambda i: (0, 0)),
            pl.BlockSpec((dv, dv), lambda i: (0, 0)),
            pl.BlockSpec((dv, 1), lambda i: (0, 0)),
        ],
        out_specs=(pl.BlockSpec((bb, L, Oc), lambda i: (i, 0, 0)), attn_spec),
        compiler_params=pltpu.CompilerParams(dimension_semantics=("parallel",)),
    )(qf, kf, vf, rel, xpad, w9, conv_b, wao, bao)


# -----------------------------------------------------------------------------
# Plain-JAX glue (relative-position bookkeeping, raw-reshape head semantics)
# -----------------------------------------------------------------------------
def _rel_to_abs(x):
    B_, NhL, L, _ = x.shape
    x = jnp.concatenate([x, jnp.zeros((B_, NhL, L, 1), x.dtype)], axis=3)
    flat = x.reshape(B_, NhL, L * 2 * L)
    flat = jnp.concatenate([flat, jnp.zeros((B_, NhL, L - 1), x.dtype)], axis=2)
    final = flat.reshape(B_, NhL, L + 1, 2 * L - 1)
    return final[:, :, :L, L - 1:]


def _relative_logits_1d(q_split, rel_k, H_, W_, Nh, transpose_mask):
    # q_split: (B, Nh, H_, W_, dkh); rel_k: (2*image_size-1, dkh) with image_size == W_
    B_ = q_split.shape[0]
    M = rel_k.shape[0]
    assert M == 2 * W_ - 1, "rel encoding requires image_size == spatial size"
    # Tiny contraction (K=dkh, N=2W-1): keep in plain XLA.
    rl = jnp.einsum('bnxyd,md->bnxym', q_split, rel_k)
    rl = rl.reshape(-1, Nh * H_, W_, 2 * W_ - 1)
    rl = _rel_to_abs(rl)                                            # (B, Nh*H_, W_, W_)
    rl = rl.reshape(-1, Nh, H_, W_, W_)
    rl = jnp.broadcast_to(rl[:, :, :, None, :, :], (B_, Nh, H_, H_, W_, W_))
    rl = jnp.transpose(rl, transpose_mask)
    return rl.reshape(-1, Nh, H_ * W_, H_ * W_)


def aacn_vgg_forward(x, params, num_heads, dk, dv, fast_epilogue=True):
    B, C, H, W = x.shape
    Nh = num_heads
    dkh = dk // Nh
    dvh = dv // Nh
    L = H * W

    x_nhwc = jnp.transpose(x, (0, 2, 3, 1))                         # single NCHW->NHWC

    # ---- kqv_conv (1x1 conv) with the q-scale folded into weights/bias ----------
    x_rows = x_nhwc.reshape(B * L, C)
    kqv_w = params['kqv_w'].reshape(2 * dk + dv, C)
    scale = jnp.ones((2 * dk + dv,), jnp.float32).at[dk:2 * dk].set(dkh ** -0.5)
    kqv_w = (kqv_w * scale[:, None]).T                              # (C, 2dk+dv)
    kqv_b = params['kqv_b'] * scale
    kqv_rows = matmul_bias(x_rows, kqv_w, kqv_b)                    # (BHW, 2dk+dv) f32

    # split_heads_2d in the reference is a *raw* NCHW reshape, so build the NCHW view.
    kqv = kqv_rows.reshape(B, H, W, 2 * dk + dv).transpose(0, 3, 1, 2)
    k_ = kqv[:, :dk]
    q_ = kqv[:, dk:2 * dk]                                          # already scaled
    v_ = kqv[:, 2 * dk:]
    k_s = k_.reshape(B, Nh, H, W, dkh)
    q_s = q_.reshape(B, Nh, H, W, dkh)
    v_s = v_.reshape(B, Nh, H, W, dvh)

    # relative positional logits (canonical AACN formulation), pre-summed, bf16 to the kernel
    qr_w = _relative_logits_1d(q_s, params['rel_w'], H, W, Nh, (0, 1, 2, 4, 3, 5))
    qr_h = _relative_logits_1d(jnp.swapaxes(q_s, 2, 3), params['rel_h'], W, H, Nh,
                               (0, 1, 4, 2, 5, 3))
    rel = (qr_h + qr_w).astype(jnp.bfloat16)                        # (B, Nh, HW, HW)

    qf = q_s.reshape(B, Nh, L, dkh).astype(jnp.bfloat16)
    kf = k_s.reshape(B, Nh, L, dkh).astype(jnp.bfloat16)
    vf = v_s.reshape(B, Nh, L, dvh).astype(jnp.bfloat16)

    # conv_out operands (NHWC slab, PyTorch (O,C,3,3) weight -> (9C, O))
    xpad = jnp.pad(x_nhwc, ((0, 0), (1, 1), (1, 1), (0, 0))).astype(jnp.bfloat16)
    w9 = jnp.transpose(params['conv_out_w'], (2, 3, 1, 0)).reshape(9 * C, C - dv)
    w9 = w9.astype(jnp.bfloat16)
    conv_b = params['conv_out_b'].reshape(1, C - dv).astype(jnp.float32)
    wao = params['attn_out_w'].reshape(dv, dv).astype(jnp.bfloat16)  # (O, I)
    bao = params['attn_out_b'].reshape(dv, 1).astype(jnp.float32)

    bb = _batches_per_step(B)
    conv_rows, attn_o = fused_attn_conv(qf, kf, vf, rel, xpad, w9, conv_b, wao, bao,
                                        fast_epilogue=fast_epilogue, bb=bb)

    conv_nchw = jnp.transpose(conv_rows.reshape(B, H, W, C - dv), (0, 3, 1, 2))
    if fast_epilogue:
        attn_nchw = attn_o.reshape(B, dv, H, W)                     # already channel-major
    else:
        # Fallback epilogue: raw combine_heads reshape + separate attn_out matmul.
        combined = attn_o.reshape(B, dv, L)
        a_rows = jnp.transpose(combined, (0, 2, 1)).reshape(B * L, dv)
        a_w = params['attn_out_w'].reshape(dv, dv).T
        attn_rows = matmul_bias(a_rows, a_w, params['attn_out_b'])
        attn_nchw = jnp.transpose(attn_rows.reshape(B, L, dv), (0, 2, 1)).reshape(B, dv, H, W)

    return jnp.concatenate([conv_nchw, attn_nchw], axis=1)          # (B, C, H, W)


# -----------------------------------------------------------------------------
# Float64 numpy reference (mirrors the PyTorch forward semantics)
# -----------------------------------------------------------------------------
def reference_forward_np(x, params, num_heads, dk, dv):
    x = np.asarray(x, np.float64)
    p = {k: np.asarray(v, np.float64) for k, v in params.items()}
    B, C, H, W = x.shape
    Nh = num_heads
    dkh = dk // Nh
    dvh = dv // Nh

    def conv2d(inp, w, b, pad):
        O, _, kh, kw = w.shape
        hp = np.pad(inp, ((0, 0), (0, 0), (pad, pad), (pad, pad)))
        out = np.zeros((inp.shape[0], O, H, W))
        for i in range(kh):
            for j in range(kw):
                out += np.einsum('bchw,oc->bohw', hp[:, :, i:i + H, j:j + W], w[:, :, i, j])
        return out + b[None, :, None, None]

    def rel_to_abs(t):
        B_, NhL, L, _ = t.shape
        t = np.concatenate([t, np.zeros((B_, NhL, L, 1))], axis=3)
        flat = t.reshape(B_, NhL, L * 2 * L)
        flat = np.concatenate([flat, np.zeros((B_, NhL, L - 1))], axis=2)
        fin = flat.reshape(B_, NhL, L + 1, 2 * L - 1)
        return fin[:, :, :L, L - 1:]

    def rel_logits_1d(q, rel_k, H_, W_, mask):
        rl = np.einsum('bnxyd,md->bnxym', q, rel_k)
        rl = rl.reshape(-1, Nh * H_, W_, 2 * W_ - 1)
        rl = rel_to_abs(rl)
        rl = rl.reshape(-1, Nh, H_, W_, W_)
        rl = np.repeat(rl[:, :, :, None, :, :], H_, axis=3)
        rl = np.transpose(rl, mask)
        return rl.reshape(-1, Nh, H_ * W_, H_ * W_)

    kqv = conv2d(x, p['kqv_w'], p['kqv_b'], 0)
    k = kqv[:, :dk]
    q = kqv[:, dk:2 * dk] * dkh ** (-0.5)
    v = kqv[:, 2 * dk:]
    k = k.reshape(B, Nh, H, W, dkh)
    q = q.reshape(B, Nh, H, W, dkh)
    v = v.reshape(B, Nh, H, W, dvh)

    qr_w = rel_logits_1d(q, p['rel_w'], H, W, (0, 1, 2, 4, 3, 5))
    qr_h = rel_logits_1d(np.swapaxes(q, 2, 3), p['rel_h'], W, H, (0, 1, 4, 2, 5, 3))

    qf = q.reshape(B, Nh, H * W, dkh)
    kf = k.reshape(B, Nh, H * W, dkh)
    vf = v.reshape(B, Nh, H * W, dvh)
    logits = np.einsum('bnld,bnmd->bnlm', qf, kf) + qr_h + qr_w
    m = logits.max(axis=-1, keepdims=True)
    e = np.exp(logits - m)
    weights = e / e.sum(axis=-1, keepdims=True)
    attn = np.einsum('bnlm,bnmd->bnld', weights, vf)
    attn = attn.reshape(B, Nh, dvh, H, W).reshape(B, dv, H, W)
    attn = conv2d(attn, p['attn_out_w'], p['attn_out_b'], 0)
    conv = conv2d(x, p['conv_out_w'], p['conv_out_b'], 1)
    return np.concatenate([conv, attn], axis=1)


# -----------------------------------------------------------------------------
if __name__ == "__main__":
    B, C, H, W = 2, 64, 8, 8
    num_heads = 8
    image_size = H            # rel encodings sized for the spatial extent
    k_ratio = v_ratio = 0.25

    dk = math.floor(C * k_ratio / num_heads) * num_heads
    if dk / num_heads < 20:
        dk = num_heads * 20
    dv = math.floor(C * v_ratio / num_heads) * num_heads
    dkh = dk // num_heads
    dvh = dv // num_heads

    key = jax.random.PRNGKey(0)
    keys = jax.random.split(key, 9)
    x = jax.random.normal(keys[0], (B, C, H, W), jnp.float32)

    def init(kk, shape, scale):
        return jax.random.normal(kk, shape, jnp.float32) * scale

    params = {
        'conv_out_w': init(keys[1], (C - dv, C, 3, 3), 1.0 / math.sqrt(C * 9)),
        'conv_out_b': init(keys[2], (C - dv,), 0.05),
        'kqv_w':      init(keys[3], (2 * dk + dv, C, 1, 1), 1.0 / math.sqrt(C)),
        'kqv_b':      init(keys[4], (2 * dk + dv,), 0.05),
        'attn_out_w': init(keys[5], (dv, dv, 1, 1), 1.0 / math.sqrt(dv)),
        'attn_out_b': init(keys[6], (dv,), 0.05),
        'rel_h':      init(keys[7], (2 * image_size - 1, dkh), 1.0 / math.sqrt(dkh)),
        'rel_w':      init(keys[8], (2 * image_size - 1, dkh), 1.0 / math.sqrt(dkh)),
    }

    ref = reference_forward_np(x, params, num_heads, dk, dv)

    out = None
    for fast in (True, False):
        try:
            fwd = jax.jit(functools.partial(aacn_vgg_forward, num_heads=num_heads,
                                            dk=dk, dv=dv, fast_epilogue=fast))
            out = jax.block_until_ready(fwd(x, params))
            break
        except Exception:
            # Fused combine_heads/attn_out epilogue failed to lower on this toolchain;
            # retry with the proven unfused epilogue.
            if not fast:
                raise
            out = None

    assert out is not None and out.shape == (B, C, H, W), (None if out is None else out.shape)
    np.testing.assert_allclose(np.asarray(out, np.float64), ref, rtol=5e-2, atol=5e-2)
    print("KERNEL_OK")
</pallas_src>

<mosaic_0001>
module attributes {stable_mosaic.version = 11 : i64} {
  func.func @_matmul_bias_kernel(%arg0: i32, %arg1: memref<128x64xbf16, #tpu.memory_space<vmem>>, %arg2: memref<64x384xbf16, #tpu.memory_space<vmem>>, %arg3: memref<1x384xf32, #tpu.memory_space<vmem>>, %arg4: memref<128x384xf32, #tpu.memory_space<vmem>>) attributes {dimension_semantics = [#tpu.dimension_semantics<parallel>], iteration_bounds = array<i64: 1>, scalar_prefetch = 0 : i64, scratch_operands = 0 : i64, tpu.core_type = #tpu.core_type<tc>, window_params = [{transform_indices = @transform_0, window_bounds = array<i64: 128, 64>}, {pipeline_mode = #tpu.pipeline_mode<synchronous>, transform_indices = @transform_1, window_bounds = array<i64: 64, 384>}, {pipeline_mode = #tpu.pipeline_mode<synchronous>, transform_indices = @transform_2, window_bounds = array<i64: 1, 384>}, {transform_indices = @transform_3, window_bounds = array<i64: 128, 384>}]} {
    %c0 = arith.constant 0 : index
    %c0_0 = arith.constant 0 : index
    %0 = vector.load %arg1[%c0, %c0_0] : memref<128x64xbf16, #tpu.memory_space<vmem>>, vector<128x64xbf16>
    %c0_1 = arith.constant 0 : index
    %c0_2 = arith.constant 0 : index
    %1 = vector.load %arg2[%c0_1, %c0_2] : memref<64x384xbf16, #tpu.memory_space<vmem>>, vector<64x384xbf16>
    %cst = arith.constant dense<0.000000e+00> : vector<128x384xf32>
    %2 = tpu.matmul %0, %1, %cst {dimension_numbers = #tpu.dot_dimension_numbers<[1], [0], [0], [1], [0, 0, 1, 1], [], []>} : vector<128x64xbf16>, vector<64x384xbf16>, vector<128x384xf32> -> vector<128x384xf32>
    %c0_3 = arith.constant 0 : index
    %c0_4 = arith.constant 0 : index
    %3 = vector.load %arg3[%c0_3, %c0_4] : memref<1x384xf32, #tpu.memory_space<vmem>>, vector<1x384xf32>
    %4 = vector.broadcast %3 : vector<1x384xf32> to vector<128x384xf32>
    %5 = arith.addf %2, %4 : vector<128x384xf32>
    %c0_5 = arith.constant 0 : index
    %c0_6 = arith.constant 0 : index
    %6 = vector.load %arg4[%c0_5, %c0_6] : memref<128x384xf32, #tpu.memory_space<vmem>>, vector<128x384xf32>
    tpu.vector_store %arg4[%c0_5, %c0_6], %5 {strides = array<i32>} : memref<128x384xf32, #tpu.memory_space<vmem>>, vector<128x384xf32>,
    return
  }
  func.func @transform_0(%arg0: i32) -> (i32, i32) {
    %c0_i32 = arith.constant 0 : i32
    %c0_i32_0 = arith.constant 0 : i32
    return %arg0, %c0_i32 : i32, i32
  }
  func.func @transform_1(%arg0: i32) -> (i32, i32) {
    %c0_i32 = arith.constant 0 : i32
    %c0_i32_0 = arith.constant 0 : i32
    %c0_i32_1 = arith.constant 0 : i32
    return %c0_i32, %c0_i32_0 : i32, i32
  }
  func.func @transform_2(%arg0: i32) -> (i32, i32) {
    %c0_i32 = arith.constant 0 : i32
    %c0_i32_0 = arith.constant 0 : i32
    %c0_i32_1 = arith.constant 0 : i32
    return %c0_i32, %c0_i32_0 : i32, i32
  }
  func.func @transform_3(%arg0: i32) -> (i32, i32) {
    %c0_i32 = arith.constant 0 : i32
    %c0_i32_0 = arith.constant 0 : i32
    return %arg0, %c0_i32 : i32, i32
  }
}

module attributes {stable_mosaic.version = 11 : i64} {
  func.func @_fused_attn_conv_kernel(%arg0: i32, %arg1: memref<2x8x64x20xbf16, #tpu.memory_space<vmem>>, %arg2: memref<2x8x64x20xbf16, #tpu.memory_space<vmem>>, %arg3: memref<2x8x64x2xbf16, #tpu.memory_space<vmem>>, %arg4: memref<2x8x64x64xbf16, #tpu.memory_space<vmem>>, %arg5: memref<2x10x10x64xbf16, #tpu.memory_space<vmem>>, %arg6: memref<576x48xbf16, #tpu.memory_space<vmem>>, %arg7: memref<1x48xf32, #tpu.memory_space<vmem>>, %arg8: memref<16x16xbf16, #tpu.memory_space<vmem>>, %arg9: memref<16x1xf32, #tpu.memory_space<vmem>>, %arg10: memref<2x64x48xf32, #tpu.memory_space<vmem>>, %arg11: memref<2x16x64xf32, #tpu.memory_space<vmem>>) attributes {dimension_semantics = [#tpu.dimension_semantics<parallel>], iteration_bounds = array<i64: 1>, scalar_prefetch = 0 : i64, scratch_operands = 0 : i64, tpu.core_type = #tpu.core_type<tc>, window_params = [{transform_indices = @transform_0, window_bounds = array<i64: 2, 8, 64, 20>}, {transform_indices = @transform_1, window_bounds = array<i64: 2, 8, 64, 20>}, {transform_indices = @transform_2, window_bounds = array<i64: 2, 8, 64, 2>}, {transform_indices = @transform_3, window_bounds = array<i64: 2, 8, 64, 64>}, {transform_indices = @transform_4, window_bounds = array<i64: 2, 10, 10, 64>}, {pipeline_mode = #tpu.pipeline_mode<synchronous>, transform_indices = @transform_5, window_bounds = array<i64: 576, 48>}, {pipeline_mode = #tpu.pipeline_mode<synchronous>, transform_indices = @transform_6, window_bounds = array<i64: 1, 48>}, {pipeline_mode = #tpu.pipeline_mode<synchronous>, transform_indices = @transform_7, window_bounds = array<i64: 16, 16>}, {pipeline_mode = #tpu.pipeline_mode<synchronous>, transform_indices = @transform_8, window_bounds = array<i64: 16, 1>}, {transform_indices = @transform_9, window_bounds = array<i64: 2, 64, 48>}, {transform_indices = @transform_10, window_bounds = array<i64: 2, 16, 64>}]} {
    %c0 = arith.constant 0 : index
    %c0_0 = arith.constant 0 : index
    %c0_1 = arith.constant 0 : index
    %c0_2 = arith.constant 0 : index
    %0 = vector.load %arg5[%c0, %c0_0, %c0_1, %c0_2] : memref<2x10x10x64xbf16, #tpu.memory_space<vmem>>, vector<1x10x10x64xbf16>
    %1 = vector.shape_cast %0 : vector<1x10x10x64xbf16> to vector<10x10x64xbf16>
    %2 = vector.extract_strided_slice %1 {offsets = [0, 0, 0], sizes = [8, 8, 64], strides = [1, 1, 1]} : vector<10x10x64xbf16> to vector<8x8x64xbf16>
    %3 = vector.shape_cast %2 : vector<8x8x64xbf16> to vector<64x64xbf16>
    %4 = vector.extract_strided_slice %1 {offsets = [0, 1, 0], sizes = [8, 8, 64], strides = [1, 1, 1]} : vector<10x10x64xbf16> to vector<8x8x64xbf16>
    %5 = vector.shape_cast %4 : vector<8x8x64xbf16> to vector<64x64xbf16>
    %6 = vector.extract_strided_slice %1 {offsets = [0, 2, 0], sizes = [8, 8, 64], strides = [1, 1, 1]} : vector<10x10x64xbf16> to vector<8x8x64xbf16>
    %7 = vector.shape_cast %6 : vector<8x8x64xbf16> to vector<64x64xbf16>
    %8 = vector.extract_strided_slice %1 {offsets = [1, 0, 0], sizes = [8, 8, 64], strides = [1, 1, 1]} : vector<10x10x64xbf16> to vector<8x8x64xbf16>
    %9 = vector.shape_cast %8 : vector<8x8x64xbf16> to vector<64x64xbf16>
    %10 = vector.extract_strided_slice %1 {offsets = [1, 1, 0], sizes = [8, 8, 64], strides = [1, 1, 1]} : vector<10x10x64xbf16> to vector<8x8x64xbf16>
    %11 = vector.shape_cast %10 : vector<8x8x64xbf16> to vector<64x64xbf16>
    %12 = vector.extract_strided_slice %1 {offsets = [1, 2, 0], sizes = [8, 8, 64], strides = [1, 1, 1]} : vector<10x10x64xbf16> to vector<8x8x64xbf16>
    %13 = vector.shape_cast %12 : vector<8x8x64xbf16> to vector<64x64xbf16>
    %14 = vector.extract_strided_slice %1 {offsets = [2, 0, 0], sizes = [8, 8, 64], strides = [1, 1, 1]} : vector<10x10x64xbf16> to vector<8x8x64xbf16>
    %15 = vector.shape_cast %14 : vector<8x8x64xbf16> to vector<64x64xbf16>
    %16 = vector.extract_strided_slice %1 {offsets = [2, 1, 0], sizes = [8, 8, 64], strides = [1, 1, 1]} : vector<10x10x64xbf16> to vector<8x8x64xbf16>
    %17 = vector.shape_cast %16 : vector<8x8x64xbf16> to vector<64x64xbf16>
    %18 = vector.extract_strided_slice %1 {offsets = [2, 2, 0], sizes = [8, 8, 64], strides = [1, 1, 1]} : vector<10x10x64xbf16> to vector<8x8x64xbf16>
    %19 = vector.shape_cast %18 : vector<8x8x64xbf16> to vector<64x64xbf16>
    %20 = tpu.concatenate %3, %5, %7, %9, %11, %13, %15, %17, %19 in 1 : vector<64x64xbf16>, vector<64x64xbf16>, vector<64x64xbf16>, vector<64x64xbf16>, vector<64x64xbf16>, vector<64x64xbf16>, vector<64x64xbf16>, vector<64x64xbf16>, vector<64x64xbf16> -> vector<64x576xbf16>
    %c0_3 = arith.constant 0 : index
    %c0_4 = arith.constant 0 : index
    %21 = vector.load %arg6[%c0_3, %c0_4] : memref<576x48xbf16, #tpu.memory_space<vmem>>, vector<576x48xbf16>
    %cst = arith.constant dense<0.000000e+00> : vector<64x48xf32>
    %22 = tpu.matmul %20, %21, %cst {dimension_numbers = #tpu.dot_dimension_numbers<[1], [0], [0], [1], [0, 0, 1, 1], [], []>} : vector<64x576xbf16>, vector<576x48xbf16>, vector<64x48xf32> -> vector<64x48xf32>
    %c0_5 = arith.constant 0 : index
    %c0_6 = arith.constant 0 : index
    %23 = vector.load %arg7[%c0_5, %c0_6] : memref<1x48xf32, #tpu.memory_space<vmem>>, vector<1x48xf32>
    %24 = vector.broadcast %23 : vector<1x48xf32> to vector<64x48xf32>
    %25 = arith.addf %22, %24 : vector<64x48xf32>
    %c0_7 = arith.constant 0 : index
    %c0_8 = arith.constant 0 : index
    %c0_9 = arith.constant 0 : index
    %26 = vector.load %arg10[%c0_7, %c0_8, %c0_9] : memref<2x64x48xf32, #tpu.memory_space<vmem>>, vector<1x64x48xf32>
    %27 = vector.shape_cast %26 : vector<1x64x48xf32> to vector<64x48xf32>
    %28 = vector.shape_cast %25 : vector<64x48xf32> to vector<1x64x48xf32>
    tpu.vector_store %arg10[%c0_7, %c0_8, %c0_9], %28 {strides = array<i32>} : memref<2x64x48xf32, #tpu.memory_space<vmem>>, vector<1x64x48xf32>,
    %c0_10 = arith.constant 0 : index
    %c0_11 = arith.constant 0 : index
    %c0_12 = arith.constant 0 : index
    %c0_13 = arith.constant 0 : index
    %29 = vector.load %arg1[%c0_10, %c0_11, %c0_12, %c0_13] : memref<2x8x64x20xbf16, #tpu.memory_space<vmem>>, vector<1x8x64x20xbf16>
    %30 = vector.shape_cast %29 : vector<1x8x64x20xbf16> to vector<8x64x20xbf16>
    %c0_14 = arith.constant 0 : index
    %c0_15 = arith.constant 0 : index
    %c0_16 = arith.constant 0 : index
    %c0_17 = arith.constant 0 : index
    %31 = vector.load %arg2[%c0_14, %c0_15, %c0_16, %c0_17] : memref<2x8x64x20xbf16, #tpu.memory_space<vmem>>, vector<1x8x64x20xbf16>
    %32 = vector.shape_cast %31 : vector<1x8x64x20xbf16> to vector<8x64x20xbf16>
    %c0_18 = arith.constant 0 : index
    %c0_19 = arith.constant 0 : index
    %c0_20 = arith.constant 0 : index
    %c0_21 = arith.constant 0 : index
    %33 = vector.load %arg3[%c0_18, %c0_19, %c0_20, %c0_21] : memref<2x8x64x2xbf16, #tpu.memory_space<vmem>>, vector<1x8x64x2xbf16>
    %34 = vector.shape_cast %33 : vector<1x8x64x2xbf16> to vector<8x64x2xbf16>
    "tpu.trace_start"() <{level = 10 : i32, message = "nld,nmd->nlm"}> : () -> ()
    %cst_22 = arith.constant dense<0.000000e+00> : vector<8x64x64xf32>
    %35 = tpu.matmul %30, %32, %cst_22 {dimension_numbers = #tpu.dot_dimension_numbers<[2], [2], [1], [1], [0, 0, 0, 1, 1, 1], [0], [0]>} : vector<8x64x20xbf16>, vector<8x64x20xbf16>, vector<8x64x64xf32> -> vector<8x64x64xf32>
    "tpu.trace_stop"() : () -> ()
    %c0_23 = arith.constant 0 : index
    %c0_24 = arith.constant 0 : index
    %c0_25 = arith.constant 0 : index
    %c0_26 = arith.constant 0 : index
    %36 = vector.load %arg4[%c0_23, %c0_24, %c0_25, %c0_26] : memref<2x8x64x64xbf16, #tpu.memory_space<vmem>>, vector<1x8x64x64xbf16>
    %37 = vector.shape_cast %36 : vector<1x8x64x64xbf16> to vector<8x64x64xbf16>
    %38 = arith.extf %37 : vector<8x64x64xbf16> to vector<8x64x64xf32>
    %39 = arith.addf %35, %38 : vector<8x64x64xf32>
    %cst_27 = arith.constant dense<0xFF800000> : vector<8x64xf32>
    %40 = vector.multi_reduction <maximumf>, %39, %cst_27 [2] : vector<8x64x64xf32> to vector<8x64xf32>
    %41 = vector.shape_cast %40 : vector<8x64xf32> to vector<8x64x1xf32>
    %42 = vector.broadcast %41 : vector<8x64x1xf32> to vector<8x64x64xf32>
    %43 = arith.subf %39, %42 : vector<8x64x64xf32>
    %44 = math.exp %43 : vector<8x64x64xf32>
    %cst_28 = arith.constant dense<0.000000e+00> : vector<8x64xf32>
    %45 = vector.multi_reduction <add>, %44, %cst_28 [2] : vector<8x64x64xf32> to vector<8x64xf32>
    %46 = vector.shape_cast %45 : vector<8x64xf32> to vector<8x64x1xf32>
    %47 = tpu.reciprocal %46 {approx = true} : vector<8x64x1xf32> -> vector<8x64x1xf32>
    %48 = vector.broadcast %47 : vector<8x64x1xf32> to vector<8x64x64xf32>
    %49 = arith.mulf %44, %48 : vector<8x64x64xf32>
    %50 = arith.truncf %49 : vector<8x64x64xf32> to vector<8x64x64xbf16>
    "tpu.trace_start"() <{level = 10 : i32, message = "nlm,nmd->nld"}> : () -> ()
    %cst_29 = arith.constant dense<0.000000e+00> : vector<8x64x2xf32>
    %51 = tpu.matmul %50, %34, %cst_29 {dimension_numbers = #tpu.dot_dimension_numbers<[2], [1], [1], [2], [0, 0, 0, 1, 1, 2], [0], [0]>} : vector<8x64x64xbf16>, vector<8x64x2xbf16>, vector<8x64x2xf32> -> vector<8x64x2xf32>
    "tpu.trace_stop"() : () -> ()
    %52 = vector.shape_cast %51 : vector<8x64x2xf32> to vector<16x64xf32>
    %53 = arith.truncf %52 : vector<16x64xf32> to vector<16x64xbf16>
    %c0_30 = arith.constant 0 : index
    %c0_31 = arith.constant 0 : index
    %54 = vector.load %arg8[%c0_30, %c0_31] : memref<16x16xbf16, #tpu.memory_space<vmem>>, vector<16x16xbf16>
    %cst_32 = arith.constant dense<0.000000e+00> : vector<16x64xf32>
    %55 = tpu.matmul %54, %53, %cst_32 {dimension_numbers = #tpu.dot_dimension_numbers<[1], [0], [0], [1], [0, 0, 1, 1], [], []>} : vector<16x16xbf16>, vector<16x64xbf16>, vector<16x64xf32> -> vector<16x64xf32>
    %c0_33 = arith.constant 0 : index
    %c0_34 = arith.constant 0 : index
    %56 = vector.load %arg9[%c0_33, %c0_34] : memref<16x1xf32, #tpu.memory_space<vmem>>, vector<16x1xf32>
    %57 = vector.broadcast %56 : vector<16x1xf32> to vector<16x64xf32>
    %58 = arith.addf %55, %57 : vector<16x64xf32>
    %c0_35 = arith.constant 0 : index
    %c0_36 = arith.constant 0 : index
    %c0_37 = arith.constant 0 : index
    %59 = vector.load %arg11[%c0_35, %c0_36, %c0_37] : memref<2x16x64xf32, #tpu.memory_space<vmem>>, vector<1x16x64xf32>
    %60 = vector.shape_cast %59 : vector<1x16x64xf32> to vector<16x64xf32>
    %61 = vector.shape_cast %58 : vector<16x64xf32> to vector<1x16x64xf32>
    tpu.vector_store %arg11[%c0_35, %c0_36, %c0_37], %61 {strides = array<i32>} : memref<2x16x64xf32, #tpu.memory_space<vmem>>, vector<1x16x64xf32>,
    %c1 = arith.constant 1 : index
    %c0_38 = arith.constant 0 : index
    %c0_39 = arith.constant 0 : index
    %c0_40 = arith.constant 0 : index
    %62 = vector.load %arg5[%c1, %c0_38, %c0_39, %c0_40] : memref<2x10x10x64xbf16, #tpu.memory_space<vmem>>, vector<1x10x10x64xbf16>
    %63 = vector.shape_cast %62 : vector<1x10x10x64xbf16> to vector<10x10x64xbf16>
    %64 = vector.extract_strided_slice %63 {offsets = [0, 0, 0], sizes = [8, 8, 64], strides = [1, 1, 1]} : vector<10x10x64xbf16> to vector<8x8x64xbf16>
    %65 = vector.shape_cast %64 : vector<8x8x64xbf16> to vector<64x64xbf16>
    %66 = vector.extract_strided_slice %63 {offsets = [0, 1, 0], sizes = [8, 8, 64], strides = [1, 1, 1]} : vector<10x10x64xbf16> to vector<8x8x64xbf16>
    %67 = vector.shape_cast %66 : vector<8x8x64xbf16> to vector<64x64xbf16>
    %68 = vector.extract_strided_slice %63 {offsets = [0, 2, 0], sizes = [8, 8, 64], strides = [1, 1, 1]} : vector<10x10x64xbf16> to vector<8x8x64xbf16>
    %69 = vector.shape_cast %68 : vector<8x8x64xbf16> to vector<64x64xbf16>
    %70 = vector.extract_strided_slice %63 {offsets = [1, 0, 0], sizes = [8, 8, 64], strides = [1, 1, 1]} : vector<10x10x64xbf16> to vector<8x8x64xbf16>
    %71 = vector.shape_cast %70 : vector<8x8x64xbf16> to vector<64x64xbf16>
    %72 = vector.extract_strided_slice %63 {offsets = [1, 1, 0], sizes = [8, 8, 64], strides = [1, 1, 1]} : vector<10x10x64xbf16> to vector<8x8x64xbf16>
    %73 = vector.shape_cast %72 : vector<8x8x64xbf16> to vector<64x64xbf16>
    %74 = vector.extract_strided_slice %63 {offsets = [1, 2, 0], sizes = [8, 8, 64], strides = [1, 1, 1]} : vector<10x10x64xbf16> to vector<8x8x64xbf16>
    %75 = vector.shape_cast %74 : vector<8x8x64xbf16> to vector<64x64xbf16>
    %76 = vector.extract_strided_slice %63 {offsets = [2, 0, 0], sizes = [8, 8, 64], strides = [1, 1, 1]} : vector<10x10x64xbf16> to vector<8x8x64xbf16>
    %77 = vector.shape_cast %76 : vector<8x8x64xbf16> to vector<64x64xbf16>
    %78 = vector.extract_strided_slice %63 {offsets = [2, 1, 0], sizes = [8, 8, 64], strides = [1, 1, 1]} : vector<10x10x64xbf16> to vector<8x8x64xbf16>
    %79 = vector.shape_cast %78 : vector<8x8x64xbf16> to vector<64x64xbf16>
    %80 = vector.extract_strided_slice %63 {offsets = [2, 2, 0], sizes = [8, 8, 64], strides = [1, 1, 1]} : vector<10x10x64xbf16> to vector<8x8x64xbf16>
    %81 = vector.shape_cast %80 : vector<8x8x64xbf16> to vector<64x64xbf16>
    %82 = tpu.concatenate %65, %67, %69, %71, %73, %75, %77, %79, %81 in 1 : vector<64x64xbf16>, vector<64x64xbf16>, vector<64x64xbf16>, vector<64x64xbf16>, vector<64x64xbf16>, vector<64x64xbf16>, vector<64x64xbf16>, vector<64x64xbf16>, vector<64x64xbf16> -> vector<64x576xbf16>
    %c0_41 = arith.constant 0 : index
    %c0_42 = arith.constant 0 : index
    %83 = vector.load %arg6[%c0_41, %c0_42] : memref<576x48xbf16, #tpu.memory_space<vmem>>, vector<576x48xbf16>
    %cst_43 = arith.constant dense<0.000000e+00> : vector<64x48xf32>
    %84 = tpu.matmul %82, %83, %cst_43 {dimension_numbers = #tpu.dot_dimension_numbers<[1], [0], [0], [1], [0, 0, 1, 1], [], []>} : vector<64x576xbf16>, vector<576x48xbf16>, vector<64x48xf32> -> vector<64x48xf32>
    %c0_44 = arith.constant 0 : index
    %c0_45 = arith.constant 0 : index
    %85 = vector.load %arg7[%c0_44, %c0_45] : memref<1x48xf32, #tpu.memory_space<vmem>>, vector<1x48xf32>
    %86 = vector.broadcast %85 : vector<1x48xf32> to vector<64x48xf32>
    %87 = arith.addf %84, %86 : vector<64x48xf32>
    %c1_46 = arith.constant 1 : index
    %c0_47 = arith.constant 0 : index
    %c0_48 = arith.constant 0 : index
    %88 = vector.load %arg10[%c1_46, %c0_47, %c0_48] : memref<2x64x48xf32, #tpu.memory_space<vmem>>, vector<1x64x48xf32>
    %89 = vector.shape_cast %88 : vector<1x64x48xf32> to vector<64x48xf32>
    %90 = vector.shape_cast %87 : vector<64x48xf32> to vector<1x64x48xf32>
    tpu.vector_store %arg10[%c1_46, %c0_47, %c0_48], %90 {strides = array<i32>} : memref<2x64x48xf32, #tpu.memory_space<vmem>>, vector<1x64x48xf32>,
    %c1_49 = arith.constant 1 : index
    %c0_50 = arith.constant 0 : index
    %c0_51 = arith.constant 0 : index
    %c0_52 = arith.constant 0 : index
    %91 = vector.load %arg1[%c1_49, %c0_50, %c0_51, %c0_52] : memref<2x8x64x20xbf16, #tpu.memory_space<vmem>>, vector<1x8x64x20xbf16>
    %92 = vector.shape_cast %91 : vector<1x8x64x20xbf16> to vector<8x64x20xbf16>
    %c1_53 = arith.constant 1 : index
    %c0_54 = arith.constant 0 : index
    %c0_55 = arith.constant 0 : index
    %c0_56 = arith.constant 0 : index
    %93 = vector.load %arg2[%c1_53, %c0_54, %c0_55, %c0_56] : memref<2x8x64x20xbf16, #tpu.memory_space<vmem>>, vector<1x8x64x20xbf16>
    %94 = vector.shape_cast %93 : vector<1x8x64x20xbf16> to vector<8x64x20xbf16>
    %c1_57 = arith.constant 1 : index
    %c0_58 = arith.constant 0 : index
    %c0_59 = arith.constant 0 : index
    %c0_60 = arith.constant 0 : index
    %95 = vector.load %arg3[%c1_57, %c0_58, %c0_59, %c0_60] : memref<2x8x64x2xbf16, #tpu.memory_space<vmem>>, vector<1x8x64x2xbf16>
    %96 = vector.shape_cast %95 : vector<1x8x64x2xbf16> to vector<8x64x2xbf16>
    "tpu.trace_start"() <{level = 10 : i32, message = "nld,nmd->nlm"}> : () -> ()
    %cst_61 = arith.constant dense<0.000000e+00> : vector<8x64x64xf32>
    %97 = tpu.matmul %92, %94, %cst_61 {dimension_numbers = #tpu.dot_dimension_numbers<[2], [2], [1], [1], [0, 0, 0, 1, 1, 1], [0], [0]>} : vector<8x64x20xbf16>, vector<8x64x20xbf16>, vector<8x64x64xf32> -> vector<8x64x64xf32>
    "tpu.trace_stop"() : () -> ()
    %c1_62 = arith.constant 1 : index
    %c0_63 = arith.constant 0 : index
    %c0_64 = arith.constant 0 : index
    %c0_65 = arith.constant 0 : index
    %98 = vector.load %arg4[%c1_62, %c0_63, %c0_64, %c0_65] : memref<2x8x64x64xbf16, #tpu.memory_space<vmem>>, vector<1x8x64x64xbf16>
    %99 = vector.shape_cast %98 : vector<1x8x64x64xbf16> to vector<8x64x64xbf16>
    %100 = arith.extf %99 : vector<8x64x64xbf16> to vector<8x64x64xf32>
    %101 = arith.addf %97, %100 : vector<8x64x64xf32>
    %cst_66 = arith.constant dense<0xFF800000> : vector<8x64xf32>
    %102 = vector.multi_reduction <maximumf>, %101, %cst_66 [2] : vector<8x64x64xf32> to vector<8x64xf32>
    %103 = vector.shape_cast %102 : vector<8x64xf32> to vector<8x64x1xf32>
    %104 = vector.broadcast %103 : vector<8x64x1xf32> to vector<8x64x64xf32>
    %105 = arith.subf %101, %104 : vector<8x64x64xf32>
    %106 = math.exp %105 : vector<8x64x64xf32>
    %cst_67 = arith.constant dense<0.000000e+00> : vector<8x64xf32>
    %107 = vector.multi_reduction <add>, %106, %cst_67 [2] : vector<8x64x64xf32> to vector<8x64xf32>
    %108 = vector.shape_cast %107 : vector<8x64xf32> to vector<8x64x1xf32>
    %109 = tpu.reciprocal %108 {approx = true} : vector<8x64x1xf32> -> vector<8x64x1xf32>
    %110 = vector.broadcast %109 : vector<8x64x1xf32> to vector<8x64x64xf32>
    %111 = arith.mulf %106, %110 : vector<8x64x64xf32>
    %112 = arith.truncf %111 : vector<8x64x64xf32> to vector<8x64x64xbf16>
    "tpu.trace_start"() <{level = 10 : i32, message = "nlm,nmd->nld"}> : () -> ()
    %cst_68 = arith.constant dense<0.000000e+00> : vector<8x64x2xf32>
    %113 = tpu.matmul %112, %96, %cst_68 {dimension_numbers = #tpu.dot_dimension_numbers<[2], [1], [1], [2], [0, 0, 0, 1, 1, 2], [0], [0]>} : vector<8x64x64xbf16>, vector<8x64x2xbf16>, vector<8x64x2xf32> -> vector<8x64x2xf32>
    "tpu.trace_stop"() : () -> ()
    %114 = vector.shape_cast %113 : vector<8x64x2xf32> to vector<16x64xf32>
    %115 = arith.truncf %114 : vector<16x64xf32> to vector<16x64xbf16>
    %c0_69 = arith.constant 0 : index
    %c0_70 = arith.constant 0 : index
    %116 = vector.load %arg8[%c0_69, %c0_70] : memref<16x16xbf16, #tpu.memory_space<vmem>>, vector<16x16xbf16>
    %cst_71 = arith.constant dense<0.000000e+00> : vector<16x64xf32>
    %117 = tpu.matmul %116, %115, %cst_71 {dimension_numbers = #tpu.dot_dimension_numbers<[1], [0], [0], [1], [0, 0, 1, 1], [], []>} : vector<16x16xbf16>, vector<16x64xbf16>, vector<16x64xf32> -> vector<16x64xf32>
    %c0_72 = arith.constant 0 : index
    %c0_73 = arith.constant 0 : index
    %118 = vector.load %arg9[%c0_72, %c0_73] : memref<16x1xf32, #tpu.memory_space<vmem>>, vector<16x1xf32>
    %119 = vector.broadcast %118 : vector<16x1xf32> to vector<16x64xf32>
    %120 = arith.addf %117, %119 : vector<16x64xf32>
    %c1_74 = arith.constant 1 : index
    %c0_75 = arith.constant 0 : index
    %c0_76 = arith.constant 0 : index
    %121 = vector.load %arg11[%c1_74, %c0_75, %c0_76] : memref<2x16x64xf32, #tpu.memory_space<vmem>>, vector<1x16x64xf32>
    %122 = vector.shape_cast %121 : vector<1x16x64xf32> to vector<16x64xf32>
    %123 = vector.shape_cast %120 : vector<16x64xf32> to vector<1x16x64xf32>
    tpu.vector_store %arg11[%c1_74, %c0_75, %c0_76], %123 {strides = array<i32>} : memref<2x16x64xf32, #tpu.memory_space<vmem>>, vector<1x16x64xf32>,
    return
  }
  func.func @transform_0(%arg0: i32) -> (i32, i32, i32, i32) {
    %c0_i32 = arith.constant 0 : i32
    %c0_i32_0 = arith.constant 0 : i32
    %c0_i32_1 = arith.constant 0 : i32
    %c0_i32_2 = arith.constant 0 : i32
    return %arg0, %c0_i32, %c0_i32_0, %c0_i32_1 : i32, i32, i32, i32
  }
  func.func @transform_1(%arg0: i32) -> (i32, i32, i32, i32) {
    %c0_i32 = arith.constant 0 : i32
    %c0_i32_0 = arith.constant 0 : i32
    %c0_i32_1 = arith.constant 0 : i32
    %c0_i32_2 = arith.constant 0 : i32
    return %arg0, %c0_i32, %c0_i32_0, %c0_i32_1 : i32, i32, i32, i32
  }
  func.func @transform_2(%arg0: i32) -> (i32, i32, i32, i32) {
    %c0_i32 = arith.constant 0 : i32
    %c0_i32_0 = arith.constant 0 : i32
    %c0_i32_1 = arith.constant 0 : i32
    %c0_i32_2 = arith.constant 0 : i32
    return %arg0, %c0_i32, %c0_i32_0, %c0_i32_1 : i32, i32, i32, i32
  }
  func.func @transform_3(%arg0: i32) -> (i32, i32, i32, i32) {
    %c0_i32 = arith.constant 0 : i32
    %c0_i32_0 = arith.constant 0 : i32
    %c0_i32_1 = arith.constant 0 : i32
    %c0_i32_2 = arith.constant 0 : i32
    return %arg0, %c0_i32, %c0_i32_0, %c0_i32_1 : i32, i32, i32, i32
  }
  func.func @transform_4(%arg0: i32) -> (i32, i32, i32, i32) {
    %c0_i32 = arith.constant 0 : i32
    %c0_i32_0 = arith.constant 0 : i32
    %c0_i32_1 = arith.constant 0 : i32
    %c0_i32_2 = arith.constant 0 : i32
    return %arg0, %c0_i32, %c0_i32_0, %c0_i32_1 : i32, i32, i32, i32
  }
  func.func @transform_5(%arg0: i32) -> (i32, i32) {
    %c0_i32 = arith.constant 0 : i32
    %c0_i32_0 = arith.constant 0 : i32
    %c0_i32_1 = arith.constant 0 : i32
    return %c0_i32, %c0_i32_0 : i32, i32
  }
  func.func @transform_6(%arg0: i32) -> (i32, i32) {
    %c0_i32 = arith.constant 0 : i32
    %c0_i32_0 = arith.constant 0 : i32
    %c0_i32_1 = arith.constant 0 : i32
    return %c0_i32, %c0_i32_0 : i32, i32
  }
  func.func @transform_7(%arg0: i32) -> (i32, i32) {
    %c0_i32 = arith.constant 0 : i32
    %c0_i32_0 = arith.constant 0 : i32
    %c0_i32_1 = arith.constant 0 : i32
    return %c0_i32, %c0_i32_0 : i32, i32
  }
  func.func @transform_8(%arg0: i32) -> (i32, i32) {
    %c0_i32 = arith.constant 0 : i32
    %c0_i32_0 = arith.constant 0 : i32
    %c0_i32_1 = arith.constant 0 : i32
    return %c0_i32, %c0_i32_0 : i32, i32
  }
  func.func @transform_9(%arg0: i32) -> (i32, i32, i32) {
    %c0_i32 = arith.constant 0 : i32
    %c0_i32_0 = arith.constant 0 : i32
    %c0_i32_1 = arith.constant 0 : i32
    return %arg0, %c0_i32, %c0_i32_0 : i32, i32, i32
  }
  func.func @transform_10(%arg0: i32) -> (i32, i32, i32) {
    %c0_i32 = arith.constant 0 : i32
    %c0_i32_0 = arith.constant 0 : i32
    %c0_i32_1 = arith.constant 0 : i32
    return %arg0, %c0_i32, %c0_i32_0 : i32, i32, i32
  }
}

module attributes {stable_mosaic.version = 11 : i64} {
  func.func @_matmul_bias_kernel(%arg0: i32, %arg1: memref<128x64xbf16, #tpu.memory_space<vmem>>, %arg2: memref<64x384xbf16, #tpu.memory_space<vmem>>, %arg3: memref<1x384xf32, #tpu.memory_space<vmem>>, %arg4: memref<128x384xf32, #tpu.memory_space<vmem>>) attributes {dimension_semantics = [#tpu.dimension_semantics<parallel>], iteration_bounds = array<i64: 1>, scalar_prefetch = 0 : i64, scratch_operands = 0 : i64, tpu.core_type = #tpu.core_type<tc>, window_params = [{transform_indices = @transform_0, window_bounds = array<i64: 128, 64>}, {pipeline_mode = #tpu.pipeline_mode<synchronous>, transform_indices = @transform_1, window_bounds = array<i64: 64, 384>}, {pipeline_mode = #tpu.pipeline_mode<synchronous>, transform_indices = @transform_2, window_bounds = array<i64: 1, 384>}, {transform_indices = @transform_3, window_bounds = array<i64: 128, 384>}]} {
    %c0 = arith.constant 0 : index
    %c0_0 = arith.constant 0 : index
    %0 = vector.load %arg1[%c0, %c0_0] : memref<128x64xbf16, #tpu.memory_space<vmem>>, vector<128x64xbf16>
    %c0_1 = arith.constant 0 : index
    %c0_2 = arith.constant 0 : index
    %1 = vector.load %arg2[%c0_1, %c0_2] : memref<64x384xbf16, #tpu.memory_space<vmem>>, vector<64x384xbf16>
    %cst = arith.constant dense<0.000000e+00> : vector<128x384xf32>
    %2 = tpu.matmul %0, %1, %cst {dimension_numbers = #tpu.dot_dimension_numbers<[1], [0], [0], [1], [0, 0, 1, 1], [], []>} : vector<128x64xbf16>, vector<64x384xbf16>, vector<128x384xf32> -> vector<128x384xf32>
    %c0_3 = arith.constant 0 : index
    %c0_4 = arith.constant 0 : index
    %3 = vector.load %arg3[%c0_3, %c0_4] : memref<1x384xf32, #tpu.memory_space<vmem>>, vector<1x384xf32>
    %4 = vector.broadcast %3 : vector<1x384xf32> to vector<128x384xf32>
    %5 = arith.addf %2, %4 : vector<128x384xf32>
    %c0_5 = arith.constant 0 : index
    %c0_6 = arith.constant 0 : index
    %6 = vector.load %arg4[%c0_5, %c0_6] : memref<128x384xf32, #tpu.memory_space<vmem>>, vector<128x384xf32>
    tpu.vector_store %arg4[%c0_5, %c0_6], %5 {strides = array<i32>} : memref<128x384xf32, #tpu.memory_space<vmem>>, vector<128x384xf32>,
    return
  }
  func.func @transform_0(%arg0: i32) -> (i32, i32) {
    %c0_i32 = arith.constant 0 : i32
    %c0_i32_0 = arith.constant 0 : i32
    return %arg0, %c0_i32 : i32, i32
  }
  func.func @transform_1(%arg0: i32) -> (i32, i32) {
    %c0_i32 = arith.constant 0 : i32
    %c0_i32_0 = arith.constant 0 : i32
    %c0_i32_1 = arith.constant 0 : i32
    return %c0_i32, %c0_i32_0 : i32, i32
  }
  func.func @transform_2(%arg0: i32) -> (i32, i32) {
    %c0_i32 = arith.constant 0 : i32
    %c0_i32_0 = arith.constant 0 : i32
    %c0_i32_1 = arith.constant 0 : i32
    return %c0_i32, %c0_i32_0 : i32, i32
  }
  func.func @transform_3(%arg0: i32) -> (i32, i32) {
    %c0_i32 = arith.constant 0 : i32
    %c0_i32_0 = arith.constant 0 : i32
    return %arg0, %c0_i32 : i32, i32
  }
}

module attributes {stable_mosaic.version = 11 : i64} {
  func.func @_fused_attn_conv_kernel(%arg0: i32, %arg1: memref<2x8x64x20xbf16, #tpu.memory_space<vmem>>, %arg2: memref<2x8x64x20xbf16, #tpu.memory_space<vmem>>, %arg3: memref<2x8x64x2xbf16, #tpu.memory_space<vmem>>, %arg4: memref<2x8x64x64xbf16, #tpu.memory_space<vmem>>, %arg5: memref<2x10x10x64xbf16, #tpu.memory_space<vmem>>, %arg6: memref<576x48xbf16, #tpu.memory_space<vmem>>, %arg7: memref<1x48xf32, #tpu.memory_space<vmem>>, %arg8: memref<16x16xbf16, #tpu.memory_space<vmem>>, %arg9: memref<16x1xf32, #tpu.memory_space<vmem>>, %arg10: memref<2x64x48xf32, #tpu.memory_space<vmem>>, %arg11: memref<2x8x64x2xf32, #tpu.memory_space<vmem>>) attributes {dimension_semantics = [#tpu.dimension_semantics<parallel>], iteration_bounds = array<i64: 1>, scalar_prefetch = 0 : i64, scratch_operands = 0 : i64, tpu.core_type = #tpu.core_type<tc>, window_params = [{transform_indices = @transform_0, window_bounds = array<i64: 2, 8, 64, 20>}, {transform_indices = @transform_1, window_bounds = array<i64: 2, 8, 64, 20>}, {transform_indices = @transform_2, window_bounds = array<i64: 2, 8, 64, 2>}, {transform_indices = @transform_3, window_bounds = array<i64: 2, 8, 64, 64>}, {transform_indices = @transform_4, window_bounds = array<i64: 2, 10, 10, 64>}, {pipeline_mode = #tpu.pipeline_mode<synchronous>, transform_indices = @transform_5, window_bounds = array<i64: 576, 48>}, {pipeline_mode = #tpu.pipeline_mode<synchronous>, transform_indices = @transform_6, window_bounds = array<i64: 1, 48>}, {pipeline_mode = #tpu.pipeline_mode<synchronous>, transform_indices = @transform_7, window_bounds = array<i64: 16, 16>}, {pipeline_mode = #tpu.pipeline_mode<synchronous>, transform_indices = @transform_8, window_bounds = array<i64: 16, 1>}, {transform_indices = @transform_9, window_bounds = array<i64: 2, 64, 48>}, {transform_indices = @transform_10, window_bounds = array<i64: 2, 8, 64, 2>}]} {
    %c0 = arith.constant 0 : index
    %c0_0 = arith.constant 0 : index
    %c0_1 = arith.constant 0 : index
    %c0_2 = arith.constant 0 : index
    %0 = vector.load %arg5[%c0, %c0_0, %c0_1, %c0_2] : memref<2x10x10x64xbf16, #tpu.memory_space<vmem>>, vector<1x10x10x64xbf16>
    %1 = vector.shape_cast %0 : vector<1x10x10x64xbf16> to vector<10x10x64xbf16>
    %2 = vector.extract_strided_slice %1 {offsets = [0, 0, 0], sizes = [8, 8, 64], strides = [1, 1, 1]} : vector<10x10x64xbf16> to vector<8x8x64xbf16>
    %3 = vector.shape_cast %2 : vector<8x8x64xbf16> to vector<64x64xbf16>
    %4 = vector.extract_strided_slice %1 {offsets = [0, 1, 0], sizes = [8, 8, 64], strides = [1, 1, 1]} : vector<10x10x64xbf16> to vector<8x8x64xbf16>
    %5 = vector.shape_cast %4 : vector<8x8x64xbf16> to vector<64x64xbf16>
    %6 = vector.extract_strided_slice %1 {offsets = [0, 2, 0], sizes = [8, 8, 64], strides = [1, 1, 1]} : vector<10x10x64xbf16> to vector<8x8x64xbf16>
    %7 = vector.shape_cast %6 : vector<8x8x64xbf16> to vector<64x64xbf16>
    %8 = vector.extract_strided_slice %1 {offsets = [1, 0, 0], sizes = [8, 8, 64], strides = [1, 1, 1]} : vector<10x10x64xbf16> to vector<8x8x64xbf16>
    %9 = vector.shape_cast %8 : vector<8x8x64xbf16> to vector<64x64xbf16>
    %10 = vector.extract_strided_slice %1 {offsets = [1, 1, 0], sizes = [8, 8, 64], strides = [1, 1, 1]} : vector<10x10x64xbf16> to vector<8x8x64xbf16>
    %11 = vector.shape_cast %10 : vector<8x8x64xbf16> to vector<64x64xbf16>
    %12 = vector.extract_strided_slice %1 {offsets = [1, 2, 0], sizes = [8, 8, 64], strides = [1, 1, 1]} : vector<10x10x64xbf16> to vector<8x8x64xbf16>
    %13 = vector.shape_cast %12 : vector<8x8x64xbf16> to vector<64x64xbf16>
    %14 = vector.extract_strided_slice %1 {offsets = [2, 0, 0], sizes = [8, 8, 64], strides = [1, 1, 1]} : vector<10x10x64xbf16> to vector<8x8x64xbf16>
    %15 = vector.shape_cast %14 : vector<8x8x64xbf16> to vector<64x64xbf16>
    %16 = vector.extract_strided_slice %1 {offsets = [2, 1, 0], sizes = [8, 8, 64], strides = [1, 1, 1]} : vector<10x10x64xbf16> to vector<8x8x64xbf16>
    %17 = vector.shape_cast %16 : vector<8x8x64xbf16> to vector<64x64xbf16>
    %18 = vector.extract_strided_slice %1 {offsets = [2, 2, 0], sizes = [8, 8, 64], strides = [1, 1, 1]} : vector<10x10x64xbf16> to vector<8x8x64xbf16>
    %19 = vector.shape_cast %18 : vector<8x8x64xbf16> to vector<64x64xbf16>
    %cst = arith.constant 0.000000e+00 : f32
    %20 = vector.broadcast %cst : f32 to vector<64x48xf32>
    %c0_3 = arith.constant 0 : index
    %c0_4 = arith.constant 0 : index
    %21 = vector.load %arg6[%c0_3, %c0_4] : memref<576x48xbf16, #tpu.memory_space<vmem>>, vector<64x48xbf16>
    %cst_5 = arith.constant dense<0.000000e+00> : vector<64x48xf32>
    %22 = tpu.matmul %3, %21, %cst_5 {dimension_numbers = #tpu.dot_dimension_numbers<[1], [0], [0], [1], [0, 0, 1, 1], [], []>} : vector<64x64xbf16>, vector<64x48xbf16>, vector<64x48xf32> -> vector<64x48xf32>
    %23 = arith.addf %20, %22 : vector<64x48xf32>
    %c64 = arith.constant 64 : index
    %c0_6 = arith.constant 0 : index
    %24 = vector.load %arg6[%c64, %c0_6] : memref<576x48xbf16, #tpu.memory_space<vmem>>, vector<64x48xbf16>
    %cst_7 = arith.constant dense<0.000000e+00> : vector<64x48xf32>
    %25 = tpu.matmul %5, %24, %cst_7 {dimension_numbers = #tpu.dot_dimension_numbers<[1], [0], [0], [1], [0, 0, 1, 1], [], []>} : vector<64x64xbf16>, vector<64x48xbf16>, vector<64x48xf32> -> vector<64x48xf32>
    %26 = arith.addf %23, %25 : vector<64x48xf32>
    %c128 = arith.constant 128 : index
    %c0_8 = arith.constant 0 : index
    %27 = vector.load %arg6[%c128, %c0_8] : memref<576x48xbf16, #tpu.memory_space<vmem>>, vector<64x48xbf16>
    %cst_9 = arith.constant dense<0.000000e+00> : vector<64x48xf32>
    %28 = tpu.matmul %7, %27, %cst_9 {dimension_numbers = #tpu.dot_dimension_numbers<[1], [0], [0], [1], [0, 0, 1, 1], [], []>} : vector<64x64xbf16>, vector<64x48xbf16>, vector<64x48xf32> -> vector<64x48xf32>
    %29 = arith.addf %26, %28 : vector<64x48xf32>
    %c192 = arith.constant 192 : index
    %c0_10 = arith.constant 0 : index
    %30 = vector.load %arg6[%c192, %c0_10] : memref<576x48xbf16, #tpu.memory_space<vmem>>, vector<64x48xbf16>
    %cst_11 = arith.constant dense<0.000000e+00> : vector<64x48xf32>
    %31 = tpu.matmul %9, %30, %cst_11 {dimension_numbers = #tpu.dot_dimension_numbers<[1], [0], [0], [1], [0, 0, 1, 1], [], []>} : vector<64x64xbf16>, vector<64x48xbf16>, vector<64x48xf32> -> vector<64x48xf32>
    %32 = arith.addf %29, %31 : vector<64x48xf32>
    %c256 = arith.constant 256 : index
    %c0_12 = arith.constant 0 : index
    %33 = vector.load %arg6[%c256, %c0_12] : memref<576x48xbf16, #tpu.memory_space<vmem>>, vector<64x48xbf16>
    %cst_13 = arith.constant dense<0.000000e+00> : vector<64x48xf32>
    %34 = tpu.matmul %11, %33, %cst_13 {dimension_numbers = #tpu.dot_dimension_numbers<[1], [0], [0], [1], [0, 0, 1, 1], [], []>} : vector<64x64xbf16>, vector<64x48xbf16>, vector<64x48xf32> -> vector<64x48xf32>
    %35 = arith.addf %32, %34 : vector<64x48xf32>
    %c320 = arith.constant 320 : index
    %c0_14 = arith.constant 0 : index
    %36 = vector.load %arg6[%c320, %c0_14] : memref<576x48xbf16, #tpu.memory_space<vmem>>, vector<64x48xbf16>
    %cst_15 = arith.constant dense<0.000000e+00> : vector<64x48xf32>
    %37 = tpu.matmul %13, %36, %cst_15 {dimension_numbers = #tpu.dot_dimension_numbers<[1], [0], [0], [1], [0, 0, 1, 1], [], []>} : vector<64x64xbf16>, vector<64x48xbf16>, vector<64x48xf32> -> vector<64x48xf32>
    %38 = arith.addf %35, %37 : vector<64x48xf32>
    %c384 = arith.constant 384 : index
    %c0_16 = arith.constant 0 : index
    %39 = vector.load %arg6[%c384, %c0_16] : memref<576x48xbf16, #tpu.memory_space<vmem>>, vector<64x48xbf16>
    %cst_17 = arith.constant dense<0.000000e+00> : vector<64x48xf32>
    %40 = tpu.matmul %15, %39, %cst_17 {dimension_numbers = #tpu.dot_dimension_numbers<[1], [0], [0], [1], [0, 0, 1, 1], [], []>} : vector<64x64xbf16>, vector<64x48xbf16>, vector<64x48xf32> -> vector<64x48xf32>
    %41 = arith.addf %38, %40 : vector<64x48xf32>
    %c448 = arith.constant 448 : index
    %c0_18 = arith.constant 0 : index
    %42 = vector.load %arg6[%c448, %c0_18] : memref<576x48xbf16, #tpu.memory_space<vmem>>, vector<64x48xbf16>
    %cst_19 = arith.constant dense<0.000000e+00> : vector<64x48xf32>
    %43 = tpu.matmul %17, %42, %cst_19 {dimension_numbers = #tpu.dot_dimension_numbers<[1], [0], [0], [1], [0, 0, 1, 1], [], []>} : vector<64x64xbf16>, vector<64x48xbf16>, vector<64x48xf32> -> vector<64x48xf32>
    %44 = arith.addf %41, %43 : vector<64x48xf32>
    %c512 = arith.constant 512 : index
    %c0_20 = arith.constant 0 : index
    %45 = vector.load %arg6[%c512, %c0_20] : memref<576x48xbf16, #tpu.memory_space<vmem>>, vector<64x48xbf16>
    %cst_21 = arith.constant dense<0.000000e+00> : vector<64x48xf32>
    %46 = tpu.matmul %19, %45, %cst_21 {dimension_numbers = #tpu.dot_dimension_numbers<[1], [0], [0], [1], [0, 0, 1, 1], [], []>} : vector<64x64xbf16>, vector<64x48xbf16>, vector<64x48xf32> -> vector<64x48xf32>
    %47 = arith.addf %44, %46 : vector<64x48xf32>
    %c0_22 = arith.constant 0 : index
    %c0_23 = arith.constant 0 : index
    %48 = vector.load %arg7[%c0_22, %c0_23] : memref<1x48xf32, #tpu.memory_space<vmem>>, vector<1x48xf32>
    %49 = vector.broadcast %48 : vector<1x48xf32> to vector<64x48xf32>
    %50 = arith.addf %47, %49 : vector<64x48xf32>
    %c0_24 = arith.constant 0 : index
    %c0_25 = arith.constant 0 : index
    %c0_26 = arith.constant 0 : index
    %51 = vector.load %arg10[%c0_24, %c0_25, %c0_26] : memref<2x64x48xf32, #tpu.memory_space<vmem>>, vector<1x64x48xf32>
    %52 = vector.shape_cast %51 : vector<1x64x48xf32> to vector<64x48xf32>
    %53 = vector.shape_cast %50 : vector<64x48xf32> to vector<1x64x48xf32>
    tpu.vector_store %arg10[%c0_24, %c0_25, %c0_26], %53 {strides = array<i32>} : memref<2x64x48xf32, #tpu.memory_space<vmem>>, vector<1x64x48xf32>,
    %c0_27 = arith.constant 0 : index
    %c0_28 = arith.constant 0 : index
    %c0_29 = arith.constant 0 : index
    %c0_30 = arith.constant 0 : index
    %54 = vector.load %arg1[%c0_27, %c0_28, %c0_29, %c0_30] : memref<2x8x64x20xbf16, #tpu.memory_space<vmem>>, vector<1x8x64x20xbf16>
    %55 = vector.shape_cast %54 : vector<1x8x64x20xbf16> to vector<8x64x20xbf16>
    %c0_31 = arith.constant 0 : index
    %c0_32 = arith.constant 0 : index
    %c0_33 = arith.constant 0 : index
    %c0_34 = arith.constant 0 : index
    %56 = vector.load %arg2[%c0_31, %c0_32, %c0_33, %c0_34] : memref<2x8x64x20xbf16, #tpu.memory_space<vmem>>, vector<1x8x64x20xbf16>
    %57 = vector.shape_cast %56 : vector<1x8x64x20xbf16> to vector<8x64x20xbf16>
    %c0_35 = arith.constant 0 : index
    %c0_36 = arith.constant 0 : index
    %c0_37 = arith.constant 0 : index
    %c0_38 = arith.constant 0 : index
    %58 = vector.load %arg3[%c0_35, %c0_36, %c0_37, %c0_38] : memref<2x8x64x2xbf16, #tpu.memory_space<vmem>>, vector<1x8x64x2xbf16>
    %59 = vector.shape_cast %58 : vector<1x8x64x2xbf16> to vector<8x64x2xbf16>
    "tpu.trace_start"() <{level = 10 : i32, message = "nld,nmd->nlm"}> : () -> ()
    %cst_39 = arith.constant dense<0.000000e+00> : vector<8x64x64xf32>
    %60 = tpu.matmul %55, %57, %cst_39 {dimension_numbers = #tpu.dot_dimension_numbers<[2], [2], [1], [1], [0, 0, 0, 1, 1, 1], [0], [0]>} : vector<8x64x20xbf16>, vector<8x64x20xbf16>, vector<8x64x64xf32> -> vector<8x64x64xf32>
    "tpu.trace_stop"() : () -> ()
    %c0_40 = arith.constant 0 : index
    %c0_41 = arith.constant 0 : index
    %c0_42 = arith.constant 0 : index
    %c0_43 = arith.constant 0 : index
    %61 = vector.load %arg4[%c0_40, %c0_41, %c0_42, %c0_43] : memref<2x8x64x64xbf16, #tpu.memory_space<vmem>>, vector<1x8x64x64xbf16>
    %62 = vector.shape_cast %61 : vector<1x8x64x64xbf16> to vector<8x64x64xbf16>
    %63 = arith.extf %62 : vector<8x64x64xbf16> to vector<8x64x64xf32>
    %64 = arith.addf %60, %63 : vector<8x64x64xf32>
    %cst_44 = arith.constant dense<0xFF800000> : vector<8x64xf32>
    %65 = vector.multi_reduction <maximumf>, %64, %cst_44 [2] : vector<8x64x64xf32> to vector<8x64xf32>
    %66 = vector.shape_cast %65 : vector<8x64xf32> to vector<8x64x1xf32>
    %67 = vector.broadcast %66 : vector<8x64x1xf32> to vector<8x64x64xf32>
    %68 = arith.subf %64, %67 : vector<8x64x64xf32>
    %69 = math.exp %68 : vector<8x64x64xf32>
    %cst_45 = arith.constant dense<0.000000e+00> : vector<8x64xf32>
    %70 = vector.multi_reduction <add>, %69, %cst_45 [2] : vector<8x64x64xf32> to vector<8x64xf32>
    %71 = vector.shape_cast %70 : vector<8x64xf32> to vector<8x64x1xf32>
    %72 = tpu.reciprocal %71 {approx = true} : vector<8x64x1xf32> -> vector<8x64x1xf32>
    %73 = vector.broadcast %72 : vector<8x64x1xf32> to vector<8x64x64xf32>
    %74 = arith.mulf %69, %73 : vector<8x64x64xf32>
    %75 = arith.truncf %74 : vector<8x64x64xf32> to vector<8x64x64xbf16>
    "tpu.trace_start"() <{level = 10 : i32, message = "nlm,nmd->nld"}> : () -> ()
    %cst_46 = arith.constant dense<0.000000e+00> : vector<8x64x2xf32>
    %76 = tpu.matmul %75, %59, %cst_46 {dimension_numbers = #tpu.dot_dimension_numbers<[2], [1], [1], [2], [0, 0, 0, 1, 1, 2], [0], [0]>} : vector<8x64x64xbf16>, vector<8x64x2xbf16>, vector<8x64x2xf32> -> vector<8x64x2xf32>
    "tpu.trace_stop"() : () -> ()
    %c0_47 = arith.constant 0 : index
    %c0_48 = arith.constant 0 : index
    %c0_49 = arith.constant 0 : index
    %c0_50 = arith.constant 0 : index
    %77 = vector.load %arg11[%c0_47, %c0_48, %c0_49, %c0_50] : memref<2x8x64x2xf32, #tpu.memory_space<vmem>>, vector<1x8x64x2xf32>
    %78 = vector.shape_cast %77 : vector<1x8x64x2xf32> to vector<8x64x2xf32>
    %79 = vector.shape_cast %76 : vector<8x64x2xf32> to vector<1x8x64x2xf32>
    tpu.vector_store %arg11[%c0_47, %c0_48, %c0_49, %c0_50], %79 {strides = array<i32>} : memref<2x8x64x2xf32, #tpu.memory_space<vmem>>, vector<1x8x64x2xf32>,
    %c1 = arith.constant 1 : index
    %c0_51 = arith.constant 0 : index
    %c0_52 = arith.constant 0 : index
    %c0_53 = arith.constant 0 : index
    %80 = vector.load %arg5[%c1, %c0_51, %c0_52, %c0_53] : memref<2x10x10x64xbf16, #tpu.memory_space<vmem>>, vector<1x10x10x64xbf16>
    %81 = vector.shape_cast %80 : vector<1x10x10x64xbf16> to vector<10x10x64xbf16>
    %82 = vector.extract_strided_slice %81 {offsets = [0, 0, 0], sizes = [8, 8, 64], strides = [1, 1, 1]} : vector<10x10x64xbf16> to vector<8x8x64xbf16>
    %83 = vector.shape_cast %82 : vector<8x8x64xbf16> to vector<64x64xbf16>
    %84 = vector.extract_strided_slice %81 {offsets = [0, 1, 0], sizes = [8, 8, 64], strides = [1, 1, 1]} : vector<10x10x64xbf16> to vector<8x8x64xbf16>
    %85 = vector.shape_cast %84 : vector<8x8x64xbf16> to vector<64x64xbf16>
    %86 = vector.extract_strided_slice %81 {offsets = [0, 2, 0], sizes = [8, 8, 64], strides = [1, 1, 1]} : vector<10x10x64xbf16> to vector<8x8x64xbf16>
    %87 = vector.shape_cast %86 : vector<8x8x64xbf16> to vector<64x64xbf16>
    %88 = vector.extract_strided_slice %81 {offsets = [1, 0, 0], sizes = [8, 8, 64], strides = [1, 1, 1]} : vector<10x10x64xbf16> to vector<8x8x64xbf16>
    %89 = vector.shape_cast %88 : vector<8x8x64xbf16> to vector<64x64xbf16>
    %90 = vector.extract_strided_slice %81 {offsets = [1, 1, 0], sizes = [8, 8, 64], strides = [1, 1, 1]} : vector<10x10x64xbf16> to vector<8x8x64xbf16>
    %91 = vector.shape_cast %90 : vector<8x8x64xbf16> to vector<64x64xbf16>
    %92 = vector.extract_strided_slice %81 {offsets = [1, 2, 0], sizes = [8, 8, 64], strides = [1, 1, 1]} : vector<10x10x64xbf16> to vector<8x8x64xbf16>
    %93 = vector.shape_cast %92 : vector<8x8x64xbf16> to vector<64x64xbf16>
    %94 = vector.extract_strided_slice %81 {offsets = [2, 0, 0], sizes = [8, 8, 64], strides = [1, 1, 1]} : vector<10x10x64xbf16> to vector<8x8x64xbf16>
    %95 = vector.shape_cast %94 : vector<8x8x64xbf16> to vector<64x64xbf16>
    %96 = vector.extract_strided_slice %81 {offsets = [2, 1, 0], sizes = [8, 8, 64], strides = [1, 1, 1]} : vector<10x10x64xbf16> to vector<8x8x64xbf16>
    %97 = vector.shape_cast %96 : vector<8x8x64xbf16> to vector<64x64xbf16>
    %98 = vector.extract_strided_slice %81 {offsets = [2, 2, 0], sizes = [8, 8, 64], strides = [1, 1, 1]} : vector<10x10x64xbf16> to vector<8x8x64xbf16>
    %99 = vector.shape_cast %98 : vector<8x8x64xbf16> to vector<64x64xbf16>
    %cst_54 = arith.constant 0.000000e+00 : f32
    %100 = vector.broadcast %cst_54 : f32 to vector<64x48xf32>
    %c0_55 = arith.constant 0 : index
    %c0_56 = arith.constant 0 : index
    %101 = vector.load %arg6[%c0_55, %c0_56] : memref<576x48xbf16, #tpu.memory_space<vmem>>, vector<64x48xbf16>
    %cst_57 = arith.constant dense<0.000000e+00> : vector<64x48xf32>
    %102 = tpu.matmul %83, %101, %cst_57 {dimension_numbers = #tpu.dot_dimension_numbers<[1], [0], [0], [1], [0, 0, 1, 1], [], []>} : vector<64x64xbf16>, vector<64x48xbf16>, vector<64x48xf32> -> vector<64x48xf32>
    %103 = arith.addf %100, %102 : vector<64x48xf32>
    %c64_58 = arith.constant 64 : index
    %c0_59 = arith.constant 0 : index
    %104 = vector.load %arg6[%c64_58, %c0_59] : memref<576x48xbf16, #tpu.memory_space<vmem>>, vector<64x48xbf16>
    %cst_60 = arith.constant dense<0.000000e+00> : vector<64x48xf32>
    %105 = tpu.matmul %85, %104, %cst_60 {dimension_numbers = #tpu.dot_dimension_numbers<[1], [0], [0], [1], [0, 0, 1, 1], [], []>} : vector<64x64xbf16>, vector<64x48xbf16>, vector<64x48xf32> -> vector<64x48xf32>
    %106 = arith.addf %103, %105 : vector<64x48xf32>
    %c128_61 = arith.constant 128 : index
    %c0_62 = arith.constant 0 : index
    %107 = vector.load %arg6[%c128_61, %c0_62] : memref<576x48xbf16, #tpu.memory_space<vmem>>, vector<64x48xbf16>
    %cst_63 = arith.constant dense<0.000000e+00> : vector<64x48xf32>
    %108 = tpu.matmul %87, %107, %cst_63 {dimension_numbers = #tpu.dot_dimension_numbers<[1], [0], [0], [1], [0, 0, 1, 1], [], []>} : vector<64x64xbf16>, vector<64x48xbf16>, vector<64x48xf32> -> vector<64x48xf32>
    %109 = arith.addf %106, %108 : vector<64x48xf32>
    %c192_64 = arith.constant 192 : index
    %c0_65 = arith.constant 0 : index
    %110 = vector.load %arg6[%c192_64, %c0_65] : memref<576x48xbf16, #tpu.memory_space<vmem>>, vector<64x48xbf16>
    %cst_66 = arith.constant dense<0.000000e+00> : vector<64x48xf32>
    %111 = tpu.matmul %89, %110, %cst_66 {dimension_numbers = #tpu.dot_dimension_numbers<[1], [0], [0], [1], [0, 0, 1, 1], [], []>} : vector<64x64xbf16>, vector<64x48xbf16>, vector<64x48xf32> -> vector<64x48xf32>
    %112 = arith.addf %109, %111 : vector<64x48xf32>
    %c256_67 = arith.constant 256 : index
    %c0_68 = arith.constant 0 : index
    %113 = vector.load %arg6[%c256_67, %c0_68] : memref<576x48xbf16, #tpu.memory_space<vmem>>, vector<64x48xbf16>
    %cst_69 = arith.constant dense<0.000000e+00> : vector<64x48xf32>
    %114 = tpu.matmul %91, %113, %cst_69 {dimension_numbers = #tpu.dot_dimension_numbers<[1], [0], [0], [1], [0, 0, 1, 1], [], []>} : vector<64x64xbf16>, vector<64x48xbf16>, vector<64x48xf32> -> vector<64x48xf32>
    %115 = arith.addf %112, %114 : vector<64x48xf32>
    %c320_70 = arith.constant 320 : index
    %c0_71 = arith.constant 0 : index
    %116 = vector.load %arg6[%c320_70, %c0_71] : memref<576x48xbf16, #tpu.memory_space<vmem>>, vector<64x48xbf16>
    %cst_72 = arith.constant dense<0.000000e+00> : vector<64x48xf32>
    %117 = tpu.matmul %93, %116, %cst_72 {dimension_numbers = #tpu.dot_dimension_numbers<[1], [0], [0], [1], [0, 0, 1, 1], [], []>} : vector<64x64xbf16>, vector<64x48xbf16>, vector<64x48xf32> -> vector<64x48xf32>
    %118 = arith.addf %115, %117 : vector<64x48xf32>
    %c384_73 = arith.constant 384 : index
    %c0_74 = arith.constant 0 : index
    %119 = vector.load %arg6[%c384_73, %c0_74] : memref<576x48xbf16, #tpu.memory_space<vmem>>, vector<64x48xbf16>
    %cst_75 = arith.constant dense<0.000000e+00> : vector<64x48xf32>
    %120 = tpu.matmul %95, %119, %cst_75 {dimension_numbers = #tpu.dot_dimension_numbers<[1], [0], [0], [1], [0, 0, 1, 1], [], []>} : vector<64x64xbf16>, vector<64x48xbf16>, vector<64x48xf32> -> vector<64x48xf32>
    %121 = arith.addf %118, %120 : vector<64x48xf32>
    %c448_76 = arith.constant 448 : index
    %c0_77 = arith.constant 0 : index
    %122 = vector.load %arg6[%c448_76, %c0_77] : memref<576x48xbf16, #tpu.memory_space<vmem>>, vector<64x48xbf16>
    %cst_78 = arith.constant dense<0.000000e+00> : vector<64x48xf32>
    %123 = tpu.matmul %97, %122, %cst_78 {dimension_numbers = #tpu.dot_dimension_numbers<[1], [0], [0], [1], [0, 0, 1, 1], [], []>} : vector<64x64xbf16>, vector<64x48xbf16>, vector<64x48xf32> -> vector<64x48xf32>
    %124 = arith.addf %121, %123 : vector<64x48xf32>
    %c512_79 = arith.constant 512 : index
    %c0_80 = arith.constant 0 : index
    %125 = vector.load %arg6[%c512_79, %c0_80] : memref<576x48xbf16, #tpu.memory_space<vmem>>, vector<64x48xbf16>
    %cst_81 = arith.constant dense<0.000000e+00> : vector<64x48xf32>
    %126 = tpu.matmul %99, %125, %cst_81 {dimension_numbers = #tpu.dot_dimension_numbers<[1], [0], [0], [1], [0, 0, 1, 1], [], []>} : vector<64x64xbf16>, vector<64x48xbf16>, vector<64x48xf32> -> vector<64x48xf32>
    %127 = arith.addf %124, %126 : vector<64x48xf32>
    %c0_82 = arith.constant 0 : index
    %c0_83 = arith.constant 0 : index
    %128 = vector.load %arg7[%c0_82, %c0_83] : memref<1x48xf32, #tpu.memory_space<vmem>>, vector<1x48xf32>
    %129 = vector.broadcast %128 : vector<1x48xf32> to vector<64x48xf32>
    %130 = arith.addf %127, %129 : vector<64x48xf32>
    %c1_84 = arith.constant 1 : index
    %c0_85 = arith.constant 0 : index
    %c0_86 = arith.constant 0 : index
    %131 = vector.load %arg10[%c1_84, %c0_85, %c0_86] : memref<2x64x48xf32, #tpu.memory_space<vmem>>, vector<1x64x48xf32>
    %132 = vector.shape_cast %131 : vector<1x64x48xf32> to vector<64x48xf32>
    %133 = vector.shape_cast %130 : vector<64x48xf32> to vector<1x64x48xf32>
    tpu.vector_store %arg10[%c1_84, %c0_85, %c0_86], %133 {strides = array<i32>} : memref<2x64x48xf32, #tpu.memory_space<vmem>>, vector<1x64x48xf32>,
    %c1_87 = arith.constant 1 : index
    %c0_88 = arith.constant 0 : index
    %c0_89 = arith.constant 0 : index
    %c0_90 = arith.constant 0 : index
    %134 = vector.load %arg1[%c1_87, %c0_88, %c0_89, %c0_90] : memref<2x8x64x20xbf16, #tpu.memory_space<vmem>>, vector<1x8x64x20xbf16>
    %135 = vector.shape_cast %134 : vector<1x8x64x20xbf16> to vector<8x64x20xbf16>
    %c1_91 = arith.constant 1 : index
    %c0_92 = arith.constant 0 : index
    %c0_93 = arith.constant 0 : index
    %c0_94 = arith.constant 0 : index
    %136 = vector.load %arg2[%c1_91, %c0_92, %c0_93, %c0_94] : memref<2x8x64x20xbf16, #tpu.memory_space<vmem>>, vector<1x8x64x20xbf16>
    %137 = vector.shape_cast %136 : vector<1x8x64x20xbf16> to vector<8x64x20xbf16>
    %c1_95 = arith.constant 1 : index
    %c0_96 = arith.constant 0 : index
    %c0_97 = arith.constant 0 : index
    %c0_98 = arith.constant 0 : index
    %138 = vector.load %arg3[%c1_95, %c0_96, %c0_97, %c0_98] : memref<2x8x64x2xbf16, #tpu.memory_space<vmem>>, vector<1x8x64x2xbf16>
    %139 = vector.shape_cast %138 : vector<1x8x64x2xbf16> to vector<8x64x2xbf16>
    "tpu.trace_start"() <{level = 10 : i32, message = "nld,nmd->nlm"}> : () -> ()
    %cst_99 = arith.constant dense<0.000000e+00> : vector<8x64x64xf32>
    %140 = tpu.matmul %135, %137, %cst_99 {dimension_numbers = #tpu.dot_dimension_numbers<[2], [2], [1], [1], [0, 0, 0, 1, 1, 1], [0], [0]>} : vector<8x64x20xbf16>, vector<8x64x20xbf16>, vector<8x64x64xf32> -> vector<8x64x64xf32>
    "tpu.trace_stop"() : () -> ()
    %c1_100 = arith.constant 1 : index
    %c0_101 = arith.constant 0 : index
    %c0_102 = arith.constant 0 : index
    %c0_103 = arith.constant 0 : index
    %141 = vector.load %arg4[%c1_100, %c0_101, %c0_102, %c0_103] : memref<2x8x64x64xbf16, #tpu.memory_space<vmem>>, vector<1x8x64x64xbf16>
    %142 = vector.shape_cast %141 : vector<1x8x64x64xbf16> to vector<8x64x64xbf16>
    %143 = arith.extf %142 : vector<8x64x64xbf16> to vector<8x64x64xf32>
    %144 = arith.addf %140, %143 : vector<8x64x64xf32>
    %cst_104 = arith.constant dense<0xFF800000> : vector<8x64xf32>
    %145 = vector.multi_reduction <maximumf>, %144, %cst_104 [2] : vector<8x64x64xf32> to vector<8x64xf32>
    %146 = vector.shape_cast %145 : vector<8x64xf32> to vector<8x64x1xf32>
    %147 = vector.broadcast %146 : vector<8x64x1xf32> to vector<8x64x64xf32>
    %148 = arith.subf %144, %147 : vector<8x64x64xf32>
    %149 = math.exp %148 : vector<8x64x64xf32>
    %cst_105 = arith.constant dense<0.000000e+00> : vector<8x64xf32>
    %150 = vector.multi_reduction <add>, %149, %cst_105 [2] : vector<8x64x64xf32> to vector<8x64xf32>
    %151 = vector.shape_cast %150 : vector<8x64xf32> to vector<8x64x1xf32>
    %152 = tpu.reciprocal %151 {approx = true} : vector<8x64x1xf32> -> vector<8x64x1xf32>
    %153 = vector.broadcast %152 : vector<8x64x1xf32> to vector<8x64x64xf32>
    %154 = arith.mulf %149, %153 : vector<8x64x64xf32>
    %155 = arith.truncf %154 : vector<8x64x64xf32> to vector<8x64x64xbf16>
    "tpu.trace_start"() <{level = 10 : i32, message = "nlm,nmd->nld"}> : () -> ()
    %cst_106 = arith.constant dense<0.000000e+00> : vector<8x64x2xf32>
    %156 = tpu.matmul %155, %139, %cst_106 {dimension_numbers = #tpu.dot_dimension_numbers<[2], [1], [1], [2], [0, 0, 0, 1, 1, 2], [0], [0]>} : vector<8x64x64xbf16>, vector<8x64x2xbf16>, vector<8x64x2xf32> -> vector<8x64x2xf32>
    "tpu.trace_stop"() : () -> ()
    %c1_107 = arith.constant 1 : index
    %c0_108 = arith.constant 0 : index
    %c0_109 = arith.constant 0 : index
    %c0_110 = arith.constant 0 : index
    %157 = vector.load %arg11[%c1_107, %c0_108, %c0_109, %c0_110] : memref<2x8x64x2xf32, #tpu.memory_space<vmem>>, vector<1x8x64x2xf32>
    %158 = vector.shape_cast %157 : vector<1x8x64x2xf32> to vector<8x64x2xf32>
    %159 = vector.shape_cast %156 : vector<8x64x2xf32> to vector<1x8x64x2xf32>
    tpu.vector_store %arg11[%c1_107, %c0_108, %c0_109, %c0_110], %159 {strides = array<i32>} : memref<2x8x64x2xf32, #tpu.memory_space<vmem>>, vector<1x8x64x2xf32>,
    return
  }
  func.func @transform_0(%arg0: i32) -> (i32, i32, i32, i32) {
    %c0_i32 = arith.constant 0 : i32
    %c0_i32_0 = arith.constant 0 : i32
    %c0_i32_1 = arith.constant 0 : i32
    %c0_i32_2 = arith.constant 0 : i32
    return %arg0, %c0_i32, %c0_i32_0, %c0_i32_1 : i32, i32, i32, i32
  }
  func.func @transform_1(%arg0: i32) -> (i32, i32, i32, i32) {
    %c0_i32 = arith.constant 0 : i32
    %c0_i32_0 = arith.constant 0 : i32
    %c0_i32_1 = arith.constant 0 : i32
    %c0_i32_2 = arith.constant 0 : i32
    return %arg0, %c0_i32, %c0_i32_0, %c0_i32_1 : i32, i32, i32, i32
  }
  func.func @transform_2(%arg0: i32) -> (i32, i32, i32, i32) {
    %c0_i32 = arith.constant 0 : i32
    %c0_i32_0 = arith.constant 0 : i32
    %c0_i32_1 = arith.constant 0 : i32
    %c0_i32_2 = arith.constant 0 : i32
    return %arg0, %c0_i32, %c0_i32_0, %c0_i32_1 : i32, i32, i32, i32
  }
  func.func @transform_3(%arg0: i32) -> (i32, i32, i32, i32) {
    %c0_i32 = arith.constant 0 : i32
    %c0_i32_0 = arith.constant 0 : i32
    %c0_i32_1 = arith.constant 0 : i32
    %c0_i32_2 = arith.constant 0 : i32
    return %arg0, %c0_i32, %c0_i32_0, %c0_i32_1 : i32, i32, i32, i32
  }
  func.func @transform_4(%arg0: i32) -> (i32, i32, i32, i32) {
    %c0_i32 = arith.constant 0 : i32
    %c0_i32_0 = arith.constant 0 : i32
    %c0_i32_1 = arith.constant 0 : i32
    %c0_i32_2 = arith.constant 0 : i32
    return %arg0, %c0_i32, %c0_i32_0, %c0_i32_1 : i32, i32, i32, i32
  }
  func.func @transform_5(%arg0: i32) -> (i32, i32) {
    %c0_i32 = arith.constant 0 : i32
    %c0_i32_0 = arith.constant 0 : i32
    %c0_i32_1 = arith.constant 0 : i32
    return %c0_i32, %c0_i32_0 : i32, i32
  }
  func.func @transform_6(%arg0: i32) -> (i32, i32) {
    %c0_i32 = arith.constant 0 : i32
    %c0_i32_0 = arith.constant 0 : i32
    %c0_i32_1 = arith.constant 0 : i32
    return %c0_i32, %c0_i32_0 : i32, i32
  }
  func.func @transform_7(%arg0: i32) -> (i32, i32) {
    %c0_i32 = arith.constant 0 : i32
    %c0_i32_0 = arith.constant 0 : i32
    %c0_i32_1 = arith.constant 0 : i32
    return %c0_i32, %c0_i32_0 : i32, i32
  }
  func.func @transform_8(%arg0: i32) -> (i32, i32) {
    %c0_i32 = arith.constant 0 : i32
    %c0_i32_0 = arith.constant 0 : i32
    %c0_i32_1 = arith.constant 0 : i32
    return %c0_i32, %c0_i32_0 : i32, i32
  }
  func.func @transform_9(%arg0: i32) -> (i32, i32, i32) {
    %c0_i32 = arith.constant 0 : i32
    %c0_i32_0 = arith.constant 0 : i32
    %c0_i32_1 = arith.constant 0 : i32
    return %arg0, %c0_i32, %c0_i32_0 : i32, i32, i32
  }
  func.func @transform_10(%arg0: i32) -> (i32, i32, i32, i32) {
    %c0_i32 = arith.constant 0 : i32
    %c0_i32_0 = arith.constant 0 : i32
    %c0_i32_1 = arith.constant 0 : i32
    %c0_i32_2 = arith.constant 0 : i32
    return %arg0, %c0_i32, %c0_i32_0, %c0_i32_1 : i32, i32, i32, i32
  }
}

module attributes {stable_mosaic.version = 11 : i64} {
  func.func @_matmul_bias_kernel(%arg0: i32, %arg1: memref<128x16xbf16, #tpu.memory_space<vmem>>, %arg2: memref<16x128xbf16, #tpu.memory_space<vmem>>, %arg3: memref<1x128xf32, #tpu.memory_space<vmem>>, %arg4: memref<128x128xf32, #tpu.memory_space<vmem>>) attributes {dimension_semantics = [#tpu.dimension_semantics<parallel>], iteration_bounds = array<i64: 1>, scalar_prefetch = 0 : i64, scratch_operands = 0 : i64, tpu.core_type = #tpu.core_type<tc>, window_params = [{transform_indices = @transform_0, window_bounds = array<i64: 128, 16>}, {pipeline_mode = #tpu.pipeline_mode<synchronous>, transform_indices = @transform_1, window_bounds = array<i64: 16, 128>}, {pipeline_mode = #tpu.pipeline_mode<synchronous>, transform_indices = @transform_2, window_bounds = array<i64: 1, 128>}, {transform_indices = @transform_3, window_bounds = array<i64: 128, 128>}]} {
    %c0 = arith.constant 0 : index
    %c0_0 = arith.constant 0 : index
    %0 = vector.load %arg1[%c0, %c0_0] : memref<128x16xbf16, #tpu.memory_space<vmem>>, vector<128x16xbf16>
    %c0_1 = arith.constant 0 : index
    %c0_2 = arith.constant 0 : index
    %1 = vector.load %arg2[%c0_1, %c0_2] : memref<16x128xbf16, #tpu.memory_space<vmem>>, vector<16x128xbf16>
    %cst = arith.constant dense<0.000000e+00> : vector<128x128xf32>
    %2 = tpu.matmul %0, %1, %cst {dimension_numbers = #tpu.dot_dimension_numbers<[1], [0], [0], [1], [0, 0, 1, 1], [], []>} : vector<128x16xbf16>, vector<16x128xbf16>, vector<128x128xf32> -> vector<128x128xf32>
    %c0_3 = arith.constant 0 : index
    %c0_4 = arith.constant 0 : index
    %3 = vector.load %arg3[%c0_3, %c0_4] : memref<1x128xf32, #tpu.memory_space<vmem>>, vector<1x128xf32>
    %4 = vector.broadcast %3 : vector<1x128xf32> to vector<128x128xf32>
    %5 = arith.addf %2, %4 : vector<128x128xf32>
    %c0_5 = arith.constant 0 : index
    %c0_6 = arith.constant 0 : index
    %6 = vector.load %arg4[%c0_5, %c0_6] : memref<128x128xf32, #tpu.memory_space<vmem>>, vector<128x128xf32>
    tpu.vector_store %arg4[%c0_5, %c0_6], %5 {strides = array<i32>} : memref<128x128xf32, #tpu.memory_space<vmem>>, vector<128x128xf32>,
    return
  }
  func.func @transform_0(%arg0: i32) -> (i32, i32) {
    %c0_i32 = arith.constant 0 : i32
    %c0_i32_0 = arith.constant 0 : i32
    return %arg0, %c0_i32 : i32, i32
  }
  func.func @transform_1(%arg0: i32) -> (i32, i32) {
    %c0_i32 = arith.constant 0 : i32
    %c0_i32_0 = arith.constant 0 : i32
    %c0_i32_1 = arith.constant 0 : i32
    return %c0_i32, %c0_i32_0 : i32, i32
  }
  func.func @transform_2(%arg0: i32) -> (i32, i32) {
    %c0_i32 = arith.constant 0 : i32
    %c0_i32_0 = arith.constant 0 : i32
    %c0_i32_1 = arith.constant 0 : i32
    return %c0_i32, %c0_i32_0 : i32, i32
  }
  func.func @transform_3(%arg0: i32) -> (i32, i32) {
    %c0_i32 = arith.constant 0 : i32
    %c0_i32_0 = arith.constant 0 : i32
    return %arg0, %c0_i32 : i32, i32
  }
}

</mosaic_0001>

<llo_original>
// kernel: mul.9
$region0: #{mul.9}
  #allocation4 [shape = 's32[1]{0}', space=sflag, size = 0x4, scoped, tag = 'scoped memory for mul.9']
  %s0 = inlined_call_operand.hbm [shape: f32[336], index: 0, kind: input, shape index: {}]
  %s1 = inlined_call_operand.hbm [shape: f32[336], index: 1, kind: input, shape index: {}]
  %s2 = inlined_call_operand.vmem [shape: f32[336], index: 2, kind: output, shape index: {}]
  $region1: #{mul.9} parent=0
    #allocation0 [shape = 'u8[2048]{0}', space=vmem, size = 0x800, scoped, tag = 'operand span for operand 0']
    #allocation1 [shape = 's32[1]{0}', space=sflag, size = 0x4, scoped, tag = 'scoped memory for mul.9']
    #allocation2 [shape = 'u8[2048]{0}', space=vmem, size = 0x800, scoped, tag = 'operand span for operand 1']
    #allocation3 [shape = 's32[1]{0}', space=sflag, size = 0x4, scoped, tag = 'scoped memory for mul.9']
    %3 = vsyncpa [#allocation1], 0
    %4 = vsyncpa [#allocation3], 0
    %s6 = ssub.s32 64, 64
    %7 = vsyncadd [#allocation1], %s6
    %s9 = sshll.u32 [#allocation0], 4
    %s10 = int_to_ptr.vmem [resolvable:$true] %s9
    %12 = dma.hbm_to_vmem [thread:$0]  %s0, 64, %s10, [#allocation1]
    %s14 = ssub.s32 64, 64
    %15 = vsyncadd [#allocation3], %s14
    %s17 = sshll.u32 [#allocation2], 4
    %s18 = int_to_ptr.vmem [resolvable:$true] %s17
    %20 = dma.hbm_to_vmem [thread:$0]  %s1, 64, %s18, [#allocation3]
    %21 = dma.done [#allocation1], 64
    %22 = dma.done [#allocation3], 64
    %v23 = vld [vmem:[#allocation0] sm:$0x7]
    %v24 = vld [vmem:[#allocation2] sm:$0x7]
    %25 = xla_tuple %v23, %v24
    %26 = xla_tuple %25
    %v27 = vmul.f32 %v23, %v24
    %28 = xla_tuple %v27
    %29 = vst [vmem:[%s2] sm:$0xf] %v27
    %30 = vsyncpa [#allocation1], 1
    %31 = vsyncpa [#allocation3], 1

// kernel: aacn_vgg_forward.2
$region0: #{aacn_vgg_forward.2}
  #allocation0 [shape = 'u32[]', space=smem, size = 0x4, offset = 0x4, fixed_abs, tag = 'smem constant byte address 0x4 - core index']
  #allocation1 [shape = 'u32[144,128]{1,0:T(1,128)}', space=vmem, size = 0x12000, scoped, tag = 'internal scratch']
  %s0 = inlined_call_operand.vmem [shape: bf16[128,64], index: 0, kind: input, shape index: {}]
  %s1 = inlined_call_operand.vmem [shape: bf16[64,384], index: 1, kind: input, shape index: {}]
  %s2 = inlined_call_operand.vmem [shape: f32[1,384], index: 2, kind: input, shape index: {}]
  %s3 = inlined_call_operand.vmem [shape: f32[128,384], index: 3, kind: output, shape index: {}]
  %s4 = sld [smem:[#allocation0]]
  $region22: #{aacn_vgg_forward.2} parent=0
    _
  %s6 = ssub.s32 1, %s4
  %s7 = scalar_select 0, %s6, %s4
  // Predicated region
  $region2: #{aacn_vgg_forward.2} parent=0 // pred_check
    _
  $region3: #{aacn_vgg_forward.2} parent=0 // pred_check_branch
    %9 = sbr.rel (0) target = $region5
  $region4: #{aacn_vgg_forward.2} parent=0 // pred_region
    _
  $region5: #{aacn_vgg_forward.2} parent=0 // pred_fallthru
    _
  // Predicated region
  $region6: #{aacn_vgg_forward.2} parent=0 // pred_check
    _
  $region7: #{aacn_vgg_forward.2} parent=0 // pred_check_branch
    %11 = sbr.rel (0) target = $region9
  $region8: #{aacn_vgg_forward.2} parent=0 // pred_region
    _
  $region9: #{aacn_vgg_forward.2} parent=0 // pred_fallthru
    _
  // Predicated region
  $region10: #{aacn_vgg_forward.2} parent=0 // pred_check
    _
  $region11: #{aacn_vgg_forward.2} parent=0 // pred_check_branch
    %13 = sbr.rel (0) target = $region13
  $region12: #{aacn_vgg_forward.2} parent=0 // pred_region
    _
  $region13: #{aacn_vgg_forward.2} parent=0 // pred_fallthru
    _
  %v15 = vld [vmem:[%s0] sm:$0xf]
  %v16 = vld [vmem:[%s0 + $0x4] sm:$0xf]
  %v17 = vld [vmem:[%s0 + $0x8] sm:$0xf]
  %v18 = vld [vmem:[%s0 + $0xc] sm:$0xf]
  %v19 = vld [vmem:[%s0 + $0x10] sm:$0xf]
  %v20 = vld [vmem:[%s0 + $0x14] sm:$0xf]
  %v21 = vld [vmem:[%s0 + $0x18] sm:$0xf]
  %v22 = vld [vmem:[%s0 + $0x1c] sm:$0xf]
  %v23 = vld [vmem:[%s0 + $0x20] sm:$0xf]
  %v24 = vld [vmem:[%s0 + $0x24] sm:$0xf]
  %v25 = vld [vmem:[%s0 + $0x28] sm:$0xf]
  %v26 = vld [vmem:[%s0 + $0x2c] sm:$0xf]
  %v27 = vld [vmem:[%s0 + $0x30] sm:$0xf]
  %v28 = vld [vmem:[%s0 + $0x34] sm:$0xf]
  %v29 = vld [vmem:[%s0 + $0x38] sm:$0xf]
  %v30 = vld [vmem:[%s0 + $0x3c] sm:$0xf]
  %v31 = vld [vmem:[%s1] sm:$0xff]
  %v32 = vld [vmem:[%s1 + $0x8] sm:$0xf]
  %v33 = vld [vmem:[%s1 + $0xc] sm:$0xff]
  %v34 = vld [vmem:[%s1 + $0x14] sm:$0xf]
  %v35 = vld [vmem:[%s1 + $0x18] sm:$0xff]
  %v36 = vld [vmem:[%s1 + $0x20] sm:$0xf]
  %v37 = vld [vmem:[%s1 + $0x24] sm:$0xff]
  %v38 = vld [vmem:[%s1 + $0x2c] sm:$0xf]
  %v39 = vld [vmem:[%s1 + $0x30] sm:$0xff]
  %v40 = vld [vmem:[%s1 + $0x38] sm:$0xf]
  %v41 = vld [vmem:[%s1 + $0x3c] sm:$0xff]
  %v42 = vld [vmem:[%s1 + $0x44] sm:$0xf]
  %v43 = vld [vmem:[%s1 + $0x48] sm:$0xff]
  %v44 = vld [vmem:[%s1 + $0x50] sm:$0xf]
  %v45 = vld [vmem:[%s1 + $0x54] sm:$0xff]
  %v46 = vld [vmem:[%s1 + $0x5c] sm:$0xf]
  %v47 = vld [vmem:[%s2] sm:$0x7]
  %v49 = vlaneseq
  %v50 = vshrl.u32 %v49, 7
  %v51 = vsub.s32 0, %v50
  %v52 = vrot.slane %v47, %v51
  %v53 = vlaneseq
  %v54 = vshrl.u32 %v53, 7
  %v55 = vsub.s32 1, %v54
  %v56 = vrot.slane %v47, %v55
  %v57 = vlaneseq
  %v58 = vshrl.u32 %v57, 7
  %v59 = vsub.s32 2, %v58
  %v60 = vrot.slane %v47, %v59
  %v80 = vunpack.c.l.b16 %v15
  %v81 = vunpack.c.l.b16 %v16
  %v82 = vunpack.c.l.b16 %v17
  %v83 = vunpack.c.l.b16 %v18
  %v84 = vunpack.c.l.b16 %v19
  %v85 = vunpack.c.l.b16 %v20
  %v86 = vunpack.c.l.b16 %v21
  %v87 = vunpack.c.l.b16 %v22
  %v88 = vunpack.c.l.b16 %v23
  %v89 = vunpack.c.l.b16 %v24
  %v90 = vunpack.c.l.b16 %v25
  %v91 = vunpack.c.l.b16 %v26
  %v92 = vunpack.c.l.b16 %v27
  %v93 = vunpack.c.l.b16 %v28
  %v94 = vunpack.c.l.b16 %v29
  %v95 = vunpack.c.l.b16 %v30
  %v96 = vpack.c.b16 %v81, %v80
  %v97 = vpack.c.b16 %v83, %v82
  %v98 = vpack.c.b16 %v85, %v84
  %v99 = vpack.c.b16 %v87, %v86
  %v100 = vpack.c.b16 %v89, %v88
  %v101 = vpack.c.b16 %v91, %v90
  %v102 = vpack.c.b16 %v93, %v92
  %v103 = vpack.c.b16 %v95, %v94
  %v120 = vunpack.c.l.b16 %v31
  %v121 = vunpack.c.h.b16 %v31
  %v122 = vunpack.c.l.b16 %v32
  %v123 = vunpack.c.l.b16 %v33
  %v124 = vunpack.c.h.b16 %v33
  %v125 = vunpack.c.l.b16 %v34
  %v126 = vunpack.c.l.b16 %v35
  %v127 = vunpack.c.h.b16 %v35
  %v128 = vunpack.c.l.b16 %v36
  %v129 = vunpack.c.l.b16 %v37
  %v130 = vunpack.c.h.b16 %v37
  %v131 = vunpack.c.l.b16 %v38
  %v132 = vunpack.c.l.b16 %v39
  %v133 = vunpack.c.h.b16 %v39
  %v134 = vunpack.c.l.b16 %v40
  %v135 = vunpack.c.l.b16 %v41
  %v136 = vunpack.c.h.b16 %v41
  %v137 = vunpack.c.l.b16 %v42
  %v138 = vunpack.c.l.b16 %v43
  %v139 = vunpack.c.h.b16 %v43
  %v140 = vunpack.c.l.b16 %v44
  %v141 = vunpack.c.l.b16 %v45
  %v142 = vunpack.c.h.b16 %v45
  %v143 = vunpack.c.l.b16 %v46
  %v144 = vpack.c.b16 %v123, %v120
  %v145 = vpack.c.b16 %v124, %v121
  %v146 = vpack.c.b16 %v125, %v122
  %v147 = vpack.c.b16 %v129, %v126
  %v148 = vpack.c.b16 %v130, %v127
  %v149 = vpack.c.b16 %v131, %v128
  %v150 = vpack.c.b16 %v135, %v132
  %v151 = vpack.c.b16 %v136, %v133
  %v152 = vpack.c.b16 %v137, %v134
  %v153 = vpack.c.b16 %v141, %v138
  %v154 = vpack.c.b16 %v142, %v139
  %v155 = vpack.c.b16 %v143, %v140
  %vm168 = vcmask 523264
  %v170 = vsel %vm168, %v96, 0
  %v173 = vsel %vm168, %v97, 0
  %v176 = vsel %vm168, %v98, 0
  %v179 = vsel %vm168, %v99, 0
  %v182 = vsel %vm168, %v100, 0
  %v185 = vsel %vm168, %v101, 0
  %v188 = vsel %vm168, %v102, 0
  %v191 = vsel %vm168, %v103, 0
  %193 = vmatprep.subr.bf16.mxu0 %v145
  %194 = vmatpush1.bf16.msra.mxu0 %v144
  %195 = vmatprep.subr.bf16.mxu0 %v148
  %196 = vmatpush1.bf16.msra.mxu0 %v147
  %197 = vmatprep.subr.bf16.mxu0 %v151
  %198 = vmatpush1.bf16.msra.mxu0 %v150
  %199 = vmatprep.subr.bf16.mxu0 %v154
  %200 = vmatpush1.bf16.msra.mxu0 %v153
  %201 = vmatprep.subr.bf16.mxu0 0
  %202 = vmatpush1.bf16.msra.mxu0 0
  %203 = vmatprep.subr.bf16.mxu0 0
  %204 = vmatpush1.bf16.msra.mxu0 0
  %205 = vmatprep.subr.bf16.mxu0 0
  %206 = vmatpush1.bf16.msra.mxu0 0
  %207 = vmatprep.subr.bf16.mxu0 0
  %208 = vmatpush1.bf16.msra.mxu0 0
  %209 = vmatprep.subr.bf16.mxu0 0
  %210 = vmatpush1.bf16.msra.mxu0 0
  %211 = vmatprep.subr.bf16.mxu0 0
  %212 = vmatpush1.bf16.msra.mxu0 0
  %213 = vmatprep.subr.bf16.mxu0 0
  %214 = vmatpush1.bf16.msra.mxu0 0
  %215 = vmatprep.subr.bf16.mxu0 0
  %216 = vmatpush1.bf16.msra.mxu0 0
  %217 = vmatprep.subr.bf16.mxu0 0
  %218 = vmatpush1.bf16.msra.mxu0 0
  %219 = vmatprep.subr.bf16.mxu0 0
  %220 = vmatpush1.bf16.msra.mxu0 0
  %221 = vmatprep.subr.bf16.mxu0 0
  %222 = vmatpush1.bf16.msra.mxu0 0
  %223 = vmatprep.subr.bf16.mxu0 0
  %224 = vmatpush1.bf16.msra.mxu0 0
  %225 = vmatprep.mubr.bf16.mxu0 0
  %226 = vmatmul.mubr.bf16.gmra.mrb[0].mxu0 %v170
  %v227 = vpop.f32.mrb[0].mxu0
  %v228 = vadd.f32 %v52, %v227
  %v229 = vpop.f32.mrb[0].mxu0
  %v230 = vadd.f32 %v56, %v229
  %v231 = vpop.f32.mrb[0].mxu0
  %v232 = vadd.f32 %v52, %v231
  %v233 = vpop.f32.mrb[0].mxu0
  %v234 = vadd.f32 %v56, %v233
  %235 = vmatprep.mubr.bf16.mxu0 0
  %236 = vmatmul.mubr.bf16.gmra.mrb[0].mxu0 %v173
  %v237 = vpop.f32.mrb[0].mxu0
  %v238 = vadd.f32 %v52, %v237
  %v239 = vpop.f32.mrb[0].mxu0
  %v240 = vadd.f32 %v56, %v239
  %v241 = vpop.f32.mrb[0].mxu0
  %v242 = vadd.f32 %v52, %v241
  %v243 = vpop.f32.mrb[0].mxu0
  %v244 = vadd.f32 %v56, %v243
  %245 = vmatprep.mubr.bf16.mxu0 0
  %246 = vmatmul.mubr.bf16.gmra.mrb[0].mxu0 %v176
  %v247 = vpop.f32.mrb[0].mxu0
  %v248 = vadd.f32 %v52, %v247
  %v249 = vpop.f32.mrb[0].mxu0
  %v250 = vadd.f32 %v56, %v249
  %v251 = vpop.f32.mrb[0].mxu0
  %v252 = vadd.f32 %v52, %v251
  %v253 = vpop.f32.mrb[0].mxu0
  %v254 = vadd.f32 %v56, %v253
  %255 = vmatprep.mubr.bf16.mxu0 0
  %256 = vmatmul.mubr.bf16.gmra.mrb[0].mxu0 %v179
  %v257 = vpop.f32.mrb[0].mxu0
  %v258 = vadd.f32 %v52, %v257
  %v259 = vpop.f32.mrb[0].mxu0
  %v260 = vadd.f32 %v56, %v259
  %v261 = vpop.f32.mrb[0].mxu0
  %v262 = vadd.f32 %v52, %v261
  %v263 = vpop.f32.mrb[0].mxu0
  %v264 = vadd.f32 %v56, %v263
  %265 = vmatprep.mubr.bf16.mxu0 0
  %266 = vmatmul.mubr.bf16.gmra.mrb[0].mxu0 %v182
  %v267 = vpop.f32.mrb[0].mxu0
  %v268 = vadd.f32 %v52, %v267
  %v269 = vpop.f32.mrb[0].mxu0
  %v270 = vadd.f32 %v56, %v269
  %v271 = vpop.f32.mrb[0].mxu0
  %v272 = vadd.f32 %v52, %v271
  %v273 = vpop.f32.mrb[0].mxu0
  %v274 = vadd.f32 %v56, %v273
  %275 = vmatprep.mubr.bf16.mxu0 0
  %276 = vmatmul.mubr.bf16.gmra.mrb[0].mxu0 %v185
  %v277 = vpop.f32.mrb[0].mxu0
  %v278 = vadd.f32 %v52, %v277
  %v279 = vpop.f32.mrb[0].mxu0
  %v280 = vadd.f32 %v56, %v279
  %v281 = vpop.f32.mrb[0].mxu0
  %v282 = vadd.f32 %v52, %v281
  %v283 = vpop.f32.mrb[0].mxu0
  %v284 = vadd.f32 %v56, %v283
  %285 = vmatprep.mubr.bf16.mxu0 0
  %286 = vmatmul.mubr.bf16.gmra.mrb[0].mxu0 %v188
  %v287 = vpop.f32.mrb[0].mxu0
  %v288 = vadd.f32 %v52, %v287
  %v289 = vpop.f32.mrb[0].mxu0
  %v290 = vadd.f32 %v56, %v289
  %v291 = vpop.f32.mrb[0].mxu0
  %v292 = vadd.f32 %v52, %v291
  %v293 = vpop.f32.mrb[0].mxu0
  %v294 = vadd.f32 %v56, %v293
  %295 = vmatprep.mubr.bf16.mxu0 0
  %296 = vmatmul.mubr.bf16.gmra.mrb[0].mxu0 %v191
  %v297 = vpop.f32.mrb[0].mxu0
  %v298 = vadd.f32 %v52, %v297
  %v299 = vpop.f32.mrb[0].mxu0
  %v300 = vadd.f32 %v56, %v299
  %v301 = vpop.f32.mrb[0].mxu0
  %v302 = vadd.f32 %v52, %v301
  %v303 = vpop.f32.mrb[0].mxu0
  %v304 = vadd.f32 %v56, %v303
  %305 = vdwg.mxu0
  %306 = vmatprep.subr.bf16.mxu0 0
  %307 = vmatpush1.bf16.msra.mxu0 %v146
  %308 = vmatprep.subr.bf16.mxu0 0
  %309 = vmatpush1.bf16.msra.mxu0 %v149
  %310 = vmatprep.subr.bf16.mxu0 0
  %311 = vmatpush1.bf16.msra.mxu0 %v152
  %312 = vmatprep.subr.bf16.mxu0 0
  %313 = vmatpush1.bf16.msra.mxu0 %v155
  %314 = vmatprep.subr.bf16.mxu0 0
  %315 = vmatpush1.bf16.msra.mxu0 0
  %316 = vmatprep.subr.bf16.mxu0 0
  %317 = vmatpush1.bf16.msra.mxu0 0
  %318 = vmatprep.subr.bf16.mxu0 0
  %319 = vmatpush1.bf16.msra.mxu0 0
  %320 = vmatprep.subr.bf16.mxu0 0
  %321 = vmatpush1.bf16.msra.mxu0 0
  %322 = vmatprep.subr.bf16.mxu0 0
  %323 = vmatpush1.bf16.msra.mxu0 0
  %324 = vmatprep.subr.bf16.mxu0 0
  %325 = vmatpush1.bf16.msra.mxu0 0
  %326 = vmatprep.subr.bf16.mxu0 0
  %327 = vmatpush1.bf16.msra.mxu0 0
  %328 = vmatprep.subr.bf16.mxu0 0
  %329 = vmatpush1.bf16.msra.mxu0 0
  %330 = vmatprep.subr.bf16.mxu0 0
  %331 = vmatpush1.bf16.msra.mxu0 0
  %332 = vmatprep.subr.bf16.mxu0 0
  %333 = vmatpush1.bf16.msra.mxu0 0
  %334 = vmatprep.subr.bf16.mxu0 0
  %335 = vmatpush1.bf16.msra.mxu0 0
  %336 = vmatprep.subr.bf16.mxu0 0
  %337 = vmatpush1.bf16.msra.mxu0 0
  %338 = vmatprep.mubr.bf16.mxu0 0
  %339 = vmatmul.mubr.bf16.gmra.mrb[0].mxu0 %v170
  %v340 = vpop.f32.mrb[0].mxu0
  %v341 = vadd.f32 %v60, %v340
  %v342 = vpop.f32.mrb[0].mxu0
  %v343 = vpop.f32.mrb[0].mxu0
  %v344 = vadd.f32 %v60, %v343
  %v345 = vpop.f32.mrb[0].mxu0
  %346 = vmatprep.mubr.bf16.mxu0 0
  %347 = vmatmul.mubr.bf16.gmra.mrb[0].mxu0 %v173
  %v348 = vpop.f32.mrb[0].mxu0
  %v349 = vadd.f32 %v60, %v348
  %v350 = vpop.f32.mrb[0].mxu0
  %v351 = vpop.f32.mrb[0].mxu0
  %v352 = vadd.f32 %v60, %v351
  %v353 = vpop.f32.mrb[0].mxu0
  %354 = vmatprep.mubr.bf16.mxu0 0
  %355 = vmatmul.mubr.bf16.gmra.mrb[0].mxu0 %v176
  %v356 = vpop.f32.mrb[0].mxu0
  %v357 = vadd.f32 %v60, %v356
  %v358 = vpop.f32.mrb[0].mxu0
  %v359 = vpop.f32.mrb[0].mxu0
  %v360 = vadd.f32 %v60, %v359
  %v361 = vpop.f32.mrb[0].mxu0
  %362 = vmatprep.mubr.bf16.mxu0 0
  %363 = vmatmul.mubr.bf16.gmra.mrb[0].mxu0 %v179
  %v364 = vpop.f32.mrb[0].mxu0
  %v365 = vadd.f32 %v60, %v364
  %v366 = vpop.f32.mrb[0].mxu0
  %v367 = vpop.f32.mrb[0].mxu0
  %v368 = vadd.f32 %v60, %v367
  %v369 = vpop.f32.mrb[0].mxu0
  %370 = vmatprep.mubr.bf16.mxu0 0
  %371 = vmatmul.mubr.bf16.gmra.mrb[0].mxu0 %v182
  %v372 = vpop.f32.mrb[0].mxu0
  %v373 = vadd.f32 %v60, %v372
  %v374 = vpop.f32.mrb[0].mxu0
  %v375 = vpop.f32.mrb[0].mxu0
  %v376 = vadd.f32 %v60, %v375
  %v377 = vpop.f32.mrb[0].mxu0
  %378 = vmatprep.mubr.bf16.mxu0 0
  %379 = vmatmul.mubr.bf16.gmra.mrb[0].mxu0 %v185
  %v380 = vpop.f32.mrb[0].mxu0
  %v381 = vadd.f32 %v60, %v380
  %v382 = vpop.f32.mrb[0].mxu0
  %v383 = vpop.f32.mrb[0].mxu0
  %v384 = vadd.f32 %v60, %v383
  %v385 = vpop.f32.mrb[0].mxu0
  %386 = vmatprep.mubr.bf16.mxu0 0
  %387 = vmatmul.mubr.bf16.gmra.mrb[0].mxu0 %v188
  %v388 = vpop.f32.mrb[0].mxu0
  %v389 = vadd.f32 %v60, %v388
  %v390 = vpop.f32.mrb[0].mxu0
  %v391 = vpop.f32.mrb[0].mxu0
  %v392 = vadd.f32 %v60, %v391
  %v393 = vpop.f32.mrb[0].mxu0
  %394 = vmatprep.mubr.bf16.mxu0 0
  %395 = vmatmul.mubr.bf16.gmra.mrb[0].mxu0 %v191
  %v396 = vpop.f32.mrb[0].mxu0
  %v397 = vadd.f32 %v60, %v396
  %v398 = vpop.f32.mrb[0].mxu0
  %v399 = vpop.f32.mrb[0].mxu0
  %v400 = vadd.f32 %v60, %v399
  %v401 = vpop.f32.mrb[0].mxu0
  %402 = vdwg.mxu0
  %403 = vst [vmem:[%s3] sm:$0xff] %v228
  %404 = vst [vmem:[%s3 + $0x8] sm:$0xff] %v230
  %405 = vst [vmem:[%s3 + $0x10] sm:$0xff] %v341
  %406 = vst [vmem:[%s3 + $0x18] sm:$0xff] %v232
  %407 = vst [vmem:[%s3 + $0x20] sm:$0xff] %v234
  %408 = vst [vmem:[%s3 + $0x28] sm:$0xff] %v344
  %409 = vst [vmem:[%s3 + $0x30] sm:$0xff] %v238
  %410 = vst [vmem:[%s3 + $0x38] sm:$0xff] %v240
  %411 = vst [vmem:[%s3 + $0x40] sm:$0xff] %v349
  %412 = vst [vmem:[%s3 + $0x48] sm:$0xff] %v242
  %413 = vst [vmem:[%s3 + $0x50] sm:$0xff] %v244
  %414 = vst [vmem:[%s3 + $0x58] sm:$0xff] %v352
  %415 = vst [vmem:[%s3 + $0x60] sm:$0xff] %v248
  %416 = vst [vmem:[%s3 + $0x68] sm:$0xff] %v250
  %417 = vst [vmem:[%s3 + $0x70] sm:$0xff] %v357
  %418 = vst [vmem:[%s3 + $0x78] sm:$0xff] %v252
  %419 = vst [vmem:[%s3 + $0x80] sm:$0xff] %v254
  %420 = vst [vmem:[%s3 + $0x88] sm:$0xff] %v360
  %421 = vst [vmem:[%s3 + $0x90] sm:$0xff] %v258
  %422 = vst [vmem:[%s3 + $0x98] sm:$0xff] %v260
  %423 = vst [vmem:[%s3 + $0xa0] sm:$0xff] %v365
  %424 = vst [vmem:[%s3 + $0xa8] sm:$0xff] %v262
  %425 = vst [vmem:[%s3 + $0xb0] sm:$0xff] %v264
  %426 = vst [vmem:[%s3 + $0xb8] sm:$0xff] %v368
  %427 = vst [vmem:[%s3 + $0xc0] sm:$0xff] %v268
  %428 = vst [vmem:[%s3 + $0xc8] sm:$0xff] %v270
  %429 = vst [vmem:[%s3 + $0xd0] sm:$0xff] %v373
  %430 = vst [vmem:[%s3 + $0xd8] sm:$0xff] %v272
  %431 = vst [vmem:[%s3 + $0xe0] sm:$0xff] %v274
  %432 = vst [vmem:[%s3 + $0xe8] sm:$0xff] %v376
  %433 = vst [vmem:[%s3 + $0xf0] sm:$0xff] %v278
  %434 = vst [vmem:[%s3 + $0xf8] sm:$0xff] %v280
  %435 = vst [vmem:[%s3 + $0x100] sm:$0xff] %v381
  %436 = vst [vmem:[%s3 + $0x108] sm:$0xff] %v282
  %437 = vst [vmem:[%s3 + $0x110] sm:$0xff] %v284
  %438 = vst [vmem:[%s3 + $0x118] sm:$0xff] %v384
  %439 = vst [vmem:[%s3 + $0x120] sm:$0xff] %v288
  %440 = vst [vmem:[%s3 + $0x128] sm:$0xff] %v290
  %441 = vst [vmem:[%s3 + $0x130] sm:$0xff] %v389
  %442 = vst [vmem:[%s3 + $0x138] sm:$0xff] %v292
  %443 = vst [vmem:[%s3 + $0x140] sm:$0xff] %v294
  %444 = vst [vmem:[%s3 + $0x148] sm:$0xff] %v392
  %445 = vst [vmem:[%s3 + $0x150] sm:$0xff] %v298
  %446 = vst [vmem:[%s3 + $0x158] sm:$0xff] %v300
  %447 = vst [vmem:[%s3 + $0x160] sm:$0xff] %v397
  %448 = vst [vmem:[%s3 + $0x168] sm:$0xff] %v302
  %449 = vst [vmem:[%s3 + $0x170] sm:$0xff] %v304
  %450 = vst [vmem:[%s3 + $0x178] sm:$0xff] %v400
  // Predicated region
  $region14: #{aacn_vgg_forward.2} parent=0 // pred_check
    _
  $region15: #{aacn_vgg_forward.2} parent=0 // pred_check_branch
    %452 = sbr.rel (0) target = $region17
  $region16: #{aacn_vgg_forward.2} parent=0 // pred_region
    _
  $region17: #{aacn_vgg_forward.2} parent=0 // pred_fallthru
    _
  // Predicated region
  $region18: #{aacn_vgg_forward.2} parent=0 // pred_check
    _
  $region19: #{aacn_vgg_forward.2} parent=0 // pred_check_branch
    %454 = sbr.rel (0) target = $region21
  $region20: #{aacn_vgg_forward.2} parent=0 // pred_region
    _
  $region21: #{aacn_vgg_forward.2} parent=0 // pred_fallthru
    _

// kernel: mul.9
$region0: #{mul.9}
  #allocation4 [shape = 's32[1]{0}', space=sflag, size = 0x4, scoped, tag = 'scoped memory for mul.9']
  %s0 = inlined_call_operand.hbm [shape: f32[336], index: 0, kind: input, shape index: {}]
  %s1 = inlined_call_operand.hbm [shape: f32[336], index: 1, kind: input, shape index: {}]
  %s2 = inlined_call_operand.vmem [shape: f32[336], index: 2, kind: output, shape index: {}]
  $region1: #{mul.9} parent=0
    #allocation0 [shape = 'u8[2048]{0}', space=vmem, size = 0x800, scoped, tag = 'operand span for operand 0']
    #allocation1 [shape = 's32[1]{0}', space=sflag, size = 0x4, scoped, tag = 'scoped memory for mul.9']
    #allocation2 [shape = 'u8[2048]{0}', space=vmem, size = 0x800, scoped, tag = 'operand span for operand 1']
    #allocation3 [shape = 's32[1]{0}', space=sflag, size = 0x4, scoped, tag = 'scoped memory for mul.9']
    %3 = vsyncpa [#allocation1], 0
    %4 = vsyncpa [#allocation3], 0
    %s6 = ssub.s32 64, 64
    %7 = vsyncadd [#allocation1], %s6
    %s9 = sshll.u32 [#allocation0], 4
    %s10 = int_to_ptr.vmem [resolvable:$true] %s9
    %12 = dma.hbm_to_vmem [thread:$0]  %s0, 64, %s10, [#allocation1]
    %s14 = ssub.s32 64, 64
    %15 = vsyncadd [#allocation3], %s14
    %s17 = sshll.u32 [#allocation2], 4
    %s18 = int_to_ptr.vmem [resolvable:$true] %s17
    %20 = dma.hbm_to_vmem [thread:$0]  %s1, 64, %s18, [#allocation3]
    %21 = dma.done [#allocation1], 64
    %22 = dma.done [#allocation3], 64
    %v23 = vld [vmem:[#allocation0] sm:$0x7]
    %v24 = vld [vmem:[#allocation2] sm:$0x7]
    %25 = xla_tuple %v23, %v24
    %26 = xla_tuple %25
    %v27 = vmul.f32 %v23, %v24
    %28 = xla_tuple %v27
    %29 = vst [vmem:[%s2] sm:$0xf] %v27
    %30 = vsyncpa [#allocation1], 1
    %31 = vsyncpa [#allocation3], 1

// kernel: aacn_vgg_forward.3
$region0: #{aacn_vgg_forward.3}
  #allocation0 [shape = 'u32[]', space=smem, size = 0x4, offset = 0x4, fixed_abs, tag = 'smem constant byte address 0x4 - core index']
  #allocation1 [shape = 'u32[144,128]{1,0:T(1,128)}', space=vmem, size = 0x12000, scoped, tag = 'internal scratch']
  %s0 = inlined_call_operand.vmem [shape: bf16[128,64], index: 0, kind: input, shape index: {}]
  %s1 = inlined_call_operand.vmem [shape: bf16[64,384], index: 1, kind: input, shape index: {}]
  %s2 = inlined_call_operand.vmem [shape: f32[1,384], index: 2, kind: input, shape index: {}]
  %s3 = inlined_call_operand.vmem [shape: f32[128,384], index: 3, kind: output, shape index: {}]
  %s4 = sld [smem:[#allocation0]]
  $region22: #{aacn_vgg_forward.3} parent=0
    _
  %s6 = ssub.s32 1, %s4
  %s7 = scalar_select 0, %s6, %s4
  // Predicated region
  $region2: #{aacn_vgg_forward.3} parent=0 // pred_check
    _
  $region3: #{aacn_vgg_forward.3} parent=0 // pred_check_branch
    %9 = sbr.rel (0) target = $region5
  $region4: #{aacn_vgg_forward.3} parent=0 // pred_region
    _
  $region5: #{aacn_vgg_forward.3} parent=0 // pred_fallthru
    _
  // Predicated region
  $region6: #{aacn_vgg_forward.3} parent=0 // pred_check
    _
  $region7: #{aacn_vgg_forward.3} parent=0 // pred_check_branch
    %11 = sbr.rel (0) target = $region9
  $region8: #{aacn_vgg_forward.3} parent=0 // pred_region
    _
  $region9: #{aacn_vgg_forward.3} parent=0 // pred_fallthru
    _
  // Predicated region
  $region10: #{aacn_vgg_forward.3} parent=0 // pred_check
    _
  $region11: #{aacn_vgg_forward.3} parent=0 // pred_check_branch
    %13 = sbr.rel (0) target = $region13
  $region12: #{aacn_vgg_forward.3} parent=0 // pred_region
    _
  $region13: #{aacn_vgg_forward.3} parent=0 // pred_fallthru
    _
  %v15 = vld [vmem:[%s0] sm:$0xf]
  %v16 = vld [vmem:[%s0 + $0x4] sm:$0xf]
  %v17 = vld [vmem:[%s0 + $0x8] sm:$0xf]
  %v18 = vld [vmem:[%s0 + $0xc] sm:$0xf]
  %v19 = vld [vmem:[%s0 + $0x10] sm:$0xf]
  %v20 = vld [vmem:[%s0 + $0x14] sm:$0xf]
  %v21 = vld [vmem:[%s0 + $0x18] sm:$0xf]
  %v22 = vld [vmem:[%s0 + $0x1c] sm:$0xf]
  %v23 = vld [vmem:[%s0 + $0x20] sm:$0xf]
  %v24 = vld [vmem:[%s0 + $0x24] sm:$0xf]
  %v25 = vld [vmem:[%s0 + $0x28] sm:$0xf]
  %v26 = vld [vmem:[%s0 + $0x2c] sm:$0xf]
  %v27 = vld [vmem:[%s0 + $0x30] sm:$0xf]
  %v28 = vld [vmem:[%s0 + $0x34] sm:$0xf]
  %v29 = vld [vmem:[%s0 + $0x38] sm:$0xf]
  %v30 = vld [vmem:[%s0 + $0x3c] sm:$0xf]
  %v31 = vld [vmem:[%s1] sm:$0xff]
  %v32 = vld [vmem:[%s1 + $0x8] sm:$0xf]
  %v33 = vld [vmem:[%s1 + $0xc] sm:$0xff]
  %v34 = vld [vmem:[%s1 + $0x14] sm:$0xf]
  %v35 = vld [vmem:[%s1 + $0x18] sm:$0xff]
  %v36 = vld [vmem:[%s1 + $0x20] sm:$0xf]
  %v37 = vld [vmem:[%s1 + $0x24] sm:$0xff]
  %v38 = vld [vmem:[%s1 + $0x2c] sm:$0xf]
  %v39 = vld [vmem:[%s1 + $0x30] sm:$0xff]
  %v40 = vld [vmem:[%s1 + $0x38] sm:$0xf]
  %v41 = vld [vmem:[%s1 + $0x3c] sm:$0xff]
  %v42 = vld [vmem:[%s1 + $0x44] sm:$0xf]
  %v43 = vld [vmem:[%s1 + $0x48] sm:$0xff]
  %v44 = vld [vmem:[%s1 + $0x50] sm:$0xf]
  %v45 = vld [vmem:[%s1 + $0x54] sm:$0xff]
  %v46 = vld [vmem:[%s1 + $0x5c] sm:$0xf]
  %v47 = vld [vmem:[%s2] sm:$0x7]
  %v49 = vlaneseq
  %v50 = vshrl.u32 %v49, 7
  %v51 = vsub.s32 0, %v50
  %v52 = vrot.slane %v47, %v51
  %v53 = vlaneseq
  %v54 = vshrl.u32 %v53, 7
  %v55 = vsub.s32 1, %v54
  %v56 = vrot.slane %v47, %v55
  %v57 = vlaneseq
  %v58 = vshrl.u32 %v57, 7
  %v59 = vsub.s32 2, %v58
  %v60 = vrot.slane %v47, %v59
  %v80 = vunpack.c.l.b16 %v15
  %v81 = vunpack.c.l.b16 %v16
  %v82 = vunpack.c.l.b16 %v17
  %v83 = vunpack.c.l.b16 %v18
  %v84 = vunpack.c.l.b16 %v19
  %v85 = vunpack.c.l.b16 %v20
  %v86 = vunpack.c.l.b16 %v21
  %v87 = vunpack.c.l.b16 %v22
  %v88 = vunpack.c.l.b16 %v23
  %v89 = vunpack.c.l.b16 %v24
  %v90 = vunpack.c.l.b16 %v25
  %v91 = vunpack.c.l.b16 %v26
  %v92 = vunpack.c.l.b16 %v27
  %v93 = vunpack.c.l.b16 %v28
  %v94 = vunpack.c.l.b16 %v29
  %v95 = vunpack.c.l.b16 %v30
  %v96 = vpack.c.b16 %v81, %v80
  %v97 = vpack.c.b16 %v83, %v82
  %v98 = vpack.c.b16 %v85, %v84
  %v99 = vpack.c.b16 %v87, %v86
  %v100 = vpack.c.b16 %v89, %v88
  %v101 = vpack.c.b16 %v91, %v90
  %v102 = vpack.c.b16 %v93, %v92
  %v103 = vpack.c.b16 %v95, %v94
  %v120 = vunpack.c.l.b16 %v31
  %v121 = vunpack.c.h.b16 %v31
  %v122 = vunpack.c.l.b16 %v32
  %v123 = vunpack.c.l.b16 %v33
  %v124 = vunpack.c.h.b16 %v33
  %v125 = vunpack.c.l.b16 %v34
  %v126 = vunpack.c.l.b16 %v35
  %v127 = vunpack.c.h.b16 %v35
  %v128 = vunpack.c.l.b16 %v36
  %v129 = vunpack.c.l.b16 %v37
  %v130 = vunpack.c.h.b16 %v37
  %v131 = vunpack.c.l.b16 %v38
  %v132 = vunpack.c.l.b16 %v39
  %v133 = vunpack.c.h.b16 %v39
  %v134 = vunpack.c.l.b16 %v40
  %v135 = vunpack.c.l.b16 %v41
  %v136 = vunpack.c.h.b16 %v41
  %v137 = vunpack.c.l.b16 %v42
  %v138 = vunpack.c.l.b16 %v43
  %v139 = vunpack.c.h.b16 %v43
  %v140 = vunpack.c.l.b16 %v44
  %v141 = vunpack.c.l.b16 %v45
  %v142 = vunpack.c.h.b16 %v45
  %v143 = vunpack.c.l.b16 %v46
  %v144 = vpack.c.b16 %v123, %v120
  %v145 = vpack.c.b16 %v124, %v121
  %v146 = vpack.c.b16 %v125, %v122
  %v147 = vpack.c.b16 %v129, %v126
  %v148 = vpack.c.b16 %v130, %v127
  %v149 = vpack.c.b16 %v131, %v128
  %v150 = vpack.c.b16 %v135, %v132
  %v151 = vpack.c.b16 %v136, %v133
  %v152 = vpack.c.b16 %v137, %v134
  %v153 = vpack.c.b16 %v141, %v138
  %v154 = vpack.c.b16 %v142, %v139
  %v155 = vpack.c.b16 %v143, %v140
  %vm168 = vcmask 523264
  %v170 = vsel %vm168, %v96, 0
  %v173 = vsel %vm168, %v97, 0
  %v176 = vsel %vm168, %v98, 0
  %v179 = vsel %vm168, %v99, 0
  %v182 = vsel %vm168, %v100, 0
  %v185 = vsel %vm168, %v101, 0
  %v188 = vsel %vm168, %v102, 0
  %v191 = vsel %vm168, %v103, 0
  %193 = vmatprep.subr.bf16.mxu0 %v145
  %194 = vmatpush1.bf16.msra.mxu0 %v144
  %195 = vmatprep.subr.bf16.mxu0 %v148
  %196 = vmatpush1.bf16.msra.mxu0 %v147
  %197 = vmatprep.subr.bf16.mxu0 %v151
  %198 = vmatpush1.bf16.msra.mxu0 %v150
  %199 = vmatprep.subr.bf16.mxu0 %v154
  %200 = vmatpush1.bf16.msra.mxu0 %v153
  %201 = vmatprep.subr.bf16.mxu0 0
  %202 = vmatpush1.bf16.msra.mxu0 0
  %203 = vmatprep.subr.bf16.mxu0 0
  %204 = vmatpush1.bf16.msra.mxu0 0
  %205 = vmatprep.subr.bf16.mxu0 0
  %206 = vmatpush1.bf16.msra.mxu0 0
  %207 = vmatprep.subr.bf16.mxu0 0
  %208 = vmatpush1.bf16.msra.mxu0 0
  %209 = vmatprep.subr.bf16.mxu0 0
  %210 = vmatpush1.bf16.msra.mxu0 0
  %211 = vmatprep.subr.bf16.mxu0 0
  %212 = vmatpush1.bf16.msra.mxu0 0
  %213 = vmatprep.subr.bf16.mxu0 0
  %214 = vmatpush1.bf16.msra.mxu0 0
  %215 = vmatprep.subr.bf16.mxu0 0
  %216 = vmatpush1.bf16.msra.mxu0 0
  %217 = vmatprep.subr.bf16.mxu0 0
  %218 = vmatpush1.bf16.msra.mxu0 0
  %219 = vmatprep.subr.bf16.mxu0 0
  %220 = vmatpush1.bf16.msra.mxu0 0
  %221 = vmatprep.subr.bf16.mxu0 0
  %222 = vmatpush1.bf16.msra.mxu0 0
  %223 = vmatprep.subr.bf16.mxu0 0
  %224 = vmatpush1.bf16.msra.mxu0 0
  %225 = vmatprep.mubr.bf16.mxu0 0
  %226 = vmatmul.mubr.bf16.gmra.mrb[0].mxu0 %v170
  %v227 = vpop.f32.mrb[0].mxu0
  %v228 = vadd.f32 %v52, %v227
  %v229 = vpop.f32.mrb[0].mxu0
  %v230 = vadd.f32 %v56, %v229
  %v231 = vpop.f32.mrb[0].mxu0
  %v232 = vadd.f32 %v52, %v231
  %v233 = vpop.f32.mrb[0].mxu0
  %v234 = vadd.f32 %v56, %v233
  %235 = vmatprep.mubr.bf16.mxu0 0
  %236 = vmatmul.mubr.bf16.gmra.mrb[0].mxu0 %v173
  %v237 = vpop.f32.mrb[0].mxu0
  %v238 = vadd.f32 %v52, %v237
  %v239 = vpop.f32.mrb[0].mxu0
  %v240 = vadd.f32 %v56, %v239
  %v241 = vpop.f32.mrb[0].mxu0
  %v242 = vadd.f32 %v52, %v241
  %v243 = vpop.f32.mrb[0].mxu0
  %v244 = vadd.f32 %v56, %v243
  %245 = vmatprep.mubr.bf16.mxu0 0
  %246 = vmatmul.mubr.bf16.gmra.mrb[0].mxu0 %v176
  %v247 = vpop.f32.mrb[0].mxu0
  %v248 = vadd.f32 %v52, %v247
  %v249 = vpop.f32.mrb[0].mxu0
  %v250 = vadd.f32 %v56, %v249
  %v251 = vpop.f32.mrb[0].mxu0
  %v252 = vadd.f32 %v52, %v251
  %v253 = vpop.f32.mrb[0].mxu0
  %v254 = vadd.f32 %v56, %v253
  %255 = vmatprep.mubr.bf16.mxu0 0
  %256 = vmatmul.mubr.bf16.gmra.mrb[0].mxu0 %v179
  %v257 = vpop.f32.mrb[0].mxu0
  %v258 = vadd.f32 %v52, %v257
  %v259 = vpop.f32.mrb[0].mxu0
  %v260 = vadd.f32 %v56, %v259
  %v261 = vpop.f32.mrb[0].mxu0
  %v262 = vadd.f32 %v52, %v261
  %v263 = vpop.f32.mrb[0].mxu0
  %v264 = vadd.f32 %v56, %v263
  %265 = vmatprep.mubr.bf16.mxu0 0
  %266 = vmatmul.mubr.bf16.gmra.mrb[0].mxu0 %v182
  %v267 = vpop.f32.mrb[0].mxu0
  %v268 = vadd.f32 %v52, %v267
  %v269 = vpop.f32.mrb[0].mxu0
  %v270 = vadd.f32 %v56, %v269
  %v271 = vpop.f32.mrb[0].mxu0
  %v272 = vadd.f32 %v52, %v271
  %v273 = vpop.f32.mrb[0].mxu0
  %v274 = vadd.f32 %v56, %v273
  %275 = vmatprep.mubr.bf16.mxu0 0
  %276 = vmatmul.mubr.bf16.gmra.mrb[0].mxu0 %v185
  %v277 = vpop.f32.mrb[0].mxu0
  %v278 = vadd.f32 %v52, %v277
  %v279 = vpop.f32.mrb[0].mxu0
  %v280 = vadd.f32 %v56, %v279
  %v281 = vpop.f32.mrb[0].mxu0
  %v282 = vadd.f32 %v52, %v281
  %v283 = vpop.f32.mrb[0].mxu0
  %v284 = vadd.f32 %v56, %v283
  %285 = vmatprep.mubr.bf16.mxu0 0
  %286 = vmatmul.mubr.bf16.gmra.mrb[0].mxu0 %v188
  %v287 = vpop.f32.mrb[0].mxu0
  %v288 = vadd.f32 %v52, %v287
  %v289 = vpop.f32.mrb[0].mxu0
  %v290 = vadd.f32 %v56, %v289
  %v291 = vpop.f32.mrb[0].mxu0
  %v292 = vadd.f32 %v52, %v291
  %v293 = vpop.f32.mrb[0].mxu0
  %v294 = vadd.f32 %v56, %v293
  %295 = vmatprep.mubr.bf16.mxu0 0
  %296 = vmatmul.mubr.bf16.gmra.mrb[0].mxu0 %v191
  %v297 = vpop.f32.mrb[0].mxu0
  %v298 = vadd.f32 %v52, %v297
  %v299 = vpop.f32.mrb[0].mxu0
  %v300 = vadd.f32 %v56, %v299
  %v301 = vpop.f32.mrb[0].mxu0
  %v302 = vadd.f32 %v52, %v301
  %v303 = vpop.f32.mrb[0].mxu0
  %v304 = vadd.f32 %v56, %v303
  %305 = vdwg.mxu0
  %306 = vmatprep.subr.bf16.mxu0 0
  %307 = vmatpush1.bf16.msra.mxu0 %v146
  %308 = vmatprep.subr.bf16.mxu0 0
  %309 = vmatpush1.bf16.msra.mxu0 %v149
  %310 = vmatprep.subr.bf16.mxu0 0
  %311 = vmatpush1.bf16.msra.mxu0 %v152
  %312 = vmatprep.subr.bf16.mxu0 0
  %313 = vmatpush1.bf16.msra.mxu0 %v155
  %314 = vmatprep.subr.bf16.mxu0 0
  %315 = vmatpush1.bf16.msra.mxu0 0
  %316 = vmatprep.subr.bf16.mxu0 0
  %317 = vmatpush1.bf16.msra.mxu0 0
  %318 = vmatprep.subr.bf16.mxu0 0
  %319 = vmatpush1.bf16.msra.mxu0 0
  %320 = vmatprep.subr.bf16.mxu0 0
  %321 = vmatpush1.bf16.msra.mxu0 0
  %322 = vmatprep.subr.bf16.mxu0 0
  %323 = vmatpush1.bf16.msra.mxu0 0
  %324 = vmatprep.subr.bf16.mxu0 0
  %325 = vmatpush1.bf16.msra.mxu0 0
  %326 = vmatprep.subr.bf16.mxu0 0
  %327 = vmatpush1.bf16.msra.mxu0 0
  %328 = vmatprep.subr.bf16.mxu0 0
  %329 = vmatpush1.bf16.msra.mxu0 0
  %330 = vmatprep.subr.bf16.mxu0 0
  %331 = vmatpush1.bf16.msra.mxu0 0
  %332 = vmatprep.subr.bf16.mxu0 0
  %333 = vmatpush1.bf16.msra.mxu0 0
  %334 = vmatprep.subr.bf16.mxu0 0
  %335 = vmatpush1.bf16.msra.mxu0 0
  %336 = vmatprep.subr.bf16.mxu0 0
  %337 = vmatpush1.bf16.msra.mxu0 0
  %338 = vmatprep.mubr.bf16.mxu0 0
  %339 = vmatmul.mubr.bf16.gmra.mrb[0].mxu0 %v170
  %v340 = vpop.f32.mrb[0].mxu0
  %v341 = vadd.f32 %v60, %v340
  %v342 = vpop.f32.mrb[0].mxu0
  %v343 = vpop.f32.mrb[0].mxu0
  %v344 = vadd.f32 %v60, %v343
  %v345 = vpop.f32.mrb[0].mxu0
  %346 = vmatprep.mubr.bf16.mxu0 0
  %347 = vmatmul.mubr.bf16.gmra.mrb[0].mxu0 %v173
  %v348 = vpop.f32.mrb[0].mxu0
  %v349 = vadd.f32 %v60, %v348
  %v350 = vpop.f32.mrb[0].mxu0
  %v351 = vpop.f32.mrb[0].mxu0
  %v352 = vadd.f32 %v60, %v351
  %v353 = vpop.f32.mrb[0].mxu0
  %354 = vmatprep.mubr.bf16.mxu0 0
  %355 = vmatmul.mubr.bf16.gmra.mrb[0].mxu0 %v176
  %v356 = vpop.f32.mrb[0].mxu0
  %v357 = vadd.f32 %v60, %v356
  %v358 = vpop.f32.mrb[0].mxu0
  %v359 = vpop.f32.mrb[0].mxu0
  %v360 = vadd.f32 %v60, %v359
  %v361 = vpop.f32.mrb[0].mxu0
  %362 = vmatprep.mubr.bf16.mxu0 0
  %363 = vmatmul.mubr.bf16.gmra.mrb[0].mxu0 %v179
  %v364 = vpop.f32.mrb[0].mxu0
  %v365 = vadd.f32 %v60, %v364
  %v366 = vpop.f32.mrb[0].mxu0
  %v367 = vpop.f32.mrb[0].mxu0
  %v368 = vadd.f32 %v60, %v367
  %v369 = vpop.f32.mrb[0].mxu0
  %370 = vmatprep.mubr.bf16.mxu0 0
  %371 = vmatmul.mubr.bf16.gmra.mrb[0].mxu0 %v182
  %v372 = vpop.f32.mrb[0].mxu0
  %v373 = vadd.f32 %v60, %v372
  %v374 = vpop.f32.mrb[0].mxu0
  %v375 = vpop.f32.mrb[0].mxu0
  %v376 = vadd.f32 %v60, %v375
  %v377 = vpop.f32.mrb[0].mxu0
  %378 = vmatprep.mubr.bf16.mxu0 0
  %379 = vmatmul.mubr.bf16.gmra.mrb[0].mxu0 %v185
  %v380 = vpop.f32.mrb[0].mxu0
  %v381 = vadd.f32 %v60, %v380
  %v382 = vpop.f32.mrb[0].mxu0
  %v383 = vpop.f32.mrb[0].mxu0
  %v384 = vadd.f32 %v60, %v383
  %v385 = vpop.f32.mrb[0].mxu0
  %386 = vmatprep.mubr.bf16.mxu0 0
  %387 = vmatmul.mubr.bf16.gmra.mrb[0].mxu0 %v188
  %v388 = vpop.f32.mrb[0].mxu0
  %v389 = vadd.f32 %v60, %v388
  %v390 = vpop.f32.mrb[0].mxu0
  %v391 = vpop.f32.mrb[0].mxu0
  %v392 = vadd.f32 %v60, %v391
  %v393 = vpop.f32.mrb[0].mxu0
  %394 = vmatprep.mubr.bf16.mxu0 0
  %395 = vmatmul.mubr.bf16.gmra.mrb[0].mxu0 %v191
  %v396 = vpop.f32.mrb[0].mxu0
  %v397 = vadd.f32 %v60, %v396
  %v398 = vpop.f32.mrb[0].mxu0
  %v399 = vpop.f32.mrb[0].mxu0
  %v400 = vadd.f32 %v60, %v399
  %v401 = vpop.f32.mrb[0].mxu0
  %402 = vdwg.mxu0
  %403 = vst [vmem:[%s3] sm:$0xff] %v228
  %404 = vst [vmem:[%s3 + $0x8] sm:$0xff] %v230
  %405 = vst [vmem:[%s3 + $0x10] sm:$0xff] %v341
  %406 = vst [vmem:[%s3 + $0x18] sm:$0xff] %v232
  %407 = vst [vmem:[%s3 + $0x20] sm:$0xff] %v234
  %408 = vst [vmem:[%s3 + $0x28] sm:$0xff] %v344
  %409 = vst [vmem:[%s3 + $0x30] sm:$0xff] %v238
  %410 = vst [vmem:[%s3 + $0x38] sm:$0xff] %v240
  %411 = vst [vmem:[%s3 + $0x40] sm:$0xff] %v349
  %412 = vst [vmem:[%s3 + $0x48] sm:$0xff] %v242
  %413 = vst [vmem:[%s3 + $0x50] sm:$0xff] %v244
  %414 = vst [vmem:[%s3 + $0x58] sm:$0xff] %v352
  %415 = vst [vmem:[%s3 + $0x60] sm:$0xff] %v248
  %416 = vst [vmem:[%s3 + $0x68] sm:$0xff] %v250
  %417 = vst [vmem:[%s3 + $0x70] sm:$0xff] %v357
  %418 = vst [vmem:[%s3 + $0x78] sm:$0xff] %v252
  %419 = vst [vmem:[%s3 + $0x80] sm:$0xff] %v254
  %420 = vst [vmem:[%s3 + $0x88] sm:$0xff] %v360
  %421 = vst [vmem:[%s3 + $0x90] sm:$0xff] %v258
  %422 = vst [vmem:[%s3 + $0x98] sm:$0xff] %v260
  %423 = vst [vmem:[%s3 + $0xa0] sm:$0xff] %v365
  %424 = vst [vmem:[%s3 + $0xa8] sm:$0xff] %v262
  %425 = vst [vmem:[%s3 + $0xb0] sm:$0xff] %v264
  %426 = vst [vmem:[%s3 + $0xb8] sm:$0xff] %v368
  %427 = vst [vmem:[%s3 + $0xc0] sm:$0xff] %v268
  %428 = vst [vmem:[%s3 + $0xc8] sm:$0xff] %v270
  %429 = vst [vmem:[%s3 + $0xd0] sm:$0xff] %v373
  %430 = vst [vmem:[%s3 + $0xd8] sm:$0xff] %v272
  %431 = vst [vmem:[%s3 + $0xe0] sm:$0xff] %v274
  %432 = vst [vmem:[%s3 + $0xe8] sm:$0xff] %v376
  %433 = vst [vmem:[%s3 + $0xf0] sm:$0xff] %v278
  %434 = vst [vmem:[%s3 + $0xf8] sm:$0xff] %v280
  %435 = vst [vmem:[%s3 + $0x100] sm:$0xff] %v381
  %436 = vst [vmem:[%s3 + $0x108] sm:$0xff] %v282
  %437 = vst [vmem:[%s3 + $0x110] sm:$0xff] %v284
  %438 = vst [vmem:[%s3 + $0x118] sm:$0xff] %v384
  %439 = vst [vmem:[%s3 + $0x120] sm:$0xff] %v288
  %440 = vst [vmem:[%s3 + $0x128] sm:$0xff] %v290
  %441 = vst [vmem:[%s3 + $0x130] sm:$0xff] %v389
  %442 = vst [vmem:[%s3 + $0x138] sm:$0xff] %v292
  %443 = vst [vmem:[%s3 + $0x140] sm:$0xff] %v294
  %444 = vst [vmem:[%s3 + $0x148] sm:$0xff] %v392
  %445 = vst [vmem:[%s3 + $0x150] sm:$0xff] %v298
  %446 = vst [vmem:[%s3 + $0x158] sm:$0xff] %v300
  %447 = vst [vmem:[%s3 + $0x160] sm:$0xff] %v397
  %448 = vst [vmem:[%s3 + $0x168] sm:$0xff] %v302
  %449 = vst [vmem:[%s3 + $0x170] sm:$0xff] %v304
  %450 = vst [vmem:[%s3 + $0x178] sm:$0xff] %v400
  // Predicated region
  $region14: #{aacn_vgg_forward.3} parent=0 // pred_check
    _
  $region15: #{aacn_vgg_forward.3} parent=0 // pred_check_branch
    %452 = sbr.rel (0) target = $region17
  $region16: #{aacn_vgg_forward.3} parent=0 // pred_region
    _
  $region17: #{aacn_vgg_forward.3} parent=0 // pred_fallthru
    _
  // Predicated region
  $region18: #{aacn_vgg_forward.3} parent=0 // pred_check
    _
  $region19: #{aacn_vgg_forward.3} parent=0 // pred_check_branch
    %454 = sbr.rel (0) target = $region21
  $region20: #{aacn_vgg_forward.3} parent=0 // pred_region
    _
  $region21: #{aacn_vgg_forward.3} parent=0 // pred_fallthru
    _

// kernel: aacn_vgg_forward.5
$region0: #{aacn_vgg_forward.5}
  #allocation0 [shape = 'u32[]', space=smem, size = 0x4, offset = 0x4, fixed_abs, tag = 'smem constant byte address 0x4 - core index']
  #allocation1 [shape = 'u32[144,128]{1,0:T(1,128)}', space=vmem, size = 0x12000, scoped, tag = 'internal scratch']
  %s0 = inlined_call_operand.vmem [shape: bf16[128,16], index: 0, kind: input, shape index: {}]
  %s1 = inlined_call_operand.vmem [shape: bf16[16,128], index: 1, kind: input, shape index: {}]
  %s2 = inlined_call_operand.vmem [shape: f32[1,128], index: 2, kind: input, shape index: {}]
  %s3 = inlined_call_operand.vmem [shape: f32[128,128], index: 3, kind: output, shape index: {}]
  %s4 = sld [smem:[#allocation0]]
  $region22: #{aacn_vgg_forward.5} parent=0
    _
  %s6 = ssub.s32 1, %s4
  %s7 = scalar_select 0, %s6, %s4
  // Predicated region
  $region2: #{aacn_vgg_forward.5} parent=0 // pred_check
    _
  $region3: #{aacn_vgg_forward.5} parent=0 // pred_check_branch
    %9 = sbr.rel (0) target = $region5
  $region4: #{aacn_vgg_forward.5} parent=0 // pred_region
    _
  $region5: #{aacn_vgg_forward.5} parent=0 // pred_fallthru
    _
  // Predicated region
  $region6: #{aacn_vgg_forward.5} parent=0 // pred_check
    _
  $region7: #{aacn_vgg_forward.5} parent=0 // pred_check_branch
    %11 = sbr.rel (0) target = $region9
  $region8: #{aacn_vgg_forward.5} parent=0 // pred_region
    _
  $region9: #{aacn_vgg_forward.5} parent=0 // pred_fallthru
    _
  // Predicated region
  $region10: #{aacn_vgg_forward.5} parent=0 // pred_check
    _
  $region11: #{aacn_vgg_forward.5} parent=0 // pred_check_branch
    %13 = sbr.rel (0) target = $region13
  $region12: #{aacn_vgg_forward.5} parent=0 // pred_region
    _
  $region13: #{aacn_vgg_forward.5} parent=0 // pred_fallthru
    _
  %v15 = vld [vmem:[%s0] sm:$0xf]
  %v16 = vld [vmem:[%s0 + $0x4] sm:$0xf]
  %v17 = vld [vmem:[%s0 + $0x8] sm:$0xf]
  %v18 = vld [vmem:[%s0 + $0xc] sm:$0xf]
  %v19 = vld [vmem:[%s0 + $0x10] sm:$0xf]
  %v20 = vld [vmem:[%s0 + $0x14] sm:$0xf]
  %v21 = vld [vmem:[%s0 + $0x18] sm:$0xf]
  %v22 = vld [vmem:[%s0 + $0x1c] sm:$0xf]
  %v23 = vld [vmem:[%s0 + $0x20] sm:$0xf]
  %v24 = vld [vmem:[%s0 + $0x24] sm:$0xf]
  %v25 = vld [vmem:[%s0 + $0x28] sm:$0xf]
  %v26 = vld [vmem:[%s0 + $0x2c] sm:$0xf]
  %v27 = vld [vmem:[%s0 + $0x30] sm:$0xf]
  %v28 = vld [vmem:[%s0 + $0x34] sm:$0xf]
  %v29 = vld [vmem:[%s0 + $0x38] sm:$0xf]
  %v30 = vld [vmem:[%s0 + $0x3c] sm:$0xf]
  %v31 = vld [vmem:[%s1] sm:$0xf]
  %v32 = vld [vmem:[%s1 + $0x4] sm:$0xf]
  %v33 = vld [vmem:[%s2] sm:$0x1]
  %v35 = vlaneseq
  %v36 = vshrl.u32 %v35, 7
  %v37 = vsub.s32 0, %v36
  %v38 = vrot.slane %v33, %v37
  %v56 = vunpack.c.l.b16 %v15
  %v57 = vunpack.c.l.b16 %v16
  %v58 = vunpack.c.l.b16 %v17
  %v59 = vunpack.c.l.b16 %v18
  %v60 = vunpack.c.l.b16 %v19
  %v61 = vunpack.c.l.b16 %v20
  %v62 = vunpack.c.l.b16 %v21
  %v63 = vunpack.c.l.b16 %v22
  %v64 = vunpack.c.l.b16 %v23
  %v65 = vunpack.c.l.b16 %v24
  %v66 = vunpack.c.l.b16 %v25
  %v67 = vunpack.c.l.b16 %v26
  %v68 = vunpack.c.l.b16 %v27
  %v69 = vunpack.c.l.b16 %v28
  %v70 = vunpack.c.l.b16 %v29
  %v71 = vunpack.c.l.b16 %v30
  %v72 = vpack.c.b16 %v57, %v56
  %v73 = vpack.c.b16 %v59, %v58
  %v74 = vpack.c.b16 %v61, %v60
  %v75 = vpack.c.b16 %v63, %v62
  %v76 = vpack.c.b16 %v65, %v64
  %v77 = vpack.c.b16 %v67, %v66
  %v78 = vpack.c.b16 %v69, %v68
  %v79 = vpack.c.b16 %v71, %v70
  %v82 = vunpack.c.l.b16 %v31
  %v83 = vunpack.c.l.b16 %v32
  %v84 = vpack.c.b16 %v83, %v82
  %vm86 = vcmask 130048
  %v88 = vsel %vm86, %v72, 0
  %v91 = vsel %vm86, %v73, 0
  %v94 = vsel %vm86, %v74, 0
  %v97 = vsel %vm86, %v75, 0
  %v100 = vsel %vm86, %v76, 0
  %v103 = vsel %vm86, %v77, 0
  %v106 = vsel %vm86, %v78, 0
  %v109 = vsel %vm86, %v79, 0
  %111 = vmatprep.subr.bf16.mxu0 0
  %112 = vmatpush1.bf16.msra.mxu0 %v84
  %113 = vmatprep.subr.bf16.mxu0 0
  %114 = vmatpush1.bf16.msra.mxu0 0
  %115 = vmatprep.subr.bf16.mxu0 0
  %116 = vmatpush1.bf16.msra.mxu0 0
  %117 = vmatprep.subr.bf16.mxu0 0
  %118 = vmatpush1.bf16.msra.mxu0 0
  %119 = vmatprep.subr.bf16.mxu0 0
  %120 = vmatpush1.bf16.msra.mxu0 0
  %121 = vmatprep.subr.bf16.mxu0 0
  %122 = vmatpush1.bf16.msra.mxu0 0
  %123 = vmatprep.subr.bf16.mxu0 0
  %124 = vmatpush1.bf16.msra.mxu0 0
  %125 = vmatprep.subr.bf16.mxu0 0
  %126 = vmatpush1.bf16.msra.mxu0 0
  %127 = vmatprep.subr.bf16.mxu0 0
  %128 = vmatpush1.bf16.msra.mxu0 0
  %129 = vmatprep.subr.bf16.mxu0 0
  %130 = vmatpush1.bf16.msra.mxu0 0
  %131 = vmatprep.subr.bf16.mxu0 0
  %132 = vmatpush1.bf16.msra.mxu0 0
  %133 = vmatprep.subr.bf16.mxu0 0
  %134 = vmatpush1.bf16.msra.mxu0 0
  %135 = vmatprep.subr.bf16.mxu0 0
  %136 = vmatpush1.bf16.msra.mxu0 0
  %137 = vmatprep.subr.bf16.mxu0 0
  %138 = vmatpush1.bf16.msra.mxu0 0
  %139 = vmatprep.subr.bf16.mxu0 0
  %140 = vmatpush1.bf16.msra.mxu0 0
  %141 = vmatprep.subr.bf16.mxu0 0
  %142 = vmatpush1.bf16.msra.mxu0 0
  %143 = vmatprep.mubr.bf16.mxu0 0
  %144 = vmatmul.mubr.bf16.gmra.mrb[0].mxu0 %v88
  %v145 = vpop.f32.mrb[0].mxu0
  %v146 = vadd.f32 %v38, %v145
  %v147 = vpop.f32.mrb[0].mxu0
  %v148 = vpop.f32.mrb[0].mxu0
  %v149 = vadd.f32 %v38, %v148
  %v150 = vpop.f32.mrb[0].mxu0
  %151 = vmatprep.mubr.bf16.mxu0 0
  %152 = vmatmul.mubr.bf16.gmra.mrb[0].mxu0 %v91
  %v153 = vpop.f32.mrb[0].mxu0
  %v154 = vadd.f32 %v38, %v153
  %v155 = vpop.f32.mrb[0].mxu0
  %v156 = vpop.f32.mrb[0].mxu0
  %v157 = vadd.f32 %v38, %v156
  %v158 = vpop.f32.mrb[0].mxu0
  %159 = vmatprep.mubr.bf16.mxu0 0
  %160 = vmatmul.mubr.bf16.gmra.mrb[0].mxu0 %v94
  %v161 = vpop.f32.mrb[0].mxu0
  %v162 = vadd.f32 %v38, %v161
  %v163 = vpop.f32.mrb[0].mxu0
  %v164 = vpop.f32.mrb[0].mxu0
  %v165 = vadd.f32 %v38, %v164
  %v166 = vpop.f32.mrb[0].mxu0
  %167 = vmatprep.mubr.bf16.mxu0 0
  %168 = vmatmul.mubr.bf16.gmra.mrb[0].mxu0 %v97
  %v169 = vpop.f32.mrb[0].mxu0
  %v170 = vadd.f32 %v38, %v169
  %v171 = vpop.f32.mrb[0].mxu0
  %v172 = vpop.f32.mrb[0].mxu0
  %v173 = vadd.f32 %v38, %v172
  %v174 = vpop.f32.mrb[0].mxu0
  %175 = vmatprep.mubr.bf16.mxu0 0
  %176 = vmatmul.mubr.bf16.gmra.mrb[0].mxu0 %v100
  %v177 = vpop.f32.mrb[0].mxu0
  %v178 = vadd.f32 %v38, %v177
  %v179 = vpop.f32.mrb[0].mxu0
  %v180 = vpop.f32.mrb[0].mxu0
  %v181 = vadd.f32 %v38, %v180
  %v182 = vpop.f32.mrb[0].mxu0
  %183 = vmatprep.mubr.bf16.mxu0 0
  %184 = vmatmul.mubr.bf16.gmra.mrb[0].mxu0 %v103
  %v185 = vpop.f32.mrb[0].mxu0
  %v186 = vadd.f32 %v38, %v185
  %v187 = vpop.f32.mrb[0].mxu0
  %v188 = vpop.f32.mrb[0].mxu0
  %v189 = vadd.f32 %v38, %v188
  %v190 = vpop.f32.mrb[0].mxu0
  %191 = vmatprep.mubr.bf16.mxu0 0
  %192 = vmatmul.mubr.bf16.gmra.mrb[0].mxu0 %v106
  %v193 = vpop.f32.mrb[0].mxu0
  %v194 = vadd.f32 %v38, %v193
  %v195 = vpop.f32.mrb[0].mxu0
  %v196 = vpop.f32.mrb[0].mxu0
  %v197 = vadd.f32 %v38, %v196
  %v198 = vpop.f32.mrb[0].mxu0
  %199 = vmatprep.mubr.bf16.mxu0 0
  %200 = vmatmul.mubr.bf16.gmra.mrb[0].mxu0 %v109
  %v201 = vpop.f32.mrb[0].mxu0
  %v202 = vadd.f32 %v38, %v201
  %v203 = vpop.f32.mrb[0].mxu0
  %v204 = vpop.f32.mrb[0].mxu0
  %v205 = vadd.f32 %v38, %v204
  %v206 = vpop.f32.mrb[0].mxu0
  %207 = vdwg.mxu0
  %208 = vst [vmem:[%s3] sm:$0xff] %v146
  %209 = vst [vmem:[%s3 + $0x8] sm:$0xff] %v149
  %210 = vst [vmem:[%s3 + $0x10] sm:$0xff] %v154
  %211 = vst [vmem:[%s3 + $0x18] sm:$0xff] %v157
  %212 = vst [vmem:[%s3 + $0x20] sm:$0xff] %v162
  %213 = vst [vmem:[%s3 + $0x28] sm:$0xff] %v165
  %214 = vst [vmem:[%s3 + $0x30] sm:$0xff] %v170
  %215 = vst [vmem:[%s3 + $0x38] sm:$0xff] %v173
  %216 = vst [vmem:[%s3 + $0x40] sm:$0xff] %v178
  %217 = vst [vmem:[%s3 + $0x48] sm:$0xff] %v181
  %218 = vst [vmem:[%s3 + $0x50] sm:$0xff] %v186
  %219 = vst [vmem:[%s3 + $0x58] sm:$0xff] %v189
  %220 = vst [vmem:[%s3 + $0x60] sm:$0xff] %v194
  %221 = vst [vmem:[%s3 + $0x68] sm:$0xff] %v197
  %222 = vst [vmem:[%s3 + $0x70] sm:$0xff] %v202
  %223 = vst [vmem:[%s3 + $0x78] sm:$0xff] %v205
  // Predicated region
  $region14: #{aacn_vgg_forward.5} parent=0 // pred_check
    _
  $region15: #{aacn_vgg_forward.5} parent=0 // pred_check_branch
    %225 = sbr.rel (0) target = $region17
  $region16: #{aacn_vgg_forward.5} parent=0 // pred_region
    _
  $region17: #{aacn_vgg_forward.5} parent=0 // pred_fallthru
    _
  // Predicated region
  $region18: #{aacn_vgg_forward.5} parent=0 // pred_check
    _
  $region19: #{aacn_vgg_forward.5} parent=0 // pred_check_branch
    %227 = sbr.rel (0) target = $region21
  $region20: #{aacn_vgg_forward.5} parent=0 // pred_region
    _
  $region21: #{aacn_vgg_forward.5} parent=0 // pred_fallthru
    _

// kernel: aacn_vgg_forward.4
$region0: #{aacn_vgg_forward.4}
  #allocation0 [shape = 'u32[]', space=smem, size = 0x4, offset = 0x4, fixed_abs, tag = 'smem constant byte address 0x4 - core index']
  #allocation1 [shape = 'u32[144,128]{1,0:T(1,128)}', space=vmem, size = 0x12000, scoped, tag = 'internal scratch']
  %s0 = inlined_call_operand.vmem [shape: bf16[2,8,64,20], index: 0, kind: input, shape index: {}]
  %s1 = inlined_call_operand.vmem [shape: bf16[2,8,64,20], index: 1, kind: input, shape index: {}]
  %s2 = inlined_call_operand.vmem [shape: bf16[2,8,64,2], index: 2, kind: input, shape index: {}]
  %s3 = inlined_call_operand.vmem [shape: bf16[2,8,64,64], index: 3, kind: input, shape index: {}]
  %s4 = inlined_call_operand.vmem [shape: bf16[2,10,10,64], index: 4, kind: input, shape index: {}]
  %s5 = inlined_call_operand.vmem [shape: bf16[576,48], index: 5, kind: input, shape index: {}]
  %s6 = inlined_call_operand.vmem [shape: f32[1,48], index: 6, kind: input, shape index: {}]
  %s7 = inlined_call_operand.vmem [shape: bf16[16,16], index: 7, kind: input, shape index: {}]
  %s8 = inlined_call_operand.vmem [shape: f32[16,1], index: 8, kind: input, shape index: {}]
  %s9 = inlined_call_operand.vmem [shape: f32[2,64,48], index: 9, kind: output, shape index: {0}]
  %s10 = inlined_call_operand.vmem [shape: f32[2,8,64,2], index: 10, kind: output, shape index: {1}]
  %11 = xla_tuple %s9, %s10
  %s12 = sld [smem:[#allocation0]]
  $region54: #{aacn_vgg_forward.4} parent=0
    _
  %s14 = ssub.s32 1, %s12
  %s15 = scalar_select 0, %s14, %s12
  // Predicated region
  $region2: #{aacn_vgg_forward.4} parent=0 // pred_check
    _
  $region3: #{aacn_vgg_forward.4} parent=0 // pred_check_branch
    %17 = sbr.rel (0) target = $region5
  $region4: #{aacn_vgg_forward.4} parent=0 // pred_region
    _
  $region5: #{aacn_vgg_forward.4} parent=0 // pred_fallthru
    _
  // Predicated region
  $region6: #{aacn_vgg_forward.4} parent=0 // pred_check
    _
  $region7: #{aacn_vgg_forward.4} parent=0 // pred_check_branch
    %19 = sbr.rel (0) target = $region9
  $region8: #{aacn_vgg_forward.4} parent=0 // pred_region
    _
  $region9: #{aacn_vgg_forward.4} parent=0 // pred_fallthru
    _
  // Predicated region
  $region10: #{aacn_vgg_forward.4} parent=0 // pred_check
    _
  $region11: #{aacn_vgg_forward.4} parent=0 // pred_check_branch
    %21 = sbr.rel (0) target = $region13
  $region12: #{aacn_vgg_forward.4} parent=0 // pred_region
    _
  $region13: #{aacn_vgg_forward.4} parent=0 // pred_fallthru
    _
  // Predicated region
  $region14: #{aacn_vgg_forward.4} parent=0 // pred_check
    _
  $region15: #{aacn_vgg_forward.4} parent=0 // pred_check_branch
    %23 = sbr.rel (0) target = $region17
  $region16: #{aacn_vgg_forward.4} parent=0 // pred_region
    _
  $region17: #{aacn_vgg_forward.4} parent=0 // pred_fallthru
    _
  // Predicated region
  $region18: #{aacn_vgg_forward.4} parent=0 // pred_check
    _
  $region19: #{aacn_vgg_forward.4} parent=0 // pred_check_branch
    %25 = sbr.rel (0) target = $region21
  $region20: #{aacn_vgg_forward.4} parent=0 // pred_region
    _
  $region21: #{aacn_vgg_forward.4} parent=0 // pred_fallthru
    _
  // Predicated region
  $region22: #{aacn_vgg_forward.4} parent=0 // pred_check
    _
  $region23: #{aacn_vgg_forward.4} parent=0 // pred_check_branch
    %27 = sbr.rel (0) target = $region25
  $region24: #{aacn_vgg_forward.4} parent=0 // pred_region
    _
  $region25: #{aacn_vgg_forward.4} parent=0 // pred_fallthru
    _
  // Predicated region
  $region26: #{aacn_vgg_forward.4} parent=0 // pred_check
    _
  $region27: #{aacn_vgg_forward.4} parent=0 // pred_check_branch
    %29 = sbr.rel (0) target = $region29
  $region28: #{aacn_vgg_forward.4} parent=0 // pred_region
    _
  $region29: #{aacn_vgg_forward.4} parent=0 // pred_fallthru
    _
  // Predicated region
  $region30: #{aacn_vgg_forward.4} parent=0 // pred_check
    _
  $region31: #{aacn_vgg_forward.4} parent=0 // pred_check_branch
    %31 = sbr.rel (0) target = $region33
  $region32: #{aacn_vgg_forward.4} parent=0 // pred_region
    _
  $region33: #{aacn_vgg_forward.4} parent=0 // pred_fallthru
    _
  // Predicated region
  $region34: #{aacn_vgg_forward.4} parent=0 // pred_check
    _
  $region35: #{aacn_vgg_forward.4} parent=0 // pred_check_branch
    %33 = sbr.rel (0) target = $region37
  $region36: #{aacn_vgg_forward.4} parent=0 // pred_region
    _
  $region37: #{aacn_vgg_forward.4} parent=0 // pred_fallthru
    _
  %v35 = vld [vmem:[%s4] sm:$0xf]
  %v36 = vld [vmem:[%s4 + $0x4] sm:$0x1]
  %v37 = vld [vmem:[%s4 + $0x8] sm:$0xf]
  %v38 = vld [vmem:[%s4 + $0xc] sm:$0x1]
  %v39 = vld [vmem:[%s4 + $0x10] sm:$0xf]
  %v40 = vld [vmem:[%s4 + $0x14] sm:$0x1]
  %v41 = vld [vmem:[%s4 + $0x18] sm:$0xf]
  %v42 = vld [vmem:[%s4 + $0x1c] sm:$0x1]
  %v43 = vld [vmem:[%s4 + $0x20] sm:$0xf]
  %v44 = vld [vmem:[%s4 + $0x24] sm:$0x1]
  %v45 = vld [vmem:[%s4 + $0x28] sm:$0xf]
  %v46 = vld [vmem:[%s4 + $0x2c] sm:$0x1]
  %v47 = vld [vmem:[%s4 + $0x30] sm:$0xf]
  %v48 = vld [vmem:[%s4 + $0x34] sm:$0x1]
  %v49 = vld [vmem:[%s4 + $0x38] sm:$0xf]
  %v50 = vld [vmem:[%s4 + $0x3c] sm:$0x1]
  %v51 = vld [vmem:[%s4 + $0x40] sm:$0xf]
  %v52 = vld [vmem:[%s4 + $0x44] sm:$0x1]
  %v53 = vld [vmem:[%s4 + $0x48] sm:$0xf]
  %v54 = vld [vmem:[%s4 + $0x4c] sm:$0x1]
  %vm55 = vsmask.f32 3328
  %vm56 = vsmask.f32 7440
  %vm57 = vmor %vm55, %vm56
  %v59 = vshrl.u32 %v35, 16
  %v61 = vrot.slane %v59, 4
  %v62 = vshll.u32 %v35, 16
  %v64 = vrot.slane %v62, 5
  %v65 = vor.u32 %v61, %v64
  %v66 = vrot.slane %v65, 4
  %v68 = vshll.u32 %v36, 16
  %v70 = vrot.slane %v68, 5
  %v71 = vsel %vm57, %v66, %v70
  %v73 = vshrl.u32 %v37, 16
  %v75 = vrot.slane %v73, 4
  %v76 = vshll.u32 %v37, 16
  %v78 = vrot.slane %v76, 5
  %v79 = vor.u32 %v75, %v78
  %v80 = vrot.slane %v79, 4
  %v82 = vshll.u32 %v38, 16
  %v84 = vrot.slane %v82, 5
  %v85 = vsel %vm57, %v80, %v84
  %v87 = vshrl.u32 %v39, 16
  %v89 = vrot.slane %v87, 4
  %v90 = vshll.u32 %v39, 16
  %v92 = vrot.slane %v90, 5
  %v93 = vor.u32 %v89, %v92
  %v94 = vrot.slane %v93, 4
  %v96 = vshll.u32 %v40, 16
  %v98 = vrot.slane %v96, 5
  %v99 = vsel %vm57, %v94, %v98
  %v101 = vshrl.u32 %v41, 16
  %v103 = vrot.slane %v101, 4
  %v104 = vshll.u32 %v41, 16
  %v106 = vrot.slane %v104, 5
  %v107 = vor.u32 %v103, %v106
  %v108 = vrot.slane %v107, 4
  %v110 = vshll.u32 %v42, 16
  %v112 = vrot.slane %v110, 5
  %v113 = vsel %vm57, %v108, %v112
  %v115 = vshrl.u32 %v43, 16
  %v117 = vrot.slane %v115, 4
  %v118 = vshll.u32 %v43, 16
  %v120 = vrot.slane %v118, 5
  %v121 = vor.u32 %v117, %v120
  %v122 = vrot.slane %v121, 4
  %v124 = vshll.u32 %v44, 16
  %v126 = vrot.slane %v124, 5
  %v127 = vsel %vm57, %v122, %v126
  %v129 = vshrl.u32 %v45, 16
  %v131 = vrot.slane %v129, 4
  %v132 = vshll.u32 %v45, 16
  %v134 = vrot.slane %v132, 5
  %v135 = vor.u32 %v131, %v134
  %v136 = vrot.slane %v135, 4
  %v138 = vshll.u32 %v46, 16
  %v140 = vrot.slane %v138, 5
  %v141 = vsel %vm57, %v136, %v140
  %v143 = vshrl.u32 %v47, 16
  %v145 = vrot.slane %v143, 4
  %v146 = vshll.u32 %v47, 16
  %v148 = vrot.slane %v146, 5
  %v149 = vor.u32 %v145, %v148
  %v150 = vrot.slane %v149, 4
  %v152 = vshll.u32 %v48, 16
  %v154 = vrot.slane %v152, 5
  %v155 = vsel %vm57, %v150, %v154
  %v157 = vshrl.u32 %v49, 16
  %v159 = vrot.slane %v157, 4
  %v160 = vshll.u32 %v49, 16
  %v162 = vrot.slane %v160, 5
  %v163 = vor.u32 %v159, %v162
  %v164 = vrot.slane %v163, 4
  %v166 = vshll.u32 %v50, 16
  %v168 = vrot.slane %v166, 5
  %v169 = vsel %vm57, %v164, %v168
  %vm186 = vcmask 1042432
  %vm187 = vcmask 1046532
  %vm188 = vmor %vm186, %vm187
  %v189 = vrot.slane %v35, 5
  %v190 = vrot.slane %v189, 4
  %v191 = vrot.slane %v36, 5
  %v192 = vsel %vm188, %v190, %v191
  %v193 = vrot.slane %v37, 5
  %v194 = vrot.slane %v193, 4
  %v195 = vrot.slane %v38, 5
  %v196 = vsel %vm188, %v194, %v195
  %v197 = vrot.slane %v39, 5
  %v198 = vrot.slane %v197, 4
  %v199 = vrot.slane %v40, 5
  %v200 = vsel %vm188, %v198, %v199
  %v201 = vrot.slane %v41, 5
  %v202 = vrot.slane %v201, 4
  %v203 = vrot.slane %v42, 5
  %v204 = vsel %vm188, %v202, %v203
  %v205 = vrot.slane %v43, 5
  %v206 = vrot.slane %v205, 4
  %v207 = vrot.slane %v44, 5
  %v208 = vsel %vm188, %v206, %v207
  %v209 = vrot.slane %v45, 5
  %v210 = vrot.slane %v209, 4
  %v211 = vrot.slane %v46, 5
  %v212 = vsel %vm188, %v210, %v211
  %v213 = vrot.slane %v47, 5
  %v214 = vrot.slane %v213, 4
  %v215 = vrot.slane %v48, 5
  %v216 = vsel %vm188, %v214, %v215
  %v217 = vrot.slane %v49, 5
  %v218 = vrot.slane %v217, 4
  %v219 = vrot.slane %v50, 5
  %v220 = vsel %vm188, %v218, %v219
  %v222 = vshrl.u32 %v51, 16
  %v224 = vrot.slane %v222, 4
  %v225 = vshll.u32 %v51, 16
  %v227 = vrot.slane %v225, 5
  %v228 = vor.u32 %v224, %v227
  %v229 = vrot.slane %v228, 4
  %v231 = vshll.u32 %v52, 16
  %v233 = vrot.slane %v231, 5
  %v234 = vsel %vm57, %v229, %v233
  %v237 = vrot.slane %v51, 5
  %v238 = vrot.slane %v237, 4
  %v239 = vrot.slane %v52, 5
  %v240 = vsel %vm188, %v238, %v239
  %v242 = vshrl.u32 %v53, 16
  %v244 = vrot.slane %v242, 4
  %v245 = vshll.u32 %v53, 16
  %v247 = vrot.slane %v245, 5
  %v248 = vor.u32 %v244, %v247
  %v249 = vrot.slane %v248, 4
  %v251 = vshll.u32 %v54, 16
  %v253 = vrot.slane %v251, 5
  %v254 = vsel %vm57, %v249, %v253
  %v257 = vrot.slane %v53, 5
  %v258 = vrot.slane %v257, 4
  %v259 = vrot.slane %v54, 5
  %v260 = vsel %vm188, %v258, %v259
  %v261 = vld [vmem:[%s5] sm:$0xf]
  %v262 = vld [vmem:[%s5 + $0x4] sm:$0xf]
  %v263 = vld [vmem:[%s5 + $0x8] sm:$0xf]
  %v264 = vld [vmem:[%s5 + $0xc] sm:$0xf]
  %v265 = vld [vmem:[%s5 + $0x10] sm:$0xf]
  %v266 = vld [vmem:[%s5 + $0x14] sm:$0xf]
  %v267 = vld [vmem:[%s5 + $0x18] sm:$0xf]
  %v268 = vld [vmem:[%s5 + $0x1c] sm:$0xf]
  %v269 = vld [vmem:[%s5 + $0x20] sm:$0xf]
  %v270 = vld [vmem:[%s5 + $0x24] sm:$0xf]
  %v271 = vld [vmem:[%s5 + $0x28] sm:$0xf]
  %v272 = vld [vmem:[%s5 + $0x2c] sm:$0xf]
  %v273 = vld [vmem:[%s5 + $0x30] sm:$0xf]
  %v274 = vld [vmem:[%s5 + $0x34] sm:$0xf]
  %v275 = vld [vmem:[%s5 + $0x38] sm:$0xf]
  %v276 = vld [vmem:[%s5 + $0x3c] sm:$0xf]
  %v277 = vunpack.c.l.b16 %v71
  %v278 = vunpack.c.l.b16 %v85
  %v279 = vunpack.c.l.b16 %v99
  %v280 = vunpack.c.l.b16 %v113
  %v281 = vunpack.c.l.b16 %v127
  %v282 = vunpack.c.l.b16 %v141
  %v283 = vunpack.c.l.b16 %v155
  %v284 = vunpack.c.l.b16 %v169
  %v285 = vpack.c.b16 %v278, %v277
  %v286 = vpack.c.b16 %v280, %v279
  %v287 = vpack.c.b16 %v282, %v281
  %v288 = vpack.c.b16 %v284, %v283
  %v297 = vunpack.c.l.b16 %v269
  %v298 = vunpack.c.l.b16 %v270
  %v299 = vunpack.c.l.b16 %v271
  %v300 = vunpack.c.l.b16 %v272
  %v301 = vunpack.c.l.b16 %v273
  %v302 = vunpack.c.l.b16 %v274
  %v303 = vunpack.c.l.b16 %v275
  %v304 = vunpack.c.l.b16 %v276
  %v305 = vpack.c.b16 %v298, %v297
  %v306 = vpack.c.b16 %v300, %v299
  %v307 = vpack.c.b16 %v302, %v301
  %v308 = vpack.c.b16 %v304, %v303
  %vm313 = vcmask 523264
  %v315 = vsel %vm313, %v285, 0
  %v318 = vsel %vm313, %v286, 0
  %v321 = vsel %vm313, %v287, 0
  %v324 = vsel %vm313, %v288, 0
  %326 = vmatprep.subr.bf16.mxu0 0
  %327 = vmatpush1.bf16.msra.mxu0 %v305
  %328 = vmatprep.subr.bf16.mxu0 0
  %329 = vmatpush1.bf16.msra.mxu0 %v306
  %330 = vmatprep.subr.bf16.mxu0 0
  %331 = vmatpush1.bf16.msra.mxu0 %v307
  %332 = vmatprep.subr.bf16.mxu0 0
  %333 = vmatpush1.bf16.msra.mxu0 %v308
  %334 = vmatprep.subr.bf16.mxu0 0
  %335 = vmatpush1.bf16.msra.mxu0 0
  %336 = vmatprep.subr.bf16.mxu0 0
  %337 = vmatpush1.bf16.msra.mxu0 0
  %338 = vmatprep.subr.bf16.mxu0 0
  %339 = vmatpush1.bf16.msra.mxu0 0
  %340 = vmatprep.subr.bf16.mxu0 0
  %341 = vmatpush1.bf16.msra.mxu0 0
  %342 = vmatprep.subr.bf16.mxu0 0
  %343 = vmatpush1.bf16.msra.mxu0 0
  %344 = vmatprep.subr.bf16.mxu0 0
  %345 = vmatpush1.bf16.msra.mxu0 0
  %346 = vmatprep.subr.bf16.mxu0 0
  %347 = vmatpush1.bf16.msra.mxu0 0
  %348 = vmatprep.subr.bf16.mxu0 0
  %349 = vmatpush1.bf16.msra.mxu0 0
  %350 = vmatprep.subr.bf16.mxu0 0
  %351 = vmatpush1.bf16.msra.mxu0 0
  %352 = vmatprep.subr.bf16.mxu0 0
  %353 = vmatpush1.bf16.msra.mxu0 0
  %354 = vmatprep.subr.bf16.mxu0 0
  %355 = vmatpush1.bf16.msra.mxu0 0
  %356 = vmatprep.subr.bf16.mxu0 0
  %357 = vmatpush1.bf16.msra.mxu0 0
  %358 = vmatprep.mubr.bf16.mxu0 0
  %359 = vmatmul.mubr.bf16.gmra.mrb[0].mxu0 %v315
  %v360 = vpop.f32.mrb[0].mxu0
  %v361 = vadd.f32 0.0, %v360
  %v362 = vpop.f32.mrb[0].mxu0
  %v363 = vpop.f32.mrb[0].mxu0
  %v364 = vadd.f32 0.0, %v363
  %v365 = vpop.f32.mrb[0].mxu0
  %366 = vmatprep.mubr.bf16.mxu0 0
  %367 = vmatmul.mubr.bf16.gmra.mrb[0].mxu0 %v318
  %v368 = vpop.f32.mrb[0].mxu0
  %v369 = vadd.f32 0.0, %v368
  %v370 = vpop.f32.mrb[0].mxu0
  %v371 = vpop.f32.mrb[0].mxu0
  %v372 = vadd.f32 0.0, %v371
  %v373 = vpop.f32.mrb[0].mxu0
  %374 = vmatprep.mubr.bf16.mxu0 0
  %375 = vmatmul.mubr.bf16.gmra.mrb[0].mxu0 %v321
  %v376 = vpop.f32.mrb[0].mxu0
  %v377 = vadd.f32 0.0, %v376
  %v378 = vpop.f32.mrb[0].mxu0
  %v379 = vpop.f32.mrb[0].mxu0
  %v380 = vadd.f32 0.0, %v379
  %v381 = vpop.f32.mrb[0].mxu0
  %382 = vmatprep.mubr.bf16.mxu0 0
  %383 = vmatmul.mubr.bf16.gmra.mrb[0].mxu0 %v324
  %v384 = vpop.f32.mrb[0].mxu0
  %v385 = vadd.f32 0.0, %v384
  %v386 = vpop.f32.mrb[0].mxu0
  %v387 = vpop.f32.mrb[0].mxu0
  %v388 = vadd.f32 0.0, %v387
  %v389 = vpop.f32.mrb[0].mxu0
  %390 = vdwg.mxu0
  %v391 = vunpack.c.l.b16 %v35
  %v392 = vunpack.c.l.b16 %v37
  %v393 = vunpack.c.l.b16 %v39
  %v394 = vunpack.c.l.b16 %v41
  %v395 = vunpack.c.l.b16 %v43
  %v396 = vunpack.c.l.b16 %v45
  %v397 = vunpack.c.l.b16 %v47
  %v398 = vunpack.c.l.b16 %v49
  %v399 = vpack.c.b16 %v392, %v391
  %v400 = vpack.c.b16 %v394, %v393
  %v401 = vpack.c.b16 %v396, %v395
  %v402 = vpack.c.b16 %v398, %v397
  %v411 = vunpack.c.l.b16 %v261
  %v412 = vunpack.c.l.b16 %v262
  %v413 = vunpack.c.l.b16 %v263
  %v414 = vunpack.c.l.b16 %v264
  %v415 = vunpack.c.l.b16 %v265
  %v416 = vunpack.c.l.b16 %v266
  %v417 = vunpack.c.l.b16 %v267
  %v418 = vunpack.c.l.b16 %v268
  %v419 = vpack.c.b16 %v412, %v411
  %v420 = vpack.c.b16 %v414, %v413
  %v421 = vpack.c.b16 %v416, %v415
  %v422 = vpack.c.b16 %v418, %v417
  %v428 = vsel %vm313, %v399, 0
  %v431 = vsel %vm313, %v400, 0
  %v434 = vsel %vm313, %v401, 0
  %v437 = vsel %vm313, %v402, 0
  %439 = vmatprep.subr.bf16.mxu0 0
  %440 = vmatpush1.bf16.msra.mxu0 %v419
  %441 = vmatprep.subr.bf16.mxu0 0
  %442 = vmatpush1.bf16.msra.mxu0 %v420
  %443 = vmatprep.subr.bf16.mxu0 0
  %444 = vmatpush1.bf16.msra.mxu0 %v421
  %445 = vmatprep.subr.bf16.mxu0 0
  %446 = vmatpush1.bf16.msra.mxu0 %v422
  %447 = vmatprep.subr.bf16.mxu0 0
  %448 = vmatpush1.bf16.msra.mxu0 0
  %449 = vmatprep.subr.bf16.mxu0 0
  %450 = vmatpush1.bf16.msra.mxu0 0
  %451 = vmatprep.subr.bf16.mxu0 0
  %452 = vmatpush1.bf16.msra.mxu0 0
  %453 = vmatprep.subr.bf16.mxu0 0
  %454 = vmatpush1.bf16.msra.mxu0 0
  %455 = vmatprep.subr.bf16.mxu0 0
  %456 = vmatpush1.bf16.msra.mxu0 0
  %457 = vmatprep.subr.bf16.mxu0 0
  %458 = vmatpush1.bf16.msra.mxu0 0
  %459 = vmatprep.subr.bf16.mxu0 0
  %460 = vmatpush1.bf16.msra.mxu0 0
  %461 = vmatprep.subr.bf16.mxu0 0
  %462 = vmatpush1.bf16.msra.mxu0 0
  %463 = vmatprep.subr.bf16.mxu0 0
  %464 = vmatpush1.bf16.msra.mxu0 0
  %465 = vmatprep.subr.bf16.mxu0 0
  %466 = vmatpush1.bf16.msra.mxu0 0
  %467 = vmatprep.subr.bf16.mxu0 0
  %468 = vmatpush1.bf16.msra.mxu0 0
  %469 = vmatprep.subr.bf16.mxu0 0
  %470 = vmatpush1.bf16.msra.mxu0 0
  %471 = vmatprep.mubr.bf16.mxu0 0
  %472 = vmatmul.mubr.bf16.gmra.mrb[0].mxu0 %v428
  %v473 = vpop.f32.mrb[0].mxu0
  %v474 = vadd.f32 %v361, %v473
  %v475 = vpop.f32.mrb[0].mxu0
  %v476 = vpop.f32.mrb[0].mxu0
  %v477 = vadd.f32 %v364, %v476
  %v478 = vpop.f32.mrb[0].mxu0
  %479 = vmatprep.mubr.bf16.mxu0 0
  %480 = vmatmul.mubr.bf16.gmra.mrb[0].mxu0 %v431
  %v481 = vpop.f32.mrb[0].mxu0
  %v482 = vadd.f32 %v369, %v481
  %v483 = vpop.f32.mrb[0].mxu0
  %v484 = vpop.f32.mrb[0].mxu0
  %v485 = vadd.f32 %v372, %v484
  %v486 = vpop.f32.mrb[0].mxu0
  %487 = vmatprep.mubr.bf16.mxu0 0
  %488 = vmatmul.mubr.bf16.gmra.mrb[0].mxu0 %v434
  %v489 = vpop.f32.mrb[0].mxu0
  %v490 = vadd.f32 %v377, %v489
  %v491 = vpop.f32.mrb[0].mxu0
  %v492 = vpop.f32.mrb[0].mxu0
  %v493 = vadd.f32 %v380, %v492
  %v494 = vpop.f32.mrb[0].mxu0
  %495 = vmatprep.mubr.bf16.mxu0 0
  %496 = vmatmul.mubr.bf16.gmra.mrb[0].mxu0 %v437
  %v497 = vpop.f32.mrb[0].mxu0
  %v498 = vadd.f32 %v385, %v497
  %v499 = vpop.f32.mrb[0].mxu0
  %v500 = vpop.f32.mrb[0].mxu0
  %v501 = vadd.f32 %v388, %v500
  %v502 = vpop.f32.mrb[0].mxu0
  %503 = vdwg.mxu0
  %v504 = vld [vmem:[%s5 + $0x40] sm:$0xf]
  %v505 = vld [vmem:[%s5 + $0x44] sm:$0xf]
  %v506 = vld [vmem:[%s5 + $0x48] sm:$0xf]
  %v507 = vld [vmem:[%s5 + $0x4c] sm:$0xf]
  %v508 = vld [vmem:[%s5 + $0x50] sm:$0xf]
  %v509 = vld [vmem:[%s5 + $0x54] sm:$0xf]
  %v510 = vld [vmem:[%s5 + $0x58] sm:$0xf]
  %v511 = vld [vmem:[%s5 + $0x5c] sm:$0xf]
  %v512 = vunpack.c.l.b16 %v192
  %v513 = vunpack.c.l.b16 %v196
  %v514 = vunpack.c.l.b16 %v200
  %v515 = vunpack.c.l.b16 %v204
  %v516 = vunpack.c.l.b16 %v208
  %v517 = vunpack.c.l.b16 %v212
  %v518 = vunpack.c.l.b16 %v216
  %v519 = vunpack.c.l.b16 %v220
  %v520 = vpack.c.b16 %v513, %v512
  %v521 = vpack.c.b16 %v515, %v514
  %v522 = vpack.c.b16 %v517, %v516
  %v523 = vpack.c.b16 %v519, %v518
  %v532 = vunpack.c.l.b16 %v504
  %v533 = vunpack.c.l.b16 %v505
  %v534 = vunpack.c.l.b16 %v506
  %v535 = vunpack.c.l.b16 %v507
  %v536 = vunpack.c.l.b16 %v508
  %v537 = vunpack.c.l.b16 %v509
  %v538 = vunpack.c.l.b16 %v510
  %v539 = vunpack.c.l.b16 %v511
  %v540 = vpack.c.b16 %v533, %v532
  %v541 = vpack.c.b16 %v535, %v534
  %v542 = vpack.c.b16 %v537, %v536
  %v543 = vpack.c.b16 %v539, %v538
  %v549 = vsel %vm313, %v520, 0
  %v552 = vsel %vm313, %v521, 0
  %v555 = vsel %vm313, %v522, 0
  %v558 = vsel %vm313, %v523, 0
  %560 = vmatprep.subr.bf16.mxu0 0
  %561 = vmatpush1.bf16.msra.mxu0 %v540
  %562 = vmatprep.subr.bf16.mxu0 0
  %563 = vmatpush1.bf16.msra.mxu0 %v541
  %564 = vmatprep.subr.bf16.mxu0 0
  %565 = vmatpush1.bf16.msra.mxu0 %v542
  %566 = vmatprep.subr.bf16.mxu0 0
  %567 = vmatpush1.bf16.msra.mxu0 %v543
  %568 = vmatprep.subr.bf16.mxu0 0
  %569 = vmatpush1.bf16.msra.mxu0 0
  %570 = vmatprep.subr.bf16.mxu0 0
  %571 = vmatpush1.bf16.msra.mxu0 0
  %572 = vmatprep.subr.bf16.mxu0 0
  %573 = vmatpush1.bf16.msra.mxu0 0
  %574 = vmatprep.subr.bf16.mxu0 0
  %575 = vmatpush1.bf16.msra.mxu0 0
  %576 = vmatprep.subr.bf16.mxu0 0
  %577 = vmatpush1.bf16.msra.mxu0 0
  %578 = vmatprep.subr.bf16.mxu0 0
  %579 = vmatpush1.bf16.msra.mxu0 0
  %580 = vmatprep.subr.bf16.mxu0 0
  %581 = vmatpush1.bf16.msra.mxu0 0
  %582 = vmatprep.subr.bf16.mxu0 0
  %583 = vmatpush1.bf16.msra.mxu0 0
  %584 = vmatprep.subr.bf16.mxu0 0
  %585 = vmatpush1.bf16.msra.mxu0 0
  %586 = vmatprep.subr.bf16.mxu0 0
  %587 = vmatpush1.bf16.msra.mxu0 0
  %588 = vmatprep.subr.bf16.mxu0 0
  %589 = vmatpush1.bf16.msra.mxu0 0
  %590 = vmatprep.subr.bf16.mxu0 0
  %591 = vmatpush1.bf16.msra.mxu0 0
  %592 = vmatprep.mubr.bf16.mxu0 0
  %593 = vmatmul.mubr.bf16.gmra.mrb[0].mxu0 %v549
  %v594 = vpop.f32.mrb[0].mxu0
  %v595 = vadd.f32 0.0, %v594
  %v596 = vpop.f32.mrb[0].mxu0
  %v597 = vpop.f32.mrb[0].mxu0
  %v598 = vadd.f32 0.0, %v597
  %v599 = vpop.f32.mrb[0].mxu0
  %600 = vmatprep.mubr.bf16.mxu0 0
  %601 = vmatmul.mubr.bf16.gmra.mrb[0].mxu0 %v552
  %v602 = vpop.f32.mrb[0].mxu0
  %v603 = vadd.f32 0.0, %v602
  %v604 = vpop.f32.mrb[0].mxu0
  %v605 = vpop.f32.mrb[0].mxu0
  %v606 = vadd.f32 0.0, %v605
  %v607 = vpop.f32.mrb[0].mxu0
  %608 = vmatprep.mubr.bf16.mxu0 0
  %609 = vmatmul.mubr.bf16.gmra.mrb[0].mxu0 %v555
  %v610 = vpop.f32.mrb[0].mxu0
  %v611 = vadd.f32 0.0, %v610
  %v612 = vpop.f32.mrb[0].mxu0
  %v613 = vpop.f32.mrb[0].mxu0
  %v614 = vadd.f32 0.0, %v613
  %v615 = vpop.f32.mrb[0].mxu0
  %616 = vmatprep.mubr.bf16.mxu0 0
  %617 = vmatmul.mubr.bf16.gmra.mrb[0].mxu0 %v558
  %v618 = vpop.f32.mrb[0].mxu0
  %v619 = vadd.f32 0.0, %v618
  %v620 = vpop.f32.mrb[0].mxu0
  %v621 = vpop.f32.mrb[0].mxu0
  %v622 = vadd.f32 0.0, %v621
  %v623 = vpop.f32.mrb[0].mxu0
  %624 = vdwg.mxu0
  %v625 = vadd.f32 %v474, %v595
  %v626 = vadd.f32 %v477, %v598
  %v627 = vadd.f32 %v482, %v603
  %v628 = vadd.f32 %v485, %v606
  %v629 = vadd.f32 %v490, %v611
  %v630 = vadd.f32 %v493, %v614
  %v631 = vadd.f32 %v498, %v619
  %v632 = vadd.f32 %v501, %v622
  %v633 = vld [vmem:[%s5 + $0x60] sm:$0xf]
  %v634 = vld [vmem:[%s5 + $0x64] sm:$0xf]
  %v635 = vld [vmem:[%s5 + $0x68] sm:$0xf]
  %v636 = vld [vmem:[%s5 + $0x6c] sm:$0xf]
  %v637 = vld [vmem:[%s5 + $0x70] sm:$0xf]
  %v638 = vld [vmem:[%s5 + $0x74] sm:$0xf]
  %v639 = vld [vmem:[%s5 + $0x78] sm:$0xf]
  %v640 = vld [vmem:[%s5 + $0x7c] sm:$0xf]
  %v641 = vunpack.c.l.b16 %v51
  %v642 = vpack.c.b16 %v393, %v392
  %v643 = vpack.c.b16 %v395, %v394
  %v644 = vpack.c.b16 %v397, %v396
  %v645 = vpack.c.b16 %v641, %v398
  %v654 = vunpack.c.l.b16 %v633
  %v655 = vunpack.c.l.b16 %v634
  %v656 = vunpack.c.l.b16 %v635
  %v657 = vunpack.c.l.b16 %v636
  %v658 = vunpack.c.l.b16 %v637
  %v659 = vunpack.c.l.b16 %v638
  %v660 = vunpack.c.l.b16 %v639
  %v661 = vunpack.c.l.b16 %v640
  %v662 = vpack.c.b16 %v655, %v654
  %v663 = vpack.c.b16 %v657, %v656
  %v664 = vpack.c.b16 %v659, %v658
  %v665 = vpack.c.b16 %v661, %v660
  %v671 = vsel %vm313, %v642, 0
  %v674 = vsel %vm313, %v643, 0
  %v677 = vsel %vm313, %v644, 0
  %v680 = vsel %vm313, %v645, 0
  %682 = vmatprep.subr.bf16.mxu0 0
  %683 = vmatpush1.bf16.msra.mxu0 %v662
  %684 = vmatprep.subr.bf16.mxu0 0
  %685 = vmatpush1.bf16.msra.mxu0 %v663
  %686 = vmatprep.subr.bf16.mxu0 0
  %687 = vmatpush1.bf16.msra.mxu0 %v664
  %688 = vmatprep.subr.bf16.mxu0 0
  %689 = vmatpush1.bf16.msra.mxu0 %v665
  %690 = vmatprep.subr.bf16.mxu0 0
  %691 = vmatpush1.bf16.msra.mxu0 0
  %692 = vmatprep.subr.bf16.mxu0 0
  %693 = vmatpush1.bf16.msra.mxu0 0
  %694 = vmatprep.subr.bf16.mxu0 0
  %695 = vmatpush1.bf16.msra.mxu0 0
  %696 = vmatprep.subr.bf16.mxu0 0
  %697 = vmatpush1.bf16.msra.mxu0 0
  %698 = vmatprep.subr.bf16.mxu0 0
  %699 = vmatpush1.bf16.msra.mxu0 0
  %700 = vmatprep.subr.bf16.mxu0 0
  %701 = vmatpush1.bf16.msra.mxu0 0
  %702 = vmatprep.subr.bf16.mxu0 0
  %703 = vmatpush1.bf16.msra.mxu0 0
  %704 = vmatprep.subr.bf16.mxu0 0
  %705 = vmatpush1.bf16.msra.mxu0 0
  %706 = vmatprep.subr.bf16.mxu0 0
  %707 = vmatpush1.bf16.msra.mxu0 0
  %708 = vmatprep.subr.bf16.mxu0 0
  %709 = vmatpush1.bf16.msra.mxu0 0
  %710 = vmatprep.subr.bf16.mxu0 0
  %711 = vmatpush1.bf16.msra.mxu0 0
  %712 = vmatprep.subr.bf16.mxu0 0
  %713 = vmatpush1.bf16.msra.mxu0 0
  %714 = vmatprep.mubr.bf16.mxu0 0
  %715 = vmatmul.mubr.bf16.gmra.mrb[0].mxu0 %v671
  %v716 = vpop.f32.mrb[0].mxu0
  %v717 = vadd.f32 0.0, %v716
  %v718 = vpop.f32.mrb[0].mxu0
  %v719 = vpop.f32.mrb[0].mxu0
  %v720 = vadd.f32 0.0, %v719
  %v721 = vpop.f32.mrb[0].mxu0
  %722 = vmatprep.mubr.bf16.mxu0 0
  %723 = vmatmul.mubr.bf16.gmra.mrb[0].mxu0 %v674
  %v724 = vpop.f32.mrb[0].mxu0
  %v725 = vadd.f32 0.0, %v724
  %v726 = vpop.f32.mrb[0].mxu0
  %v727 = vpop.f32.mrb[0].mxu0
  %v728 = vadd.f32 0.0, %v727
  %v729 = vpop.f32.mrb[0].mxu0
  %730 = vmatprep.mubr.bf16.mxu0 0
  %731 = vmatmul.mubr.bf16.gmra.mrb[0].mxu0 %v677
  %v732 = vpop.f32.mrb[0].mxu0
  %v733 = vadd.f32 0.0, %v732
  %v734 = vpop.f32.mrb[0].mxu0
  %v735 = vpop.f32.mrb[0].mxu0
  %v736 = vadd.f32 0.0, %v735
  %v737 = vpop.f32.mrb[0].mxu0
  %738 = vmatprep.mubr.bf16.mxu0 0
  %739 = vmatmul.mubr.bf16.gmra.mrb[0].mxu0 %v680
  %v740 = vpop.f32.mrb[0].mxu0
  %v741 = vadd.f32 0.0, %v740
  %v742 = vpop.f32.mrb[0].mxu0
  %v743 = vpop.f32.mrb[0].mxu0
  %v744 = vadd.f32 0.0, %v743
  %v745 = vpop.f32.mrb[0].mxu0
  %746 = vdwg.mxu0
  %v747 = vadd.f32 %v625, %v717
  %v748 = vadd.f32 %v626, %v720
  %v749 = vadd.f32 %v627, %v725
  %v750 = vadd.f32 %v628, %v728
  %v751 = vadd.f32 %v629, %v733
  %v752 = vadd.f32 %v630, %v736
  %v753 = vadd.f32 %v631, %v741
  %v754 = vadd.f32 %v632, %v744
  %v755 = vld [vmem:[%s5 + $0x80] sm:$0xf]
  %v756 = vld [vmem:[%s5 + $0x84] sm:$0xf]
  %v757 = vld [vmem:[%s5 + $0x88] sm:$0xf]
  %v758 = vld [vmem:[%s5 + $0x8c] sm:$0xf]
  %v759 = vld [vmem:[%s5 + $0x90] sm:$0xf]
  %v760 = vld [vmem:[%s5 + $0x94] sm:$0xf]
  %v761 = vld [vmem:[%s5 + $0x98] sm:$0xf]
  %v762 = vld [vmem:[%s5 + $0x9c] sm:$0xf]
  %v763 = vunpack.c.l.b16 %v234
  %v764 = vpack.c.b16 %v279, %v278
  %v765 = vpack.c.b16 %v281, %v280
  %v766 = vpack.c.b16 %v283, %v282
  %v767 = vpack.c.b16 %v763, %v284
  %v776 = vunpack.c.l.b16 %v755
  %v777 = vunpack.c.l.b16 %v756
  %v778 = vunpack.c.l.b16 %v757
  %v779 = vunpack.c.l.b16 %v758
  %v780 = vunpack.c.l.b16 %v759
  %v781 = vunpack.c.l.b16 %v760
  %v782 = vunpack.c.l.b16 %v761
  %v783 = vunpack.c.l.b16 %v762
  %v784 = vpack.c.b16 %v777, %v776
  %v785 = vpack.c.b16 %v779, %v778
  %v786 = vpack.c.b16 %v781, %v780
  %v787 = vpack.c.b16 %v783, %v782
  %v793 = vsel %vm313, %v764, 0
  %v796 = vsel %vm313, %v765, 0
  %v799 = vsel %vm313, %v766, 0
  %v802 = vsel %vm313, %v767, 0
  %804 = vmatprep.subr.bf16.mxu0 0
  %805 = vmatpush1.bf16.msra.mxu0 %v784
  %806 = vmatprep.subr.bf16.mxu0 0
  %807 = vmatpush1.bf16.msra.mxu0 %v785
  %808 = vmatprep.subr.bf16.mxu0 0
  %809 = vmatpush1.bf16.msra.mxu0 %v786
  %810 = vmatprep.subr.bf16.mxu0 0
  %811 = vmatpush1.bf16.msra.mxu0 %v787
  %812 = vmatprep.subr.bf16.mxu0 0
  %813 = vmatpush1.bf16.msra.mxu0 0
  %814 = vmatprep.subr.bf16.mxu0 0
  %815 = vmatpush1.bf16.msra.mxu0 0
  %816 = vmatprep.subr.bf16.mxu0 0
  %817 = vmatpush1.bf16.msra.mxu0 0
  %818 = vmatprep.subr.bf16.mxu0 0
  %819 = vmatpush1.bf16.msra.mxu0 0
  %820 = vmatprep.subr.bf16.mxu0 0
  %821 = vmatpush1.bf16.msra.mxu0 0
  %822 = vmatprep.subr.bf16.mxu0 0
  %823 = vmatpush1.bf16.msra.mxu0 0
  %824 = vmatprep.subr.bf16.mxu0 0
  %825 = vmatpush1.bf16.msra.mxu0 0
  %826 = vmatprep.subr.bf16.mxu0 0
  %827 = vmatpush1.bf16.msra.mxu0 0
  %828 = vmatprep.subr.bf16.mxu0 0
  %829 = vmatpush1.bf16.msra.mxu0 0
  %830 = vmatprep.subr.bf16.mxu0 0
  %831 = vmatpush1.bf16.msra.mxu0 0
  %832 = vmatprep.subr.bf16.mxu0 0
  %833 = vmatpush1.bf16.msra.mxu0 0
  %834 = vmatprep.subr.bf16.mxu0 0
  %835 = vmatpush1.bf16.msra.mxu0 0
  %836 = vmatprep.mubr.bf16.mxu0 0
  %837 = vmatmul.mubr.bf16.gmra.mrb[0].mxu0 %v793
  %v838 = vpop.f32.mrb[0].mxu0
  %v839 = vadd.f32 0.0, %v838
  %v840 = vpop.f32.mrb[0].mxu0
  %v841 = vpop.f32.mrb[0].mxu0
  %v842 = vadd.f32 0.0, %v841
  %v843 = vpop.f32.mrb[0].mxu0
  %844 = vmatprep.mubr.bf16.mxu0 0
  %845 = vmatmul.mubr.bf16.gmra.mrb[0].mxu0 %v796
  %v846 = vpop.f32.mrb[0].mxu0
  %v847 = vadd.f32 0.0, %v846
  %v848 = vpop.f32.mrb[0].mxu0
  %v849 = vpop.f32.mrb[0].mxu0
  %v850 = vadd.f32 0.0, %v849
  %v851 = vpop.f32.mrb[0].mxu0
  %852 = vmatprep.mubr.bf16.mxu0 0
  %853 = vmatmul.mubr.bf16.gmra.mrb[0].mxu0 %v799
  %v854 = vpop.f32.mrb[0].mxu0
  %v855 = vadd.f32 0.0, %v854
  %v856 = vpop.f32.mrb[0].mxu0
  %v857 = vpop.f32.mrb[0].mxu0
  %v858 = vadd.f32 0.0, %v857
  %v859 = vpop.f32.mrb[0].mxu0
  %860 = vmatprep.mubr.bf16.mxu0 0
  %861 = vmatmul.mubr.bf16.gmra.mrb[0].mxu0 %v802
  %v862 = vpop.f32.mrb[0].mxu0
  %v863 = vadd.f32 0.0, %v862
  %v864 = vpop.f32.mrb[0].mxu0
  %v865 = vpop.f32.mrb[0].mxu0
  %v866 = vadd.f32 0.0, %v865
  %v867 = vpop.f32.mrb[0].mxu0
  %868 = vdwg.mxu0
  %v869 = vadd.f32 %v747, %v839
  %v870 = vadd.f32 %v748, %v842
  %v871 = vadd.f32 %v749, %v847
  %v872 = vadd.f32 %v750, %v850
  %v873 = vadd.f32 %v751, %v855
  %v874 = vadd.f32 %v752, %v858
  %v875 = vadd.f32 %v753, %v863
  %v876 = vadd.f32 %v754, %v866
  %v877 = vld [vmem:[%s5 + $0xa0] sm:$0xf]
  %v878 = vld [vmem:[%s5 + $0xa4] sm:$0xf]
  %v879 = vld [vmem:[%s5 + $0xa8] sm:$0xf]
  %v880 = vld [vmem:[%s5 + $0xac] sm:$0xf]
  %v881 = vld [vmem:[%s5 + $0xb0] sm:$0xf]
  %v882 = vld [vmem:[%s5 + $0xb4] sm:$0xf]
  %v883 = vld [vmem:[%s5 + $0xb8] sm:$0xf]
  %v884 = vld [vmem:[%s5 + $0xbc] sm:$0xf]
  %v885 = vunpack.c.l.b16 %v240
  %v886 = vpack.c.b16 %v514, %v513
  %v887 = vpack.c.b16 %v516, %v515
  %v888 = vpack.c.b16 %v518, %v517
  %v889 = vpack.c.b16 %v885, %v519
  %v898 = vunpack.c.l.b16 %v877
  %v899 = vunpack.c.l.b16 %v878
  %v900 = vunpack.c.l.b16 %v879
  %v901 = vunpack.c.l.b16 %v880
  %v902 = vunpack.c.l.b16 %v881
  %v903 = vunpack.c.l.b16 %v882
  %v904 = vunpack.c.l.b16 %v883
  %v905 = vunpack.c.l.b16 %v884
  %v906 = vpack.c.b16 %v899, %v898
  %v907 = vpack.c.b16 %v901, %v900
  %v908 = vpack.c.b16 %v903, %v902
  %v909 = vpack.c.b16 %v905, %v904
  %v915 = vsel %vm313, %v886, 0
  %v918 = vsel %vm313, %v887, 0
  %v921 = vsel %vm313, %v888, 0
  %v924 = vsel %vm313, %v889, 0
  %926 = vmatprep.subr.bf16.mxu0 0
  %927 = vmatpush1.bf16.msra.mxu0 %v906
  %928 = vmatprep.subr.bf16.mxu0 0
  %929 = vmatpush1.bf16.msra.mxu0 %v907
  %930 = vmatprep.subr.bf16.mxu0 0
  %931 = vmatpush1.bf16.msra.mxu0 %v908
  %932 = vmatprep.subr.bf16.mxu0 0
  %933 = vmatpush1.bf16.msra.mxu0 %v909
  %934 = vmatprep.subr.bf16.mxu0 0
  %935 = vmatpush1.bf16.msra.mxu0 0
  %936 = vmatprep.subr.bf16.mxu0 0
  %937 = vmatpush1.bf16.msra.mxu0 0
  %938 = vmatprep.subr.bf16.mxu0 0
  %939 = vmatpush1.bf16.msra.mxu0 0
  %940 = vmatprep.subr.bf16.mxu0 0
  %941 = vmatpush1.bf16.msra.mxu0 0
  %942 = vmatprep.subr.bf16.mxu0 0
  %943 = vmatpush1.bf16.msra.mxu0 0
  %944 = vmatprep.subr.bf16.mxu0 0
  %945 = vmatpush1.bf16.msra.mxu0 0
  %946 = vmatprep.subr.bf16.mxu0 0
  %947 = vmatpush1.bf16.msra.mxu0 0
  %948 = vmatprep.subr.bf16.mxu0 0
  %949 = vmatpush1.bf16.msra.mxu0 0
  %950 = vmatprep.subr.bf16.mxu0 0
  %951 = vmatpush1.bf16.msra.mxu0 0
  %952 = vmatprep.subr.bf16.mxu0 0
  %953 = vmatpush1.bf16.msra.mxu0 0
  %954 = vmatprep.subr.bf16.mxu0 0
  %955 = vmatpush1.bf16.msra.mxu0 0
  %956 = vmatprep.subr.bf16.mxu0 0
  %957 = vmatpush1.bf16.msra.mxu0 0
  %958 = vmatprep.mubr.bf16.mxu0 0
  %959 = vmatmul.mubr.bf16.gmra.mrb[0].mxu0 %v915
  %v960 = vpop.f32.mrb[0].mxu0
  %v961 = vadd.f32 0.0, %v960
  %v962 = vpop.f32.mrb[0].mxu0
  %v963 = vpop.f32.mrb[0].mxu0
  %v964 = vadd.f32 0.0, %v963
  %v965 = vpop.f32.mrb[0].mxu0
  %966 = vmatprep.mubr.bf16.mxu0 0
  %967 = vmatmul.mubr.bf16.gmra.mrb[0].mxu0 %v918
  %v968 = vpop.f32.mrb[0].mxu0
  %v969 = vadd.f32 0.0, %v968
  %v970 = vpop.f32.mrb[0].mxu0
  %v971 = vpop.f32.mrb[0].mxu0
  %v972 = vadd.f32 0.0, %v971
  %v973 = vpop.f32.mrb[0].mxu0
  %974 = vmatprep.mubr.bf16.mxu0 0
  %975 = vmatmul.mubr.bf16.gmra.mrb[0].mxu0 %v921
  %v976 = vpop.f32.mrb[0].mxu0
  %v977 = vadd.f32 0.0, %v976
  %v978 = vpop.f32.mrb[0].mxu0
  %v979 = vpop.f32.mrb[0].mxu0
  %v980 = vadd.f32 0.0, %v979
  %v981 = vpop.f32.mrb[0].mxu0
  %982 = vmatprep.mubr.bf16.mxu0 0
  %983 = vmatmul.mubr.bf16.gmra.mrb[0].mxu0 %v924
  %v984 = vpop.f32.mrb[0].mxu0
  %v985 = vadd.f32 0.0, %v984
  %v986 = vpop.f32.mrb[0].mxu0
  %v987 = vpop.f32.mrb[0].mxu0
  %v988 = vadd.f32 0.0, %v987
  %v989 = vpop.f32.mrb[0].mxu0
  %990 = vdwg.mxu0
  %v991 = vadd.f32 %v869, %v961
  %v992 = vadd.f32 %v870, %v964
  %v993 = vadd.f32 %v871, %v969
  %v994 = vadd.f32 %v872, %v972
  %v995 = vadd.f32 %v873, %v977
  %v996 = vadd.f32 %v874, %v980
  %v997 = vadd.f32 %v875, %v985
  %v998 = vadd.f32 %v876, %v988
  %v999 = vld [vmem:[%s5 + $0xc0] sm:$0xf]
  %v1000 = vld [vmem:[%s5 + $0xc4] sm:$0xf]
  %v1001 = vld [vmem:[%s5 + $0xc8] sm:$0xf]
  %v1002 = vld [vmem:[%s5 + $0xcc] sm:$0xf]
  %v1003 = vld [vmem:[%s5 + $0xd0] sm:$0xf]
  %v1004 = vld [vmem:[%s5 + $0xd4] sm:$0xf]
  %v1005 = vld [vmem:[%s5 + $0xd8] sm:$0xf]
  %v1006 = vld [vmem:[%s5 + $0xdc] sm:$0xf]
  %v1007 = vunpack.c.l.b16 %v53
  %v1008 = vpack.c.b16 %v1007, %v641
  %v1017 = vunpack.c.l.b16 %v999
  %v1018 = vunpack.c.l.b16 %v1000
  %v1019 = vunpack.c.l.b16 %v1001
  %v1020 = vunpack.c.l.b16 %v1002
  %v1021 = vunpack.c.l.b16 %v1003
  %v1022 = vunpack.c.l.b16 %v1004
  %v1023 = vunpack.c.l.b16 %v1005
  %v1024 = vunpack.c.l.b16 %v1006
  %v1025 = vpack.c.b16 %v1018, %v1017
  %v1026 = vpack.c.b16 %v1020, %v1019
  %v1027 = vpack.c.b16 %v1022, %v1021
  %v1028 = vpack.c.b16 %v1024, %v1023
  %v1034 = vsel %vm313, %v1008, 0
  %1036 = vmatprep.subr.bf16.mxu0 0
  %1037 = vmatpush1.bf16.msra.mxu0 %v1025
  %1038 = vmatprep.subr.bf16.mxu0 0
  %1039 = vmatpush1.bf16.msra.mxu0 %v1026
  %1040 = vmatprep.subr.bf16.mxu0 0
  %1041 = vmatpush1.bf16.msra.mxu0 %v1027
  %1042 = vmatprep.subr.bf16.mxu0 0
  %1043 = vmatpush1.bf16.msra.mxu0 %v1028
  %1044 = vmatprep.subr.bf16.mxu0 0
  %1045 = vmatpush1.bf16.msra.mxu0 0
  %1046 = vmatprep.subr.bf16.mxu0 0
  %1047 = vmatpush1.bf16.msra.mxu0 0
  %1048 = vmatprep.subr.bf16.mxu0 0
  %1049 = vmatpush1.bf16.msra.mxu0 0
  %1050 = vmatprep.subr.bf16.mxu0 0
  %1051 = vmatpush1.bf16.msra.mxu0 0
  %1052 = vmatprep.subr.bf16.mxu0 0
  %1053 = vmatpush1.bf16.msra.mxu0 0
  %1054 = vmatprep.subr.bf16.mxu0 0
  %1055 = vmatpush1.bf16.msra.mxu0 0
  %1056 = vmatprep.subr.bf16.mxu0 0
  %1057 = vmatpush1.bf16.msra.mxu0 0
  %1058 = vmatprep.subr.bf16.mxu0 0
  %1059 = vmatpush1.bf16.msra.mxu0 0
  %1060 = vmatprep.subr.bf16.mxu0 0
  %1061 = vmatpush1.bf16.msra.mxu0 0
  %1062 = vmatprep.subr.bf16.mxu0 0
  %1063 = vmatpush1.bf16.msra.mxu0 0
  %1064 = vmatprep.subr.bf16.mxu0 0
  %1065 = vmatpush1.bf16.msra.mxu0 0
  %1066 = vmatprep.subr.bf16.mxu0 0
  %1067 = vmatpush1.bf16.msra.mxu0 0
  %1068 = vmatprep.mubr.bf16.mxu0 0
  %1069 = vmatmul.mubr.bf16.gmra.mrb[0].mxu0 %v431
  %v1070 = vpop.f32.mrb[0].mxu0
  %v1071 = vadd.f32 0.0, %v1070
  %v1072 = vpop.f32.mrb[0].mxu0
  %v1073 = vpop.f32.mrb[0].mxu0
  %v1074 = vadd.f32 0.0, %v1073
  %v1075 = vpop.f32.mrb[0].mxu0
  %1076 = vmatprep.mubr.bf16.mxu0 0
  %1077 = vmatmul.mubr.bf16.gmra.mrb[0].mxu0 %v434
  %v1078 = vpop.f32.mrb[0].mxu0
  %v1079 = vadd.f32 0.0, %v1078
  %v1080 = vpop.f32.mrb[0].mxu0
  %v1081 = vpop.f32.mrb[0].mxu0
  %v1082 = vadd.f32 0.0, %v1081
  %v1083 = vpop.f32.mrb[0].mxu0
  %1084 = vmatprep.mubr.bf16.mxu0 0
  %1085 = vmatmul.mubr.bf16.gmra.mrb[0].mxu0 %v437
  %v1086 = vpop.f32.mrb[0].mxu0
  %v1087 = vadd.f32 0.0, %v1086
  %v1088 = vpop.f32.mrb[0].mxu0
  %v1089 = vpop.f32.mrb[0].mxu0
  %v1090 = vadd.f32 0.0, %v1089
  %v1091 = vpop.f32.mrb[0].mxu0
  %1092 = vmatprep.mubr.bf16.mxu0 0
  %1093 = vmatmul.mubr.bf16.gmra.mrb[0].mxu0 %v1034
  %v1094 = vpop.f32.mrb[0].mxu0
  %v1095 = vadd.f32 0.0, %v1094
  %v1096 = vpop.f32.mrb[0].mxu0
  %v1097 = vpop.f32.mrb[0].mxu0
  %v1098 = vadd.f32 0.0, %v1097
  %v1099 = vpop.f32.mrb[0].mxu0
  %1100 = vdwg.mxu0
  %v1101 = vadd.f32 %v991, %v1071
  %v1102 = vadd.f32 %v992, %v1074
  %v1103 = vadd.f32 %v993, %v1079
  %v1104 = vadd.f32 %v994, %v1082
  %v1105 = vadd.f32 %v995, %v1087
  %v1106 = vadd.f32 %v996, %v1090
  %v1107 = vadd.f32 %v997, %v1095
  %v1108 = vadd.f32 %v998, %v1098
  %v1109 = vld [vmem:[%s5 + $0xe0] sm:$0xf]
  %v1110 = vld [vmem:[%s5 + $0xe4] sm:$0xf]
  %v1111 = vld [vmem:[%s5 + $0xe8] sm:$0xf]
  %v1112 = vld [vmem:[%s5 + $0xec] sm:$0xf]
  %v1113 = vld [vmem:[%s5 + $0xf0] sm:$0xf]
  %v1114 = vld [vmem:[%s5 + $0xf4] sm:$0xf]
  %v1115 = vld [vmem:[%s5 + $0xf8] sm:$0xf]
  %v1116 = vld [vmem:[%s5 + $0xfc] sm:$0xf]
  %v1117 = vunpack.c.l.b16 %v254
  %v1118 = vpack.c.b16 %v1117, %v763
  %v1127 = vunpack.c.l.b16 %v1109
  %v1128 = vunpack.c.l.b16 %v1110
  %v1129 = vunpack.c.l.b16 %v1111
  %v1130 = vunpack.c.l.b16 %v1112
  %v1131 = vunpack.c.l.b16 %v1113
  %v1132 = vunpack.c.l.b16 %v1114
  %v1133 = vunpack.c.l.b16 %v1115
  %v1134 = vunpack.c.l.b16 %v1116
  %v1135 = vpack.c.b16 %v1128, %v1127
  %v1136 = vpack.c.b16 %v1130, %v1129
  %v1137 = vpack.c.b16 %v1132, %v1131
  %v1138 = vpack.c.b16 %v1134, %v1133
  %v1144 = vsel %vm313, %v1118, 0
  %1146 = vmatprep.subr.bf16.mxu0 0
  %1147 = vmatpush1.bf16.msra.mxu0 %v1135
  %1148 = vmatprep.subr.bf16.mxu0 0
  %1149 = vmatpush1.bf16.msra.mxu0 %v1136
  %1150 = vmatprep.subr.bf16.mxu0 0
  %1151 = vmatpush1.bf16.msra.mxu0 %v1137
  %1152 = vmatprep.subr.bf16.mxu0 0
  %1153 = vmatpush1.bf16.msra.mxu0 %v1138
  %1154 = vmatprep.subr.bf16.mxu0 0
  %1155 = vmatpush1.bf16.msra.mxu0 0
  %1156 = vmatprep.subr.bf16.mxu0 0
  %1157 = vmatpush1.bf16.msra.mxu0 0
  %1158 = vmatprep.subr.bf16.mxu0 0
  %1159 = vmatpush1.bf16.msra.mxu0 0
  %1160 = vmatprep.subr.bf16.mxu0 0
  %1161 = vmatpush1.bf16.msra.mxu0 0
  %1162 = vmatprep.subr.bf16.mxu0 0
  %1163 = vmatpush1.bf16.msra.mxu0 0
  %1164 = vmatprep.subr.bf16.mxu0 0
  %1165 = vmatpush1.bf16.msra.mxu0 0
  %1166 = vmatprep.subr.bf16.mxu0 0
  %1167 = vmatpush1.bf16.msra.mxu0 0
  %1168 = vmatprep.subr.bf16.mxu0 0
  %1169 = vmatpush1.bf16.msra.mxu0 0
  %1170 = vmatprep.subr.bf16.mxu0 0
  %1171 = vmatpush1.bf16.msra.mxu0 0
  %1172 = vmatprep.subr.bf16.mxu0 0
  %1173 = vmatpush1.bf16.msra.mxu0 0
  %1174 = vmatprep.subr.bf16.mxu0 0
  %1175 = vmatpush1.bf16.msra.mxu0 0
  %1176 = vmatprep.subr.bf16.mxu0 0
  %1177 = vmatpush1.bf16.msra.mxu0 0
  %1178 = vmatprep.mubr.bf16.mxu0 0
  %1179 = vmatmul.mubr.bf16.gmra.mrb[0].mxu0 %v318
  %v1180 = vpop.f32.mrb[0].mxu0
  %v1181 = vadd.f32 0.0, %v1180
  %v1182 = vpop.f32.mrb[0].mxu0
  %v1183 = vpop.f32.mrb[0].mxu0
  %v1184 = vadd.f32 0.0, %v1183
  %v1185 = vpop.f32.mrb[0].mxu0
  %1186 = vmatprep.mubr.bf16.mxu0 0
  %1187 = vmatmul.mubr.bf16.gmra.mrb[0].mxu0 %v321
  %v1188 = vpop.f32.mrb[0].mxu0
  %v1189 = vadd.f32 0.0, %v1188
  %v1190 = vpop.f32.mrb[0].mxu0
  %v1191 = vpop.f32.mrb[0].mxu0
  %v1192 = vadd.f32 0.0, %v1191
  %v1193 = vpop.f32.mrb[0].mxu0
  %1194 = vmatprep.mubr.bf16.mxu0 0
  %1195 = vmatmul.mubr.bf16.gmra.mrb[0].mxu0 %v324
  %v1196 = vpop.f32.mrb[0].mxu0
  %v1197 = vadd.f32 0.0, %v1196
  %v1198 = vpop.f32.mrb[0].mxu0
  %v1199 = vpop.f32.mrb[0].mxu0
  %v1200 = vadd.f32 0.0, %v1199
  %v1201 = vpop.f32.mrb[0].mxu0
  %1202 = vmatprep.mubr.bf16.mxu0 0
  %1203 = vmatmul.mubr.bf16.gmra.mrb[0].mxu0 %v1144
  %v1204 = vpop.f32.mrb[0].mxu0
  %v1205 = vadd.f32 0.0, %v1204
  %v1206 = vpop.f32.mrb[0].mxu0
  %v1207 = vpop.f32.mrb[0].mxu0
  %v1208 = vadd.f32 0.0, %v1207
  %v1209 = vpop.f32.mrb[0].mxu0
  %1210 = vdwg.mxu0
  %v1211 = vadd.f32 %v1101, %v1181
  %v1212 = vadd.f32 %v1102, %v1184
  %v1213 = vadd.f32 %v1103, %v1189
  %v1214 = vadd.f32 %v1104, %v1192
  %v1215 = vadd.f32 %v1105, %v1197
  %v1216 = vadd.f32 %v1106, %v1200
  %v1217 = vadd.f32 %v1107, %v1205
  %v1218 = vadd.f32 %v1108, %v1208
  %v1219 = vld [vmem:[%s5 + $0x100] sm:$0xf]
  %v1220 = vld [vmem:[%s5 + $0x104] sm:$0xf]
  %v1221 = vld [vmem:[%s5 + $0x108] sm:$0xf]
  %v1222 = vld [vmem:[%s5 + $0x10c] sm:$0xf]
  %v1223 = vld [vmem:[%s5 + $0x110] sm:$0xf]
  %v1224 = vld [vmem:[%s5 + $0x114] sm:$0xf]
  %v1225 = vld [vmem:[%s5 + $0x118] sm:$0xf]
  %v1226 = vld [vmem:[%s5 + $0x11c] sm:$0xf]
  %v1227 = vunpack.c.l.b16 %v260
  %v1228 = vpack.c.b16 %v1227, %v885
  %v1237 = vunpack.c.l.b16 %v1219
  %v1238 = vunpack.c.l.b16 %v1220
  %v1239 = vunpack.c.l.b16 %v1221
  %v1240 = vunpack.c.l.b16 %v1222
  %v1241 = vunpack.c.l.b16 %v1223
  %v1242 = vunpack.c.l.b16 %v1224
  %v1243 = vunpack.c.l.b16 %v1225
  %v1244 = vunpack.c.l.b16 %v1226
  %v1245 = vpack.c.b16 %v1238, %v1237
  %v1246 = vpack.c.b16 %v1240, %v1239
  %v1247 = vpack.c.b16 %v1242, %v1241
  %v1248 = vpack.c.b16 %v1244, %v1243
  %v1254 = vsel %vm313, %v1228, 0
  %1256 = vmatprep.subr.bf16.mxu0 0
  %1257 = vmatpush1.bf16.msra.mxu0 %v1245
  %1258 = vmatprep.subr.bf16.mxu0 0
  %1259 = vmatpush1.bf16.msra.mxu0 %v1246
  %1260 = vmatprep.subr.bf16.mxu0 0
  %1261 = vmatpush1.bf16.msra.mxu0 %v1247
  %1262 = vmatprep.subr.bf16.mxu0 0
  %1263 = vmatpush1.bf16.msra.mxu0 %v1248
  %1264 = vmatprep.subr.bf16.mxu0 0
  %1265 = vmatpush1.bf16.msra.mxu0 0
  %1266 = vmatprep.subr.bf16.mxu0 0
  %1267 = vmatpush1.bf16.msra.mxu0 0
  %1268 = vmatprep.subr.bf16.mxu0 0
  %1269 = vmatpush1.bf16.msra.mxu0 0
  %1270 = vmatprep.subr.bf16.mxu0 0
  %1271 = vmatpush1.bf16.msra.mxu0 0
  %1272 = vmatprep.subr.bf16.mxu0 0
  %1273 = vmatpush1.bf16.msra.mxu0 0
  %1274 = vmatprep.subr.bf16.mxu0 0
  %1275 = vmatpush1.bf16.msra.mxu0 0
  %1276 = vmatprep.subr.bf16.mxu0 0
  %1277 = vmatpush1.bf16.msra.mxu0 0
  %1278 = vmatprep.subr.bf16.mxu0 0
  %1279 = vmatpush1.bf16.msra.mxu0 0
  %1280 = vmatprep.subr.bf16.mxu0 0
  %1281 = vmatpush1.bf16.msra.mxu0 0
  %1282 = vmatprep.subr.bf16.mxu0 0
  %1283 = vmatpush1.bf16.msra.mxu0 0
  %1284 = vmatprep.subr.bf16.mxu0 0
  %1285 = vmatpush1.bf16.msra.mxu0 0
  %1286 = vmatprep.subr.bf16.mxu0 0
  %1287 = vmatpush1.bf16.msra.mxu0 0
  %1288 = vmatprep.mubr.bf16.mxu0 0
  %1289 = vmatmul.mubr.bf16.gmra.mrb[0].mxu0 %v552
  %v1290 = vpop.f32.mrb[0].mxu0
  %v1291 = vadd.f32 0.0, %v1290
  %v1292 = vpop.f32.mrb[0].mxu0
  %v1293 = vpop.f32.mrb[0].mxu0
  %v1294 = vadd.f32 0.0, %v1293
  %v1295 = vpop.f32.mrb[0].mxu0
  %1296 = vmatprep.mubr.bf16.mxu0 0
  %1297 = vmatmul.mubr.bf16.gmra.mrb[0].mxu0 %v555
  %v1298 = vpop.f32.mrb[0].mxu0
  %v1299 = vadd.f32 0.0, %v1298
  %v1300 = vpop.f32.mrb[0].mxu0
  %v1301 = vpop.f32.mrb[0].mxu0
  %v1302 = vadd.f32 0.0, %v1301
  %v1303 = vpop.f32.mrb[0].mxu0
  %1304 = vmatprep.mubr.bf16.mxu0 0
  %1305 = vmatmul.mubr.bf16.gmra.mrb[0].mxu0 %v558
  %v1306 = vpop.f32.mrb[0].mxu0
  %v1307 = vadd.f32 0.0, %v1306
  %v1308 = vpop.f32.mrb[0].mxu0
  %v1309 = vpop.f32.mrb[0].mxu0
  %v1310 = vadd.f32 0.0, %v1309
  %v1311 = vpop.f32.mrb[0].mxu0
  %1312 = vmatprep.mubr.bf16.mxu0 0
  %1313 = vmatmul.mubr.bf16.gmra.mrb[0].mxu0 %v1254
  %v1314 = vpop.f32.mrb[0].mxu0
  %v1315 = vadd.f32 0.0, %v1314
  %v1316 = vpop.f32.mrb[0].mxu0
  %v1317 = vpop.f32.mrb[0].mxu0
  %v1318 = vadd.f32 0.0, %v1317
  %v1319 = vpop.f32.mrb[0].mxu0
  %1320 = vdwg.mxu0
  %v1321 = vadd.f32 %v1211, %v1291
  %v1322 = vadd.f32 %v1212, %v1294
  %v1323 = vadd.f32 %v1213, %v1299
  %v1324 = vadd.f32 %v1214, %v1302
  %v1325 = vadd.f32 %v1215, %v1307
  %v1326 = vadd.f32 %v1216, %v1310
  %v1327 = vadd.f32 %v1217, %v1315
  %v1328 = vadd.f32 %v1218, %v1318
  %v1329 = vld [vmem:[%s6] sm:$0x1]
  %v1331 = vlaneseq
  %v1332 = vshrl.u32 %v1331, 7
  %v1333 = vsub.s32 0, %v1332
  %v1334 = vrot.slane %v1329, %v1333
  %v1336 = vadd.f32 %v1321, %v1334
  %v1337 = vadd.f32 %v1322, %v1334
  %v1338 = vadd.f32 %v1323, %v1334
  %v1339 = vadd.f32 %v1324, %v1334
  %v1340 = vadd.f32 %v1325, %v1334
  %v1341 = vadd.f32 %v1326, %v1334
  %v1342 = vadd.f32 %v1327, %v1334
  %v1343 = vadd.f32 %v1328, %v1334
  %vm1344 = vcmask 392192
  %1345 = vst.msk [vmem:[%s9] sm:$0xff] %vm1344, %v1336
  %1346 = vst.msk [vmem:[%s9 + $0x8] sm:$0xff] %vm1344, %v1337
  %1347 = vst.msk [vmem:[%s9 + $0x10] sm:$0xff] %vm1344, %v1338
  %1348 = vst.msk [vmem:[%s9 + $0x18] sm:$0xff] %vm1344, %v1339
  %1349 = vst.msk [vmem:[%s9 + $0x20] sm:$0xff] %vm1344, %v1340
  %1350 = vst.msk [vmem:[%s9 + $0x28] sm:$0xff] %vm1344, %v1341
  %1351 = vst.msk [vmem:[%s9 + $0x30] sm:$0xff] %vm1344, %v1342
  %1352 = vst.msk [vmem:[%s9 + $0x38] sm:$0xff] %vm1344, %v1343
  %v1353 = vld [vmem:[%s0] sm:$0xf]
  %v1354 = vld [vmem:[%s0 + $0x4] sm:$0xf]
  %v1355 = vld [vmem:[%s0 + $0x8] sm:$0xf]
  %v1356 = vld [vmem:[%s0 + $0xc] sm:$0xf]
  %v1357 = vld [vmem:[%s0 + $0x10] sm:$0xf]
  %v1358 = vld [vmem:[%s0 + $0x14] sm:$0xf]
  %v1359 = vld [vmem:[%s0 + $0x18] sm:$0xf]
  %v1360 = vld [vmem:[%s0 + $0x1c] sm:$0xf]
  %v1361 = vld [vmem:[%s0 + $0x20] sm:$0xf]
  %v1362 = vld [vmem:[%s0 + $0x24] sm:$0xf]
  %v1363 = vld [vmem:[%s0 + $0x28] sm:$0xf]
  %v1364 = vld [vmem:[%s0 + $0x2c] sm:$0xf]
  %v1365 = vld [vmem:[%s0 + $0x30] sm:$0xf]
  %v1366 = vld [vmem:[%s0 + $0x34] sm:$0xf]
  %v1367 = vld [vmem:[%s0 + $0x38] sm:$0xf]
  %v1368 = vld [vmem:[%s0 + $0x3c] sm:$0xf]
  %v1369 = vld [vmem:[%s0 + $0x40] sm:$0xf]
  %v1370 = vld [vmem:[%s0 + $0x44] sm:$0xf]
  %v1371 = vld [vmem:[%s0 + $0x48] sm:$0xf]
  %v1372 = vld [vmem:[%s0 + $0x4c] sm:$0xf]
  %v1373 = vld [vmem:[%s0 + $0x50] sm:$0xf]
  %v1374 = vld [vmem:[%s0 + $0x54] sm:$0xf]
  %v1375 = vld [vmem:[%s0 + $0x58] sm:$0xf]
  %v1376 = vld [vmem:[%s0 + $0x5c] sm:$0xf]
  %v1377 = vld [vmem:[%s0 + $0x60] sm:$0xf]
  %v1378 = vld [vmem:[%s0 + $0x64] sm:$0xf]
  %v1379 = vld [vmem:[%s0 + $0x68] sm:$0xf]
  %v1380 = vld [vmem:[%s0 + $0x6c] sm:$0xf]
  %v1381 = vld [vmem:[%s0 + $0x70] sm:$0xf]
  %v1382 = vld [vmem:[%s0 + $0x74] sm:$0xf]
  %v1383 = vld [vmem:[%s0 + $0x78] sm:$0xf]
  %v1384 = vld [vmem:[%s0 + $0x7c] sm:$0xf]
  %v1385 = vld [vmem:[%s0 + $0x80] sm:$0xf]
  %v1386 = vld [vmem:[%s0 + $0x84] sm:$0xf]
  %v1387 = vld [vmem:[%s0 + $0x88] sm:$0xf]
  %v1388 = vld [vmem:[%s0 + $0x8c] sm:$0xf]
  %v1389 = vld [vmem:[%s0 + $0x90] sm:$0xf]
  %v1390 = vld [vmem:[%s0 + $0x94] sm:$0xf]
  %v1391 = vld [vmem:[%s0 + $0x98] sm:$0xf]
  %v1392 = vld [vmem:[%s0 + $0x9c] sm:$0xf]
  %v1393 = vld [vmem:[%s0 + $0xa0] sm:$0xf]
  %v1394 = vld [vmem:[%s0 + $0xa4] sm:$0xf]
  %v1395 = vld [vmem:[%s0 + $0xa8] sm:$0xf]
  %v1396 = vld [vmem:[%s0 + $0xac] sm:$0xf]
  %v1397 = vld [vmem:[%s0 + $0xb0] sm:$0xf]
  %v1398 = vld [vmem:[%s0 + $0xb4] sm:$0xf]
  %v1399 = vld [vmem:[%s0 + $0xb8] sm:$0xf]
  %v1400 = vld [vmem:[%s0 + $0xbc] sm:$0xf]
  %v1401 = vld [vmem:[%s0 + $0xc0] sm:$0xf]
  %v1402 = vld [vmem:[%s0 + $0xc4] sm:$0xf]
  %v1403 = vld [vmem:[%s0 + $0xc8] sm:$0xf]
  %v1404 = vld [vmem:[%s0 + $0xcc] sm:$0xf]
  %v1405 = vld [vmem:[%s0 + $0xd0] sm:$0xf]
  %v1406 = vld [vmem:[%s0 + $0xd4] sm:$0xf]
  %v1407 = vld [vmem:[%s0 + $0xd8] sm:$0xf]
  %v1408 = vld [vmem:[%s0 + $0xdc] sm:$0xf]
  %v1409 = vld [vmem:[%s0 + $0xe0] sm:$0xf]
  %v1410 = vld [vmem:[%s0 + $0xe4] sm:$0xf]
  %v1411 = vld [vmem:[%s0 + $0xe8] sm:$0xf]
  %v1412 = vld [vmem:[%s0 + $0xec] sm:$0xf]
  %v1413 = vld [vmem:[%s0 + $0xf0] sm:$0xf]
  %v1414 = vld [vmem:[%s0 + $0xf4] sm:$0xf]
  %v1415 = vld [vmem:[%s0 + $0xf8] sm:$0xf]
  %v1416 = vld [vmem:[%s0 + $0xfc] sm:$0xf]
  %v1417 = vld [vmem:[%s1] sm:$0xf]
  %v1418 = vld [vmem:[%s1 + $0x4] sm:$0xf]
  %v1419 = vld [vmem:[%s1 + $0x8] sm:$0xf]
  %v1420 = vld [vmem:[%s1 + $0xc] sm:$0xf]
  %v1421 = vld [vmem:[%s1 + $0x10] sm:$0xf]
  %v1422 = vld [vmem:[%s1 + $0x14] sm:$0xf]
  %v1423 = vld [vmem:[%s1 + $0x18] sm:$0xf]
  %v1424 = vld [vmem:[%s1 + $0x1c] sm:$0xf]
  %v1425 = vld [vmem:[%s1 + $0x20] sm:$0xf]
  %v1426 = vld [vmem:[%s1 + $0x24] sm:$0xf]
  %v1427 = vld [vmem:[%s1 + $0x28] sm:$0xf]
  %v1428 = vld [vmem:[%s1 + $0x2c] sm:$0xf]
  %v1429 = vld [vmem:[%s1 + $0x30] sm:$0xf]
  %v1430 = vld [vmem:[%s1 + $0x34] sm:$0xf]
  %v1431 = vld [vmem:[%s1 + $0x38] sm:$0xf]
  %v1432 = vld [vmem:[%s1 + $0x3c] sm:$0xf]
  %v1433 = vld [vmem:[%s1 + $0x40] sm:$0xf]
  %v1434 = vld [vmem:[%s1 + $0x44] sm:$0xf]
  %v1435 = vld [vmem:[%s1 + $0x48] sm:$0xf]
  %v1436 = vld [vmem:[%s1 + $0x4c] sm:$0xf]
  %v1437 = vld [vmem:[%s1 + $0x50] sm:$0xf]
  %v1438 = vld [vmem:[%s1 + $0x54] sm:$0xf]
  %v1439 = vld [vmem:[%s1 + $0x58] sm:$0xf]
  %v1440 = vld [vmem:[%s1 + $0x5c] sm:$0xf]
  %v1441 = vld [vmem:[%s1 + $0x60] sm:$0xf]
  %v1442 = vld [vmem:[%s1 + $0x64] sm:$0xf]
  %v1443 = vld [vmem:[%s1 + $0x68] sm:$0xf]
  %v1444 = vld [vmem:[%s1 + $0x6c] sm:$0xf]
  %v1445 = vld [vmem:[%s1 + $0x70] sm:$0xf]
  %v1446 = vld [vmem:[%s1 + $0x74] sm:$0xf]
  %v1447 = vld [vmem:[%s1 + $0x78] sm:$0xf]
  %v1448 = vld [vmem:[%s1 + $0x7c] sm:$0xf]
  %v1449 = vld [vmem:[%s1 + $0x80] sm:$0xf]
  %v1450 = vld [vmem:[%s1 + $0x84] sm:$0xf]
  %v1451 = vld [vmem:[%s1 + $0x88] sm:$0xf]
  %v1452 = vld [vmem:[%s1 + $0x8c] sm:$0xf]
  %v1453 = vld [vmem:[%s1 + $0x90] sm:$0xf]
  %v1454 = vld [vmem:[%s1 + $0x94] sm:$0xf]
  %v1455 = vld [vmem:[%s1 + $0x98] sm:$0xf]
  %v1456 = vld [vmem:[%s1 + $0x9c] sm:$0xf]
  %v1457 = vld [vmem:[%s1 + $0xa0] sm:$0xf]
  %v1458 = vld [vmem:[%s1 + $0xa4] sm:$0xf]
  %v1459 = vld [vmem:[%s1 + $0xa8] sm:$0xf]
  %v1460 = vld [vmem:[%s1 + $0xac] sm:$0xf]
  %v1461 = vld [vmem:[%s1 + $0xb0] sm:$0xf]
  %v1462 = vld [vmem:[%s1 + $0xb4] sm:$0xf]
  %v1463 = vld [vmem:[%s1 + $0xb8] sm:$0xf]
  %v1464 = vld [vmem:[%s1 + $0xbc] sm:$0xf]
  %v1465 = vld [vmem:[%s1 + $0xc0] sm:$0xf]
  %v1466 = vld [vmem:[%s1 + $0xc4] sm:$0xf]
  %v1467 = vld [vmem:[%s1 + $0xc8] sm:$0xf]
  %v1468 = vld [vmem:[%s1 + $0xcc] sm:$0xf]
  %v1469 = vld [vmem:[%s1 + $0xd0] sm:$0xf]
  %v1470 = vld [vmem:[%s1 + $0xd4] sm:$0xf]
  %v1471 = vld [vmem:[%s1 + $0xd8] sm:$0xf]
  %v1472 = vld [vmem:[%s1 + $0xdc] sm:$0xf]
  %v1473 = vld [vmem:[%s1 + $0xe0] sm:$0xf]
  %v1474 = vld [vmem:[%s1 + $0xe4] sm:$0xf]
  %v1475 = vld [vmem:[%s1 + $0xe8] sm:$0xf]
  %v1476 = vld [vmem:[%s1 + $0xec] sm:$0xf]
  %v1477 = vld [vmem:[%s1 + $0xf0] sm:$0xf]
  %v1478 = vld [vmem:[%s1 + $0xf4] sm:$0xf]
  %v1479 = vld [vmem:[%s1 + $0xf8] sm:$0xf]
  %v1480 = vld [vmem:[%s1 + $0xfc] sm:$0xf]
  %v1481 = vld [vmem:[%s2] sm:$0xf]
  %v1482 = vld [vmem:[%s2 + $0x4] sm:$0xf]
  %v1483 = vld [vmem:[%s2 + $0x8] sm:$0xf]
  %v1484 = vld [vmem:[%s2 + $0xc] sm:$0xf]
  %v1485 = vld [vmem:[%s2 + $0x10] sm:$0xf]
  %v1486 = vld [vmem:[%s2 + $0x14] sm:$0xf]
  %v1487 = vld [vmem:[%s2 + $0x18] sm:$0xf]
  %v1488 = vld [vmem:[%s2 + $0x1c] sm:$0xf]
  %v1489 = vld [vmem:[%s2 + $0x20] sm:$0xf]
  %v1490 = vld [vmem:[%s2 + $0x24] sm:$0xf]
  %v1491 = vld [vmem:[%s2 + $0x28] sm:$0xf]
  %v1492 = vld [vmem:[%s2 + $0x2c] sm:$0xf]
  %v1493 = vld [vmem:[%s2 + $0x30] sm:$0xf]
  %v1494 = vld [vmem:[%s2 + $0x34] sm:$0xf]
  %v1495 = vld [vmem:[%s2 + $0x38] sm:$0xf]
  %v1496 = vld [vmem:[%s2 + $0x3c] sm:$0xf]
  %v1497 = vld [vmem:[%s2 + $0x40] sm:$0xf]
  %v1498 = vld [vmem:[%s2 + $0x44] sm:$0xf]
  %v1499 = vld [vmem:[%s2 + $0x48] sm:$0xf]
  %v1500 = vld [vmem:[%s2 + $0x4c] sm:$0xf]
  %v1501 = vld [vmem:[%s2 + $0x50] sm:$0xf]
  %v1502 = vld [vmem:[%s2 + $0x54] sm:$0xf]
  %v1503 = vld [vmem:[%s2 + $0x58] sm:$0xf]
  %v1504 = vld [vmem:[%s2 + $0x5c] sm:$0xf]
  %v1505 = vld [vmem:[%s2 + $0x60] sm:$0xf]
  %v1506 = vld [vmem:[%s2 + $0x64] sm:$0xf]
  %v1507 = vld [vmem:[%s2 + $0x68] sm:$0xf]
  %v1508 = vld [vmem:[%s2 + $0x6c] sm:$0xf]
  %v1509 = vld [vmem:[%s2 + $0x70] sm:$0xf]
  %v1510 = vld [vmem:[%s2 + $0x74] sm:$0xf]
  %v1511 = vld [vmem:[%s2 + $0x78] sm:$0xf]
  %v1512 = vld [vmem:[%s2 + $0x7c] sm:$0xf]
  %v1513 = vld [vmem:[%s2 + $0x80] sm:$0xf]
  %v1514 = vld [vmem:[%s2 + $0x84] sm:$0xf]
  %v1515 = vld [vmem:[%s2 + $0x88] sm:$0xf]
  %v1516 = vld [vmem:[%s2 + $0x8c] sm:$0xf]
  %v1517 = vld [vmem:[%s2 + $0x90] sm:$0xf]
  %v1518 = vld [vmem:[%s2 + $0x94] sm:$0xf]
  %v1519 = vld [vmem:[%s2 + $0x98] sm:$0xf]
  %v1520 = vld [vmem:[%s2 + $0x9c] sm:$0xf]
  %v1521 = vld [vmem:[%s2 + $0xa0] sm:$0xf]
  %v1522 = vld [vmem:[%s2 + $0xa4] sm:$0xf]
  %v1523 = vld [vmem:[%s2 + $0xa8] sm:$0xf]
  %v1524 = vld [vmem:[%s2 + $0xac] sm:$0xf]
  %v1525 = vld [vmem:[%s2 + $0xb0] sm:$0xf]
  %v1526 = vld [vmem:[%s2 + $0xb4] sm:$0xf]
  %v1527 = vld [vmem:[%s2 + $0xb8] sm:$0xf]
  %v1528 = vld [vmem:[%s2 + $0xbc] sm:$0xf]
  %v1529 = vld [vmem:[%s2 + $0xc0] sm:$0xf]
  %v1530 = vld [vmem:[%s2 + $0xc4] sm:$0xf]
  %v1531 = vld [vmem:[%s2 + $0xc8] sm:$0xf]
  %v1532 = vld [vmem:[%s2 + $0xcc] sm:$0xf]
  %v1533 = vld [vmem:[%s2 + $0xd0] sm:$0xf]
  %v1534 = vld [vmem:[%s2 + $0xd4] sm:$0xf]
  %v1535 = vld [vmem:[%s2 + $0xd8] sm:$0xf]
  %v1536 = vld [vmem:[%s2 + $0xdc] sm:$0xf]
  %v1537 = vld [vmem:[%s2 + $0xe0] sm:$0xf]
  %v1538 = vld [vmem:[%s2 + $0xe4] sm:$0xf]
  %v1539 = vld [vmem:[%s2 + $0xe8] sm:$0xf]
  %v1540 = vld [vmem:[%s2 + $0xec] sm:$0xf]
  %v1541 = vld [vmem:[%s2 + $0xf0] sm:$0xf]
  %v1542 = vld [vmem:[%s2 + $0xf4] sm:$0xf]
  %v1543 = vld [vmem:[%s2 + $0xf8] sm:$0xf]
  %v1544 = vld [vmem:[%s2 + $0xfc] sm:$0xf]
  %v1545 = vld [vmem:[%s3] sm:$0xf]
  %v1546 = vld [vmem:[%s3 + $0x4] sm:$0xf]
  %v1547 = vld [vmem:[%s3 + $0x8] sm:$0xf]
  %v1548 = vld [vmem:[%s3 + $0xc] sm:$0xf]
  %v1549 = vld [vmem:[%s3 + $0x10] sm:$0xf]
  %v1550 = vld [vmem:[%s3 + $0x14] sm:$0xf]
  %v1551 = vld [vmem:[%s3 + $0x18] sm:$0xf]
  %v1552 = vld [vmem:[%s3 + $0x1c] sm:$0xf]
  %v1553 = vld [vmem:[%s3 + $0x20] sm:$0xf]
  %v1554 = vld [vmem:[%s3 + $0x24] sm:$0xf]
  %v1555 = vld [vmem:[%s3 + $0x28] sm:$0xf]
  %v1556 = vld [vmem:[%s3 + $0x2c] sm:$0xf]
  %v1557 = vld [vmem:[%s3 + $0x30] sm:$0xf]
  %v1558 = vld [vmem:[%s3 + $0x34] sm:$0xf]
  %v1559 = vld [vmem:[%s3 + $0x38] sm:$0xf]
  %v1560 = vld [vmem:[%s3 + $0x3c] sm:$0xf]
  %v1561 = vld [vmem:[%s3 + $0x40] sm:$0xf]
  %v1562 = vld [vmem:[%s3 + $0x44] sm:$0xf]
  %v1563 = vld [vmem:[%s3 + $0x48] sm:$0xf]
  %v1564 = vld [vmem:[%s3 + $0x4c] sm:$0xf]
  %v1565 = vld [vmem:[%s3 + $0x50] sm:$0xf]
  %v1566 = vld [vmem:[%s3 + $0x54] sm:$0xf]
  %v1567 = vld [vmem:[%s3 + $0x58] sm:$0xf]
  %v1568 = vld [vmem:[%s3 + $0x5c] sm:$0xf]
  %v1569 = vld [vmem:[%s3 + $0x60] sm:$0xf]
  %v1570 = vld [vmem:[%s3 + $0x64] sm:$0xf]
  %v1571 = vld [vmem:[%s3 + $0x68] sm:$0xf]
  %v1572 = vld [vmem:[%s3 + $0x6c] sm:$0xf]
  %v1573 = vld [vmem:[%s3 + $0x70] sm:$0xf]
  %v1574 = vld [vmem:[%s3 + $0x74] sm:$0xf]
  %v1575 = vld [vmem:[%s3 + $0x78] sm:$0xf]
  %v1576 = vld [vmem:[%s3 + $0x7c] sm:$0xf]
  %v1577 = vld [vmem:[%s3 + $0x80] sm:$0xf]
  %v1578 = vld [vmem:[%s3 + $0x84] sm:$0xf]
  %v1579 = vld [vmem:[%s3 + $0x88] sm:$0xf]
  %v1580 = vld [vmem:[%s3 + $0x8c] sm:$0xf]
  %v1581 = vld [vmem:[%s3 + $0x90] sm:$0xf]
  %v1582 = vld [vmem:[%s3 + $0x94] sm:$0xf]
  %v1583 = vld [vmem:[%s3 + $0x98] sm:$0xf]
  %v1584 = vld [vmem:[%s3 + $0x9c] sm:$0xf]
  %v1585 = vld [vmem:[%s3 + $0xa0] sm:$0xf]
  %v1586 = vld [vmem:[%s3 + $0xa4] sm:$0xf]
  %v1587 = vld [vmem:[%s3 + $0xa8] sm:$0xf]
  %v1588 = vld [vmem:[%s3 + $0xac] sm:$0xf]
  %v1589 = vld [vmem:[%s3 + $0xb0] sm:$0xf]
  %v1590 = vld [vmem:[%s3 + $0xb4] sm:$0xf]
  %v1591 = vld [vmem:[%s3 + $0xb8] sm:$0xf]
  %v1592 = vld [vmem:[%s3 + $0xbc] sm:$0xf]
  %v1593 = vld [vmem:[%s3 + $0xc0] sm:$0xf]
  %v1594 = vld [vmem:[%s3 + $0xc4] sm:$0xf]
  %v1595 = vld [vmem:[%s3 + $0xc8] sm:$0xf]
  %v1596 = vld [vmem:[%s3 + $0xcc] sm:$0xf]
  %v1597 = vld [vmem:[%s3 + $0xd0] sm:$0xf]
  %v1598 = vld [vmem:[%s3 + $0xd4] sm:$0xf]
  %v1599 = vld [vmem:[%s3 + $0xd8] sm:$0xf]
  %v1600 = vld [vmem:[%s3 + $0xdc] sm:$0xf]
  %v1601 = vld [vmem:[%s3 + $0xe0] sm:$0xf]
  %v1602 = vld [vmem:[%s3 + $0xe4] sm:$0xf]
  %v1603 = vld [vmem:[%s3 + $0xe8] sm:$0xf]
  %v1604 = vld [vmem:[%s3 + $0xec] sm:$0xf]
  %v1605 = vld [vmem:[%s3 + $0xf0] sm:$0xf]
  %v1606 = vld [vmem:[%s3 + $0xf4] sm:$0xf]
  %v1607 = vld [vmem:[%s3 + $0xf8] sm:$0xf]
  %v1608 = vld [vmem:[%s3 + $0xfc] sm:$0xf]
  %v1609 = vunpack.c.l.bf16 %v1545
  %v1610 = vunpack.c.l.bf16 %v1546
  %v1611 = vunpack.c.l.bf16 %v1547
  %v1612 = vunpack.c.l.bf16 %v1548
  %v1613 = vunpack.c.l.bf16 %v1549
  %v1614 = vunpack.c.l.bf16 %v1550
  %v1615 = vunpack.c.l.bf16 %v1551
  %v1616 = vunpack.c.l.bf16 %v1552
  %v1617 = vunpack.c.l.bf16 %v1553
  %v1618 = vunpack.c.l.bf16 %v1554
  %v1619 = vunpack.c.l.bf16 %v1555
  %v1620 = vunpack.c.l.bf16 %v1556
  %v1621 = vunpack.c.l.bf16 %v1557
  %v1622 = vunpack.c.l.bf16 %v1558
  %v1623 = vunpack.c.l.bf16 %v1559
  %v1624 = vunpack.c.l.bf16 %v1560
  %v1625 = vunpack.c.l.bf16 %v1561
  %v1626 = vunpack.c.l.bf16 %v1562
  %v1627 = vunpack.c.l.bf16 %v1563
  %v1628 = vunpack.c.l.bf16 %v1564
  %v1629 = vunpack.c.l.bf16 %v1565
  %v1630 = vunpack.c.l.bf16 %v1566
  %v1631 = vunpack.c.l.bf16 %v1567
  %v1632 = vunpack.c.l.bf16 %v1568
  %v1633 = vunpack.c.l.bf16 %v1569
  %v1634 = vunpack.c.l.bf16 %v1570
  %v1635 = vunpack.c.l.bf16 %v1571
  %v1636 = vunpack.c.l.bf16 %v1572
  %v1637 = vunpack.c.l.bf16 %v1573
  %v1638 = vunpack.c.l.bf16 %v1574
  %v1639 = vunpack.c.l.bf16 %v1575
  %v1640 = vunpack.c.l.bf16 %v1576
  %v1641 = vunpack.c.l.bf16 %v1577
  %v1642 = vunpack.c.l.bf16 %v1578
  %v1643 = vunpack.c.l.bf16 %v1579
  %v1644 = vunpack.c.l.bf16 %v1580
  %v1645 = vunpack.c.l.bf16 %v1581
  %v1646 = vunpack.c.l.bf16 %v1582
  %v1647 = vunpack.c.l.bf16 %v1583
  %v1648 = vunpack.c.l.bf16 %v1584
  %v1649 = vunpack.c.l.bf16 %v1585
  %v1650 = vunpack.c.l.bf16 %v1586
  %v1651 = vunpack.c.l.bf16 %v1587
  %v1652 = vunpack.c.l.bf16 %v1588
  %v1653 = vunpack.c.l.bf16 %v1589
  %v1654 = vunpack.c.l.bf16 %v1590
  %v1655 = vunpack.c.l.bf16 %v1591
  %v1656 = vunpack.c.l.bf16 %v1592
  %v1657 = vunpack.c.l.bf16 %v1593
  %v1658 = vunpack.c.l.bf16 %v1594
  %v1659 = vunpack.c.l.bf16 %v1595
  %v1660 = vunpack.c.l.bf16 %v1596
  %v1661 = vunpack.c.l.bf16 %v1597
  %v1662 = vunpack.c.l.bf16 %v1598
  %v1663 = vunpack.c.l.bf16 %v1599
  %v1664 = vunpack.c.l.bf16 %v1600
  %v1665 = vunpack.c.l.bf16 %v1601
  %v1666 = vunpack.c.l.bf16 %v1602
  %v1667 = vunpack.c.l.bf16 %v1603
  %v1668 = vunpack.c.l.bf16 %v1604
  %v1669 = vunpack.c.l.bf16 %v1605
  %v1670 = vunpack.c.l.bf16 %v1606
  %v1671 = vunpack.c.l.bf16 %v1607
  %v1672 = vunpack.c.l.bf16 %v1608
  %v1681 = vunpack.c.l.b16 %v1353
  %v1682 = vunpack.c.l.b16 %v1354
  %v1683 = vunpack.c.l.b16 %v1355
  %v1684 = vunpack.c.l.b16 %v1356
  %v1685 = vunpack.c.l.b16 %v1357
  %v1686 = vunpack.c.l.b16 %v1358
  %v1687 = vunpack.c.l.b16 %v1359
  %v1688 = vunpack.c.l.b16 %v1360
  %v1689 = vpack.c.b16 %v1682, %v1681
  %v1690 = vpack.c.b16 %v1684, %v1683
  %v1691 = vpack.c.b16 %v1686, %v1685
  %v1692 = vpack.c.b16 %v1688, %v1687
  %v1701 = vunpack.c.l.b16 %v1417
  %v1702 = vunpack.c.l.b16 %v1418
  %v1703 = vunpack.c.l.b16 %v1419
  %v1704 = vunpack.c.l.b16 %v1420
  %v1705 = vunpack.c.l.b16 %v1421
  %v1706 = vunpack.c.l.b16 %v1422
  %v1707 = vunpack.c.l.b16 %v1423
  %v1708 = vunpack.c.l.b16 %v1424
  %v1709 = vpack.c.b16 %v1702, %v1701
  %v1710 = vpack.c.b16 %v1704, %v1703
  %v1711 = vpack.c.b16 %v1706, %v1705
  %v1712 = vpack.c.b16 %v1708, %v1707
  %vm1713 = vcmask 162816
  %v1715 = vsel %vm1713, %v1689, 0
  %v1718 = vsel %vm1713, %v1690, 0
  %v1721 = vsel %vm1713, %v1691, 0
  %v1724 = vsel %vm1713, %v1692, 0
  %v1727 = vsel %vm1713, %v1709, 0
  %v1730 = vsel %vm1713, %v1710, 0
  %v1733 = vsel %vm1713, %v1711, 0
  %v1736 = vsel %vm1713, %v1712, 0
  %1738 = vmatprep.subr.bf16.mxu0 0
  %1739 = vmatpush1.bf16.xpose.msra.mxu0 %v1727
  %1740 = vmatprep.subr.bf16.mxu0 0
  %1741 = vmatpush1.bf16.xpose.msra.mxu0 %v1730
  %1742 = vmatprep.subr.bf16.mxu0 0
  %1743 = vmatpush1.bf16.xpose.msra.mxu0 %v1733
  %1744 = vmatprep.subr.bf16.mxu0 0
  %1745 = vmatpush1.bf16.xpose.msra.mxu0 %v1736
  %1746 = vmatprep.subr.bf16.mxu0 0
  %1747 = vmatpush1.bf16.xpose.msra.mxu0 0
  %1748 = vmatprep.subr.bf16.mxu0 0
  %1749 = vmatpush1.bf16.xpose.msra.mxu0 0
  %1750 = vmatprep.subr.bf16.mxu0 0
  %1751 = vmatpush1.bf16.xpose.msra.mxu0 0
  %1752 = vmatprep.subr.bf16.mxu0 0
  %1753 = vmatpush1.bf16.xpose.msra.mxu0 0
  %1754 = vmatprep.subr.bf16.mxu0 0
  %1755 = vmatpush1.bf16.xpose.msra.mxu0 0
  %1756 = vmatprep.subr.bf16.mxu0 0
  %1757 = vmatpush1.bf16.xpose.msra.mxu0 0
  %1758 = vmatprep.subr.bf16.mxu0 0
  %1759 = vmatpush1.bf16.xpose.msra.mxu0 0
  %1760 = vmatprep.subr.bf16.mxu0 0
  %1761 = vmatpush1.bf16.xpose.msra.mxu0 0
  %1762 = vmatprep.subr.bf16.mxu0 0
  %1763 = vmatpush1.bf16.xpose.msra.mxu0 0
  %1764 = vmatprep.subr.bf16.mxu0 0
  %1765 = vmatpush1.bf16.xpose.msra.mxu0 0
  %1766 = vmatprep.subr.bf16.mxu0 0
  %1767 = vmatpush1.bf16.xpose.msra.mxu0 0
  %1768 = vmatprep.subr.bf16.mxu0 0
  %1769 = vmatpush1.bf16.xpose.msra.mxu0 0
  %1770 = vmatprep.mubr.bf16.mxu0 0
  %1771 = vmatmul.mubr.bf16.gmra.mrb[0].mxu0 %v1715
  %v1772 = vpop.f32.mrb[0].mxu0
  %v1773 = vadd.f32 %v1609, %v1772
  %v1774 = vpop.f32.mrb[0].mxu0
  %v1775 = vpop.f32.mrb[0].mxu0
  %v1776 = vadd.f32 %v1610, %v1775
  %v1777 = vpop.f32.mrb[0].mxu0
  %1778 = vmatprep.mubr.bf16.mxu0 0
  %1779 = vmatmul.mubr.bf16.gmra.mrb[0].mxu0 %v1718
  %v1780 = vpop.f32.mrb[0].mxu0
  %v1781 = vadd.f32 %v1611, %v1780
  %v1782 = vpop.f32.mrb[0].mxu0
  %v1783 = vpop.f32.mrb[0].mxu0
  %v1784 = vadd.f32 %v1612, %v1783
  %v1785 = vpop.f32.mrb[0].mxu0
  %1786 = vmatprep.mubr.bf16.mxu0 0
  %1787 = vmatmul.mubr.bf16.gmra.mrb[0].mxu0 %v1721
  %v1788 = vpop.f32.mrb[0].mxu0
  %v1789 = vadd.f32 %v1613, %v1788
  %v1790 = vpop.f32.mrb[0].mxu0
  %v1791 = vpop.f32.mrb[0].mxu0
  %v1792 = vadd.f32 %v1614, %v1791
  %v1793 = vpop.f32.mrb[0].mxu0
  %1794 = vmatprep.mubr.bf16.mxu0 0
  %1795 = vmatmul.mubr.bf16.gmra.mrb[0].mxu0 %v1724
  %v1796 = vpop.f32.mrb[0].mxu0
  %v1797 = vadd.f32 %v1615, %v1796
  %v1798 = vpop.f32.mrb[0].mxu0
  %v1799 = vpop.f32.mrb[0].mxu0
  %v1800 = vadd.f32 %v1616, %v1799
  %v1801 = vpop.f32.mrb[0].mxu0
  %1802 = vdwg.mxu0
  %v1811 = vunpack.c.l.b16 %v1361
  %v1812 = vunpack.c.l.b16 %v1362
  %v1813 = vunpack.c.l.b16 %v1363
  %v1814 = vunpack.c.l.b16 %v1364
  %v1815 = vunpack.c.l.b16 %v1365
  %v1816 = vunpack.c.l.b16 %v1366
  %v1817 = vunpack.c.l.b16 %v1367
  %v1818 = vunpack.c.l.b16 %v1368
  %v1819 = vpack.c.b16 %v1812, %v1811
  %v1820 = vpack.c.b16 %v1814, %v1813
  %v1821 = vpack.c.b16 %v1816, %v1815
  %v1822 = vpack.c.b16 %v1818, %v1817
  %v1831 = vunpack.c.l.b16 %v1425
  %v1832 = vunpack.c.l.b16 %v1426
  %v1833 = vunpack.c.l.b16 %v1427
  %v1834 = vunpack.c.l.b16 %v1428
  %v1835 = vunpack.c.l.b16 %v1429
  %v1836 = vunpack.c.l.b16 %v1430
  %v1837 = vunpack.c.l.b16 %v1431
  %v1838 = vunpack.c.l.b16 %v1432
  %v1839 = vpack.c.b16 %v1832, %v1831
  %v1840 = vpack.c.b16 %v1834, %v1833
  %v1841 = vpack.c.b16 %v1836, %v1835
  %v1842 = vpack.c.b16 %v1838, %v1837
  %v1844 = vsel %vm1713, %v1819, 0
  %v1847 = vsel %vm1713, %v1820, 0
  %v1850 = vsel %vm1713, %v1821, 0
  %v1853 = vsel %vm1713, %v1822, 0
  %v1856 = vsel %vm1713, %v1839, 0
  %v1859 = vsel %vm1713, %v1840, 0
  %v1862 = vsel %vm1713, %v1841, 0
  %v1865 = vsel %vm1713, %v1842, 0
  %1867 = vmatprep.subr.bf16.mxu0 0
  %1868 = vmatpush1.bf16.xpose.msra.mxu0 %v1856
  %1869 = vmatprep.subr.bf16.mxu0 0
  %1870 = vmatpush1.bf16.xpose.msra.mxu0 %v1859
  %1871 = vmatprep.subr.bf16.mxu0 0
  %1872 = vmatpush1.bf16.xpose.msra.mxu0 %v1862
  %1873 = vmatprep.subr.bf16.mxu0 0
  %1874 = vmatpush1.bf16.xpose.msra.mxu0 %v1865
  %1875 = vmatprep.subr.bf16.mxu0 0
  %1876 = vmatpush1.bf16.xpose.msra.mxu0 0
  %1877 = vmatprep.subr.bf16.mxu0 0
  %1878 = vmatpush1.bf16.xpose.msra.mxu0 0
  %1879 = vmatprep.subr.bf16.mxu0 0
  %1880 = vmatpush1.bf16.xpose.msra.mxu0 0
  %1881 = vmatprep.subr.bf16.mxu0 0
  %1882 = vmatpush1.bf16.xpose.msra.mxu0 0
  %1883 = vmatprep.subr.bf16.mxu0 0
  %1884 = vmatpush1.bf16.xpose.msra.mxu0 0
  %1885 = vmatprep.subr.bf16.mxu0 0
  %1886 = vmatpush1.bf16.xpose.msra.mxu0 0
  %1887 = vmatprep.subr.bf16.mxu0 0
  %1888 = vmatpush1.bf16.xpose.msra.mxu0 0
  %1889 = vmatprep.subr.bf16.mxu0 0
  %1890 = vmatpush1.bf16.xpose.msra.mxu0 0
  %1891 = vmatprep.subr.bf16.mxu0 0
  %1892 = vmatpush1.bf16.xpose.msra.mxu0 0
  %1893 = vmatprep.subr.bf16.mxu0 0
  %1894 = vmatpush1.bf16.xpose.msra.mxu0 0
  %1895 = vmatprep.subr.bf16.mxu0 0
  %1896 = vmatpush1.bf16.xpose.msra.mxu0 0
  %1897 = vmatprep.subr.bf16.mxu0 0
  %1898 = vmatpush1.bf16.xpose.msra.mxu0 0
  %1899 = vmatprep.mubr.bf16.mxu0 0
  %1900 = vmatmul.mubr.bf16.gmra.mrb[0].mxu0 %v1844
  %v1901 = vpop.f32.mrb[0].mxu0
  %v1902 = vadd.f32 %v1617, %v1901
  %v1903 = vpop.f32.mrb[0].mxu0
  %v1904 = vpop.f32.mrb[0].mxu0
  %v1905 = vadd.f32 %v1618, %v1904
  %v1906 = vpop.f32.mrb[0].mxu0
  %1907 = vmatprep.mubr.bf16.mxu0 0
  %1908 = vmatmul.mubr.bf16.gmra.mrb[0].mxu0 %v1847
  %v1909 = vpop.f32.mrb[0].mxu0
  %v1910 = vadd.f32 %v1619, %v1909
  %v1911 = vpop.f32.mrb[0].mxu0
  %v1912 = vpop.f32.mrb[0].mxu0
  %v1913 = vadd.f32 %v1620, %v1912
  %v1914 = vpop.f32.mrb[0].mxu0
  %1915 = vmatprep.mubr.bf16.mxu0 0
  %1916 = vmatmul.mubr.bf16.gmra.mrb[0].mxu0 %v1850
  %v1917 = vpop.f32.mrb[0].mxu0
  %v1918 = vadd.f32 %v1621, %v1917
  %v1919 = vpop.f32.mrb[0].mxu0
  %v1920 = vpop.f32.mrb[0].mxu0
  %v1921 = vadd.f32 %v1622, %v1920
  %v1922 = vpop.f32.mrb[0].mxu0
  %1923 = vmatprep.mubr.bf16.mxu0 0
  %1924 = vmatmul.mubr.bf16.gmra.mrb[0].mxu0 %v1853
  %v1925 = vpop.f32.mrb[0].mxu0
  %v1926 = vadd.f32 %v1623, %v1925
  %v1927 = vpop.f32.mrb[0].mxu0
  %v1928 = vpop.f32.mrb[0].mxu0
  %v1929 = vadd.f32 %v1624, %v1928
  %v1930 = vpop.f32.mrb[0].mxu0
  %1931 = vdwg.mxu0
  %v1940 = vunpack.c.l.b16 %v1369
  %v1941 = vunpack.c.l.b16 %v1370
  %v1942 = vunpack.c.l.b16 %v1371
  %v1943 = vunpack.c.l.b16 %v1372
  %v1944 = vunpack.c.l.b16 %v1373
  %v1945 = vunpack.c.l.b16 %v1374
  %v1946 = vunpack.c.l.b16 %v1375
  %v1947 = vunpack.c.l.b16 %v1376
  %v1948 = vpack.c.b16 %v1941, %v1940
  %v1949 = vpack.c.b16 %v1943, %v1942
  %v1950 = vpack.c.b16 %v1945, %v1944
  %v1951 = vpack.c.b16 %v1947, %v1946
  %v1960 = vunpack.c.l.b16 %v1433
  %v1961 = vunpack.c.l.b16 %v1434
  %v1962 = vunpack.c.l.b16 %v1435
  %v1963 = vunpack.c.l.b16 %v1436
  %v1964 = vunpack.c.l.b16 %v1437
  %v1965 = vunpack.c.l.b16 %v1438
  %v1966 = vunpack.c.l.b16 %v1439
  %v1967 = vunpack.c.l.b16 %v1440
  %v1968 = vpack.c.b16 %v1961, %v1960
  %v1969 = vpack.c.b16 %v1963, %v1962
  %v1970 = vpack.c.b16 %v1965, %v1964
  %v1971 = vpack.c.b16 %v1967, %v1966
  %v1973 = vsel %vm1713, %v1948, 0
  %v1976 = vsel %vm1713, %v1949, 0
  %v1979 = vsel %vm1713, %v1950, 0
  %v1982 = vsel %vm1713, %v1951, 0
  %v1985 = vsel %vm1713, %v1968, 0
  %v1988 = vsel %vm1713, %v1969, 0
  %v1991 = vsel %vm1713, %v1970, 0
  %v1994 = vsel %vm1713, %v1971, 0
  %1996 = vmatprep.subr.bf16.mxu0 0
  %1997 = vmatpush1.bf16.xpose.msra.mxu0 %v1985
  %1998 = vmatprep.subr.bf16.mxu0 0
  %1999 = vmatpush1.bf16.xpose.msra.mxu0 %v1988
  %2000 = vmatprep.subr.bf16.mxu0 0
  %2001 = vmatpush1.bf16.xpose.msra.mxu0 %v1991
  %2002 = vmatprep.subr.bf16.mxu0 0
  %2003 = vmatpush1.bf16.xpose.msra.mxu0 %v1994
  %2004 = vmatprep.subr.bf16.mxu0 0
  %2005 = vmatpush1.bf16.xpose.msra.mxu0 0
  %2006 = vmatprep.subr.bf16.mxu0 0
  %2007 = vmatpush1.bf16.xpose.msra.mxu0 0
  %2008 = vmatprep.subr.bf16.mxu0 0
  %2009 = vmatpush1.bf16.xpose.msra.mxu0 0
  %2010 = vmatprep.subr.bf16.mxu0 0
  %2011 = vmatpush1.bf16.xpose.msra.mxu0 0
  %2012 = vmatprep.subr.bf16.mxu0 0
  %2013 = vmatpush1.bf16.xpose.msra.mxu0 0
  %2014 = vmatprep.subr.bf16.mxu0 0
  %2015 = vmatpush1.bf16.xpose.msra.mxu0 0
  %2016 = vmatprep.subr.bf16.mxu0 0
  %2017 = vmatpush1.bf16.xpose.msra.mxu0 0
  %2018 = vmatprep.subr.bf16.mxu0 0
  %2019 = vmatpush1.bf16.xpose.msra.mxu0 0
  %2020 = vmatprep.subr.bf16.mxu0 0
  %2021 = vmatpush1.bf16.xpose.msra.mxu0 0
  %2022 = vmatprep.subr.bf16.mxu0 0
  %2023 = vmatpush1.bf16.xpose.msra.mxu0 0
  %2024 = vmatprep.subr.bf16.mxu0 0
  %2025 = vmatpush1.bf16.xpose.msra.mxu0 0
  %2026 = vmatprep.subr.bf16.mxu0 0
  %2027 = vmatpush1.bf16.xpose.msra.mxu0 0
  %2028 = vmatprep.mubr.bf16.mxu0 0
  %2029 = vmatmul.mubr.bf16.gmra.mrb[0].mxu0 %v1973
  %v2030 = vpop.f32.mrb[0].mxu0
  %v2031 = vadd.f32 %v1625, %v2030
  %v2032 = vpop.f32.mrb[0].mxu0
  %v2033 = vpop.f32.mrb[0].mxu0
  %v2034 = vadd.f32 %v1626, %v2033
  %v2035 = vpop.f32.mrb[0].mxu0
  %2036 = vmatprep.mubr.bf16.mxu0 0
  %2037 = vmatmul.mubr.bf16.gmra.mrb[0].mxu0 %v1976
  %v2038 = vpop.f32.mrb[0].mxu0
  %v2039 = vadd.f32 %v1627, %v2038
  %v2040 = vpop.f32.mrb[0].mxu0
  %v2041 = vpop.f32.mrb[0].mxu0
  %v2042 = vadd.f32 %v1628, %v2041
  %v2043 = vpop.f32.mrb[0].mxu0
  %2044 = vmatprep.mubr.bf16.mxu0 0
  %2045 = vmatmul.mubr.bf16.gmra.mrb[0].mxu0 %v1979
  %v2046 = vpop.f32.mrb[0].mxu0
  %v2047 = vadd.f32 %v1629, %v2046
  %v2048 = vpop.f32.mrb[0].mxu0
  %v2049 = vpop.f32.mrb[0].mxu0
  %v2050 = vadd.f32 %v1630, %v2049
  %v2051 = vpop.f32.mrb[0].mxu0
  %2052 = vmatprep.mubr.bf16.mxu0 0
  %2053 = vmatmul.mubr.bf16.gmra.mrb[0].mxu0 %v1982
  %v2054 = vpop.f32.mrb[0].mxu0
  %v2055 = vadd.f32 %v1631, %v2054
  %v2056 = vpop.f32.mrb[0].mxu0
  %v2057 = vpop.f32.mrb[0].mxu0
  %v2058 = vadd.f32 %v1632, %v2057
  %v2059 = vpop.f32.mrb[0].mxu0
  %2060 = vdwg.mxu0
  %v2069 = vunpack.c.l.b16 %v1377
  %v2070 = vunpack.c.l.b16 %v1378
  %v2071 = vunpack.c.l.b16 %v1379
  %v2072 = vunpack.c.l.b16 %v1380
  %v2073 = vunpack.c.l.b16 %v1381
  %v2074 = vunpack.c.l.b16 %v1382
  %v2075 = vunpack.c.l.b16 %v1383
  %v2076 = vunpack.c.l.b16 %v1384
  %v2077 = vpack.c.b16 %v2070, %v2069
  %v2078 = vpack.c.b16 %v2072, %v2071
  %v2079 = vpack.c.b16 %v2074, %v2073
  %v2080 = vpack.c.b16 %v2076, %v2075
  %v2089 = vunpack.c.l.b16 %v1441
  %v2090 = vunpack.c.l.b16 %v1442
  %v2091 = vunpack.c.l.b16 %v1443
  %v2092 = vunpack.c.l.b16 %v1444
  %v2093 = vunpack.c.l.b16 %v1445
  %v2094 = vunpack.c.l.b16 %v1446
  %v2095 = vunpack.c.l.b16 %v1447
  %v2096 = vunpack.c.l.b16 %v1448
  %v2097 = vpack.c.b16 %v2090, %v2089
  %v2098 = vpack.c.b16 %v2092, %v2091
  %v2099 = vpack.c.b16 %v2094, %v2093
  %v2100 = vpack.c.b16 %v2096, %v2095
  %v2102 = vsel %vm1713, %v2077, 0
  %v2105 = vsel %vm1713, %v2078, 0
  %v2108 = vsel %vm1713, %v2079, 0
  %v2111 = vsel %vm1713, %v2080, 0
  %v2114 = vsel %vm1713, %v2097, 0
  %v2117 = vsel %vm1713, %v2098, 0
  %v2120 = vsel %vm1713, %v2099, 0
  %v2123 = vsel %vm1713, %v2100, 0
  %2125 = vmatprep.subr.bf16.mxu0 0
  %2126 = vmatpush1.bf16.xpose.msra.mxu0 %v2114
  %2127 = vmatprep.subr.bf16.mxu0 0
  %2128 = vmatpush1.bf16.xpose.msra.mxu0 %v2117
  %2129 = vmatprep.subr.bf16.mxu0 0
  %2130 = vmatpush1.bf16.xpose.msra.mxu0 %v2120
  %2131 = vmatprep.subr.bf16.mxu0 0
  %2132 = vmatpush1.bf16.xpose.msra.mxu0 %v2123
  %2133 = vmatprep.subr.bf16.mxu0 0
  %2134 = vmatpush1.bf16.xpose.msra.mxu0 0
  %2135 = vmatprep.subr.bf16.mxu0 0
  %2136 = vmatpush1.bf16.xpose.msra.mxu0 0
  %2137 = vmatprep.subr.bf16.mxu0 0
  %2138 = vmatpush1.bf16.xpose.msra.mxu0 0
  %2139 = vmatprep.subr.bf16.mxu0 0
  %2140 = vmatpush1.bf16.xpose.msra.mxu0 0
  %2141 = vmatprep.subr.bf16.mxu0 0
  %2142 = vmatpush1.bf16.xpose.msra.mxu0 0
  %2143 = vmatprep.subr.bf16.mxu0 0
  %2144 = vmatpush1.bf16.xpose.msra.mxu0 0
  %2145 = vmatprep.subr.bf16.mxu0 0
  %2146 = vmatpush1.bf16.xpose.msra.mxu0 0
  %2147 = vmatprep.subr.bf16.mxu0 0
  %2148 = vmatpush1.bf16.xpose.msra.mxu0 0
  %2149 = vmatprep.subr.bf16.mxu0 0
  %2150 = vmatpush1.bf16.xpose.msra.mxu0 0
  %2151 = vmatprep.subr.bf16.mxu0 0
  %2152 = vmatpush1.bf16.xpose.msra.mxu0 0
  %2153 = vmatprep.subr.bf16.mxu0 0
  %2154 = vmatpush1.bf16.xpose.msra.mxu0 0
  %2155 = vmatprep.subr.bf16.mxu0 0
  %2156 = vmatpush1.bf16.xpose.msra.mxu0 0
  %2157 = vmatprep.mubr.bf16.mxu0 0
  %2158 = vmatmul.mubr.bf16.gmra.mrb[0].mxu0 %v2102
  %v2159 = vpop.f32.mrb[0].mxu0
  %v2160 = vadd.f32 %v1633, %v2159
  %v2161 = vpop.f32.mrb[0].mxu0
  %v2162 = vpop.f32.mrb[0].mxu0
  %v2163 = vadd.f32 %v1634, %v2162
  %v2164 = vpop.f32.mrb[0].mxu0
  %2165 = vmatprep.mubr.bf16.mxu0 0
  %2166 = vmatmul.mubr.bf16.gmra.mrb[0].mxu0 %v2105
  %v2167 = vpop.f32.mrb[0].mxu0
  %v2168 = vadd.f32 %v1635, %v2167
  %v2169 = vpop.f32.mrb[0].mxu0
  %v2170 = vpop.f32.mrb[0].mxu0
  %v2171 = vadd.f32 %v1636, %v2170
  %v2172 = vpop.f32.mrb[0].mxu0
  %2173 = vmatprep.mubr.bf16.mxu0 0
  %2174 = vmatmul.mubr.bf16.gmra.mrb[0].mxu0 %v2108
  %v2175 = vpop.f32.mrb[0].mxu0
  %v2176 = vadd.f32 %v1637, %v2175
  %v2177 = vpop.f32.mrb[0].mxu0
  %v2178 = vpop.f32.mrb[0].mxu0
  %v2179 = vadd.f32 %v1638, %v2178
  %v2180 = vpop.f32.mrb[0].mxu0
  %2181 = vmatprep.mubr.bf16.mxu0 0
  %2182 = vmatmul.mubr.bf16.gmra.mrb[0].mxu0 %v2111
  %v2183 = vpop.f32.mrb[0].mxu0
  %v2184 = vadd.f32 %v1639, %v2183
  %v2185 = vpop.f32.mrb[0].mxu0
  %v2186 = vpop.f32.mrb[0].mxu0
  %v2187 = vadd.f32 %v1640, %v2186
  %v2188 = vpop.f32.mrb[0].mxu0
  %2189 = vdwg.mxu0
  %v2198 = vunpack.c.l.b16 %v1385
  %v2199 = vunpack.c.l.b16 %v1386
  %v2200 = vunpack.c.l.b16 %v1387
  %v2201 = vunpack.c.l.b16 %v1388
  %v2202 = vunpack.c.l.b16 %v1389
  %v2203 = vunpack.c.l.b16 %v1390
  %v2204 = vunpack.c.l.b16 %v1391
  %v2205 = vunpack.c.l.b16 %v1392
  %v2206 = vpack.c.b16 %v2199, %v2198
  %v2207 = vpack.c.b16 %v2201, %v2200
  %v2208 = vpack.c.b16 %v2203, %v2202
  %v2209 = vpack.c.b16 %v2205, %v2204
  %v2218 = vunpack.c.l.b16 %v1449
  %v2219 = vunpack.c.l.b16 %v1450
  %v2220 = vunpack.c.l.b16 %v1451
  %v2221 = vunpack.c.l.b16 %v1452
  %v2222 = vunpack.c.l.b16 %v1453
  %v2223 = vunpack.c.l.b16 %v1454
  %v2224 = vunpack.c.l.b16 %v1455
  %v2225 = vunpack.c.l.b16 %v1456
  %v2226 = vpack.c.b16 %v2219, %v2218
  %v2227 = vpack.c.b16 %v2221, %v2220
  %v2228 = vpack.c.b16 %v2223, %v2222
  %v2229 = vpack.c.b16 %v2225, %v2224
  %v2231 = vsel %vm1713, %v2206, 0
  %v2234 = vsel %vm1713, %v2207, 0
  %v2237 = vsel %vm1713, %v2208, 0
  %v2240 = vsel %vm1713, %v2209, 0
  %v2243 = vsel %vm1713, %v2226, 0
  %v2246 = vsel %vm1713, %v2227, 0
  %v2249 = vsel %vm1713, %v2228, 0
  %v2252 = vsel %vm1713, %v2229, 0
  %2254 = vmatprep.subr.bf16.mxu0 0
  %2255 = vmatpush1.bf16.xpose.msra.mxu0 %v2243
  %2256 = vmatprep.subr.bf16.mxu0 0
  %2257 = vmatpush1.bf16.xpose.msra.mxu0 %v2246
  %2258 = vmatprep.subr.bf16.mxu0 0
  %2259 = vmatpush1.bf16.xpose.msra.mxu0 %v2249
  %2260 = vmatprep.subr.bf16.mxu0 0
  %2261 = vmatpush1.bf16.xpose.msra.mxu0 %v2252
  %2262 = vmatprep.subr.bf16.mxu0 0
  %2263 = vmatpush1.bf16.xpose.msra.mxu0 0
  %2264 = vmatprep.subr.bf16.mxu0 0
  %2265 = vmatpush1.bf16.xpose.msra.mxu0 0
  %2266 = vmatprep.subr.bf16.mxu0 0
  %2267 = vmatpush1.bf16.xpose.msra.mxu0 0
  %2268 = vmatprep.subr.bf16.mxu0 0
  %2269 = vmatpush1.bf16.xpose.msra.mxu0 0
  %2270 = vmatprep.subr.bf16.mxu0 0
  %2271 = vmatpush1.bf16.xpose.msra.mxu0 0
  %2272 = vmatprep.subr.bf16.mxu0 0
  %2273 = vmatpush1.bf16.xpose.msra.mxu0 0
  %2274 = vmatprep.subr.bf16.mxu0 0
  %2275 = vmatpush1.bf16.xpose.msra.mxu0 0
  %2276 = vmatprep.subr.bf16.mxu0 0
  %2277 = vmatpush1.bf16.xpose.msra.mxu0 0
  %2278 = vmatprep.subr.bf16.mxu0 0
  %2279 = vmatpush1.bf16.xpose.msra.mxu0 0
  %2280 = vmatprep.subr.bf16.mxu0 0
  %2281 = vmatpush1.bf16.xpose.msra.mxu0 0
  %2282 = vmatprep.subr.bf16.mxu0 0
  %2283 = vmatpush1.bf16.xpose.msra.mxu0 0
  %2284 = vmatprep.subr.bf16.mxu0 0
  %2285 = vmatpush1.bf16.xpose.msra.mxu0 0
  %2286 = vmatprep.mubr.bf16.mxu0 0
  %2287 = vmatmul.mubr.bf16.gmra.mrb[0].mxu0 %v2231
  %v2288 = vpop.f32.mrb[0].mxu0
  %v2289 = vadd.f32 %v1641, %v2288
  %v2290 = vpop.f32.mrb[0].mxu0
  %v2291 = vpop.f32.mrb[0].mxu0
  %v2292 = vadd.f32 %v1642, %v2291
  %v2293 = vpop.f32.mrb[0].mxu0
  %2294 = vmatprep.mubr.bf16.mxu0 0
  %2295 = vmatmul.mubr.bf16.gmra.mrb[0].mxu0 %v2234
  %v2296 = vpop.f32.mrb[0].mxu0
  %v2297 = vadd.f32 %v1643, %v2296
  %v2298 = vpop.f32.mrb[0].mxu0
  %v2299 = vpop.f32.mrb[0].mxu0
  %v2300 = vadd.f32 %v1644, %v2299
  %v2301 = vpop.f32.mrb[0].mxu0
  %2302 = vmatprep.mubr.bf16.mxu0 0
  %2303 = vmatmul.mubr.bf16.gmra.mrb[0].mxu0 %v2237
  %v2304 = vpop.f32.mrb[0].mxu0
  %v2305 = vadd.f32 %v1645, %v2304
  %v2306 = vpop.f32.mrb[0].mxu0
  %v2307 = vpop.f32.mrb[0].mxu0
  %v2308 = vadd.f32 %v1646, %v2307
  %v2309 = vpop.f32.mrb[0].mxu0
  %2310 = vmatprep.mubr.bf16.mxu0 0
  %2311 = vmatmul.mubr.bf16.gmra.mrb[0].mxu0 %v2240
  %v2312 = vpop.f32.mrb[0].mxu0
  %v2313 = vadd.f32 %v1647, %v2312
  %v2314 = vpop.f32.mrb[0].mxu0
  %v2315 = vpop.f32.mrb[0].mxu0
  %v2316 = vadd.f32 %v1648, %v2315
  %v2317 = vpop.f32.mrb[0].mxu0
  %2318 = vdwg.mxu0
  %v2327 = vunpack.c.l.b16 %v1393
  %v2328 = vunpack.c.l.b16 %v1394
  %v2329 = vunpack.c.l.b16 %v1395
  %v2330 = vunpack.c.l.b16 %v1396
  %v2331 = vunpack.c.l.b16 %v1397
  %v2332 = vunpack.c.l.b16 %v1398
  %v2333 = vunpack.c.l.b16 %v1399
  %v2334 = vunpack.c.l.b16 %v1400
  %v2335 = vpack.c.b16 %v2328, %v2327
  %v2336 = vpack.c.b16 %v2330, %v2329
  %v2337 = vpack.c.b16 %v2332, %v2331
  %v2338 = vpack.c.b16 %v2334, %v2333
  %v2347 = vunpack.c.l.b16 %v1457
  %v2348 = vunpack.c.l.b16 %v1458
  %v2349 = vunpack.c.l.b16 %v1459
  %v2350 = vunpack.c.l.b16 %v1460
  %v2351 = vunpack.c.l.b16 %v1461
  %v2352 = vunpack.c.l.b16 %v1462
  %v2353 = vunpack.c.l.b16 %v1463
  %v2354 = vunpack.c.l.b16 %v1464
  %v2355 = vpack.c.b16 %v2348, %v2347
  %v2356 = vpack.c.b16 %v2350, %v2349
  %v2357 = vpack.c.b16 %v2352, %v2351
  %v2358 = vpack.c.b16 %v2354, %v2353
  %v2360 = vsel %vm1713, %v2335, 0
  %v2363 = vsel %vm1713, %v2336, 0
  %v2366 = vsel %vm1713, %v2337, 0
  %v2369 = vsel %vm1713, %v2338, 0
  %v2372 = vsel %vm1713, %v2355, 0
  %v2375 = vsel %vm1713, %v2356, 0
  %v2378 = vsel %vm1713, %v2357, 0
  %v2381 = vsel %vm1713, %v2358, 0
  %2383 = vmatprep.subr.bf16.mxu0 0
  %2384 = vmatpush1.bf16.xpose.msra.mxu0 %v2372
  %2385 = vmatprep.subr.bf16.mxu0 0
  %2386 = vmatpush1.bf16.xpose.msra.mxu0 %v2375
  %2387 = vmatprep.subr.bf16.mxu0 0
  %2388 = vmatpush1.bf16.xpose.msra.mxu0 %v2378
  %2389 = vmatprep.subr.bf16.mxu0 0
  %2390 = vmatpush1.bf16.xpose.msra.mxu0 %v2381
  %2391 = vmatprep.subr.bf16.mxu0 0
  %2392 = vmatpush1.bf16.xpose.msra.mxu0 0
  %2393 = vmatprep.subr.bf16.mxu0 0
  %2394 = vmatpush1.bf16.xpose.msra.mxu0 0
  %2395 = vmatprep.subr.bf16.mxu0 0
  %2396 = vmatpush1.bf16.xpose.msra.mxu0 0
  %2397 = vmatprep.subr.bf16.mxu0 0
  %2398 = vmatpush1.bf16.xpose.msra.mxu0 0
  %2399 = vmatprep.subr.bf16.mxu0 0
  %2400 = vmatpush1.bf16.xpose.msra.mxu0 0
  %2401 = vmatprep.subr.bf16.mxu0 0
  %2402 = vmatpush1.bf16.xpose.msra.mxu0 0
  %2403 = vmatprep.subr.bf16.mxu0 0
  %2404 = vmatpush1.bf16.xpose.msra.mxu0 0
  %2405 = vmatprep.subr.bf16.mxu0 0
  %2406 = vmatpush1.bf16.xpose.msra.mxu0 0
  %2407 = vmatprep.subr.bf16.mxu0 0
  %2408 = vmatpush1.bf16.xpose.msra.mxu0 0
  %2409 = vmatprep.subr.bf16.mxu0 0
  %2410 = vmatpush1.bf16.xpose.msra.mxu0 0
  %2411 = vmatprep.subr.bf16.mxu0 0
  %2412 = vmatpush1.bf16.xpose.msra.mxu0 0
  %2413 = vmatprep.subr.bf16.mxu0 0
  %2414 = vmatpush1.bf16.xpose.msra.mxu0 0
  %2415 = vmatprep.mubr.bf16.mxu0 0
  %2416 = vmatmul.mubr.bf16.gmra.mrb[0].mxu0 %v2360
  %v2417 = vpop.f32.mrb[0].mxu0
  %v2418 = vadd.f32 %v1649, %v2417
  %v2419 = vpop.f32.mrb[0].mxu0
  %v2420 = vpop.f32.mrb[0].mxu0
  %v2421 = vadd.f32 %v1650, %v2420
  %v2422 = vpop.f32.mrb[0].mxu0
  %2423 = vmatprep.mubr.bf16.mxu0 0
  %2424 = vmatmul.mubr.bf16.gmra.mrb[0].mxu0 %v2363
  %v2425 = vpop.f32.mrb[0].mxu0
  %v2426 = vadd.f32 %v1651, %v2425
  %v2427 = vpop.f32.mrb[0].mxu0
  %v2428 = vpop.f32.mrb[0].mxu0
  %v2429 = vadd.f32 %v1652, %v2428
  %v2430 = vpop.f32.mrb[0].mxu0
  %2431 = vmatprep.mubr.bf16.mxu0 0
  %2432 = vmatmul.mubr.bf16.gmra.mrb[0].mxu0 %v2366
  %v2433 = vpop.f32.mrb[0].mxu0
  %v2434 = vadd.f32 %v1653, %v2433
  %v2435 = vpop.f32.mrb[0].mxu0
  %v2436 = vpop.f32.mrb[0].mxu0
  %v2437 = vadd.f32 %v1654, %v2436
  %v2438 = vpop.f32.mrb[0].mxu0
  %2439 = vmatprep.mubr.bf16.mxu0 0
  %2440 = vmatmul.mubr.bf16.gmra.mrb[0].mxu0 %v2369
  %v2441 = vpop.f32.mrb[0].mxu0
  %v2442 = vadd.f32 %v1655, %v2441
  %v2443 = vpop.f32.mrb[0].mxu0
  %v2444 = vpop.f32.mrb[0].mxu0
  %v2445 = vadd.f32 %v1656, %v2444
  %v2446 = vpop.f32.mrb[0].mxu0
  %2447 = vdwg.mxu0
  %v2456 = vunpack.c.l.b16 %v1401
  %v2457 = vunpack.c.l.b16 %v1402
  %v2458 = vunpack.c.l.b16 %v1403
  %v2459 = vunpack.c.l.b16 %v1404
  %v2460 = vunpack.c.l.b16 %v1405
  %v2461 = vunpack.c.l.b16 %v1406
  %v2462 = vunpack.c.l.b16 %v1407
  %v2463 = vunpack.c.l.b16 %v1408
  %v2464 = vpack.c.b16 %v2457, %v2456
  %v2465 = vpack.c.b16 %v2459, %v2458
  %v2466 = vpack.c.b16 %v2461, %v2460
  %v2467 = vpack.c.b16 %v2463, %v2462
  %v2476 = vunpack.c.l.b16 %v1465
  %v2477 = vunpack.c.l.b16 %v1466
  %v2478 = vunpack.c.l.b16 %v1467
  %v2479 = vunpack.c.l.b16 %v1468
  %v2480 = vunpack.c.l.b16 %v1469
  %v2481 = vunpack.c.l.b16 %v1470
  %v2482 = vunpack.c.l.b16 %v1471
  %v2483 = vunpack.c.l.b16 %v1472
  %v2484 = vpack.c.b16 %v2477, %v2476
  %v2485 = vpack.c.b16 %v2479, %v2478
  %v2486 = vpack.c.b16 %v2481, %v2480
  %v2487 = vpack.c.b16 %v2483, %v2482
  %v2489 = vsel %vm1713, %v2464, 0
  %v2492 = vsel %vm1713, %v2465, 0
  %v2495 = vsel %vm1713, %v2466, 0
  %v2498 = vsel %vm1713, %v2467, 0
  %v2501 = vsel %vm1713, %v2484, 0
  %v2504 = vsel %vm1713, %v2485, 0
  %v2507 = vsel %vm1713, %v2486, 0
  %v2510 = vsel %vm1713, %v2487, 0
  %2512 = vmatprep.subr.bf16.mxu0 0
  %2513 = vmatpush1.bf16.xpose.msra.mxu0 %v2501
  %2514 = vmatprep.subr.bf16.mxu0 0
  %2515 = vmatpush1.bf16.xpose.msra.mxu0 %v2504
  %2516 = vmatprep.subr.bf16.mxu0 0
  %2517 = vmatpush1.bf16.xpose.msra.mxu0 %v2507
  %2518 = vmatprep.subr.bf16.mxu0 0
  %2519 = vmatpush1.bf16.xpose.msra.mxu0 %v2510
  %2520 = vmatprep.subr.bf16.mxu0 0
  %2521 = vmatpush1.bf16.xpose.msra.mxu0 0
  %2522 = vmatprep.subr.bf16.mxu0 0
  %2523 = vmatpush1.bf16.xpose.msra.mxu0 0
  %2524 = vmatprep.subr.bf16.mxu0 0
  %2525 = vmatpush1.bf16.xpose.msra.mxu0 0
  %2526 = vmatprep.subr.bf16.mxu0 0
  %2527 = vmatpush1.bf16.xpose.msra.mxu0 0
  %2528 = vmatprep.subr.bf16.mxu0 0
  %2529 = vmatpush1.bf16.xpose.msra.mxu0 0
  %2530 = vmatprep.subr.bf16.mxu0 0
  %2531 = vmatpush1.bf16.xpose.msra.mxu0 0
  %2532 = vmatprep.subr.bf16.mxu0 0
  %2533 = vmatpush1.bf16.xpose.msra.mxu0 0
  %2534 = vmatprep.subr.bf16.mxu0 0
  %2535 = vmatpush1.bf16.xpose.msra.mxu0 0
  %2536 = vmatprep.subr.bf16.mxu0 0
  %2537 = vmatpush1.bf16.xpose.msra.mxu0 0
  %2538 = vmatprep.subr.bf16.mxu0 0
  %2539 = vmatpush1.bf16.xpose.msra.mxu0 0
  %2540 = vmatprep.subr.bf16.mxu0 0
  %2541 = vmatpush1.bf16.xpose.msra.mxu0 0
  %2542 = vmatprep.subr.bf16.mxu0 0
  %2543 = vmatpush1.bf16.xpose.msra.mxu0 0
  %2544 = vmatprep.mubr.bf16.mxu0 0
  %2545 = vmatmul.mubr.bf16.gmra.mrb[0].mxu0 %v2489
  %v2546 = vpop.f32.mrb[0].mxu0
  %v2547 = vadd.f32 %v1657, %v2546
  %v2548 = vpop.f32.mrb[0].mxu0
  %v2549 = vpop.f32.mrb[0].mxu0
  %v2550 = vadd.f32 %v1658, %v2549
  %v2551 = vpop.f32.mrb[0].mxu0
  %2552 = vmatprep.mubr.bf16.mxu0 0
  %2553 = vmatmul.mubr.bf16.gmra.mrb[0].mxu0 %v2492
  %v2554 = vpop.f32.mrb[0].mxu0
  %v2555 = vadd.f32 %v1659, %v2554
  %v2556 = vpop.f32.mrb[0].mxu0
  %v2557 = vpop.f32.mrb[0].mxu0
  %v2558 = vadd.f32 %v1660, %v2557
  %v2559 = vpop.f32.mrb[0].mxu0
  %2560 = vmatprep.mubr.bf16.mxu0 0
  %2561 = vmatmul.mubr.bf16.gmra.mrb[0].mxu0 %v2495
  %v2562 = vpop.f32.mrb[0].mxu0
  %v2563 = vadd.f32 %v1661, %v2562
  %v2564 = vpop.f32.mrb[0].mxu0
  %v2565 = vpop.f32.mrb[0].mxu0
  %v2566 = vadd.f32 %v1662, %v2565
  %v2567 = vpop.f32.mrb[0].mxu0
  %2568 = vmatprep.mubr.bf16.mxu0 0
  %2569 = vmatmul.mubr.bf16.gmra.mrb[0].mxu0 %v2498
  %v2570 = vpop.f32.mrb[0].mxu0
  %v2571 = vadd.f32 %v1663, %v2570
  %v2572 = vpop.f32.mrb[0].mxu0
  %v2573 = vpop.f32.mrb[0].mxu0
  %v2574 = vadd.f32 %v1664, %v2573
  %v2575 = vpop.f32.mrb[0].mxu0
  %2576 = vdwg.mxu0
  %v2585 = vunpack.c.l.b16 %v1409
  %v2586 = vunpack.c.l.b16 %v1410
  %v2587 = vunpack.c.l.b16 %v1411
  %v2588 = vunpack.c.l.b16 %v1412
  %v2589 = vunpack.c.l.b16 %v1413
  %v2590 = vunpack.c.l.b16 %v1414
  %v2591 = vunpack.c.l.b16 %v1415
  %v2592 = vunpack.c.l.b16 %v1416
  %v2593 = vpack.c.b16 %v2586, %v2585
  %v2594 = vpack.c.b16 %v2588, %v2587
  %v2595 = vpack.c.b16 %v2590, %v2589
  %v2596 = vpack.c.b16 %v2592, %v2591
  %v2605 = vunpack.c.l.b16 %v1473
  %v2606 = vunpack.c.l.b16 %v1474
  %v2607 = vunpack.c.l.b16 %v1475
  %v2608 = vunpack.c.l.b16 %v1476
  %v2609 = vunpack.c.l.b16 %v1477
  %v2610 = vunpack.c.l.b16 %v1478
  %v2611 = vunpack.c.l.b16 %v1479
  %v2612 = vunpack.c.l.b16 %v1480
  %v2613 = vpack.c.b16 %v2606, %v2605
  %v2614 = vpack.c.b16 %v2608, %v2607
  %v2615 = vpack.c.b16 %v2610, %v2609
  %v2616 = vpack.c.b16 %v2612, %v2611
  %v2618 = vsel %vm1713, %v2593, 0
  %v2621 = vsel %vm1713, %v2594, 0
  %v2624 = vsel %vm1713, %v2595, 0
  %v2627 = vsel %vm1713, %v2596, 0
  %v2630 = vsel %vm1713, %v2613, 0
  %v2633 = vsel %vm1713, %v2614, 0
  %v2636 = vsel %vm1713, %v2615, 0
  %v2639 = vsel %vm1713, %v2616, 0
  %2641 = vmatprep.subr.bf16.mxu0 0
  %2642 = vmatpush1.bf16.xpose.msra.mxu0 %v2630
  %2643 = vmatprep.subr.bf16.mxu0 0
  %2644 = vmatpush1.bf16.xpose.msra.mxu0 %v2633
  %2645 = vmatprep.subr.bf16.mxu0 0
  %2646 = vmatpush1.bf16.xpose.msra.mxu0 %v2636
  %2647 = vmatprep.subr.bf16.mxu0 0
  %2648 = vmatpush1.bf16.xpose.msra.mxu0 %v2639
  %2649 = vmatprep.subr.bf16.mxu0 0
  %2650 = vmatpush1.bf16.xpose.msra.mxu0 0
  %2651 = vmatprep.subr.bf16.mxu0 0
  %2652 = vmatpush1.bf16.xpose.msra.mxu0 0
  %2653 = vmatprep.subr.bf16.mxu0 0
  %2654 = vmatpush1.bf16.xpose.msra.mxu0 0
  %2655 = vmatprep.subr.bf16.mxu0 0
  %2656 = vmatpush1.bf16.xpose.msra.mxu0 0
  %2657 = vmatprep.subr.bf16.mxu0 0
  %2658 = vmatpush1.bf16.xpose.msra.mxu0 0
  %2659 = vmatprep.subr.bf16.mxu0 0
  %2660 = vmatpush1.bf16.xpose.msra.mxu0 0
  %2661 = vmatprep.subr.bf16.mxu0 0
  %2662 = vmatpush1.bf16.xpose.msra.mxu0 0
  %2663 = vmatprep.subr.bf16.mxu0 0
  %2664 = vmatpush1.bf16.xpose.msra.mxu0 0
  %2665 = vmatprep.subr.bf16.mxu0 0
  %2666 = vmatpush1.bf16.xpose.msra.mxu0 0
  %2667 = vmatprep.subr.bf16.mxu0 0
  %2668 = vmatpush1.bf16.xpose.msra.mxu0 0
  %2669 = vmatprep.subr.bf16.mxu0 0
  %2670 = vmatpush1.bf16.xpose.msra.mxu0 0
  %2671 = vmatprep.subr.bf16.mxu0 0
  %2672 = vmatpush1.bf16.xpose.msra.mxu0 0
  %2673 = vmatprep.mubr.bf16.mxu0 0
  %2674 = vmatmul.mubr.bf16.gmra.mrb[0].mxu0 %v2618
  %v2675 = vpop.f32.mrb[0].mxu0
  %v2676 = vadd.f32 %v1665, %v2675
  %v2677 = vpop.f32.mrb[0].mxu0
  %v2678 = vpop.f32.mrb[0].mxu0
  %v2679 = vadd.f32 %v1666, %v2678
  %v2680 = vpop.f32.mrb[0].mxu0
  %2681 = vmatprep.mubr.bf16.mxu0 0
  %2682 = vmatmul.mubr.bf16.gmra.mrb[0].mxu0 %v2621
  %v2683 = vpop.f32.mrb[0].mxu0
  %v2684 = vadd.f32 %v1667, %v2683
  %v2685 = vpop.f32.mrb[0].mxu0
  %v2686 = vpop.f32.mrb[0].mxu0
  %v2687 = vadd.f32 %v1668, %v2686
  %v2688 = vpop.f32.mrb[0].mxu0
  %2689 = vmatprep.mubr.bf16.mxu0 0
  %2690 = vmatmul.mubr.bf16.gmra.mrb[0].mxu0 %v2624
  %v2691 = vpop.f32.mrb[0].mxu0
  %v2692 = vadd.f32 %v1669, %v2691
  %v2693 = vpop.f32.mrb[0].mxu0
  %v2694 = vpop.f32.mrb[0].mxu0
  %v2695 = vadd.f32 %v1670, %v2694
  %v2696 = vpop.f32.mrb[0].mxu0
  %2697 = vmatprep.mubr.bf16.mxu0 0
  %2698 = vmatmul.mubr.bf16.gmra.mrb[0].mxu0 %v2627
  %v2699 = vpop.f32.mrb[0].mxu0
  %v2700 = vadd.f32 %v1671, %v2699
  %v2701 = vpop.f32.mrb[0].mxu0
  %v2702 = vpop.f32.mrb[0].mxu0
  %v2703 = vadd.f32 %v1672, %v2702
  %v2704 = vpop.f32.mrb[0].mxu0
  %2705 = vdwg.mxu0
  %v2706 = vsel %vm313, %v1773, -inf
  %2707 = vmax.xlane.f32.xlu0 %v2706
  %v2708 = vpop.xlane.xlu0 %2707
  %v2709 = vsel %vm313, %v1776, -inf
  %2710 = vmax.xlane.f32.xlu0 %v2709
  %v2711 = vpop.xlane.xlu0 %2710
  %v2712 = vsel %vm313, %v1781, -inf
  %2713 = vmax.xlane.f32.xlu0 %v2712
  %v2714 = vpop.xlane.xlu0 %2713
  %v2715 = vsel %vm313, %v1784, -inf
  %2716 = vmax.xlane.f32.xlu0 %v2715
  %v2717 = vpop.xlane.xlu0 %2716
  %v2718 = vsel %vm313, %v1789, -inf
  %2719 = vmax.xlane.f32.xlu0 %v2718
  %v2720 = vpop.xlane.xlu0 %2719
  %v2721 = vsel %vm313, %v1792, -inf
  %2722 = vmax.xlane.f32.xlu0 %v2721
  %v2723 = vpop.xlane.xlu0 %2722
  %v2724 = vsel %vm313, %v1797, -inf
  %2725 = vmax.xlane.f32.xlu0 %v2724
  %v2726 = vpop.xlane.xlu0 %2725
  %v2727 = vsel %vm313, %v1800, -inf
  %2728 = vmax.xlane.f32.xlu0 %v2727
  %v2729 = vpop.xlane.xlu0 %2728
  %v2730 = vsel %vm313, %v1902, -inf
  %2731 = vmax.xlane.f32.xlu0 %v2730
  %v2732 = vpop.xlane.xlu0 %2731
  %v2733 = vsel %vm313, %v1905, -inf
  %2734 = vmax.xlane.f32.xlu0 %v2733
  %v2735 = vpop.xlane.xlu0 %2734
  %v2736 = vsel %vm313, %v1910, -inf
  %2737 = vmax.xlane.f32.xlu0 %v2736
  %v2738 = vpop.xlane.xlu0 %2737
  %v2739 = vsel %vm313, %v1913, -inf
  %2740 = vmax.xlane.f32.xlu0 %v2739
  %v2741 = vpop.xlane.xlu0 %2740
  %v2742 = vsel %vm313, %v1918, -inf
  %2743 = vmax.xlane.f32.xlu0 %v2742
  %v2744 = vpop.xlane.xlu0 %2743
  %v2745 = vsel %vm313, %v1921, -inf
  %2746 = vmax.xlane.f32.xlu0 %v2745
  %v2747 = vpop.xlane.xlu0 %2746
  %v2748 = vsel %vm313, %v1926, -inf
  %2749 = vmax.xlane.f32.xlu0 %v2748
  %v2750 = vpop.xlane.xlu0 %2749
  %v2751 = vsel %vm313, %v1929, -inf
  %2752 = vmax.xlane.f32.xlu0 %v2751
  %v2753 = vpop.xlane.xlu0 %2752
  %v2754 = vsel %vm313, %v2031, -inf
  %2755 = vmax.xlane.f32.xlu0 %v2754
  %v2756 = vpop.xlane.xlu0 %2755
  %v2757 = vsel %vm313, %v2034, -inf
  %2758 = vmax.xlane.f32.xlu0 %v2757
  %v2759 = vpop.xlane.xlu0 %2758
  %v2760 = vsel %vm313, %v2039, -inf
  %2761 = vmax.xlane.f32.xlu0 %v2760
  %v2762 = vpop.xlane.xlu0 %2761
  %v2763 = vsel %vm313, %v2042, -inf
  %2764 = vmax.xlane.f32.xlu0 %v2763
  %v2765 = vpop.xlane.xlu0 %2764
  %v2766 = vsel %vm313, %v2047, -inf
  %2767 = vmax.xlane.f32.xlu0 %v2766
  %v2768 = vpop.xlane.xlu0 %2767
  %v2769 = vsel %vm313, %v2050, -inf
  %2770 = vmax.xlane.f32.xlu0 %v2769
  %v2771 = vpop.xlane.xlu0 %2770
  %v2772 = vsel %vm313, %v2055, -inf
  %2773 = vmax.xlane.f32.xlu0 %v2772
  %v2774 = vpop.xlane.xlu0 %2773
  %v2775 = vsel %vm313, %v2058, -inf
  %2776 = vmax.xlane.f32.xlu0 %v2775
  %v2777 = vpop.xlane.xlu0 %2776
  %v2778 = vsel %vm313, %v2160, -inf
  %2779 = vmax.xlane.f32.xlu0 %v2778
  %v2780 = vpop.xlane.xlu0 %2779
  %v2781 = vsel %vm313, %v2163, -inf
  %2782 = vmax.xlane.f32.xlu0 %v2781
  %v2783 = vpop.xlane.xlu0 %2782
  %v2784 = vsel %vm313, %v2168, -inf
  %2785 = vmax.xlane.f32.xlu0 %v2784
  %v2786 = vpop.xlane.xlu0 %2785
  %v2787 = vsel %vm313, %v2171, -inf
  %2788 = vmax.xlane.f32.xlu0 %v2787
  %v2789 = vpop.xlane.xlu0 %2788
  %v2790 = vsel %vm313, %v2176, -inf
  %2791 = vmax.xlane.f32.xlu0 %v2790
  %v2792 = vpop.xlane.xlu0 %2791
  %v2793 = vsel %vm313, %v2179, -inf
  %2794 = vmax.xlane.f32.xlu0 %v2793
  %v2795 = vpop.xlane.xlu0 %2794
  %v2796 = vsel %vm313, %v2184, -inf
  %2797 = vmax.xlane.f32.xlu0 %v2796
  %v2798 = vpop.xlane.xlu0 %2797
  %v2799 = vsel %vm313, %v2187, -inf
  %2800 = vmax.xlane.f32.xlu0 %v2799
  %v2801 = vpop.xlane.xlu0 %2800
  %v2802 = vsel %vm313, %v2289, -inf
  %2803 = vmax.xlane.f32.xlu0 %v2802
  %v2804 = vpop.xlane.xlu0 %2803
  %v2805 = vsel %vm313, %v2292, -inf
  %2806 = vmax.xlane.f32.xlu0 %v2805
  %v2807 = vpop.xlane.xlu0 %2806
  %v2808 = vsel %vm313, %v2297, -inf
  %2809 = vmax.xlane.f32.xlu0 %v2808
  %v2810 = vpop.xlane.xlu0 %2809
  %v2811 = vsel %vm313, %v2300, -inf
  %2812 = vmax.xlane.f32.xlu0 %v2811
  %v2813 = vpop.xlane.xlu0 %2812
  %v2814 = vsel %vm313, %v2305, -inf
  %2815 = vmax.xlane.f32.xlu0 %v2814
  %v2816 = vpop.xlane.xlu0 %2815
  %v2817 = vsel %vm313, %v2308, -inf
  %2818 = vmax.xlane.f32.xlu0 %v2817
  %v2819 = vpop.xlane.xlu0 %2818
  %v2820 = vsel %vm313, %v2313, -inf
  %2821 = vmax.xlane.f32.xlu0 %v2820
  %v2822 = vpop.xlane.xlu0 %2821
  %v2823 = vsel %vm313, %v2316, -inf
  %2824 = vmax.xlane.f32.xlu0 %v2823
  %v2825 = vpop.xlane.xlu0 %2824
  %v2826 = vsel %vm313, %v2418, -inf
  %2827 = vmax.xlane.f32.xlu0 %v2826
  %v2828 = vpop.xlane.xlu0 %2827
  %v2829 = vsel %vm313, %v2421, -inf
  %2830 = vmax.xlane.f32.xlu0 %v2829
  %v2831 = vpop.xlane.xlu0 %2830
  %v2832 = vsel %vm313, %v2426, -inf
  %2833 = vmax.xlane.f32.xlu0 %v2832
  %v2834 = vpop.xlane.xlu0 %2833
  %v2835 = vsel %vm313, %v2429, -inf
  %2836 = vmax.xlane.f32.xlu0 %v2835
  %v2837 = vpop.xlane.xlu0 %2836
  %v2838 = vsel %vm313, %v2434, -inf
  %2839 = vmax.xlane.f32.xlu0 %v2838
  %v2840 = vpop.xlane.xlu0 %2839
  %v2841 = vsel %vm313, %v2437, -inf
  %2842 = vmax.xlane.f32.xlu0 %v2841
  %v2843 = vpop.xlane.xlu0 %2842
  %v2844 = vsel %vm313, %v2442, -inf
  %2845 = vmax.xlane.f32.xlu0 %v2844
  %v2846 = vpop.xlane.xlu0 %2845
  %v2847 = vsel %vm313, %v2445, -inf
  %2848 = vmax.xlane.f32.xlu0 %v2847
  %v2849 = vpop.xlane.xlu0 %2848
  %v2850 = vsel %vm313, %v2547, -inf
  %2851 = vmax.xlane.f32.xlu0 %v2850
  %v2852 = vpop.xlane.xlu0 %2851
  %v2853 = vsel %vm313, %v2550, -inf
  %2854 = vmax.xlane.f32.xlu0 %v2853
  %v2855 = vpop.xlane.xlu0 %2854
  %v2856 = vsel %vm313, %v2555, -inf
  %2857 = vmax.xlane.f32.xlu0 %v2856
  %v2858 = vpop.xlane.xlu0 %2857
  %v2859 = vsel %vm313, %v2558, -inf
  %2860 = vmax.xlane.f32.xlu0 %v2859
  %v2861 = vpop.xlane.xlu0 %2860
  %v2862 = vsel %vm313, %v2563, -inf
  %2863 = vmax.xlane.f32.xlu0 %v2862
  %v2864 = vpop.xlane.xlu0 %2863
  %v2865 = vsel %vm313, %v2566, -inf
  %2866 = vmax.xlane.f32.xlu0 %v2865
  %v2867 = vpop.xlane.xlu0 %2866
  %v2868 = vsel %vm313, %v2571, -inf
  %2869 = vmax.xlane.f32.xlu0 %v2868
  %v2870 = vpop.xlane.xlu0 %2869
  %v2871 = vsel %vm313, %v2574, -inf
  %2872 = vmax.xlane.f32.xlu0 %v2871
  %v2873 = vpop.xlane.xlu0 %2872
  %v2874 = vsel %vm313, %v2676, -inf
  %2875 = vmax.xlane.f32.xlu0 %v2874
  %v2876 = vpop.xlane.xlu0 %2875
  %v2877 = vsel %vm313, %v2679, -inf
  %2878 = vmax.xlane.f32.xlu0 %v2877
  %v2879 = vpop.xlane.xlu0 %2878
  %v2880 = vsel %vm313, %v2684, -inf
  %2881 = vmax.xlane.f32.xlu0 %v2880
  %v2882 = vpop.xlane.xlu0 %2881
  %v2883 = vsel %vm313, %v2687, -inf
  %2884 = vmax.xlane.f32.xlu0 %v2883
  %v2885 = vpop.xlane.xlu0 %2884
  %v2886 = vsel %vm313, %v2692, -inf
  %2887 = vmax.xlane.f32.xlu0 %v2886
  %v2888 = vpop.xlane.xlu0 %2887
  %v2889 = vsel %vm313, %v2695, -inf
  %2890 = vmax.xlane.f32.xlu0 %v2889
  %v2891 = vpop.xlane.xlu0 %2890
  %v2892 = vsel %vm313, %v2700, -inf
  %2893 = vmax.xlane.f32.xlu0 %v2892
  %v2894 = vpop.xlane.xlu0 %2893
  %v2895 = vsel %vm313, %v2703, -inf
  %2896 = vmax.xlane.f32.xlu0 %v2895
  %v2897 = vpop.xlane.xlu0 %2896
  %v2898 = vsub.f32 %v1773, %v2708
  %v2899 = vsub.f32 %v1776, %v2711
  %v2900 = vsub.f32 %v1781, %v2714
  %v2901 = vsub.f32 %v1784, %v2717
  %v2902 = vsub.f32 %v1789, %v2720
  %v2903 = vsub.f32 %v1792, %v2723
  %v2904 = vsub.f32 %v1797, %v2726
  %v2905 = vsub.f32 %v1800, %v2729
  %v2906 = vsub.f32 %v1902, %v2732
  %v2907 = vsub.f32 %v1905, %v2735
  %v2908 = vsub.f32 %v1910, %v2738
  %v2909 = vsub.f32 %v1913, %v2741
  %v2910 = vsub.f32 %v1918, %v2744
  %v2911 = vsub.f32 %v1921, %v2747
  %v2912 = vsub.f32 %v1926, %v2750
  %v2913 = vsub.f32 %v1929, %v2753
  %v2914 = vsub.f32 %v2031, %v2756
  %v2915 = vsub.f32 %v2034, %v2759
  %v2916 = vsub.f32 %v2039, %v2762
  %v2917 = vsub.f32 %v2042, %v2765
  %v2918 = vsub.f32 %v2047, %v2768
  %v2919 = vsub.f32 %v2050, %v2771
  %v2920 = vsub.f32 %v2055, %v2774
  %v2921 = vsub.f32 %v2058, %v2777
  %v2922 = vsub.f32 %v2160, %v2780
  %v2923 = vsub.f32 %v2163, %v2783
  %v2924 = vsub.f32 %v2168, %v2786
  %v2925 = vsub.f32 %v2171, %v2789
  %v2926 = vsub.f32 %v2176, %v2792
  %v2927 = vsub.f32 %v2179, %v2795
  %v2928 = vsub.f32 %v2184, %v2798
  %v2929 = vsub.f32 %v2187, %v2801
  %v2930 = vsub.f32 %v2289, %v2804
  %v2931 = vsub.f32 %v2292, %v2807
  %v2932 = vsub.f32 %v2297, %v2810
  %v2933 = vsub.f32 %v2300, %v2813
  %v2934 = vsub.f32 %v2305, %v2816
  %v2935 = vsub.f32 %v2308, %v2819
  %v2936 = vsub.f32 %v2313, %v2822
  %v2937 = vsub.f32 %v2316, %v2825
  %v2938 = vsub.f32 %v2418, %v2828
  %v2939 = vsub.f32 %v2421, %v2831
  %v2940 = vsub.f32 %v2426, %v2834
  %v2941 = vsub.f32 %v2429, %v2837
  %v2942 = vsub.f32 %v2434, %v2840
  %v2943 = vsub.f32 %v2437, %v2843
  %v2944 = vsub.f32 %v2442, %v2846
  %v2945 = vsub.f32 %v2445, %v2849
  %v2946 = vsub.f32 %v2547, %v2852
  %v2947 = vsub.f32 %v2550, %v2855
  %v2948 = vsub.f32 %v2555, %v2858
  %v2949 = vsub.f32 %v2558, %v2861
  %v2950 = vsub.f32 %v2563, %v2864
  %v2951 = vsub.f32 %v2566, %v2867
  %v2952 = vsub.f32 %v2571, %v2870
  %v2953 = vsub.f32 %v2574, %v2873
  %v2954 = vsub.f32 %v2676, %v2876
  %v2955 = vsub.f32 %v2679, %v2879
  %v2956 = vsub.f32 %v2684, %v2882
  %v2957 = vsub.f32 %v2687, %v2885
  %v2958 = vsub.f32 %v2692, %v2888
  %v2959 = vsub.f32 %v2695, %v2891
  %v2960 = vsub.f32 %v2700, %v2894
  %v2961 = vsub.f32 %v2703, %v2897
  %v2962 = vmul.f32 %v2898, 1.442695
  %v2963 = vpow.pop %v2962
  %v2964 = vmul.f32 %v2899, 1.442695
  %v2965 = vpow.pop %v2964
  %v2966 = vmul.f32 %v2900, 1.442695
  %v2967 = vpow.pop %v2966
  %v2968 = vmul.f32 %v2901, 1.442695
  %v2969 = vpow.pop %v2968
  %v2970 = vmul.f32 %v2902, 1.442695
  %v2971 = vpow.pop %v2970
  %v2972 = vmul.f32 %v2903, 1.442695
  %v2973 = vpow.pop %v2972
  %v2974 = vmul.f32 %v2904, 1.442695
  %v2975 = vpow.pop %v2974
  %v2976 = vmul.f32 %v2905, 1.442695
  %v2977 = vpow.pop %v2976
  %v2978 = vmul.f32 %v2906, 1.442695
  %v2979 = vpow.pop %v2978
  %v2980 = vmul.f32 %v2907, 1.442695
  %v2981 = vpow.pop %v2980
  %v2982 = vmul.f32 %v2908, 1.442695
  %v2983 = vpow.pop %v2982
  %v2984 = vmul.f32 %v2909, 1.442695
  %v2985 = vpow.pop %v2984
  %v2986 = vmul.f32 %v2910, 1.442695
  %v2987 = vpow.pop %v2986
  %v2988 = vmul.f32 %v2911, 1.442695
  %v2989 = vpow.pop %v2988
  %v2990 = vmul.f32 %v2912, 1.442695
  %v2991 = vpow.pop %v2990
  %v2992 = vmul.f32 %v2913, 1.442695
  %v2993 = vpow.pop %v2992
  %v2994 = vmul.f32 %v2914, 1.442695
  %v2995 = vpow.pop %v2994
  %v2996 = vmul.f32 %v2915, 1.442695
  %v2997 = vpow.pop %v2996
  %v2998 = vmul.f32 %v2916, 1.442695
  %v2999 = vpow.pop %v2998
  %v3000 = vmul.f32 %v2917, 1.442695
  %v3001 = vpow.pop %v3000
  %v3002 = vmul.f32 %v2918, 1.442695
  %v3003 = vpow.pop %v3002
  %v3004 = vmul.f32 %v2919, 1.442695
  %v3005 = vpow.pop %v3004
  %v3006 = vmul.f32 %v2920, 1.442695
  %v3007 = vpow.pop %v3006
  %v3008 = vmul.f32 %v2921, 1.442695
  %v3009 = vpow.pop %v3008
  %v3010 = vmul.f32 %v2922, 1.442695
  %v3011 = vpow.pop %v3010
  %v3012 = vmul.f32 %v2923, 1.442695
  %v3013 = vpow.pop %v3012
  %v3014 = vmul.f32 %v2924, 1.442695
  %v3015 = vpow.pop %v3014
  %v3016 = vmul.f32 %v2925, 1.442695
  %v3017 = vpow.pop %v3016
  %v3018 = vmul.f32 %v2926, 1.442695
  %v3019 = vpow.pop %v3018
  %v3020 = vmul.f32 %v2927, 1.442695
  %v3021 = vpow.pop %v3020
  %v3022 = vmul.f32 %v2928, 1.442695
  %v3023 = vpow.pop %v3022
  %v3024 = vmul.f32 %v2929, 1.442695
  %v3025 = vpow.pop %v3024
  %v3026 = vmul.f32 %v2930, 1.442695
  %v3027 = vpow.pop %v3026
  %v3028 = vmul.f32 %v2931, 1.442695
  %v3029 = vpow.pop %v3028
  %v3030 = vmul.f32 %v2932, 1.442695
  %v3031 = vpow.pop %v3030
  %v3032 = vmul.f32 %v2933, 1.442695
  %v3033 = vpow.pop %v3032
  %v3034 = vmul.f32 %v2934, 1.442695
  %v3035 = vpow.pop %v3034
  %v3036 = vmul.f32 %v2935, 1.442695
  %v3037 = vpow.pop %v3036
  %v3038 = vmul.f32 %v2936, 1.442695
  %v3039 = vpow.pop %v3038
  %v3040 = vmul.f32 %v2937, 1.442695
  %v3041 = vpow.pop %v3040
  %v3042 = vmul.f32 %v2938, 1.442695
  %v3043 = vpow.pop %v3042
  %v3044 = vmul.f32 %v2939, 1.442695
  %v3045 = vpow.pop %v3044
  %v3046 = vmul.f32 %v2940, 1.442695
  %v3047 = vpow.pop %v3046
  %v3048 = vmul.f32 %v2941, 1.442695
  %v3049 = vpow.pop %v3048
  %v3050 = vmul.f32 %v2942, 1.442695
  %v3051 = vpow.pop %v3050
  %v3052 = vmul.f32 %v2943, 1.442695
  %v3053 = vpow.pop %v3052
  %v3054 = vmul.f32 %v2944, 1.442695
  %v3055 = vpow.pop %v3054
  %v3056 = vmul.f32 %v2945, 1.442695
  %v3057 = vpow.pop %v3056
  %v3058 = vmul.f32 %v2946, 1.442695
  %v3059 = vpow.pop %v3058
  %v3060 = vmul.f32 %v2947, 1.442695
  %v3061 = vpow.pop %v3060
  %v3062 = vmul.f32 %v2948, 1.442695
  %v3063 = vpow.pop %v3062
  %v3064 = vmul.f32 %v2949, 1.442695
  %v3065 = vpow.pop %v3064
  %v3066 = vmul.f32 %v2950, 1.442695
  %v3067 = vpow.pop %v3066
  %v3068 = vmul.f32 %v2951, 1.442695
  %v3069 = vpow.pop %v3068
  %v3070 = vmul.f32 %v2952, 1.442695
  %v3071 = vpow.pop %v3070
  %v3072 = vmul.f32 %v2953, 1.442695
  %v3073 = vpow.pop %v3072
  %v3074 = vmul.f32 %v2954, 1.442695
  %v3075 = vpow.pop %v3074
  %v3076 = vmul.f32 %v2955, 1.442695
  %v3077 = vpow.pop %v3076
  %v3078 = vmul.f32 %v2956, 1.442695
  %v3079 = vpow.pop %v3078
  %v3080 = vmul.f32 %v2957, 1.442695
  %v3081 = vpow.pop %v3080
  %v3082 = vmul.f32 %v2958, 1.442695
  %v3083 = vpow.pop %v3082
  %v3084 = vmul.f32 %v2959, 1.442695
  %v3085 = vpow.pop %v3084
  %v3086 = vmul.f32 %v2960, 1.442695
  %v3087 = vpow.pop %v3086
  %v3088 = vmul.f32 %v2961, 1.442695
  %v3089 = vpow.pop %v3088
  %v3090 = vsel %vm313, %v2963, 0.0
  %3091 = vadd.xlane.f32.xlu0 %v3090
  %v3092 = vpop.xlane.xlu0 %3091
  %v3093 = vsel %vm313, %v2965, 0.0
  %3094 = vadd.xlane.f32.xlu0 %v3093
  %v3095 = vpop.xlane.xlu0 %3094
  %v3096 = vsel %vm313, %v2967, 0.0
  %3097 = vadd.xlane.f32.xlu0 %v3096
  %v3098 = vpop.xlane.xlu0 %3097
  %v3099 = vsel %vm313, %v2969, 0.0
  %3100 = vadd.xlane.f32.xlu0 %v3099
  %v3101 = vpop.xlane.xlu0 %3100
  %v3102 = vsel %vm313, %v2971, 0.0
  %3103 = vadd.xlane.f32.xlu0 %v3102
  %v3104 = vpop.xlane.xlu0 %3103
  %v3105 = vsel %vm313, %v2973, 0.0
  %3106 = vadd.xlane.f32.xlu0 %v3105
  %v3107 = vpop.xlane.xlu0 %3106
  %v3108 = vsel %vm313, %v2975, 0.0
  %3109 = vadd.xlane.f32.xlu0 %v3108
  %v3110 = vpop.xlane.xlu0 %3109
  %v3111 = vsel %vm313, %v2977, 0.0
  %3112 = vadd.xlane.f32.xlu0 %v3111
  %v3113 = vpop.xlane.xlu0 %3112
  %v3114 = vsel %vm313, %v2979, 0.0
  %3115 = vadd.xlane.f32.xlu0 %v3114
  %v3116 = vpop.xlane.xlu0 %3115
  %v3117 = vsel %vm313, %v2981, 0.0
  %3118 = vadd.xlane.f32.xlu0 %v3117
  %v3119 = vpop.xlane.xlu0 %3118
  %v3120 = vsel %vm313, %v2983, 0.0
  %3121 = vadd.xlane.f32.xlu0 %v3120
  %v3122 = vpop.xlane.xlu0 %3121
  %v3123 = vsel %vm313, %v2985, 0.0
  %3124 = vadd.xlane.f32.xlu0 %v3123
  %v3125 = vpop.xlane.xlu0 %3124
  %v3126 = vsel %vm313, %v2987, 0.0
  %3127 = vadd.xlane.f32.xlu0 %v3126
  %v3128 = vpop.xlane.xlu0 %3127
  %v3129 = vsel %vm313, %v2989, 0.0
  %3130 = vadd.xlane.f32.xlu0 %v3129
  %v3131 = vpop.xlane.xlu0 %3130
  %v3132 = vsel %vm313, %v2991, 0.0
  %3133 = vadd.xlane.f32.xlu0 %v3132
  %v3134 = vpop.xlane.xlu0 %3133
  %v3135 = vsel %vm313, %v2993, 0.0
  %3136 = vadd.xlane.f32.xlu0 %v3135
  %v3137 = vpop.xlane.xlu0 %3136
  %v3138 = vsel %vm313, %v2995, 0.0
  %3139 = vadd.xlane.f32.xlu0 %v3138
  %v3140 = vpop.xlane.xlu0 %3139
  %v3141 = vsel %vm313, %v2997, 0.0
  %3142 = vadd.xlane.f32.xlu0 %v3141
  %v3143 = vpop.xlane.xlu0 %3142
  %v3144 = vsel %vm313, %v2999, 0.0
  %3145 = vadd.xlane.f32.xlu0 %v3144
  %v3146 = vpop.xlane.xlu0 %3145
  %v3147 = vsel %vm313, %v3001, 0.0
  %3148 = vadd.xlane.f32.xlu0 %v3147
  %v3149 = vpop.xlane.xlu0 %3148
  %v3150 = vsel %vm313, %v3003, 0.0
  %3151 = vadd.xlane.f32.xlu0 %v3150
  %v3152 = vpop.xlane.xlu0 %3151
  %v3153 = vsel %vm313, %v3005, 0.0
  %3154 = vadd.xlane.f32.xlu0 %v3153
  %v3155 = vpop.xlane.xlu0 %3154
  %v3156 = vsel %vm313, %v3007, 0.0
  %3157 = vadd.xlane.f32.xlu0 %v3156
  %v3158 = vpop.xlane.xlu0 %3157
  %v3159 = vsel %vm313, %v3009, 0.0
  %3160 = vadd.xlane.f32.xlu0 %v3159
  %v3161 = vpop.xlane.xlu0 %3160
  %v3162 = vsel %vm313, %v3011, 0.0
  %3163 = vadd.xlane.f32.xlu0 %v3162
  %v3164 = vpop.xlane.xlu0 %3163
  %v3165 = vsel %vm313, %v3013, 0.0
  %3166 = vadd.xlane.f32.xlu0 %v3165
  %v3167 = vpop.xlane.xlu0 %3166
  %v3168 = vsel %vm313, %v3015, 0.0
  %3169 = vadd.xlane.f32.xlu0 %v3168
  %v3170 = vpop.xlane.xlu0 %3169
  %v3171 = vsel %vm313, %v3017, 0.0
  %3172 = vadd.xlane.f32.xlu0 %v3171
  %v3173 = vpop.xlane.xlu0 %3172
  %v3174 = vsel %vm313, %v3019, 0.0
  %3175 = vadd.xlane.f32.xlu0 %v3174
  %v3176 = vpop.xlane.xlu0 %3175
  %v3177 = vsel %vm313, %v3021, 0.0
  %3178 = vadd.xlane.f32.xlu0 %v3177
  %v3179 = vpop.xlane.xlu0 %3178
  %v3180 = vsel %vm313, %v3023, 0.0
  %3181 = vadd.xlane.f32.xlu0 %v3180
  %v3182 = vpop.xlane.xlu0 %3181
  %v3183 = vsel %vm313, %v3025, 0.0
  %3184 = vadd.xlane.f32.xlu0 %v3183
  %v3185 = vpop.xlane.xlu0 %3184
  %v3186 = vsel %vm313, %v3027, 0.0
  %3187 = vadd.xlane.f32.xlu0 %v3186
  %v3188 = vpop.xlane.xlu0 %3187
  %v3189 = vsel %vm313, %v3029, 0.0
  %3190 = vadd.xlane.f32.xlu0 %v3189
  %v3191 = vpop.xlane.xlu0 %3190
  %v3192 = vsel %vm313, %v3031, 0.0
  %3193 = vadd.xlane.f32.xlu0 %v3192
  %v3194 = vpop.xlane.xlu0 %3193
  %v3195 = vsel %vm313, %v3033, 0.0
  %3196 = vadd.xlane.f32.xlu0 %v3195
  %v3197 = vpop.xlane.xlu0 %3196
  %v3198 = vsel %vm313, %v3035, 0.0
  %3199 = vadd.xlane.f32.xlu0 %v3198
  %v3200 = vpop.xlane.xlu0 %3199
  %v3201 = vsel %vm313, %v3037, 0.0
  %3202 = vadd.xlane.f32.xlu0 %v3201
  %v3203 = vpop.xlane.xlu0 %3202
  %v3204 = vsel %vm313, %v3039, 0.0
  %3205 = vadd.xlane.f32.xlu0 %v3204
  %v3206 = vpop.xlane.xlu0 %3205
  %v3207 = vsel %vm313, %v3041, 0.0
  %3208 = vadd.xlane.f32.xlu0 %v3207
  %v3209 = vpop.xlane.xlu0 %3208
  %v3210 = vsel %vm313, %v3043, 0.0
  %3211 = vadd.xlane.f32.xlu0 %v3210
  %v3212 = vpop.xlane.xlu0 %3211
  %v3213 = vsel %vm313, %v3045, 0.0
  %3214 = vadd.xlane.f32.xlu0 %v3213
  %v3215 = vpop.xlane.xlu0 %3214
  %v3216 = vsel %vm313, %v3047, 0.0
  %3217 = vadd.xlane.f32.xlu0 %v3216
  %v3218 = vpop.xlane.xlu0 %3217
  %v3219 = vsel %vm313, %v3049, 0.0
  %3220 = vadd.xlane.f32.xlu0 %v3219
  %v3221 = vpop.xlane.xlu0 %3220
  %v3222 = vsel %vm313, %v3051, 0.0
  %3223 = vadd.xlane.f32.xlu0 %v3222
  %v3224 = vpop.xlane.xlu0 %3223
  %v3225 = vsel %vm313, %v3053, 0.0
  %3226 = vadd.xlane.f32.xlu0 %v3225
  %v3227 = vpop.xlane.xlu0 %3226
  %v3228 = vsel %vm313, %v3055, 0.0
  %3229 = vadd.xlane.f32.xlu0 %v3228
  %v3230 = vpop.xlane.xlu0 %3229
  %v3231 = vsel %vm313, %v3057, 0.0
  %3232 = vadd.xlane.f32.xlu0 %v3231
  %v3233 = vpop.xlane.xlu0 %3232
  %v3234 = vsel %vm313, %v3059, 0.0
  %3235 = vadd.xlane.f32.xlu0 %v3234
  %v3236 = vpop.xlane.xlu0 %3235
  %v3237 = vsel %vm313, %v3061, 0.0
  %3238 = vadd.xlane.f32.xlu0 %v3237
  %v3239 = vpop.xlane.xlu0 %3238
  %v3240 = vsel %vm313, %v3063, 0.0
  %3241 = vadd.xlane.f32.xlu0 %v3240
  %v3242 = vpop.xlane.xlu0 %3241
  %v3243 = vsel %vm313, %v3065, 0.0
  %3244 = vadd.xlane.f32.xlu0 %v3243
  %v3245 = vpop.xlane.xlu0 %3244
  %v3246 = vsel %vm313, %v3067, 0.0
  %3247 = vadd.xlane.f32.xlu0 %v3246
  %v3248 = vpop.xlane.xlu0 %3247
  %v3249 = vsel %vm313, %v3069, 0.0
  %3250 = vadd.xlane.f32.xlu0 %v3249
  %v3251 = vpop.xlane.xlu0 %3250
  %v3252 = vsel %vm313, %v3071, 0.0
  %3253 = vadd.xlane.f32.xlu0 %v3252
  %v3254 = vpop.xlane.xlu0 %3253
  %v3255 = vsel %vm313, %v3073, 0.0
  %3256 = vadd.xlane.f32.xlu0 %v3255
  %v3257 = vpop.xlane.xlu0 %3256
  %v3258 = vsel %vm313, %v3075, 0.0
  %3259 = vadd.xlane.f32.xlu0 %v3258
  %v3260 = vpop.xlane.xlu0 %3259
  %v3261 = vsel %vm313, %v3077, 0.0
  %3262 = vadd.xlane.f32.xlu0 %v3261
  %v3263 = vpop.xlane.xlu0 %3262
  %v3264 = vsel %vm313, %v3079, 0.0
  %3265 = vadd.xlane.f32.xlu0 %v3264
  %v3266 = vpop.xlane.xlu0 %3265
  %v3267 = vsel %vm313, %v3081, 0.0
  %3268 = vadd.xlane.f32.xlu0 %v3267
  %v3269 = vpop.xlane.xlu0 %3268
  %v3270 = vsel %vm313, %v3083, 0.0
  %3271 = vadd.xlane.f32.xlu0 %v3270
  %v3272 = vpop.xlane.xlu0 %3271
  %v3273 = vsel %vm313, %v3085, 0.0
  %3274 = vadd.xlane.f32.xlu0 %v3273
  %v3275 = vpop.xlane.xlu0 %3274
  %v3276 = vsel %vm313, %v3087, 0.0
  %3277 = vadd.xlane.f32.xlu0 %v3276
  %v3278 = vpop.xlane.xlu0 %3277
  %v3279 = vsel %vm313, %v3089, 0.0
  %3280 = vadd.xlane.f32.xlu0 %v3279
  %v3281 = vpop.xlane.xlu0 %3280
  %v3282 = vrcp.pop %v3092
  %v3283 = vrcp.pop %v3095
  %v3284 = vrcp.pop %v3098
  %v3285 = vrcp.pop %v3101
  %v3286 = vrcp.pop %v3104
  %v3287 = vrcp.pop %v3107
  %v3288 = vrcp.pop %v3110
  %v3289 = vrcp.pop %v3113
  %v3290 = vrcp.pop %v3116
  %v3291 = vrcp.pop %v3119
  %v3292 = vrcp.pop %v3122
  %v3293 = vrcp.pop %v3125
  %v3294 = vrcp.pop %v3128
  %v3295 = vrcp.pop %v3131
  %v3296 = vrcp.pop %v3134
  %v3297 = vrcp.pop %v3137
  %v3298 = vrcp.pop %v3140
  %v3299 = vrcp.pop %v3143
  %v3300 = vrcp.pop %v3146
  %v3301 = vrcp.pop %v3149
  %v3302 = vrcp.pop %v3152
  %v3303 = vrcp.pop %v3155
  %v3304 = vrcp.pop %v3158
  %v3305 = vrcp.pop %v3161
  %v3306 = vrcp.pop %v3164
  %v3307 = vrcp.pop %v3167
  %v3308 = vrcp.pop %v3170
  %v3309 = vrcp.pop %v3173
  %v3310 = vrcp.pop %v3176
  %v3311 = vrcp.pop %v3179
  %v3312 = vrcp.pop %v3182
  %v3313 = vrcp.pop %v3185
  %v3314 = vrcp.pop %v3188
  %v3315 = vrcp.pop %v3191
  %v3316 = vrcp.pop %v3194
  %v3317 = vrcp.pop %v3197
  %v3318 = vrcp.pop %v3200
  %v3319 = vrcp.pop %v3203
  %v3320 = vrcp.pop %v3206
  %v3321 = vrcp.pop %v3209
  %v3322 = vrcp.pop %v3212
  %v3323 = vrcp.pop %v3215
  %v3324 = vrcp.pop %v3218
  %v3325 = vrcp.pop %v3221
  %v3326 = vrcp.pop %v3224
  %v3327 = vrcp.pop %v3227
  %v3328 = vrcp.pop %v3230
  %v3329 = vrcp.pop %v3233
  %v3330 = vrcp.pop %v3236
  %v3331 = vrcp.pop %v3239
  %v3332 = vrcp.pop %v3242
  %v3333 = vrcp.pop %v3245
  %v3334 = vrcp.pop %v3248
  %v3335 = vrcp.pop %v3251
  %v3336 = vrcp.pop %v3254
  %v3337 = vrcp.pop %v3257
  %v3338 = vrcp.pop %v3260
  %v3339 = vrcp.pop %v3263
  %v3340 = vrcp.pop %v3266
  %v3341 = vrcp.pop %v3269
  %v3342 = vrcp.pop %v3272
  %v3343 = vrcp.pop %v3275
  %v3344 = vrcp.pop %v3278
  %v3345 = vrcp.pop %v3281
  %v3346 = vmul.f32 %v2963, %v3282
  %v3347 = vmul.f32 %v2965, %v3283
  %v3348 = vmul.f32 %v2967, %v3284
  %v3349 = vmul.f32 %v2969, %v3285
  %v3350 = vmul.f32 %v2971, %v3286
  %v3351 = vmul.f32 %v2973, %v3287
  %v3352 = vmul.f32 %v2975, %v3288
  %v3353 = vmul.f32 %v2977, %v3289
  %v3354 = vmul.f32 %v2979, %v3290
  %v3355 = vmul.f32 %v2981, %v3291
  %v3356 = vmul.f32 %v2983, %v3292
  %v3357 = vmul.f32 %v2985, %v3293
  %v3358 = vmul.f32 %v2987, %v3294
  %v3359 = vmul.f32 %v2989, %v3295
  %v3360 = vmul.f32 %v2991, %v3296
  %v3361 = vmul.f32 %v2993, %v3297
  %v3362 = vmul.f32 %v2995, %v3298
  %v3363 = vmul.f32 %v2997, %v3299
  %v3364 = vmul.f32 %v2999, %v3300
  %v3365 = vmul.f32 %v3001, %v3301
  %v3366 = vmul.f32 %v3003, %v3302
  %v3367 = vmul.f32 %v3005, %v3303
  %v3368 = vmul.f32 %v3007, %v3304
  %v3369 = vmul.f32 %v3009, %v3305
  %v3370 = vmul.f32 %v3011, %v3306
  %v3371 = vmul.f32 %v3013, %v3307
  %v3372 = vmul.f32 %v3015, %v3308
  %v3373 = vmul.f32 %v3017, %v3309
  %v3374 = vmul.f32 %v3019, %v3310
  %v3375 = vmul.f32 %v3021, %v3311
  %v3376 = vmul.f32 %v3023, %v3312
  %v3377 = vmul.f32 %v3025, %v3313
  %v3378 = vmul.f32 %v3027, %v3314
  %v3379 = vmul.f32 %v3029, %v3315
  %v3380 = vmul.f32 %v3031, %v3316
  %v3381 = vmul.f32 %v3033, %v3317
  %v3382 = vmul.f32 %v3035, %v3318
  %v3383 = vmul.f32 %v3037, %v3319
  %v3384 = vmul.f32 %v3039, %v3320
  %v3385 = vmul.f32 %v3041, %v3321
  %v3386 = vmul.f32 %v3043, %v3322
  %v3387 = vmul.f32 %v3045, %v3323
  %v3388 = vmul.f32 %v3047, %v3324
  %v3389 = vmul.f32 %v3049, %v3325
  %v3390 = vmul.f32 %v3051, %v3326
  %v3391 = vmul.f32 %v3053, %v3327
  %v3392 = vmul.f32 %v3055, %v3328
  %v3393 = vmul.f32 %v3057, %v3329
  %v3394 = vmul.f32 %v3059, %v3330
  %v3395 = vmul.f32 %v3061, %v3331
  %v3396 = vmul.f32 %v3063, %v3332
  %v3397 = vmul.f32 %v3065, %v3333
  %v3398 = vmul.f32 %v3067, %v3334
  %v3399 = vmul.f32 %v3069, %v3335
  %v3400 = vmul.f32 %v3071, %v3336
  %v3401 = vmul.f32 %v3073, %v3337
  %v3402 = vmul.f32 %v3075, %v3338
  %v3403 = vmul.f32 %v3077, %v3339
  %v3404 = vmul.f32 %v3079, %v3340
  %v3405 = vmul.f32 %v3081, %v3341
  %v3406 = vmul.f32 %v3083, %v3342
  %v3407 = vmul.f32 %v3085, %v3343
  %v3408 = vmul.f32 %v3087, %v3344
  %v3409 = vmul.f32 %v3089, %v3345
  %v3410 = vpack.c.bf16 %v3347, %v3346
  %v3411 = vpack.c.bf16 %v3349, %v3348
  %v3412 = vpack.c.bf16 %v3351, %v3350
  %v3413 = vpack.c.bf16 %v3353, %v3352
  %v3414 = vpack.c.bf16 %v3355, %v3354
  %v3415 = vpack.c.bf16 %v3357, %v3356
  %v3416 = vpack.c.bf16 %v3359, %v3358
  %v3417 = vpack.c.bf16 %v3361, %v3360
  %v3418 = vpack.c.bf16 %v3363, %v3362
  %v3419 = vpack.c.bf16 %v3365, %v3364
  %v3420 = vpack.c.bf16 %v3367, %v3366
  %v3421 = vpack.c.bf16 %v3369, %v3368
  %v3422 = vpack.c.bf16 %v3371, %v3370
  %v3423 = vpack.c.bf16 %v3373, %v3372
  %v3424 = vpack.c.bf16 %v3375, %v3374
  %v3425 = vpack.c.bf16 %v3377, %v3376
  %v3426 = vpack.c.bf16 %v3379, %v3378
  %v3427 = vpack.c.bf16 %v3381, %v3380
  %v3428 = vpack.c.bf16 %v3383, %v3382
  %v3429 = vpack.c.bf16 %v3385, %v3384
  %v3430 = vpack.c.bf16 %v3387, %v3386
  %v3431 = vpack.c.bf16 %v3389, %v3388
  %v3432 = vpack.c.bf16 %v3391, %v3390
  %v3433 = vpack.c.bf16 %v3393, %v3392
  %v3434 = vpack.c.bf16 %v3395, %v3394
  %v3435 = vpack.c.bf16 %v3397, %v3396
  %v3436 = vpack.c.bf16 %v3399, %v3398
  %v3437 = vpack.c.bf16 %v3401, %v3400
  %v3438 = vpack.c.bf16 %v3403, %v3402
  %v3439 = vpack.c.bf16 %v3405, %v3404
  %v3440 = vpack.c.bf16 %v3407, %v3406
  %v3441 = vpack.c.bf16 %v3409, %v3408
  %v3450 = vunpack.c.l.b16 %v1481
  %v3451 = vunpack.c.l.b16 %v1482
  %v3452 = vunpack.c.l.b16 %v1483
  %v3453 = vunpack.c.l.b16 %v1484
  %v3454 = vunpack.c.l.b16 %v1485
  %v3455 = vunpack.c.l.b16 %v1486
  %v3456 = vunpack.c.l.b16 %v1487
  %v3457 = vunpack.c.l.b16 %v1488
  %v3458 = vpack.c.b16 %v3451, %v3450
  %v3459 = vpack.c.b16 %v3453, %v3452
  %v3460 = vpack.c.b16 %v3455, %v3454
  %v3461 = vpack.c.b16 %v3457, %v3456
  %v3467 = vsel %vm313, %v3410, 0
  %v3470 = vsel %vm313, %v3411, 0
  %v3473 = vsel %vm313, %v3412, 0
  %v3476 = vsel %vm313, %v3413, 0
  %3478 = vmatprep.subr.bf16.mxu0 0
  %3479 = vmatpush1.bf16.msra.mxu0 %v3458
  %3480 = vmatprep.subr.bf16.mxu0 0
  %3481 = vmatpush1.bf16.msra.mxu0 %v3459
  %3482 = vmatprep.subr.bf16.mxu0 0
  %3483 = vmatpush1.bf16.msra.mxu0 %v3460
  %3484 = vmatprep.subr.bf16.mxu0 0
  %3485 = vmatpush1.bf16.msra.mxu0 %v3461
  %3486 = vmatprep.subr.bf16.mxu0 0
  %3487 = vmatpush1.bf16.msra.mxu0 0
  %3488 = vmatprep.subr.bf16.mxu0 0
  %3489 = vmatpush1.bf16.msra.mxu0 0
  %3490 = vmatprep.subr.bf16.mxu0 0
  %3491 = vmatpush1.bf16.msra.mxu0 0
  %3492 = vmatprep.subr.bf16.mxu0 0
  %3493 = vmatpush1.bf16.msra.mxu0 0
  %3494 = vmatprep.subr.bf16.mxu0 0
  %3495 = vmatpush1.bf16.msra.mxu0 0
  %3496 = vmatprep.subr.bf16.mxu0 0
  %3497 = vmatpush1.bf16.msra.mxu0 0
  %3498 = vmatprep.subr.bf16.mxu0 0
  %3499 = vmatpush1.bf16.msra.mxu0 0
  %3500 = vmatprep.subr.bf16.mxu0 0
  %3501 = vmatpush1.bf16.msra.mxu0 0
  %3502 = vmatprep.subr.bf16.mxu0 0
  %3503 = vmatpush1.bf16.msra.mxu0 0
  %3504 = vmatprep.subr.bf16.mxu0 0
  %3505 = vmatpush1.bf16.msra.mxu0 0
  %3506 = vmatprep.subr.bf16.mxu0 0
  %3507 = vmatpush1.bf16.msra.mxu0 0
  %3508 = vmatprep.subr.bf16.mxu0 0
  %3509 = vmatpush1.bf16.msra.mxu0 0
  %3510 = vmatprep.mubr.bf16.mxu0 0
  %3511 = vmatmul.mubr.bf16.gmra.mrb[0].mxu0 %v3467
  %v3512 = vpop.f32.mrb[0].mxu0
  %v3513 = vadd.f32 0.0, %v3512
  %v3514 = vpop.f32.mrb[0].mxu0
  %v3515 = vpop.f32.mrb[0].mxu0
  %v3516 = vadd.f32 0.0, %v3515
  %v3517 = vpop.f32.mrb[0].mxu0
  %3518 = vmatprep.mubr.bf16.mxu0 0
  %3519 = vmatmul.mubr.bf16.gmra.mrb[0].mxu0 %v3470
  %v3520 = vpop.f32.mrb[0].mxu0
  %v3521 = vadd.f32 0.0, %v3520
  %v3522 = vpop.f32.mrb[0].mxu0
  %v3523 = vpop.f32.mrb[0].mxu0
  %v3524 = vadd.f32 0.0, %v3523
  %v3525 = vpop.f32.mrb[0].mxu0
  %3526 = vmatprep.mubr.bf16.mxu0 0
  %3527 = vmatmul.mubr.bf16.gmra.mrb[0].mxu0 %v3473
  %v3528 = vpop.f32.mrb[0].mxu0
  %v3529 = vadd.f32 0.0, %v3528
  %v3530 = vpop.f32.mrb[0].mxu0
  %v3531 = vpop.f32.mrb[0].mxu0
  %v3532 = vadd.f32 0.0, %v3531
  %v3533 = vpop.f32.mrb[0].mxu0
  %3534 = vmatprep.mubr.bf16.mxu0 0
  %3535 = vmatmul.mubr.bf16.gmra.mrb[0].mxu0 %v3476
  %v3536 = vpop.f32.mrb[0].mxu0
  %v3537 = vadd.f32 0.0, %v3536
  %v3538 = vpop.f32.mrb[0].mxu0
  %v3539 = vpop.f32.mrb[0].mxu0
  %v3540 = vadd.f32 0.0, %v3539
  %v3541 = vpop.f32.mrb[0].mxu0
  %3542 = vdwg.mxu0
  %v3551 = vunpack.c.l.b16 %v1489
  %v3552 = vunpack.c.l.b16 %v1490
  %v3553 = vunpack.c.l.b16 %v1491
  %v3554 = vunpack.c.l.b16 %v1492
  %v3555 = vunpack.c.l.b16 %v1493
  %v3556 = vunpack.c.l.b16 %v1494
  %v3557 = vunpack.c.l.b16 %v1495
  %v3558 = vunpack.c.l.b16 %v1496
  %v3559 = vpack.c.b16 %v3552, %v3551
  %v3560 = vpack.c.b16 %v3554, %v3553
  %v3561 = vpack.c.b16 %v3556, %v3555
  %v3562 = vpack.c.b16 %v3558, %v3557
  %v3568 = vsel %vm313, %v3414, 0
  %v3571 = vsel %vm313, %v3415, 0
  %v3574 = vsel %vm313, %v3416, 0
  %v3577 = vsel %vm313, %v3417, 0
  %3579 = vmatprep.subr.bf16.mxu0 0
  %3580 = vmatpush1.bf16.msra.mxu0 %v3559
  %3581 = vmatprep.subr.bf16.mxu0 0
  %3582 = vmatpush1.bf16.msra.mxu0 %v3560
  %3583 = vmatprep.subr.bf16.mxu0 0
  %3584 = vmatpush1.bf16.msra.mxu0 %v3561
  %3585 = vmatprep.subr.bf16.mxu0 0
  %3586 = vmatpush1.bf16.msra.mxu0 %v3562
  %3587 = vmatprep.subr.bf16.mxu0 0
  %3588 = vmatpush1.bf16.msra.mxu0 0
  %3589 = vmatprep.subr.bf16.mxu0 0
  %3590 = vmatpush1.bf16.msra.mxu0 0
  %3591 = vmatprep.subr.bf16.mxu0 0
  %3592 = vmatpush1.bf16.msra.mxu0 0
  %3593 = vmatprep.subr.bf16.mxu0 0
  %3594 = vmatpush1.bf16.msra.mxu0 0
  %3595 = vmatprep.subr.bf16.mxu0 0
  %3596 = vmatpush1.bf16.msra.mxu0 0
  %3597 = vmatprep.subr.bf16.mxu0 0
  %3598 = vmatpush1.bf16.msra.mxu0 0
  %3599 = vmatprep.subr.bf16.mxu0 0
  %3600 = vmatpush1.bf16.msra.mxu0 0
  %3601 = vmatprep.subr.bf16.mxu0 0
  %3602 = vmatpush1.bf16.msra.mxu0 0
  %3603 = vmatprep.subr.bf16.mxu0 0
  %3604 = vmatpush1.bf16.msra.mxu0 0
  %3605 = vmatprep.subr.bf16.mxu0 0
  %3606 = vmatpush1.bf16.msra.mxu0 0
  %3607 = vmatprep.subr.bf16.mxu0 0
  %3608 = vmatpush1.bf16.msra.mxu0 0
  %3609 = vmatprep.subr.bf16.mxu0 0
  %3610 = vmatpush1.bf16.msra.mxu0 0
  %3611 = vmatprep.mubr.bf16.mxu0 0
  %3612 = vmatmul.mubr.bf16.gmra.mrb[0].mxu0 %v3568
  %v3613 = vpop.f32.mrb[0].mxu0
  %v3614 = vadd.f32 0.0, %v3613
  %v3615 = vpop.f32.mrb[0].mxu0
  %v3616 = vpop.f32.mrb[0].mxu0
  %v3617 = vadd.f32 0.0, %v3616
  %v3618 = vpop.f32.mrb[0].mxu0
  %3619 = vmatprep.mubr.bf16.mxu0 0
  %3620 = vmatmul.mubr.bf16.gmra.mrb[0].mxu0 %v3571
  %v3621 = vpop.f32.mrb[0].mxu0
  %v3622 = vadd.f32 0.0, %v3621
  %v3623 = vpop.f32.mrb[0].mxu0
  %v3624 = vpop.f32.mrb[0].mxu0
  %v3625 = vadd.f32 0.0, %v3624
  %v3626 = vpop.f32.mrb[0].mxu0
  %3627 = vmatprep.mubr.bf16.mxu0 0
  %3628 = vmatmul.mubr.bf16.gmra.mrb[0].mxu0 %v3574
  %v3629 = vpop.f32.mrb[0].mxu0
  %v3630 = vadd.f32 0.0, %v3629
  %v3631 = vpop.f32.mrb[0].mxu0
  %v3632 = vpop.f32.mrb[0].mxu0
  %v3633 = vadd.f32 0.0, %v3632
  %v3634 = vpop.f32.mrb[0].mxu0
  %3635 = vmatprep.mubr.bf16.mxu0 0
  %3636 = vmatmul.mubr.bf16.gmra.mrb[0].mxu0 %v3577
  %v3637 = vpop.f32.mrb[0].mxu0
  %v3638 = vadd.f32 0.0, %v3637
  %v3639 = vpop.f32.mrb[0].mxu0
  %v3640 = vpop.f32.mrb[0].mxu0
  %v3641 = vadd.f32 0.0, %v3640
  %v3642 = vpop.f32.mrb[0].mxu0
  %3643 = vdwg.mxu0
  %v3652 = vunpack.c.l.b16 %v1497
  %v3653 = vunpack.c.l.b16 %v1498
  %v3654 = vunpack.c.l.b16 %v1499
  %v3655 = vunpack.c.l.b16 %v1500
  %v3656 = vunpack.c.l.b16 %v1501
  %v3657 = vunpack.c.l.b16 %v1502
  %v3658 = vunpack.c.l.b16 %v1503
  %v3659 = vunpack.c.l.b16 %v1504
  %v3660 = vpack.c.b16 %v3653, %v3652
  %v3661 = vpack.c.b16 %v3655, %v3654
  %v3662 = vpack.c.b16 %v3657, %v3656
  %v3663 = vpack.c.b16 %v3659, %v3658
  %v3669 = vsel %vm313, %v3418, 0
  %v3672 = vsel %vm313, %v3419, 0
  %v3675 = vsel %vm313, %v3420, 0
  %v3678 = vsel %vm313, %v3421, 0
  %3680 = vmatprep.subr.bf16.mxu0 0
  %3681 = vmatpush1.bf16.msra.mxu0 %v3660
  %3682 = vmatprep.subr.bf16.mxu0 0
  %3683 = vmatpush1.bf16.msra.mxu0 %v3661
  %3684 = vmatprep.subr.bf16.mxu0 0
  %3685 = vmatpush1.bf16.msra.mxu0 %v3662
  %3686 = vmatprep.subr.bf16.mxu0 0
  %3687 = vmatpush1.bf16.msra.mxu0 %v3663
  %3688 = vmatprep.subr.bf16.mxu0 0
  %3689 = vmatpush1.bf16.msra.mxu0 0
  %3690 = vmatprep.subr.bf16.mxu0 0
  %3691 = vmatpush1.bf16.msra.mxu0 0
  %3692 = vmatprep.subr.bf16.mxu0 0
  %3693 = vmatpush1.bf16.msra.mxu0 0
  %3694 = vmatprep.subr.bf16.mxu0 0
  %3695 = vmatpush1.bf16.msra.mxu0 0
  %3696 = vmatprep.subr.bf16.mxu0 0
  %3697 = vmatpush1.bf16.msra.mxu0 0
  %3698 = vmatprep.subr.bf16.mxu0 0
  %3699 = vmatpush1.bf16.msra.mxu0 0
  %3700 = vmatprep.subr.bf16.mxu0 0
  %3701 = vmatpush1.bf16.msra.mxu0 0
  %3702 = vmatprep.subr.bf16.mxu0 0
  %3703 = vmatpush1.bf16.msra.mxu0 0
  %3704 = vmatprep.subr.bf16.mxu0 0
  %3705 = vmatpush1.bf16.msra.mxu0 0
  %3706 = vmatprep.subr.bf16.mxu0 0
  %3707 = vmatpush1.bf16.msra.mxu0 0
  %3708 = vmatprep.subr.bf16.mxu0 0
  %3709 = vmatpush1.bf16.msra.mxu0 0
  %3710 = vmatprep.subr.bf16.mxu0 0
  %3711 = vmatpush1.bf16.msra.mxu0 0
  %3712 = vmatprep.mubr.bf16.mxu0 0
  %3713 = vmatmul.mubr.bf16.gmra.mrb[0].mxu0 %v3669
  %v3714 = vpop.f32.mrb[0].mxu0
  %v3715 = vadd.f32 0.0, %v3714
  %v3716 = vpop.f32.mrb[0].mxu0
  %v3717 = vpop.f32.mrb[0].mxu0
  %v3718 = vadd.f32 0.0, %v3717
  %v3719 = vpop.f32.mrb[0].mxu0
  %3720 = vmatprep.mubr.bf16.mxu0 0
  %3721 = vmatmul.mubr.bf16.gmra.mrb[0].mxu0 %v3672
  %v3722 = vpop.f32.mrb[0].mxu0
  %v3723 = vadd.f32 0.0, %v3722
  %v3724 = vpop.f32.mrb[0].mxu0
  %v3725 = vpop.f32.mrb[0].mxu0
  %v3726 = vadd.f32 0.0, %v3725
  %v3727 = vpop.f32.mrb[0].mxu0
  %3728 = vmatprep.mubr.bf16.mxu0 0
  %3729 = vmatmul.mubr.bf16.gmra.mrb[0].mxu0 %v3675
  %v3730 = vpop.f32.mrb[0].mxu0
  %v3731 = vadd.f32 0.0, %v3730
  %v3732 = vpop.f32.mrb[0].mxu0
  %v3733 = vpop.f32.mrb[0].mxu0
  %v3734 = vadd.f32 0.0, %v3733
  %v3735 = vpop.f32.mrb[0].mxu0
  %3736 = vmatprep.mubr.bf16.mxu0 0
  %3737 = vmatmul.mubr.bf16.gmra.mrb[0].mxu0 %v3678
  %v3738 = vpop.f32.mrb[0].mxu0
  %v3739 = vadd.f32 0.0, %v3738
  %v3740 = vpop.f32.mrb[0].mxu0
  %v3741 = vpop.f32.mrb[0].mxu0
  %v3742 = vadd.f32 0.0, %v3741
  %v3743 = vpop.f32.mrb[0].mxu0
  %3744 = vdwg.mxu0
  %v3753 = vunpack.c.l.b16 %v1505
  %v3754 = vunpack.c.l.b16 %v1506
  %v3755 = vunpack.c.l.b16 %v1507
  %v3756 = vunpack.c.l.b16 %v1508
  %v3757 = vunpack.c.l.b16 %v1509
  %v3758 = vunpack.c.l.b16 %v1510
  %v3759 = vunpack.c.l.b16 %v1511
  %v3760 = vunpack.c.l.b16 %v1512
  %v3761 = vpack.c.b16 %v3754, %v3753
  %v3762 = vpack.c.b16 %v3756, %v3755
  %v3763 = vpack.c.b16 %v3758, %v3757
  %v3764 = vpack.c.b16 %v3760, %v3759
  %v3770 = vsel %vm313, %v3422, 0
  %v3773 = vsel %vm313, %v3423, 0
  %v3776 = vsel %vm313, %v3424, 0
  %v3779 = vsel %vm313, %v3425, 0
  %3781 = vmatprep.subr.bf16.mxu0 0
  %3782 = vmatpush1.bf16.msra.mxu0 %v3761
  %3783 = vmatprep.subr.bf16.mxu0 0
  %3784 = vmatpush1.bf16.msra.mxu0 %v3762
  %3785 = vmatprep.subr.bf16.mxu0 0
  %3786 = vmatpush1.bf16.msra.mxu0 %v3763
  %3787 = vmatprep.subr.bf16.mxu0 0
  %3788 = vmatpush1.bf16.msra.mxu0 %v3764
  %3789 = vmatprep.subr.bf16.mxu0 0
  %3790 = vmatpush1.bf16.msra.mxu0 0
  %3791 = vmatprep.subr.bf16.mxu0 0
  %3792 = vmatpush1.bf16.msra.mxu0 0
  %3793 = vmatprep.subr.bf16.mxu0 0
  %3794 = vmatpush1.bf16.msra.mxu0 0
  %3795 = vmatprep.subr.bf16.mxu0 0
  %3796 = vmatpush1.bf16.msra.mxu0 0
  %3797 = vmatprep.subr.bf16.mxu0 0
  %3798 = vmatpush1.bf16.msra.mxu0 0
  %3799 = vmatprep.subr.bf16.mxu0 0
  %3800 = vmatpush1.bf16.msra.mxu0 0
  %3801 = vmatprep.subr.bf16.mxu0 0
  %3802 = vmatpush1.bf16.msra.mxu0 0
  %3803 = vmatprep.subr.bf16.mxu0 0
  %3804 = vmatpush1.bf16.msra.mxu0 0
  %3805 = vmatprep.subr.bf16.mxu0 0
  %3806 = vmatpush1.bf16.msra.mxu0 0
  %3807 = vmatprep.subr.bf16.mxu0 0
  %3808 = vmatpush1.bf16.msra.mxu0 0
  %3809 = vmatprep.subr.bf16.mxu0 0
  %3810 = vmatpush1.bf16.msra.mxu0 0
  %3811 = vmatprep.subr.bf16.mxu0 0
  %3812 = vmatpush1.bf16.msra.mxu0 0
  %3813 = vmatprep.mubr.bf16.mxu0 0
  %3814 = vmatmul.mubr.bf16.gmra.mrb[0].mxu0 %v3770
  %v3815 = vpop.f32.mrb[0].mxu0
  %v3816 = vadd.f32 0.0, %v3815
  %v3817 = vpop.f32.mrb[0].mxu0
  %v3818 = vpop.f32.mrb[0].mxu0
  %v3819 = vadd.f32 0.0, %v3818
  %v3820 = vpop.f32.mrb[0].mxu0
  %3821 = vmatprep.mubr.bf16.mxu0 0
  %3822 = vmatmul.mubr.bf16.gmra.mrb[0].mxu0 %v3773
  %v3823 = vpop.f32.mrb[0].mxu0
  %v3824 = vadd.f32 0.0, %v3823
  %v3825 = vpop.f32.mrb[0].mxu0
  %v3826 = vpop.f32.mrb[0].mxu0
  %v3827 = vadd.f32 0.0, %v3826
  %v3828 = vpop.f32.mrb[0].mxu0
  %3829 = vmatprep.mubr.bf16.mxu0 0
  %3830 = vmatmul.mubr.bf16.gmra.mrb[0].mxu0 %v3776
  %v3831 = vpop.f32.mrb[0].mxu0
  %v3832 = vadd.f32 0.0, %v3831
  %v3833 = vpop.f32.mrb[0].mxu0
  %v3834 = vpop.f32.mrb[0].mxu0
  %v3835 = vadd.f32 0.0, %v3834
  %v3836 = vpop.f32.mrb[0].mxu0
  %3837 = vmatprep.mubr.bf16.mxu0 0
  %3838 = vmatmul.mubr.bf16.gmra.mrb[0].mxu0 %v3779
  %v3839 = vpop.f32.mrb[0].mxu0
  %v3840 = vadd.f32 0.0, %v3839
  %v3841 = vpop.f32.mrb[0].mxu0
  %v3842 = vpop.f32.mrb[0].mxu0
  %v3843 = vadd.f32 0.0, %v3842
  %v3844 = vpop.f32.mrb[0].mxu0
  %3845 = vdwg.mxu0
  %v3854 = vunpack.c.l.b16 %v1513
  %v3855 = vunpack.c.l.b16 %v1514
  %v3856 = vunpack.c.l.b16 %v1515
  %v3857 = vunpack.c.l.b16 %v1516
  %v3858 = vunpack.c.l.b16 %v1517
  %v3859 = vunpack.c.l.b16 %v1518
  %v3860 = vunpack.c.l.b16 %v1519
  %v3861 = vunpack.c.l.b16 %v1520
  %v3862 = vpack.c.b16 %v3855, %v3854
  %v3863 = vpack.c.b16 %v3857, %v3856
  %v3864 = vpack.c.b16 %v3859, %v3858
  %v3865 = vpack.c.b16 %v3861, %v3860
  %v3871 = vsel %vm313, %v3426, 0
  %v3874 = vsel %vm313, %v3427, 0
  %v3877 = vsel %vm313, %v3428, 0
  %v3880 = vsel %vm313, %v3429, 0
  %3882 = vmatprep.subr.bf16.mxu0 0
  %3883 = vmatpush1.bf16.msra.mxu0 %v3862
  %3884 = vmatprep.subr.bf16.mxu0 0
  %3885 = vmatpush1.bf16.msra.mxu0 %v3863
  %3886 = vmatprep.subr.bf16.mxu0 0
  %3887 = vmatpush1.bf16.msra.mxu0 %v3864
  %3888 = vmatprep.subr.bf16.mxu0 0
  %3889 = vmatpush1.bf16.msra.mxu0 %v3865
  %3890 = vmatprep.subr.bf16.mxu0 0
  %3891 = vmatpush1.bf16.msra.mxu0 0
  %3892 = vmatprep.subr.bf16.mxu0 0
  %3893 = vmatpush1.bf16.msra.mxu0 0
  %3894 = vmatprep.subr.bf16.mxu0 0
  %3895 = vmatpush1.bf16.msra.mxu0 0
  %3896 = vmatprep.subr.bf16.mxu0 0
  %3897 = vmatpush1.bf16.msra.mxu0 0
  %3898 = vmatprep.subr.bf16.mxu0 0
  %3899 = vmatpush1.bf16.msra.mxu0 0
  %3900 = vmatprep.subr.bf16.mxu0 0
  %3901 = vmatpush1.bf16.msra.mxu0 0
  %3902 = vmatprep.subr.bf16.mxu0 0
  %3903 = vmatpush1.bf16.msra.mxu0 0
  %3904 = vmatprep.subr.bf16.mxu0 0
  %3905 = vmatpush1.bf16.msra.mxu0 0
  %3906 = vmatprep.subr.bf16.mxu0 0
  %3907 = vmatpush1.bf16.msra.mxu0 0
  %3908 = vmatprep.subr.bf16.mxu0 0
  %3909 = vmatpush1.bf16.msra.mxu0 0
  %3910 = vmatprep.subr.bf16.mxu0 0
  %3911 = vmatpush1.bf16.msra.mxu0 0
  %3912 = vmatprep.subr.bf16.mxu0 0
  %3913 = vmatpush1.bf16.msra.mxu0 0
  %3914 = vmatprep.mubr.bf16.mxu0 0
  %3915 = vmatmul.mubr.bf16.gmra.mrb[0].mxu0 %v3871
  %v3916 = vpop.f32.mrb[0].mxu0
  %v3917 = vadd.f32 0.0, %v3916
  %v3918 = vpop.f32.mrb[0].mxu0
  %v3919 = vpop.f32.mrb[0].mxu0
  %v3920 = vadd.f32 0.0, %v3919
  %v3921 = vpop.f32.mrb[0].mxu0
  %3922 = vmatprep.mubr.bf16.mxu0 0
  %3923 = vmatmul.mubr.bf16.gmra.mrb[0].mxu0 %v3874
  %v3924 = vpop.f32.mrb[0].mxu0
  %v3925 = vadd.f32 0.0, %v3924
  %v3926 = vpop.f32.mrb[0].mxu0
  %v3927 = vpop.f32.mrb[0].mxu0
  %v3928 = vadd.f32 0.0, %v3927
  %v3929 = vpop.f32.mrb[0].mxu0
  %3930 = vmatprep.mubr.bf16.mxu0 0
  %3931 = vmatmul.mubr.bf16.gmra.mrb[0].mxu0 %v3877
  %v3932 = vpop.f32.mrb[0].mxu0
  %v3933 = vadd.f32 0.0, %v3932
  %v3934 = vpop.f32.mrb[0].mxu0
  %v3935 = vpop.f32.mrb[0].mxu0
  %v3936 = vadd.f32 0.0, %v3935
  %v3937 = vpop.f32.mrb[0].mxu0
  %3938 = vmatprep.mubr.bf16.mxu0 0
  %3939 = vmatmul.mubr.bf16.gmra.mrb[0].mxu0 %v3880
  %v3940 = vpop.f32.mrb[0].mxu0
  %v3941 = vadd.f32 0.0, %v3940
  %v3942 = vpop.f32.mrb[0].mxu0
  %v3943 = vpop.f32.mrb[0].mxu0
  %v3944 = vadd.f32 0.0, %v3943
  %v3945 = vpop.f32.mrb[0].mxu0
  %3946 = vdwg.mxu0
  %v3955 = vunpack.c.l.b16 %v1521
  %v3956 = vunpack.c.l.b16 %v1522
  %v3957 = vunpack.c.l.b16 %v1523
  %v3958 = vunpack.c.l.b16 %v1524
  %v3959 = vunpack.c.l.b16 %v1525
  %v3960 = vunpack.c.l.b16 %v1526
  %v3961 = vunpack.c.l.b16 %v1527
  %v3962 = vunpack.c.l.b16 %v1528
  %v3963 = vpack.c.b16 %v3956, %v3955
  %v3964 = vpack.c.b16 %v3958, %v3957
  %v3965 = vpack.c.b16 %v3960, %v3959
  %v3966 = vpack.c.b16 %v3962, %v3961
  %v3972 = vsel %vm313, %v3430, 0
  %v3975 = vsel %vm313, %v3431, 0
  %v3978 = vsel %vm313, %v3432, 0
  %v3981 = vsel %vm313, %v3433, 0
  %3983 = vmatprep.subr.bf16.mxu0 0
  %3984 = vmatpush1.bf16.msra.mxu0 %v3963
  %3985 = vmatprep.subr.bf16.mxu0 0
  %3986 = vmatpush1.bf16.msra.mxu0 %v3964
  %3987 = vmatprep.subr.bf16.mxu0 0
  %3988 = vmatpush1.bf16.msra.mxu0 %v3965
  %3989 = vmatprep.subr.bf16.mxu0 0
  %3990 = vmatpush1.bf16.msra.mxu0 %v3966
  %3991 = vmatprep.subr.bf16.mxu0 0
  %3992 = vmatpush1.bf16.msra.mxu0 0
  %3993 = vmatprep.subr.bf16.mxu0 0
  %3994 = vmatpush1.bf16.msra.mxu0 0
  %3995 = vmatprep.subr.bf16.mxu0 0
  %3996 = vmatpush1.bf16.msra.mxu0 0
  %3997 = vmatprep.subr.bf16.mxu0 0
  %3998 = vmatpush1.bf16.msra.mxu0 0
  %3999 = vmatprep.subr.bf16.mxu0 0
  %4000 = vmatpush1.bf16.msra.mxu0 0
  %4001 = vmatprep.subr.bf16.mxu0 0
  %4002 = vmatpush1.bf16.msra.mxu0 0
  %4003 = vmatprep.subr.bf16.mxu0 0
  %4004 = vmatpush1.bf16.msra.mxu0 0
  %4005 = vmatprep.subr.bf16.mxu0 0
  %4006 = vmatpush1.bf16.msra.mxu0 0
  %4007 = vmatprep.subr.bf16.mxu0 0
  %4008 = vmatpush1.bf16.msra.mxu0 0
  %4009 = vmatprep.subr.bf16.mxu0 0
  %4010 = vmatpush1.bf16.msra.mxu0 0
  %4011 = vmatprep.subr.bf16.mxu0 0
  %4012 = vmatpush1.bf16.msra.mxu0 0
  %4013 = vmatprep.subr.bf16.mxu0 0
  %4014 = vmatpush1.bf16.msra.mxu0 0
  %4015 = vmatprep.mubr.bf16.mxu0 0
  %4016 = vmatmul.mubr.bf16.gmra.mrb[0].mxu0 %v3972
  %v4017 = vpop.f32.mrb[0].mxu0
  %v4018 = vadd.f32 0.0, %v4017
  %v4019 = vpop.f32.mrb[0].mxu0
  %v4020 = vpop.f32.mrb[0].mxu0
  %v4021 = vadd.f32 0.0, %v4020
  %v4022 = vpop.f32.mrb[0].mxu0
  %4023 = vmatprep.mubr.bf16.mxu0 0
  %4024 = vmatmul.mubr.bf16.gmra.mrb[0].mxu0 %v3975
  %v4025 = vpop.f32.mrb[0].mxu0
  %v4026 = vadd.f32 0.0, %v4025
  %v4027 = vpop.f32.mrb[0].mxu0
  %v4028 = vpop.f32.mrb[0].mxu0
  %v4029 = vadd.f32 0.0, %v4028
  %v4030 = vpop.f32.mrb[0].mxu0
  %4031 = vmatprep.mubr.bf16.mxu0 0
  %4032 = vmatmul.mubr.bf16.gmra.mrb[0].mxu0 %v3978
  %v4033 = vpop.f32.mrb[0].mxu0
  %v4034 = vadd.f32 0.0, %v4033
  %v4035 = vpop.f32.mrb[0].mxu0
  %v4036 = vpop.f32.mrb[0].mxu0
  %v4037 = vadd.f32 0.0, %v4036
  %v4038 = vpop.f32.mrb[0].mxu0
  %4039 = vmatprep.mubr.bf16.mxu0 0
  %4040 = vmatmul.mubr.bf16.gmra.mrb[0].mxu0 %v3981
  %v4041 = vpop.f32.mrb[0].mxu0
  %v4042 = vadd.f32 0.0, %v4041
  %v4043 = vpop.f32.mrb[0].mxu0
  %v4044 = vpop.f32.mrb[0].mxu0
  %v4045 = vadd.f32 0.0, %v4044
  %v4046 = vpop.f32.mrb[0].mxu0
  %4047 = vdwg.mxu0
  %v4056 = vunpack.c.l.b16 %v1529
  %v4057 = vunpack.c.l.b16 %v1530
  %v4058 = vunpack.c.l.b16 %v1531
  %v4059 = vunpack.c.l.b16 %v1532
  %v4060 = vunpack.c.l.b16 %v1533
  %v4061 = vunpack.c.l.b16 %v1534
  %v4062 = vunpack.c.l.b16 %v1535
  %v4063 = vunpack.c.l.b16 %v1536
  %v4064 = vpack.c.b16 %v4057, %v4056
  %v4065 = vpack.c.b16 %v4059, %v4058
  %v4066 = vpack.c.b16 %v4061, %v4060
  %v4067 = vpack.c.b16 %v4063, %v4062
  %v4073 = vsel %vm313, %v3434, 0
  %v4076 = vsel %vm313, %v3435, 0
  %v4079 = vsel %vm313, %v3436, 0
  %v4082 = vsel %vm313, %v3437, 0
  %4084 = vmatprep.subr.bf16.mxu0 0
  %4085 = vmatpush1.bf16.msra.mxu0 %v4064
  %4086 = vmatprep.subr.bf16.mxu0 0
  %4087 = vmatpush1.bf16.msra.mxu0 %v4065
  %4088 = vmatprep.subr.bf16.mxu0 0
  %4089 = vmatpush1.bf16.msra.mxu0 %v4066
  %4090 = vmatprep.subr.bf16.mxu0 0
  %4091 = vmatpush1.bf16.msra.mxu0 %v4067
  %4092 = vmatprep.subr.bf16.mxu0 0
  %4093 = vmatpush1.bf16.msra.mxu0 0
  %4094 = vmatprep.subr.bf16.mxu0 0
  %4095 = vmatpush1.bf16.msra.mxu0 0
  %4096 = vmatprep.subr.bf16.mxu0 0
  %4097 = vmatpush1.bf16.msra.mxu0 0
  %4098 = vmatprep.subr.bf16.mxu0 0
  %4099 = vmatpush1.bf16.msra.mxu0 0
  %4100 = vmatprep.subr.bf16.mxu0 0
  %4101 = vmatpush1.bf16.msra.mxu0 0
  %4102 = vmatprep.subr.bf16.mxu0 0
  %4103 = vmatpush1.bf16.msra.mxu0 0
  %4104 = vmatprep.subr.bf16.mxu0 0
  %4105 = vmatpush1.bf16.msra.mxu0 0
  %4106 = vmatprep.subr.bf16.mxu0 0
  %4107 = vmatpush1.bf16.msra.mxu0 0
  %4108 = vmatprep.subr.bf16.mxu0 0
  %4109 = vmatpush1.bf16.msra.mxu0 0
  %4110 = vmatprep.subr.bf16.mxu0 0
  %4111 = vmatpush1.bf16.msra.mxu0 0
  %4112 = vmatprep.subr.bf16.mxu0 0
  %4113 = vmatpush1.bf16.msra.mxu0 0
  %4114 = vmatprep.subr.bf16.mxu0 0
  %4115 = vmatpush1.bf16.msra.mxu0 0
  %4116 = vmatprep.mubr.bf16.mxu0 0
  %4117 = vmatmul.mubr.bf16.gmra.mrb[0].mxu0 %v4073
  %v4118 = vpop.f32.mrb[0].mxu0
  %v4119 = vadd.f32 0.0, %v4118
  %v4120 = vpop.f32.mrb[0].mxu0
  %v4121 = vpop.f32.mrb[0].mxu0
  %v4122 = vadd.f32 0.0, %v4121
  %v4123 = vpop.f32.mrb[0].mxu0
  %4124 = vmatprep.mubr.bf16.mxu0 0
  %4125 = vmatmul.mubr.bf16.gmra.mrb[0].mxu0 %v4076
  %v4126 = vpop.f32.mrb[0].mxu0
  %v4127 = vadd.f32 0.0, %v4126
  %v4128 = vpop.f32.mrb[0].mxu0
  %v4129 = vpop.f32.mrb[0].mxu0
  %v4130 = vadd.f32 0.0, %v4129
  %v4131 = vpop.f32.mrb[0].mxu0
  %4132 = vmatprep.mubr.bf16.mxu0 0
  %4133 = vmatmul.mubr.bf16.gmra.mrb[0].mxu0 %v4079
  %v4134 = vpop.f32.mrb[0].mxu0
  %v4135 = vadd.f32 0.0, %v4134
  %v4136 = vpop.f32.mrb[0].mxu0
  %v4137 = vpop.f32.mrb[0].mxu0
  %v4138 = vadd.f32 0.0, %v4137
  %v4139 = vpop.f32.mrb[0].mxu0
  %4140 = vmatprep.mubr.bf16.mxu0 0
  %4141 = vmatmul.mubr.bf16.gmra.mrb[0].mxu0 %v4082
  %v4142 = vpop.f32.mrb[0].mxu0
  %v4143 = vadd.f32 0.0, %v4142
  %v4144 = vpop.f32.mrb[0].mxu0
  %v4145 = vpop.f32.mrb[0].mxu0
  %v4146 = vadd.f32 0.0, %v4145
  %v4147 = vpop.f32.mrb[0].mxu0
  %4148 = vdwg.mxu0
  %v4157 = vunpack.c.l.b16 %v1537
  %v4158 = vunpack.c.l.b16 %v1538
  %v4159 = vunpack.c.l.b16 %v1539
  %v4160 = vunpack.c.l.b16 %v1540
  %v4161 = vunpack.c.l.b16 %v1541
  %v4162 = vunpack.c.l.b16 %v1542
  %v4163 = vunpack.c.l.b16 %v1543
  %v4164 = vunpack.c.l.b16 %v1544
  %v4165 = vpack.c.b16 %v4158, %v4157
  %v4166 = vpack.c.b16 %v4160, %v4159
  %v4167 = vpack.c.b16 %v4162, %v4161
  %v4168 = vpack.c.b16 %v4164, %v4163
  %v4174 = vsel %vm313, %v3438, 0
  %v4177 = vsel %vm313, %v3439, 0
  %v4180 = vsel %vm313, %v3440, 0
  %v4183 = vsel %vm313, %v3441, 0
  %4185 = vmatprep.subr.bf16.mxu0 0
  %4186 = vmatpush1.bf16.msra.mxu0 %v4165
  %4187 = vmatprep.subr.bf16.mxu0 0
  %4188 = vmatpush1.bf16.msra.mxu0 %v4166
  %4189 = vmatprep.subr.bf16.mxu0 0
  %4190 = vmatpush1.bf16.msra.mxu0 %v4167
  %4191 = vmatprep.subr.bf16.mxu0 0
  %4192 = vmatpush1.bf16.msra.mxu0 %v4168
  %4193 = vmatprep.subr.bf16.mxu0 0
  %4194 = vmatpush1.bf16.msra.mxu0 0
  %4195 = vmatprep.subr.bf16.mxu0 0
  %4196 = vmatpush1.bf16.msra.mxu0 0
  %4197 = vmatprep.subr.bf16.mxu0 0
  %4198 = vmatpush1.bf16.msra.mxu0 0
  %4199 = vmatprep.subr.bf16.mxu0 0
  %4200 = vmatpush1.bf16.msra.mxu0 0
  %4201 = vmatprep.subr.bf16.mxu0 0
  %4202 = vmatpush1.bf16.msra.mxu0 0
  %4203 = vmatprep.subr.bf16.mxu0 0
  %4204 = vmatpush1.bf16.msra.mxu0 0
  %4205 = vmatprep.subr.bf16.mxu0 0
  %4206 = vmatpush1.bf16.msra.mxu0 0
  %4207 = vmatprep.subr.bf16.mxu0 0
  %4208 = vmatpush1.bf16.msra.mxu0 0
  %4209 = vmatprep.subr.bf16.mxu0 0
  %4210 = vmatpush1.bf16.msra.mxu0 0
  %4211 = vmatprep.subr.bf16.mxu0 0
  %4212 = vmatpush1.bf16.msra.mxu0 0
  %4213 = vmatprep.subr.bf16.mxu0 0
  %4214 = vmatpush1.bf16.msra.mxu0 0
  %4215 = vmatprep.subr.bf16.mxu0 0
  %4216 = vmatpush1.bf16.msra.mxu0 0
  %4217 = vmatprep.mubr.bf16.mxu0 0
  %4218 = vmatmul.mubr.bf16.gmra.mrb[0].mxu0 %v4174
  %v4219 = vpop.f32.mrb[0].mxu0
  %v4220 = vadd.f32 0.0, %v4219
  %v4221 = vpop.f32.mrb[0].mxu0
  %v4222 = vpop.f32.mrb[0].mxu0
  %v4223 = vadd.f32 0.0, %v4222
  %v4224 = vpop.f32.mrb[0].mxu0
  %4225 = vmatprep.mubr.bf16.mxu0 0
  %4226 = vmatmul.mubr.bf16.gmra.mrb[0].mxu0 %v4177
  %v4227 = vpop.f32.mrb[0].mxu0
  %v4228 = vadd.f32 0.0, %v4227
  %v4229 = vpop.f32.mrb[0].mxu0
  %v4230 = vpop.f32.mrb[0].mxu0
  %v4231 = vadd.f32 0.0, %v4230
  %v4232 = vpop.f32.mrb[0].mxu0
  %4233 = vmatprep.mubr.bf16.mxu0 0
  %4234 = vmatmul.mubr.bf16.gmra.mrb[0].mxu0 %v4180
  %v4235 = vpop.f32.mrb[0].mxu0
  %v4236 = vadd.f32 0.0, %v4235
  %v4237 = vpop.f32.mrb[0].mxu0
  %v4238 = vpop.f32.mrb[0].mxu0
  %v4239 = vadd.f32 0.0, %v4238
  %v4240 = vpop.f32.mrb[0].mxu0
  %4241 = vmatprep.mubr.bf16.mxu0 0
  %4242 = vmatmul.mubr.bf16.gmra.mrb[0].mxu0 %v4183
  %v4243 = vpop.f32.mrb[0].mxu0
  %v4244 = vadd.f32 0.0, %v4243
  %v4245 = vpop.f32.mrb[0].mxu0
  %v4246 = vpop.f32.mrb[0].mxu0
  %v4247 = vadd.f32 0.0, %v4246
  %v4248 = vpop.f32.mrb[0].mxu0
  %4249 = vdwg.mxu0
  %vm4250 = vcmask 15360
  %4251 = vst.msk [vmem:[%s10] sm:$0xff] %vm4250, %v3513
  %4252 = vst.msk [vmem:[%s10 + $0x8] sm:$0xff] %vm4250, %v3516
  %4253 = vst.msk [vmem:[%s10 + $0x10] sm:$0xff] %vm4250, %v3521
  %4254 = vst.msk [vmem:[%s10 + $0x18] sm:$0xff] %vm4250, %v3524
  %4255 = vst.msk [vmem:[%s10 + $0x20] sm:$0xff] %vm4250, %v3529
  %4256 = vst.msk [vmem:[%s10 + $0x28] sm:$0xff] %vm4250, %v3532
  %4257 = vst.msk [vmem:[%s10 + $0x30] sm:$0xff] %vm4250, %v3537
  %4258 = vst.msk [vmem:[%s10 + $0x38] sm:$0xff] %vm4250, %v3540
  %4259 = vst.msk [vmem:[%s10 + $0x40] sm:$0xff] %vm4250, %v3614
  %4260 = vst.msk [vmem:[%s10 + $0x48] sm:$0xff] %vm4250, %v3617
  %4261 = vst.msk [vmem:[%s10 + $0x50] sm:$0xff] %vm4250, %v3622
  %4262 = vst.msk [vmem:[%s10 + $0x58] sm:$0xff] %vm4250, %v3625
  %4263 = vst.msk [vmem:[%s10 + $0x60] sm:$0xff] %vm4250, %v3630
  %4264 = vst.msk [vmem:[%s10 + $0x68] sm:$0xff] %vm4250, %v3633
  %4265 = vst.msk [vmem:[%s10 + $0x70] sm:$0xff] %vm4250, %v3638
  %4266 = vst.msk [vmem:[%s10 + $0x78] sm:$0xff] %vm4250, %v3641
  %4267 = vst.msk [vmem:[%s10 + $0x80] sm:$0xff] %vm4250, %v3715
  %4268 = vst.msk [vmem:[%s10 + $0x88] sm:$0xff] %vm4250, %v3718
  %4269 = vst.msk [vmem:[%s10 + $0x90] sm:$0xff] %vm4250, %v3723
  %4270 = vst.msk [vmem:[%s10 + $0x98] sm:$0xff] %vm4250, %v3726
  %4271 = vst.msk [vmem:[%s10 + $0xa0] sm:$0xff] %vm4250, %v3731
  %4272 = vst.msk [vmem:[%s10 + $0xa8] sm:$0xff] %vm4250, %v3734
  %4273 = vst.msk [vmem:[%s10 + $0xb0] sm:$0xff] %vm4250, %v3739
  %4274 = vst.msk [vmem:[%s10 + $0xb8] sm:$0xff] %vm4250, %v3742
  %4275 = vst.msk [vmem:[%s10 + $0xc0] sm:$0xff] %vm4250, %v3816
  %4276 = vst.msk [vmem:[%s10 + $0xc8] sm:$0xff] %vm4250, %v3819
  %4277 = vst.msk [vmem:[%s10 + $0xd0] sm:$0xff] %vm4250, %v3824
  %4278 = vst.msk [vmem:[%s10 + $0xd8] sm:$0xff] %vm4250, %v3827
  %4279 = vst.msk [vmem:[%s10 + $0xe0] sm:$0xff] %vm4250, %v3832
  %4280 = vst.msk [vmem:[%s10 + $0xe8] sm:$0xff] %vm4250, %v3835
  %4281 = vst.msk [vmem:[%s10 + $0xf0] sm:$0xff] %vm4250, %v3840
  %4282 = vst.msk [vmem:[%s10 + $0xf8] sm:$0xff] %vm4250, %v3843
  %4283 = vst.msk [vmem:[%s10 + $0x100] sm:$0xff] %vm4250, %v3917
  %4284 = vst.msk [vmem:[%s10 + $0x108] sm:$0xff] %vm4250, %v3920
  %4285 = vst.msk [vmem:[%s10 + $0x110] sm:$0xff] %vm4250, %v3925
  %4286 = vst.msk [vmem:[%s10 + $0x118] sm:$0xff] %vm4250, %v3928
  %4287 = vst.msk [vmem:[%s10 + $0x120] sm:$0xff] %vm4250, %v3933
  %4288 = vst.msk [vmem:[%s10 + $0x128] sm:$0xff] %vm4250, %v3936
  %4289 = vst.msk [vmem:[%s10 + $0x130] sm:$0xff] %vm4250, %v3941
  %4290 = vst.msk [vmem:[%s10 + $0x138] sm:$0xff] %vm4250, %v3944
  %4291 = vst.msk [vmem:[%s10 + $0x140] sm:$0xff] %vm4250, %v4018
  %4292 = vst.msk [vmem:[%s10 + $0x148] sm:$0xff] %vm4250, %v4021
  %4293 = vst.msk [vmem:[%s10 + $0x150] sm:$0xff] %vm4250, %v4026
  %4294 = vst.msk [vmem:[%s10 + $0x158] sm:$0xff] %vm4250, %v4029
  %4295 = vst.msk [vmem:[%s10 + $0x160] sm:$0xff] %vm4250, %v4034
  %4296 = vst.msk [vmem:[%s10 + $0x168] sm:$0xff] %vm4250, %v4037
  %4297 = vst.msk [vmem:[%s10 + $0x170] sm:$0xff] %vm4250, %v4042
  %4298 = vst.msk [vmem:[%s10 + $0x178] sm:$0xff] %vm4250, %v4045
  %4299 = vst.msk [vmem:[%s10 + $0x180] sm:$0xff] %vm4250, %v4119
  %4300 = vst.msk [vmem:[%s10 + $0x188] sm:$0xff] %vm4250, %v4122
  %4301 = vst.msk [vmem:[%s10 + $0x190] sm:$0xff] %vm4250, %v4127
  %4302 = vst.msk [vmem:[%s10 + $0x198] sm:$0xff] %vm4250, %v4130
  %4303 = vst.msk [vmem:[%s10 + $0x1a0] sm:$0xff] %vm4250, %v4135
  %4304 = vst.msk [vmem:[%s10 + $0x1a8] sm:$0xff] %vm4250, %v4138
  %4305 = vst.msk [vmem:[%s10 + $0x1b0] sm:$0xff] %vm4250, %v4143
  %4306 = vst.msk [vmem:[%s10 + $0x1b8] sm:$0xff] %vm4250, %v4146
  %4307 = vst.msk [vmem:[%s10 + $0x1c0] sm:$0xff] %vm4250, %v4220
  %4308 = vst.msk [vmem:[%s10 + $0x1c8] sm:$0xff] %vm4250, %v4223
  %4309 = vst.msk [vmem:[%s10 + $0x1d0] sm:$0xff] %vm4250, %v4228
  %4310 = vst.msk [vmem:[%s10 + $0x1d8] sm:$0xff] %vm4250, %v4231
  %4311 = vst.msk [vmem:[%s10 + $0x1e0] sm:$0xff] %vm4250, %v4236
  %4312 = vst.msk [vmem:[%s10 + $0x1e8] sm:$0xff] %vm4250, %v4239
  %4313 = vst.msk [vmem:[%s10 + $0x1f0] sm:$0xff] %vm4250, %v4244
  %4314 = vst.msk [vmem:[%s10 + $0x1f8] sm:$0xff] %vm4250, %v4247
  %s4315 = scalar_lea.vmem %s4, 80
  %v4316 = vld [vmem:[%s4315] sm:$0xf]
  %v4317 = vld [vmem:[%s4315 + $0x4] sm:$0x1]
  %v4318 = vld [vmem:[%s4315 + $0x8] sm:$0xf]
  %v4319 = vld [vmem:[%s4315 + $0xc] sm:$0x1]
  %v4320 = vld [vmem:[%s4315 + $0x10] sm:$0xf]
  %v4321 = vld [vmem:[%s4315 + $0x14] sm:$0x1]
  %v4322 = vld [vmem:[%s4315 + $0x18] sm:$0xf]
  %v4323 = vld [vmem:[%s4315 + $0x1c] sm:$0x1]
  %v4324 = vld [vmem:[%s4315 + $0x20] sm:$0xf]
  %v4325 = vld [vmem:[%s4315 + $0x24] sm:$0x1]
  %v4326 = vld [vmem:[%s4315 + $0x28] sm:$0xf]
  %v4327 = vld [vmem:[%s4315 + $0x2c] sm:$0x1]
  %v4328 = vld [vmem:[%s4315 + $0x30] sm:$0xf]
  %v4329 = vld [vmem:[%s4315 + $0x34] sm:$0x1]
  %v4330 = vld [vmem:[%s4315 + $0x38] sm:$0xf]
  %v4331 = vld [vmem:[%s4315 + $0x3c] sm:$0x1]
  %v4332 = vld [vmem:[%s4315 + $0x40] sm:$0xf]
  %v4333 = vld [vmem:[%s4315 + $0x44] sm:$0x1]
  %v4334 = vld [vmem:[%s4315 + $0x48] sm:$0xf]
  %v4335 = vld [vmem:[%s4315 + $0x4c] sm:$0x1]
  %v4337 = vshrl.u32 %v4316, 16
  %v4339 = vrot.slane %v4337, 4
  %v4340 = vshll.u32 %v4316, 16
  %v4342 = vrot.slane %v4340, 5
  %v4343 = vor.u32 %v4339, %v4342
  %v4344 = vrot.slane %v4343, 4
  %v4346 = vshll.u32 %v4317, 16
  %v4348 = vrot.slane %v4346, 5
  %v4349 = vsel %vm57, %v4344, %v4348
  %v4351 = vshrl.u32 %v4318, 16
  %v4353 = vrot.slane %v4351, 4
  %v4354 = vshll.u32 %v4318, 16
  %v4356 = vrot.slane %v4354, 5
  %v4357 = vor.u32 %v4353, %v4356
  %v4358 = vrot.slane %v4357, 4
  %v4360 = vshll.u32 %v4319, 16
  %v4362 = vrot.slane %v4360, 5
  %v4363 = vsel %vm57, %v4358, %v4362
  %v4365 = vshrl.u32 %v4320, 16
  %v4367 = vrot.slane %v4365, 4
  %v4368 = vshll.u32 %v4320, 16
  %v4370 = vrot.slane %v4368, 5
  %v4371 = vor.u32 %v4367, %v4370
  %v4372 = vrot.slane %v4371, 4
  %v4374 = vshll.u32 %v4321, 16
  %v4376 = vrot.slane %v4374, 5
  %v4377 = vsel %vm57, %v4372, %v4376
  %v4379 = vshrl.u32 %v4322, 16
  %v4381 = vrot.slane %v4379, 4
  %v4382 = vshll.u32 %v4322, 16
  %v4384 = vrot.slane %v4382, 5
  %v4385 = vor.u32 %v4381, %v4384
  %v4386 = vrot.slane %v4385, 4
  %v4388 = vshll.u32 %v4323, 16
  %v4390 = vrot.slane %v4388, 5
  %v4391 = vsel %vm57, %v4386, %v4390
  %v4393 = vshrl.u32 %v4324, 16
  %v4395 = vrot.slane %v4393, 4
  %v4396 = vshll.u32 %v4324, 16
  %v4398 = vrot.slane %v4396, 5
  %v4399 = vor.u32 %v4395, %v4398
  %v4400 = vrot.slane %v4399, 4
  %v4402 = vshll.u32 %v4325, 16
  %v4404 = vrot.slane %v4402, 5
  %v4405 = vsel %vm57, %v4400, %v4404
  %v4407 = vshrl.u32 %v4326, 16
  %v4409 = vrot.slane %v4407, 4
  %v4410 = vshll.u32 %v4326, 16
  %v4412 = vrot.slane %v4410, 5
  %v4413 = vor.u32 %v4409, %v4412
  %v4414 = vrot.slane %v4413, 4
  %v4416 = vshll.u32 %v4327, 16
  %v4418 = vrot.slane %v4416, 5
  %v4419 = vsel %vm57, %v4414, %v4418
  %v4421 = vshrl.u32 %v4328, 16
  %v4423 = vrot.slane %v4421, 4
  %v4424 = vshll.u32 %v4328, 16
  %v4426 = vrot.slane %v4424, 5
  %v4427 = vor.u32 %v4423, %v4426
  %v4428 = vrot.slane %v4427, 4
  %v4430 = vshll.u32 %v4329, 16
  %v4432 = vrot.slane %v4430, 5
  %v4433 = vsel %vm57, %v4428, %v4432
  %v4435 = vshrl.u32 %v4330, 16
  %v4437 = vrot.slane %v4435, 4
  %v4438 = vshll.u32 %v4330, 16
  %v4440 = vrot.slane %v4438, 5
  %v4441 = vor.u32 %v4437, %v4440
  %v4442 = vrot.slane %v4441, 4
  %v4444 = vshll.u32 %v4331, 16
  %v4446 = vrot.slane %v4444, 5
  %v4447 = vsel %vm57, %v4442, %v4446
  %v4464 = vrot.slane %v4316, 5
  %v4465 = vrot.slane %v4464, 4
  %v4466 = vrot.slane %v4317, 5
  %v4467 = vsel %vm188, %v4465, %v4466
  %v4468 = vrot.slane %v4318, 5
  %v4469 = vrot.slane %v4468, 4
  %v4470 = vrot.slane %v4319, 5
  %v4471 = vsel %vm188, %v4469, %v4470
  %v4472 = vrot.slane %v4320, 5
  %v4473 = vrot.slane %v4472, 4
  %v4474 = vrot.slane %v4321, 5
  %v4475 = vsel %vm188, %v4473, %v4474
  %v4476 = vrot.slane %v4322, 5
  %v4477 = vrot.slane %v4476, 4
  %v4478 = vrot.slane %v4323, 5
  %v4479 = vsel %vm188, %v4477, %v4478
  %v4480 = vrot.slane %v4324, 5
  %v4481 = vrot.slane %v4480, 4
  %v4482 = vrot.slane %v4325, 5
  %v4483 = vsel %vm188, %v4481, %v4482
  %v4484 = vrot.slane %v4326, 5
  %v4485 = vrot.slane %v4484, 4
  %v4486 = vrot.slane %v4327, 5
  %v4487 = vsel %vm188, %v4485, %v4486
  %v4488 = vrot.slane %v4328, 5
  %v4489 = vrot.slane %v4488, 4
  %v4490 = vrot.slane %v4329, 5
  %v4491 = vsel %vm188, %v4489, %v4490
  %v4492 = vrot.slane %v4330, 5
  %v4493 = vrot.slane %v4492, 4
  %v4494 = vrot.slane %v4331, 5
  %v4495 = vsel %vm188, %v4493, %v4494
  %v4497 = vshrl.u32 %v4332, 16
  %v4499 = vrot.slane %v4497, 4
  %v4500 = vshll.u32 %v4332, 16
  %v4502 = vrot.slane %v4500, 5
  %v4503 = vor.u32 %v4499, %v4502
  %v4504 = vrot.slane %v4503, 4
  %v4506 = vshll.u32 %v4333, 16
  %v4508 = vrot.slane %v4506, 5
  %v4509 = vsel %vm57, %v4504, %v4508
  %v4512 = vrot.slane %v4332, 5
  %v4513 = vrot.slane %v4512, 4
  %v4514 = vrot.slane %v4333, 5
  %v4515 = vsel %vm188, %v4513, %v4514
  %v4517 = vshrl.u32 %v4334, 16
  %v4519 = vrot.slane %v4517, 4
  %v4520 = vshll.u32 %v4334, 16
  %v4522 = vrot.slane %v4520, 5
  %v4523 = vor.u32 %v4519, %v4522
  %v4524 = vrot.slane %v4523, 4
  %v4526 = vshll.u32 %v4335, 16
  %v4528 = vrot.slane %v4526, 5
  %v4529 = vsel %vm57, %v4524, %v4528
  %v4532 = vrot.slane %v4334, 5
  %v4533 = vrot.slane %v4532, 4
  %v4534 = vrot.slane %v4335, 5
  %v4535 = vsel %vm188, %v4533, %v4534
  %v4536 = vld [vmem:[%s5] sm:$0xf]
  %v4537 = vld [vmem:[%s5 + $0x4] sm:$0xf]
  %v4538 = vld [vmem:[%s5 + $0x8] sm:$0xf]
  %v4539 = vld [vmem:[%s5 + $0xc] sm:$0xf]
  %v4540 = vld [vmem:[%s5 + $0x10] sm:$0xf]
  %v4541 = vld [vmem:[%s5 + $0x14] sm:$0xf]
  %v4542 = vld [vmem:[%s5 + $0x18] sm:$0xf]
  %v4543 = vld [vmem:[%s5 + $0x1c] sm:$0xf]
  %v4544 = vld [vmem:[%s5 + $0x20] sm:$0xf]
  %v4545 = vld [vmem:[%s5 + $0x24] sm:$0xf]
  %v4546 = vld [vmem:[%s5 + $0x28] sm:$0xf]
  %v4547 = vld [vmem:[%s5 + $0x2c] sm:$0xf]
  %v4548 = vld [vmem:[%s5 + $0x30] sm:$0xf]
  %v4549 = vld [vmem:[%s5 + $0x34] sm:$0xf]
  %v4550 = vld [vmem:[%s5 + $0x38] sm:$0xf]
  %v4551 = vld [vmem:[%s5 + $0x3c] sm:$0xf]
  %v4552 = vunpack.c.l.b16 %v4349
  %v4553 = vunpack.c.l.b16 %v4363
  %v4554 = vunpack.c.l.b16 %v4377
  %v4555 = vunpack.c.l.b16 %v4391
  %v4556 = vunpack.c.l.b16 %v4405
  %v4557 = vunpack.c.l.b16 %v4419
  %v4558 = vunpack.c.l.b16 %v4433
  %v4559 = vunpack.c.l.b16 %v4447
  %v4560 = vpack.c.b16 %v4553, %v4552
  %v4561 = vpack.c.b16 %v4555, %v4554
  %v4562 = vpack.c.b16 %v4557, %v4556
  %v4563 = vpack.c.b16 %v4559, %v4558
  %v4572 = vunpack.c.l.b16 %v4544
  %v4573 = vunpack.c.l.b16 %v4545
  %v4574 = vunpack.c.l.b16 %v4546
  %v4575 = vunpack.c.l.b16 %v4547
  %v4576 = vunpack.c.l.b16 %v4548
  %v4577 = vunpack.c.l.b16 %v4549
  %v4578 = vunpack.c.l.b16 %v4550
  %v4579 = vunpack.c.l.b16 %v4551
  %v4580 = vpack.c.b16 %v4573, %v4572
  %v4581 = vpack.c.b16 %v4575, %v4574
  %v4582 = vpack.c.b16 %v4577, %v4576
  %v4583 = vpack.c.b16 %v4579, %v4578
  %v4589 = vsel %vm313, %v4560, 0
  %v4592 = vsel %vm313, %v4561, 0
  %v4595 = vsel %vm313, %v4562, 0
  %v4598 = vsel %vm313, %v4563, 0
  %4600 = vmatprep.subr.bf16.mxu0 0
  %4601 = vmatpush1.bf16.msra.mxu0 %v4580
  %4602 = vmatprep.subr.bf16.mxu0 0
  %4603 = vmatpush1.bf16.msra.mxu0 %v4581
  %4604 = vmatprep.subr.bf16.mxu0 0
  %4605 = vmatpush1.bf16.msra.mxu0 %v4582
  %4606 = vmatprep.subr.bf16.mxu0 0
  %4607 = vmatpush1.bf16.msra.mxu0 %v4583
  %4608 = vmatprep.subr.bf16.mxu0 0
  %4609 = vmatpush1.bf16.msra.mxu0 0
  %4610 = vmatprep.subr.bf16.mxu0 0
  %4611 = vmatpush1.bf16.msra.mxu0 0
  %4612 = vmatprep.subr.bf16.mxu0 0
  %4613 = vmatpush1.bf16.msra.mxu0 0
  %4614 = vmatprep.subr.bf16.mxu0 0
  %4615 = vmatpush1.bf16.msra.mxu0 0
  %4616 = vmatprep.subr.bf16.mxu0 0
  %4617 = vmatpush1.bf16.msra.mxu0 0
  %4618 = vmatprep.subr.bf16.mxu0 0
  %4619 = vmatpush1.bf16.msra.mxu0 0
  %4620 = vmatprep.subr.bf16.mxu0 0
  %4621 = vmatpush1.bf16.msra.mxu0 0
  %4622 = vmatprep.subr.bf16.mxu0 0
  %4623 = vmatpush1.bf16.msra.mxu0 0
  %4624 = vmatprep.subr.bf16.mxu0 0
  %4625 = vmatpush1.bf16.msra.mxu0 0
  %4626 = vmatprep.subr.bf16.mxu0 0
  %4627 = vmatpush1.bf16.msra.mxu0 0
  %4628 = vmatprep.subr.bf16.mxu0 0
  %4629 = vmatpush1.bf16.msra.mxu0 0
  %4630 = vmatprep.subr.bf16.mxu0 0
  %4631 = vmatpush1.bf16.msra.mxu0 0
  %4632 = vmatprep.mubr.bf16.mxu0 0
  %4633 = vmatmul.mubr.bf16.gmra.mrb[0].mxu0 %v4589
  %v4634 = vpop.f32.mrb[0].mxu0
  %v4635 = vadd.f32 0.0, %v4634
  %v4636 = vpop.f32.mrb[0].mxu0
  %v4637 = vpop.f32.mrb[0].mxu0
  %v4638 = vadd.f32 0.0, %v4637
  %v4639 = vpop.f32.mrb[0].mxu0
  %4640 = vmatprep.mubr.bf16.mxu0 0
  %4641 = vmatmul.mubr.bf16.gmra.mrb[0].mxu0 %v4592
  %v4642 = vpop.f32.mrb[0].mxu0
  %v4643 = vadd.f32 0.0, %v4642
  %v4644 = vpop.f32.mrb[0].mxu0
  %v4645 = vpop.f32.mrb[0].mxu0
  %v4646 = vadd.f32 0.0, %v4645
  %v4647 = vpop.f32.mrb[0].mxu0
  %4648 = vmatprep.mubr.bf16.mxu0 0
  %4649 = vmatmul.mubr.bf16.gmra.mrb[0].mxu0 %v4595
  %v4650 = vpop.f32.mrb[0].mxu0
  %v4651 = vadd.f32 0.0, %v4650
  %v4652 = vpop.f32.mrb[0].mxu0
  %v4653 = vpop.f32.mrb[0].mxu0
  %v4654 = vadd.f32 0.0, %v4653
  %v4655 = vpop.f32.mrb[0].mxu0
  %4656 = vmatprep.mubr.bf16.mxu0 0
  %4657 = vmatmul.mubr.bf16.gmra.mrb[0].mxu0 %v4598
  %v4658 = vpop.f32.mrb[0].mxu0
  %v4659 = vadd.f32 0.0, %v4658
  %v4660 = vpop.f32.mrb[0].mxu0
  %v4661 = vpop.f32.mrb[0].mxu0
  %v4662 = vadd.f32 0.0, %v4661
  %v4663 = vpop.f32.mrb[0].mxu0
  %4664 = vdwg.mxu0
  %v4665 = vunpack.c.l.b16 %v4316
  %v4666 = vunpack.c.l.b16 %v4318
  %v4667 = vunpack.c.l.b16 %v4320
  %v4668 = vunpack.c.l.b16 %v4322
  %v4669 = vunpack.c.l.b16 %v4324
  %v4670 = vunpack.c.l.b16 %v4326
  %v4671 = vunpack.c.l.b16 %v4328
  %v4672 = vunpack.c.l.b16 %v4330
  %v4673 = vpack.c.b16 %v4666, %v4665
  %v4674 = vpack.c.b16 %v4668, %v4667
  %v4675 = vpack.c.b16 %v4670, %v4669
  %v4676 = vpack.c.b16 %v4672, %v4671
  %v4685 = vunpack.c.l.b16 %v4536
  %v4686 = vunpack.c.l.b16 %v4537
  %v4687 = vunpack.c.l.b16 %v4538
  %v4688 = vunpack.c.l.b16 %v4539
  %v4689 = vunpack.c.l.b16 %v4540
  %v4690 = vunpack.c.l.b16 %v4541
  %v4691 = vunpack.c.l.b16 %v4542
  %v4692 = vunpack.c.l.b16 %v4543
  %v4693 = vpack.c.b16 %v4686, %v4685
  %v4694 = vpack.c.b16 %v4688, %v4687
  %v4695 = vpack.c.b16 %v4690, %v4689
  %v4696 = vpack.c.b16 %v4692, %v4691
  %v4702 = vsel %vm313, %v4673, 0
  %v4705 = vsel %vm313, %v4674, 0
  %v4708 = vsel %vm313, %v4675, 0
  %v4711 = vsel %vm313, %v4676, 0
  %4713 = vmatprep.subr.bf16.mxu0 0
  %4714 = vmatpush1.bf16.msra.mxu0 %v4693
  %4715 = vmatprep.subr.bf16.mxu0 0
  %4716 = vmatpush1.bf16.msra.mxu0 %v4694
  %4717 = vmatprep.subr.bf16.mxu0 0
  %4718 = vmatpush1.bf16.msra.mxu0 %v4695
  %4719 = vmatprep.subr.bf16.mxu0 0
  %4720 = vmatpush1.bf16.msra.mxu0 %v4696
  %4721 = vmatprep.subr.bf16.mxu0 0
  %4722 = vmatpush1.bf16.msra.mxu0 0
  %4723 = vmatprep.subr.bf16.mxu0 0
  %4724 = vmatpush1.bf16.msra.mxu0 0
  %4725 = vmatprep.subr.bf16.mxu0 0
  %4726 = vmatpush1.bf16.msra.mxu0 0
  %4727 = vmatprep.subr.bf16.mxu0 0
  %4728 = vmatpush1.bf16.msra.mxu0 0
  %4729 = vmatprep.subr.bf16.mxu0 0
  %4730 = vmatpush1.bf16.msra.mxu0 0
  %4731 = vmatprep.subr.bf16.mxu0 0
  %4732 = vmatpush1.bf16.msra.mxu0 0
  %4733 = vmatprep.subr.bf16.mxu0 0
  %4734 = vmatpush1.bf16.msra.mxu0 0
  %4735 = vmatprep.subr.bf16.mxu0 0
  %4736 = vmatpush1.bf16.msra.mxu0 0
  %4737 = vmatprep.subr.bf16.mxu0 0
  %4738 = vmatpush1.bf16.msra.mxu0 0
  %4739 = vmatprep.subr.bf16.mxu0 0
  %4740 = vmatpush1.bf16.msra.mxu0 0
  %4741 = vmatprep.subr.bf16.mxu0 0
  %4742 = vmatpush1.bf16.msra.mxu0 0
  %4743 = vmatprep.subr.bf16.mxu0 0
  %4744 = vmatpush1.bf16.msra.mxu0 0
  %4745 = vmatprep.mubr.bf16.mxu0 0
  %4746 = vmatmul.mubr.bf16.gmra.mrb[0].mxu0 %v4702
  %v4747 = vpop.f32.mrb[0].mxu0
  %v4748 = vadd.f32 %v4635, %v4747
  %v4749 = vpop.f32.mrb[0].mxu0
  %v4750 = vpop.f32.mrb[0].mxu0
  %v4751 = vadd.f32 %v4638, %v4750
  %v4752 = vpop.f32.mrb[0].mxu0
  %4753 = vmatprep.mubr.bf16.mxu0 0
  %4754 = vmatmul.mubr.bf16.gmra.mrb[0].mxu0 %v4705
  %v4755 = vpop.f32.mrb[0].mxu0
  %v4756 = vadd.f32 %v4643, %v4755
  %v4757 = vpop.f32.mrb[0].mxu0
  %v4758 = vpop.f32.mrb[0].mxu0
  %v4759 = vadd.f32 %v4646, %v4758
  %v4760 = vpop.f32.mrb[0].mxu0
  %4761 = vmatprep.mubr.bf16.mxu0 0
  %4762 = vmatmul.mubr.bf16.gmra.mrb[0].mxu0 %v4708
  %v4763 = vpop.f32.mrb[0].mxu0
  %v4764 = vadd.f32 %v4651, %v4763
  %v4765 = vpop.f32.mrb[0].mxu0
  %v4766 = vpop.f32.mrb[0].mxu0
  %v4767 = vadd.f32 %v4654, %v4766
  %v4768 = vpop.f32.mrb[0].mxu0
  %4769 = vmatprep.mubr.bf16.mxu0 0
  %4770 = vmatmul.mubr.bf16.gmra.mrb[0].mxu0 %v4711
  %v4771 = vpop.f32.mrb[0].mxu0
  %v4772 = vadd.f32 %v4659, %v4771
  %v4773 = vpop.f32.mrb[0].mxu0
  %v4774 = vpop.f32.mrb[0].mxu0
  %v4775 = vadd.f32 %v4662, %v4774
  %v4776 = vpop.f32.mrb[0].mxu0
  %4777 = vdwg.mxu0
  %v4778 = vld [vmem:[%s5 + $0x40] sm:$0xf]
  %v4779 = vld [vmem:[%s5 + $0x44] sm:$0xf]
  %v4780 = vld [vmem:[%s5 + $0x48] sm:$0xf]
  %v4781 = vld [vmem:[%s5 + $0x4c] sm:$0xf]
  %v4782 = vld [vmem:[%s5 + $0x50] sm:$0xf]
  %v4783 = vld [vmem:[%s5 + $0x54] sm:$0xf]
  %v4784 = vld [vmem:[%s5 + $0x58] sm:$0xf]
  %v4785 = vld [vmem:[%s5 + $0x5c] sm:$0xf]
  %v4786 = vunpack.c.l.b16 %v4467
  %v4787 = vunpack.c.l.b16 %v4471
  %v4788 = vunpack.c.l.b16 %v4475
  %v4789 = vunpack.c.l.b16 %v4479
  %v4790 = vunpack.c.l.b16 %v4483
  %v4791 = vunpack.c.l.b16 %v4487
  %v4792 = vunpack.c.l.b16 %v4491
  %v4793 = vunpack.c.l.b16 %v4495
  %v4794 = vpack.c.b16 %v4787, %v4786
  %v4795 = vpack.c.b16 %v4789, %v4788
  %v4796 = vpack.c.b16 %v4791, %v4790
  %v4797 = vpack.c.b16 %v4793, %v4792
  %v4806 = vunpack.c.l.b16 %v4778
  %v4807 = vunpack.c.l.b16 %v4779
  %v4808 = vunpack.c.l.b16 %v4780
  %v4809 = vunpack.c.l.b16 %v4781
  %v4810 = vunpack.c.l.b16 %v4782
  %v4811 = vunpack.c.l.b16 %v4783
  %v4812 = vunpack.c.l.b16 %v4784
  %v4813 = vunpack.c.l.b16 %v4785
  %v4814 = vpack.c.b16 %v4807, %v4806
  %v4815 = vpack.c.b16 %v4809, %v4808
  %v4816 = vpack.c.b16 %v4811, %v4810
  %v4817 = vpack.c.b16 %v4813, %v4812
  %v4823 = vsel %vm313, %v4794, 0
  %v4826 = vsel %vm313, %v4795, 0
  %v4829 = vsel %vm313, %v4796, 0
  %v4832 = vsel %vm313, %v4797, 0
  %4834 = vmatprep.subr.bf16.mxu0 0
  %4835 = vmatpush1.bf16.msra.mxu0 %v4814
  %4836 = vmatprep.subr.bf16.mxu0 0
  %4837 = vmatpush1.bf16.msra.mxu0 %v4815
  %4838 = vmatprep.subr.bf16.mxu0 0
  %4839 = vmatpush1.bf16.msra.mxu0 %v4816
  %4840 = vmatprep.subr.bf16.mxu0 0
  %4841 = vmatpush1.bf16.msra.mxu0 %v4817
  %4842 = vmatprep.subr.bf16.mxu0 0
  %4843 = vmatpush1.bf16.msra.mxu0 0
  %4844 = vmatprep.subr.bf16.mxu0 0
  %4845 = vmatpush1.bf16.msra.mxu0 0
  %4846 = vmatprep.subr.bf16.mxu0 0
  %4847 = vmatpush1.bf16.msra.mxu0 0
  %4848 = vmatprep.subr.bf16.mxu0 0
  %4849 = vmatpush1.bf16.msra.mxu0 0
  %4850 = vmatprep.subr.bf16.mxu0 0
  %4851 = vmatpush1.bf16.msra.mxu0 0
  %4852 = vmatprep.subr.bf16.mxu0 0
  %4853 = vmatpush1.bf16.msra.mxu0 0
  %4854 = vmatprep.subr.bf16.mxu0 0
  %4855 = vmatpush1.bf16.msra.mxu0 0
  %4856 = vmatprep.subr.bf16.mxu0 0
  %4857 = vmatpush1.bf16.msra.mxu0 0
  %4858 = vmatprep.subr.bf16.mxu0 0
  %4859 = vmatpush1.bf16.msra.mxu0 0
  %4860 = vmatprep.subr.bf16.mxu0 0
  %4861 = vmatpush1.bf16.msra.mxu0 0
  %4862 = vmatprep.subr.bf16.mxu0 0
  %4863 = vmatpush1.bf16.msra.mxu0 0
  %4864 = vmatprep.subr.bf16.mxu0 0
  %4865 = vmatpush1.bf16.msra.mxu0 0
  %4866 = vmatprep.mubr.bf16.mxu0 0
  %4867 = vmatmul.mubr.bf16.gmra.mrb[0].mxu0 %v4823
  %v4868 = vpop.f32.mrb[0].mxu0
  %v4869 = vadd.f32 0.0, %v4868
  %v4870 = vpop.f32.mrb[0].mxu0
  %v4871 = vpop.f32.mrb[0].mxu0
  %v4872 = vadd.f32 0.0, %v4871
  %v4873 = vpop.f32.mrb[0].mxu0
  %4874 = vmatprep.mubr.bf16.mxu0 0
  %4875 = vmatmul.mubr.bf16.gmra.mrb[0].mxu0 %v4826
  %v4876 = vpop.f32.mrb[0].mxu0
  %v4877 = vadd.f32 0.0, %v4876
  %v4878 = vpop.f32.mrb[0].mxu0
  %v4879 = vpop.f32.mrb[0].mxu0
  %v4880 = vadd.f32 0.0, %v4879
  %v4881 = vpop.f32.mrb[0].mxu0
  %4882 = vmatprep.mubr.bf16.mxu0 0
  %4883 = vmatmul.mubr.bf16.gmra.mrb[0].mxu0 %v4829
  %v4884 = vpop.f32.mrb[0].mxu0
  %v4885 = vadd.f32 0.0, %v4884
  %v4886 = vpop.f32.mrb[0].mxu0
  %v4887 = vpop.f32.mrb[0].mxu0
  %v4888 = vadd.f32 0.0, %v4887
  %v4889 = vpop.f32.mrb[0].mxu0
  %4890 = vmatprep.mubr.bf16.mxu0 0
  %4891 = vmatmul.mubr.bf16.gmra.mrb[0].mxu0 %v4832
  %v4892 = vpop.f32.mrb[0].mxu0
  %v4893 = vadd.f32 0.0, %v4892
  %v4894 = vpop.f32.mrb[0].mxu0
  %v4895 = vpop.f32.mrb[0].mxu0
  %v4896 = vadd.f32 0.0, %v4895
  %v4897 = vpop.f32.mrb[0].mxu0
  %4898 = vdwg.mxu0
  %v4899 = vadd.f32 %v4748, %v4869
  %v4900 = vadd.f32 %v4751, %v4872
  %v4901 = vadd.f32 %v4756, %v4877
  %v4902 = vadd.f32 %v4759, %v4880
  %v4903 = vadd.f32 %v4764, %v4885
  %v4904 = vadd.f32 %v4767, %v4888
  %v4905 = vadd.f32 %v4772, %v4893
  %v4906 = vadd.f32 %v4775, %v4896
  %v4907 = vld [vmem:[%s5 + $0x60] sm:$0xf]
  %v4908 = vld [vmem:[%s5 + $0x64] sm:$0xf]
  %v4909 = vld [vmem:[%s5 + $0x68] sm:$0xf]
  %v4910 = vld [vmem:[%s5 + $0x6c] sm:$0xf]
  %v4911 = vld [vmem:[%s5 + $0x70] sm:$0xf]
  %v4912 = vld [vmem:[%s5 + $0x74] sm:$0xf]
  %v4913 = vld [vmem:[%s5 + $0x78] sm:$0xf]
  %v4914 = vld [vmem:[%s5 + $0x7c] sm:$0xf]
  %v4915 = vunpack.c.l.b16 %v4332
  %v4916 = vpack.c.b16 %v4667, %v4666
  %v4917 = vpack.c.b16 %v4669, %v4668
  %v4918 = vpack.c.b16 %v4671, %v4670
  %v4919 = vpack.c.b16 %v4915, %v4672
  %v4928 = vunpack.c.l.b16 %v4907
  %v4929 = vunpack.c.l.b16 %v4908
  %v4930 = vunpack.c.l.b16 %v4909
  %v4931 = vunpack.c.l.b16 %v4910
  %v4932 = vunpack.c.l.b16 %v4911
  %v4933 = vunpack.c.l.b16 %v4912
  %v4934 = vunpack.c.l.b16 %v4913
  %v4935 = vunpack.c.l.b16 %v4914
  %v4936 = vpack.c.b16 %v4929, %v4928
  %v4937 = vpack.c.b16 %v4931, %v4930
  %v4938 = vpack.c.b16 %v4933, %v4932
  %v4939 = vpack.c.b16 %v4935, %v4934
  %v4945 = vsel %vm313, %v4916, 0
  %v4948 = vsel %vm313, %v4917, 0
  %v4951 = vsel %vm313, %v4918, 0
  %v4954 = vsel %vm313, %v4919, 0
  %4956 = vmatprep.subr.bf16.mxu0 0
  %4957 = vmatpush1.bf16.msra.mxu0 %v4936
  %4958 = vmatprep.subr.bf16.mxu0 0
  %4959 = vmatpush1.bf16.msra.mxu0 %v4937
  %4960 = vmatprep.subr.bf16.mxu0 0
  %4961 = vmatpush1.bf16.msra.mxu0 %v4938
  %4962 = vmatprep.subr.bf16.mxu0 0
  %4963 = vmatpush1.bf16.msra.mxu0 %v4939
  %4964 = vmatprep.subr.bf16.mxu0 0
  %4965 = vmatpush1.bf16.msra.mxu0 0
  %4966 = vmatprep.subr.bf16.mxu0 0
  %4967 = vmatpush1.bf16.msra.mxu0 0
  %4968 = vmatprep.subr.bf16.mxu0 0
  %4969 = vmatpush1.bf16.msra.mxu0 0
  %4970 = vmatprep.subr.bf16.mxu0 0
  %4971 = vmatpush1.bf16.msra.mxu0 0
  %4972 = vmatprep.subr.bf16.mxu0 0
  %4973 = vmatpush1.bf16.msra.mxu0 0
  %4974 = vmatprep.subr.bf16.mxu0 0
  %4975 = vmatpush1.bf16.msra.mxu0 0
  %4976 = vmatprep.subr.bf16.mxu0 0
  %4977 = vmatpush1.bf16.msra.mxu0 0
  %4978 = vmatprep.subr.bf16.mxu0 0
  %4979 = vmatpush1.bf16.msra.mxu0 0
  %4980 = vmatprep.subr.bf16.mxu0 0
  %4981 = vmatpush1.bf16.msra.mxu0 0
  %4982 = vmatprep.subr.bf16.mxu0 0
  %4983 = vmatpush1.bf16.msra.mxu0 0
  %4984 = vmatprep.subr.bf16.mxu0 0
  %4985 = vmatpush1.bf16.msra.mxu0 0
  %4986 = vmatprep.subr.bf16.mxu0 0
  %4987 = vmatpush1.bf16.msra.mxu0 0
  %4988 = vmatprep.mubr.bf16.mxu0 0
  %4989 = vmatmul.mubr.bf16.gmra.mrb[0].mxu0 %v4945
  %v4990 = vpop.f32.mrb[0].mxu0
  %v4991 = vadd.f32 0.0, %v4990
  %v4992 = vpop.f32.mrb[0].mxu0
  %v4993 = vpop.f32.mrb[0].mxu0
  %v4994 = vadd.f32 0.0, %v4993
  %v4995 = vpop.f32.mrb[0].mxu0
  %4996 = vmatprep.mubr.bf16.mxu0 0
  %4997 = vmatmul.mubr.bf16.gmra.mrb[0].mxu0 %v4948
  %v4998 = vpop.f32.mrb[0].mxu0
  %v4999 = vadd.f32 0.0, %v4998
  %v5000 = vpop.f32.mrb[0].mxu0
  %v5001 = vpop.f32.mrb[0].mxu0
  %v5002 = vadd.f32 0.0, %v5001
  %v5003 = vpop.f32.mrb[0].mxu0
  %5004 = vmatprep.mubr.bf16.mxu0 0
  %5005 = vmatmul.mubr.bf16.gmra.mrb[0].mxu0 %v4951
  %v5006 = vpop.f32.mrb[0].mxu0
  %v5007 = vadd.f32 0.0, %v5006
  %v5008 = vpop.f32.mrb[0].mxu0
  %v5009 = vpop.f32.mrb[0].mxu0
  %v5010 = vadd.f32 0.0, %v5009
  %v5011 = vpop.f32.mrb[0].mxu0
  %5012 = vmatprep.mubr.bf16.mxu0 0
  %5013 = vmatmul.mubr.bf16.gmra.mrb[0].mxu0 %v4954
  %v5014 = vpop.f32.mrb[0].mxu0
  %v5015 = vadd.f32 0.0, %v5014
  %v5016 = vpop.f32.mrb[0].mxu0
  %v5017 = vpop.f32.mrb[0].mxu0
  %v5018 = vadd.f32 0.0, %v5017
  %v5019 = vpop.f32.mrb[0].mxu0
  %5020 = vdwg.mxu0
  %v5021 = vadd.f32 %v4899, %v4991
  %v5022 = vadd.f32 %v4900, %v4994
  %v5023 = vadd.f32 %v4901, %v4999
  %v5024 = vadd.f32 %v4902, %v5002
  %v5025 = vadd.f32 %v4903, %v5007
  %v5026 = vadd.f32 %v4904, %v5010
  %v5027 = vadd.f32 %v4905, %v5015
  %v5028 = vadd.f32 %v4906, %v5018
  %v5029 = vld [vmem:[%s5 + $0x80] sm:$0xf]
  %v5030 = vld [vmem:[%s5 + $0x84] sm:$0xf]
  %v5031 = vld [vmem:[%s5 + $0x88] sm:$0xf]
  %v5032 = vld [vmem:[%s5 + $0x8c] sm:$0xf]
  %v5033 = vld [vmem:[%s5 + $0x90] sm:$0xf]
  %v5034 = vld [vmem:[%s5 + $0x94] sm:$0xf]
  %v5035 = vld [vmem:[%s5 + $0x98] sm:$0xf]
  %v5036 = vld [vmem:[%s5 + $0x9c] sm:$0xf]
  %v5037 = vunpack.c.l.b16 %v4509
  %v5038 = vpack.c.b16 %v4554, %v4553
  %v5039 = vpack.c.b16 %v4556, %v4555
  %v5040 = vpack.c.b16 %v4558, %v4557
  %v5041 = vpack.c.b16 %v5037, %v4559
  %v5050 = vunpack.c.l.b16 %v5029
  %v5051 = vunpack.c.l.b16 %v5030
  %v5052 = vunpack.c.l.b16 %v5031
  %v5053 = vunpack.c.l.b16 %v5032
  %v5054 = vunpack.c.l.b16 %v5033
  %v5055 = vunpack.c.l.b16 %v5034
  %v5056 = vunpack.c.l.b16 %v5035
  %v5057 = vunpack.c.l.b16 %v5036
  %v5058 = vpack.c.b16 %v5051, %v5050
  %v5059 = vpack.c.b16 %v5053, %v5052
  %v5060 = vpack.c.b16 %v5055, %v5054
  %v5061 = vpack.c.b16 %v5057, %v5056
  %v5067 = vsel %vm313, %v5038, 0
  %v5070 = vsel %vm313, %v5039, 0
  %v5073 = vsel %vm313, %v5040, 0
  %v5076 = vsel %vm313, %v5041, 0
  %5078 = vmatprep.subr.bf16.mxu0 0
  %5079 = vmatpush1.bf16.msra.mxu0 %v5058
  %5080 = vmatprep.subr.bf16.mxu0 0
  %5081 = vmatpush1.bf16.msra.mxu0 %v5059
  %5082 = vmatprep.subr.bf16.mxu0 0
  %5083 = vmatpush1.bf16.msra.mxu0 %v5060
  %5084 = vmatprep.subr.bf16.mxu0 0
  %5085 = vmatpush1.bf16.msra.mxu0 %v5061
  %5086 = vmatprep.subr.bf16.mxu0 0
  %5087 = vmatpush1.bf16.msra.mxu0 0
  %5088 = vmatprep.subr.bf16.mxu0 0
  %5089 = vmatpush1.bf16.msra.mxu0 0
  %5090 = vmatprep.subr.bf16.mxu0 0
  %5091 = vmatpush1.bf16.msra.mxu0 0
  %5092 = vmatprep.subr.bf16.mxu0 0
  %5093 = vmatpush1.bf16.msra.mxu0 0
  %5094 = vmatprep.subr.bf16.mxu0 0
  %5095 = vmatpush1.bf16.msra.mxu0 0
  %5096 = vmatprep.subr.bf16.mxu0 0
  %5097 = vmatpush1.bf16.msra.mxu0 0
  %5098 = vmatprep.subr.bf16.mxu0 0
  %5099 = vmatpush1.bf16.msra.mxu0 0
  %5100 = vmatprep.subr.bf16.mxu0 0
  %5101 = vmatpush1.bf16.msra.mxu0 0
  %5102 = vmatprep.subr.bf16.mxu0 0
  %5103 = vmatpush1.bf16.msra.mxu0 0
  %5104 = vmatprep.subr.bf16.mxu0 0
  %5105 = vmatpush1.bf16.msra.mxu0 0
  %5106 = vmatprep.subr.bf16.mxu0 0
  %5107 = vmatpush1.bf16.msra.mxu0 0
  %5108 = vmatprep.subr.bf16.mxu0 0
  %5109 = vmatpush1.bf16.msra.mxu0 0
  %5110 = vmatprep.mubr.bf16.mxu0 0
  %5111 = vmatmul.mubr.bf16.gmra.mrb[0].mxu0 %v5067
  %v5112 = vpop.f32.mrb[0].mxu0
  %v5113 = vadd.f32 0.0, %v5112
  %v5114 = vpop.f32.mrb[0].mxu0
  %v5115 = vpop.f32.mrb[0].mxu0
  %v5116 = vadd.f32 0.0, %v5115
  %v5117 = vpop.f32.mrb[0].mxu0
  %5118 = vmatprep.mubr.bf16.mxu0 0
  %5119 = vmatmul.mubr.bf16.gmra.mrb[0].mxu0 %v5070
  %v5120 = vpop.f32.mrb[0].mxu0
  %v5121 = vadd.f32 0.0, %v5120
  %v5122 = vpop.f32.mrb[0].mxu0
  %v5123 = vpop.f32.mrb[0].mxu0
  %v5124 = vadd.f32 0.0, %v5123
  %v5125 = vpop.f32.mrb[0].mxu0
  %5126 = vmatprep.mubr.bf16.mxu0 0
  %5127 = vmatmul.mubr.bf16.gmra.mrb[0].mxu0 %v5073
  %v5128 = vpop.f32.mrb[0].mxu0
  %v5129 = vadd.f32 0.0, %v5128
  %v5130 = vpop.f32.mrb[0].mxu0
  %v5131 = vpop.f32.mrb[0].mxu0
  %v5132 = vadd.f32 0.0, %v5131
  %v5133 = vpop.f32.mrb[0].mxu0
  %5134 = vmatprep.mubr.bf16.mxu0 0
  %5135 = vmatmul.mubr.bf16.gmra.mrb[0].mxu0 %v5076
  %v5136 = vpop.f32.mrb[0].mxu0
  %v5137 = vadd.f32 0.0, %v5136
  %v5138 = vpop.f32.mrb[0].mxu0
  %v5139 = vpop.f32.mrb[0].mxu0
  %v5140 = vadd.f32 0.0, %v5139
  %v5141 = vpop.f32.mrb[0].mxu0
  %5142 = vdwg.mxu0
  %v5143 = vadd.f32 %v5021, %v5113
  %v5144 = vadd.f32 %v5022, %v5116
  %v5145 = vadd.f32 %v5023, %v5121
  %v5146 = vadd.f32 %v5024, %v5124
  %v5147 = vadd.f32 %v5025, %v5129
  %v5148 = vadd.f32 %v5026, %v5132
  %v5149 = vadd.f32 %v5027, %v5137
  %v5150 = vadd.f32 %v5028, %v5140
  %v5151 = vld [vmem:[%s5 + $0xa0] sm:$0xf]
  %v5152 = vld [vmem:[%s5 + $0xa4] sm:$0xf]
  %v5153 = vld [vmem:[%s5 + $0xa8] sm:$0xf]
  %v5154 = vld [vmem:[%s5 + $0xac] sm:$0xf]
  %v5155 = vld [vmem:[%s5 + $0xb0] sm:$0xf]
  %v5156 = vld [vmem:[%s5 + $0xb4] sm:$0xf]
  %v5157 = vld [vmem:[%s5 + $0xb8] sm:$0xf]
  %v5158 = vld [vmem:[%s5 + $0xbc] sm:$0xf]
  %v5159 = vunpack.c.l.b16 %v4515
  %v5160 = vpack.c.b16 %v4788, %v4787
  %v5161 = vpack.c.b16 %v4790, %v4789
  %v5162 = vpack.c.b16 %v4792, %v4791
  %v5163 = vpack.c.b16 %v5159, %v4793
  %v5172 = vunpack.c.l.b16 %v5151
  %v5173 = vunpack.c.l.b16 %v5152
  %v5174 = vunpack.c.l.b16 %v5153
  %v5175 = vunpack.c.l.b16 %v5154
  %v5176 = vunpack.c.l.b16 %v5155
  %v5177 = vunpack.c.l.b16 %v5156
  %v5178 = vunpack.c.l.b16 %v5157
  %v5179 = vunpack.c.l.b16 %v5158
  %v5180 = vpack.c.b16 %v5173, %v5172
  %v5181 = vpack.c.b16 %v5175, %v5174
  %v5182 = vpack.c.b16 %v5177, %v5176
  %v5183 = vpack.c.b16 %v5179, %v5178
  %v5189 = vsel %vm313, %v5160, 0
  %v5192 = vsel %vm313, %v5161, 0
  %v5195 = vsel %vm313, %v5162, 0
  %v5198 = vsel %vm313, %v5163, 0
  %5200 = vmatprep.subr.bf16.mxu0 0
  %5201 = vmatpush1.bf16.msra.mxu0 %v5180
  %5202 = vmatprep.subr.bf16.mxu0 0
  %5203 = vmatpush1.bf16.msra.mxu0 %v5181
  %5204 = vmatprep.subr.bf16.mxu0 0
  %5205 = vmatpush1.bf16.msra.mxu0 %v5182
  %5206 = vmatprep.subr.bf16.mxu0 0
  %5207 = vmatpush1.bf16.msra.mxu0 %v5183
  %5208 = vmatprep.subr.bf16.mxu0 0
  %5209 = vmatpush1.bf16.msra.mxu0 0
  %5210 = vmatprep.subr.bf16.mxu0 0
  %5211 = vmatpush1.bf16.msra.mxu0 0
  %5212 = vmatprep.subr.bf16.mxu0 0
  %5213 = vmatpush1.bf16.msra.mxu0 0
  %5214 = vmatprep.subr.bf16.mxu0 0
  %5215 = vmatpush1.bf16.msra.mxu0 0
  %5216 = vmatprep.subr.bf16.mxu0 0
  %5217 = vmatpush1.bf16.msra.mxu0 0
  %5218 = vmatprep.subr.bf16.mxu0 0
  %5219 = vmatpush1.bf16.msra.mxu0 0
  %5220 = vmatprep.subr.bf16.mxu0 0
  %5221 = vmatpush1.bf16.msra.mxu0 0
  %5222 = vmatprep.subr.bf16.mxu0 0
  %5223 = vmatpush1.bf16.msra.mxu0 0
  %5224 = vmatprep.subr.bf16.mxu0 0
  %5225 = vmatpush1.bf16.msra.mxu0 0
  %5226 = vmatprep.subr.bf16.mxu0 0
  %5227 = vmatpush1.bf16.msra.mxu0 0
  %5228 = vmatprep.subr.bf16.mxu0 0
  %5229 = vmatpush1.bf16.msra.mxu0 0
  %5230 = vmatprep.subr.bf16.mxu0 0
  %5231 = vmatpush1.bf16.msra.mxu0 0
  %5232 = vmatprep.mubr.bf16.mxu0 0
  %5233 = vmatmul.mubr.bf16.gmra.mrb[0].mxu0 %v5189
  %v5234 = vpop.f32.mrb[0].mxu0
  %v5235 = vadd.f32 0.0, %v5234
  %v5236 = vpop.f32.mrb[0].mxu0
  %v5237 = vpop.f32.mrb[0].mxu0
  %v5238 = vadd.f32 0.0, %v5237
  %v5239 = vpop.f32.mrb[0].mxu0
  %5240 = vmatprep.mubr.bf16.mxu0 0
  %5241 = vmatmul.mubr.bf16.gmra.mrb[0].mxu0 %v5192
  %v5242 = vpop.f32.mrb[0].mxu0
  %v5243 = vadd.f32 0.0, %v5242
  %v5244 = vpop.f32.mrb[0].mxu0
  %v5245 = vpop.f32.mrb[0].mxu0
  %v5246 = vadd.f32 0.0, %v5245
  %v5247 = vpop.f32.mrb[0].mxu0
  %5248 = vmatprep.mubr.bf16.mxu0 0
  %5249 = vmatmul.mubr.bf16.gmra.mrb[0].mxu0 %v5195
  %v5250 = vpop.f32.mrb[0].mxu0
  %v5251 = vadd.f32 0.0, %v5250
  %v5252 = vpop.f32.mrb[0].mxu0
  %v5253 = vpop.f32.mrb[0].mxu0
  %v5254 = vadd.f32 0.0, %v5253
  %v5255 = vpop.f32.mrb[0].mxu0
  %5256 = vmatprep.mubr.bf16.mxu0 0
  %5257 = vmatmul.mubr.bf16.gmra.mrb[0].mxu0 %v5198
  %v5258 = vpop.f32.mrb[0].mxu0
  %v5259 = vadd.f32 0.0, %v5258
  %v5260 = vpop.f32.mrb[0].mxu0
  %v5261 = vpop.f32.mrb[0].mxu0
  %v5262 = vadd.f32 0.0, %v5261
  %v5263 = vpop.f32.mrb[0].mxu0
  %5264 = vdwg.mxu0
  %v5265 = vadd.f32 %v5143, %v5235
  %v5266 = vadd.f32 %v5144, %v5238
  %v5267 = vadd.f32 %v5145, %v5243
  %v5268 = vadd.f32 %v5146, %v5246
  %v5269 = vadd.f32 %v5147, %v5251
  %v5270 = vadd.f32 %v5148, %v5254
  %v5271 = vadd.f32 %v5149, %v5259
  %v5272 = vadd.f32 %v5150, %v5262
  %v5273 = vld [vmem:[%s5 + $0xc0] sm:$0xf]
  %v5274 = vld [vmem:[%s5 + $0xc4] sm:$0xf]
  %v5275 = vld [vmem:[%s5 + $0xc8] sm:$0xf]
  %v5276 = vld [vmem:[%s5 + $0xcc] sm:$0xf]
  %v5277 = vld [vmem:[%s5 + $0xd0] sm:$0xf]
  %v5278 = vld [vmem:[%s5 + $0xd4] sm:$0xf]
  %v5279 = vld [vmem:[%s5 + $0xd8] sm:$0xf]
  %v5280 = vld [vmem:[%s5 + $0xdc] sm:$0xf]
  %v5281 = vunpack.c.l.b16 %v4334
  %v5282 = vpack.c.b16 %v5281, %v4915
  %v5291 = vunpack.c.l.b16 %v5273
  %v5292 = vunpack.c.l.b16 %v5274
  %v5293 = vunpack.c.l.b16 %v5275
  %v5294 = vunpack.c.l.b16 %v5276
  %v5295 = vunpack.c.l.b16 %v5277
  %v5296 = vunpack.c.l.b16 %v5278
  %v5297 = vunpack.c.l.b16 %v5279
  %v5298 = vunpack.c.l.b16 %v5280
  %v5299 = vpack.c.b16 %v5292, %v5291
  %v5300 = vpack.c.b16 %v5294, %v5293
  %v5301 = vpack.c.b16 %v5296, %v5295
  %v5302 = vpack.c.b16 %v5298, %v5297
  %v5308 = vsel %vm313, %v5282, 0
  %5310 = vmatprep.subr.bf16.mxu0 0
  %5311 = vmatpush1.bf16.msra.mxu0 %v5299
  %5312 = vmatprep.subr.bf16.mxu0 0
  %5313 = vmatpush1.bf16.msra.mxu0 %v5300
  %5314 = vmatprep.subr.bf16.mxu0 0
  %5315 = vmatpush1.bf16.msra.mxu0 %v5301
  %5316 = vmatprep.subr.bf16.mxu0 0
  %5317 = vmatpush1.bf16.msra.mxu0 %v5302
  %5318 = vmatprep.subr.bf16.mxu0 0
  %5319 = vmatpush1.bf16.msra.mxu0 0
  %5320 = vmatprep.subr.bf16.mxu0 0
  %5321 = vmatpush1.bf16.msra.mxu0 0
  %5322 = vmatprep.subr.bf16.mxu0 0
  %5323 = vmatpush1.bf16.msra.mxu0 0
  %5324 = vmatprep.subr.bf16.mxu0 0
  %5325 = vmatpush1.bf16.msra.mxu0 0
  %5326 = vmatprep.subr.bf16.mxu0 0
  %5327 = vmatpush1.bf16.msra.mxu0 0
  %5328 = vmatprep.subr.bf16.mxu0 0
  %5329 = vmatpush1.bf16.msra.mxu0 0
  %5330 = vmatprep.subr.bf16.mxu0 0
  %5331 = vmatpush1.bf16.msra.mxu0 0
  %5332 = vmatprep.subr.bf16.mxu0 0
  %5333 = vmatpush1.bf16.msra.mxu0 0
  %5334 = vmatprep.subr.bf16.mxu0 0
  %5335 = vmatpush1.bf16.msra.mxu0 0
  %5336 = vmatprep.subr.bf16.mxu0 0
  %5337 = vmatpush1.bf16.msra.mxu0 0
  %5338 = vmatprep.subr.bf16.mxu0 0
  %5339 = vmatpush1.bf16.msra.mxu0 0
  %5340 = vmatprep.subr.bf16.mxu0 0
  %5341 = vmatpush1.bf16.msra.mxu0 0
  %5342 = vmatprep.mubr.bf16.mxu0 0
  %5343 = vmatmul.mubr.bf16.gmra.mrb[0].mxu0 %v4705
  %v5344 = vpop.f32.mrb[0].mxu0
  %v5345 = vadd.f32 0.0, %v5344
  %v5346 = vpop.f32.mrb[0].mxu0
  %v5347 = vpop.f32.mrb[0].mxu0
  %v5348 = vadd.f32 0.0, %v5347
  %v5349 = vpop.f32.mrb[0].mxu0
  %5350 = vmatprep.mubr.bf16.mxu0 0
  %5351 = vmatmul.mubr.bf16.gmra.mrb[0].mxu0 %v4708
  %v5352 = vpop.f32.mrb[0].mxu0
  %v5353 = vadd.f32 0.0, %v5352
  %v5354 = vpop.f32.mrb[0].mxu0
  %v5355 = vpop.f32.mrb[0].mxu0
  %v5356 = vadd.f32 0.0, %v5355
  %v5357 = vpop.f32.mrb[0].mxu0
  %5358 = vmatprep.mubr.bf16.mxu0 0
  %5359 = vmatmul.mubr.bf16.gmra.mrb[0].mxu0 %v4711
  %v5360 = vpop.f32.mrb[0].mxu0
  %v5361 = vadd.f32 0.0, %v5360
  %v5362 = vpop.f32.mrb[0].mxu0
  %v5363 = vpop.f32.mrb[0].mxu0
  %v5364 = vadd.f32 0.0, %v5363
  %v5365 = vpop.f32.mrb[0].mxu0
  %5366 = vmatprep.mubr.bf16.mxu0 0
  %5367 = vmatmul.mubr.bf16.gmra.mrb[0].mxu0 %v5308
  %v5368 = vpop.f32.mrb[0].mxu0
  %v5369 = vadd.f32 0.0, %v5368
  %v5370 = vpop.f32.mrb[0].mxu0
  %v5371 = vpop.f32.mrb[0].mxu0
  %v5372 = vadd.f32 0.0, %v5371
  %v5373 = vpop.f32.mrb[0].mxu0
  %5374 = vdwg.mxu0
  %v5375 = vadd.f32 %v5265, %v5345
  %v5376 = vadd.f32 %v5266, %v5348
  %v5377 = vadd.f32 %v5267, %v5353
  %v5378 = vadd.f32 %v5268, %v5356
  %v5379 = vadd.f32 %v5269, %v5361
  %v5380 = vadd.f32 %v5270, %v5364
  %v5381 = vadd.f32 %v5271, %v5369
  %v5382 = vadd.f32 %v5272, %v5372
  %v5383 = vld [vmem:[%s5 + $0xe0] sm:$0xf]
  %v5384 = vld [vmem:[%s5 + $0xe4] sm:$0xf]
  %v5385 = vld [vmem:[%s5 + $0xe8] sm:$0xf]
  %v5386 = vld [vmem:[%s5 + $0xec] sm:$0xf]
  %v5387 = vld [vmem:[%s5 + $0xf0] sm:$0xf]
  %v5388 = vld [vmem:[%s5 + $0xf4] sm:$0xf]
  %v5389 = vld [vmem:[%s5 + $0xf8] sm:$0xf]
  %v5390 = vld [vmem:[%s5 + $0xfc] sm:$0xf]
  %v5391 = vunpack.c.l.b16 %v4529
  %v5392 = vpack.c.b16 %v5391, %v5037
  %v5401 = vunpack.c.l.b16 %v5383
  %v5402 = vunpack.c.l.b16 %v5384
  %v5403 = vunpack.c.l.b16 %v5385
  %v5404 = vunpack.c.l.b16 %v5386
  %v5405 = vunpack.c.l.b16 %v5387
  %v5406 = vunpack.c.l.b16 %v5388
  %v5407 = vunpack.c.l.b16 %v5389
  %v5408 = vunpack.c.l.b16 %v5390
  %v5409 = vpack.c.b16 %v5402, %v5401
  %v5410 = vpack.c.b16 %v5404, %v5403
  %v5411 = vpack.c.b16 %v5406, %v5405
  %v5412 = vpack.c.b16 %v5408, %v5407
  %v5418 = vsel %vm313, %v5392, 0
  %5420 = vmatprep.subr.bf16.mxu0 0
  %5421 = vmatpush1.bf16.msra.mxu0 %v5409
  %5422 = vmatprep.subr.bf16.mxu0 0
  %5423 = vmatpush1.bf16.msra.mxu0 %v5410
  %5424 = vmatprep.subr.bf16.mxu0 0
  %5425 = vmatpush1.bf16.msra.mxu0 %v5411
  %5426 = vmatprep.subr.bf16.mxu0 0
  %5427 = vmatpush1.bf16.msra.mxu0 %v5412
  %5428 = vmatprep.subr.bf16.mxu0 0
  %5429 = vmatpush1.bf16.msra.mxu0 0
  %5430 = vmatprep.subr.bf16.mxu0 0
  %5431 = vmatpush1.bf16.msra.mxu0 0
  %5432 = vmatprep.subr.bf16.mxu0 0
  %5433 = vmatpush1.bf16.msra.mxu0 0
  %5434 = vmatprep.subr.bf16.mxu0 0
  %5435 = vmatpush1.bf16.msra.mxu0 0
  %5436 = vmatprep.subr.bf16.mxu0 0
  %5437 = vmatpush1.bf16.msra.mxu0 0
  %5438 = vmatprep.subr.bf16.mxu0 0
  %5439 = vmatpush1.bf16.msra.mxu0 0
  %5440 = vmatprep.subr.bf16.mxu0 0
  %5441 = vmatpush1.bf16.msra.mxu0 0
  %5442 = vmatprep.subr.bf16.mxu0 0
  %5443 = vmatpush1.bf16.msra.mxu0 0
  %5444 = vmatprep.subr.bf16.mxu0 0
  %5445 = vmatpush1.bf16.msra.mxu0 0
  %5446 = vmatprep.subr.bf16.mxu0 0
  %5447 = vmatpush1.bf16.msra.mxu0 0
  %5448 = vmatprep.subr.bf16.mxu0 0
  %5449 = vmatpush1.bf16.msra.mxu0 0
  %5450 = vmatprep.subr.bf16.mxu0 0
  %5451 = vmatpush1.bf16.msra.mxu0 0
  %5452 = vmatprep.mubr.bf16.mxu0 0
  %5453 = vmatmul.mubr.bf16.gmra.mrb[0].mxu0 %v4592
  %v5454 = vpop.f32.mrb[0].mxu0
  %v5455 = vadd.f32 0.0, %v5454
  %v5456 = vpop.f32.mrb[0].mxu0
  %v5457 = vpop.f32.mrb[0].mxu0
  %v5458 = vadd.f32 0.0, %v5457
  %v5459 = vpop.f32.mrb[0].mxu0
  %5460 = vmatprep.mubr.bf16.mxu0 0
  %5461 = vmatmul.mubr.bf16.gmra.mrb[0].mxu0 %v4595
  %v5462 = vpop.f32.mrb[0].mxu0
  %v5463 = vadd.f32 0.0, %v5462
  %v5464 = vpop.f32.mrb[0].mxu0
  %v5465 = vpop.f32.mrb[0].mxu0
  %v5466 = vadd.f32 0.0, %v5465
  %v5467 = vpop.f32.mrb[0].mxu0
  %5468 = vmatprep.mubr.bf16.mxu0 0
  %5469 = vmatmul.mubr.bf16.gmra.mrb[0].mxu0 %v4598
  %v5470 = vpop.f32.mrb[0].mxu0
  %v5471 = vadd.f32 0.0, %v5470
  %v5472 = vpop.f32.mrb[0].mxu0
  %v5473 = vpop.f32.mrb[0].mxu0
  %v5474 = vadd.f32 0.0, %v5473
  %v5475 = vpop.f32.mrb[0].mxu0
  %5476 = vmatprep.mubr.bf16.mxu0 0
  %5477 = vmatmul.mubr.bf16.gmra.mrb[0].mxu0 %v5418
  %v5478 = vpop.f32.mrb[0].mxu0
  %v5479 = vadd.f32 0.0, %v5478
  %v5480 = vpop.f32.mrb[0].mxu0
  %v5481 = vpop.f32.mrb[0].mxu0
  %v5482 = vadd.f32 0.0, %v5481
  %v5483 = vpop.f32.mrb[0].mxu0
  %5484 = vdwg.mxu0
  %v5485 = vadd.f32 %v5375, %v5455
  %v5486 = vadd.f32 %v5376, %v5458
  %v5487 = vadd.f32 %v5377, %v5463
  %v5488 = vadd.f32 %v5378, %v5466
  %v5489 = vadd.f32 %v5379, %v5471
  %v5490 = vadd.f32 %v5380, %v5474
  %v5491 = vadd.f32 %v5381, %v5479
  %v5492 = vadd.f32 %v5382, %v5482
  %v5493 = vld [vmem:[%s5 + $0x100] sm:$0xf]
  %v5494 = vld [vmem:[%s5 + $0x104] sm:$0xf]
  %v5495 = vld [vmem:[%s5 + $0x108] sm:$0xf]
  %v5496 = vld [vmem:[%s5 + $0x10c] sm:$0xf]
  %v5497 = vld [vmem:[%s5 + $0x110] sm:$0xf]
  %v5498 = vld [vmem:[%s5 + $0x114] sm:$0xf]
  %v5499 = vld [vmem:[%s5 + $0x118] sm:$0xf]
  %v5500 = vld [vmem:[%s5 + $0x11c] sm:$0xf]
  %v5501 = vunpack.c.l.b16 %v4535
  %v5502 = vpack.c.b16 %v5501, %v5159
  %v5511 = vunpack.c.l.b16 %v5493
  %v5512 = vunpack.c.l.b16 %v5494
  %v5513 = vunpack.c.l.b16 %v5495
  %v5514 = vunpack.c.l.b16 %v5496
  %v5515 = vunpack.c.l.b16 %v5497
  %v5516 = vunpack.c.l.b16 %v5498
  %v5517 = vunpack.c.l.b16 %v5499
  %v5518 = vunpack.c.l.b16 %v5500
  %v5519 = vpack.c.b16 %v5512, %v5511
  %v5520 = vpack.c.b16 %v5514, %v5513
  %v5521 = vpack.c.b16 %v5516, %v5515
  %v5522 = vpack.c.b16 %v5518, %v5517
  %v5528 = vsel %vm313, %v5502, 0
  %5530 = vmatprep.subr.bf16.mxu0 0
  %5531 = vmatpush1.bf16.msra.mxu0 %v5519
  %5532 = vmatprep.subr.bf16.mxu0 0
  %5533 = vmatpush1.bf16.msra.mxu0 %v5520
  %5534 = vmatprep.subr.bf16.mxu0 0
  %5535 = vmatpush1.bf16.msra.mxu0 %v5521
  %5536 = vmatprep.subr.bf16.mxu0 0
  %5537 = vmatpush1.bf16.msra.mxu0 %v5522
  %5538 = vmatprep.subr.bf16.mxu0 0
  %5539 = vmatpush1.bf16.msra.mxu0 0
  %5540 = vmatprep.subr.bf16.mxu0 0
  %5541 = vmatpush1.bf16.msra.mxu0 0
  %5542 = vmatprep.subr.bf16.mxu0 0
  %5543 = vmatpush1.bf16.msra.mxu0 0
  %5544 = vmatprep.subr.bf16.mxu0 0
  %5545 = vmatpush1.bf16.msra.mxu0 0
  %5546 = vmatprep.subr.bf16.mxu0 0
  %5547 = vmatpush1.bf16.msra.mxu0 0
  %5548 = vmatprep.subr.bf16.mxu0 0
  %5549 = vmatpush1.bf16.msra.mxu0 0
  %5550 = vmatprep.subr.bf16.mxu0 0
  %5551 = vmatpush1.bf16.msra.mxu0 0
  %5552 = vmatprep.subr.bf16.mxu0 0
  %5553 = vmatpush1.bf16.msra.mxu0 0
  %5554 = vmatprep.subr.bf16.mxu0 0
  %5555 = vmatpush1.bf16.msra.mxu0 0
  %5556 = vmatprep.subr.bf16.mxu0 0
  %5557 = vmatpush1.bf16.msra.mxu0 0
  %5558 = vmatprep.subr.bf16.mxu0 0
  %5559 = vmatpush1.bf16.msra.mxu0 0
  %5560 = vmatprep.subr.bf16.mxu0 0
  %5561 = vmatpush1.bf16.msra.mxu0 0
  %5562 = vmatprep.mubr.bf16.mxu0 0
  %5563 = vmatmul.mubr.bf16.gmra.mrb[0].mxu0 %v4826
  %v5564 = vpop.f32.mrb[0].mxu0
  %v5565 = vadd.f32 0.0, %v5564
  %v5566 = vpop.f32.mrb[0].mxu0
  %v5567 = vpop.f32.mrb[0].mxu0
  %v5568 = vadd.f32 0.0, %v5567
  %v5569 = vpop.f32.mrb[0].mxu0
  %5570 = vmatprep.mubr.bf16.mxu0 0
  %5571 = vmatmul.mubr.bf16.gmra.mrb[0].mxu0 %v4829
  %v5572 = vpop.f32.mrb[0].mxu0
  %v5573 = vadd.f32 0.0, %v5572
  %v5574 = vpop.f32.mrb[0].mxu0
  %v5575 = vpop.f32.mrb[0].mxu0
  %v5576 = vadd.f32 0.0, %v5575
  %v5577 = vpop.f32.mrb[0].mxu0
  %5578 = vmatprep.mubr.bf16.mxu0 0
  %5579 = vmatmul.mubr.bf16.gmra.mrb[0].mxu0 %v4832
  %v5580 = vpop.f32.mrb[0].mxu0
  %v5581 = vadd.f32 0.0, %v5580
  %v5582 = vpop.f32.mrb[0].mxu0
  %v5583 = vpop.f32.mrb[0].mxu0
  %v5584 = vadd.f32 0.0, %v5583
  %v5585 = vpop.f32.mrb[0].mxu0
  %5586 = vmatprep.mubr.bf16.mxu0 0
  %5587 = vmatmul.mubr.bf16.gmra.mrb[0].mxu0 %v5528
  %v5588 = vpop.f32.mrb[0].mxu0
  %v5589 = vadd.f32 0.0, %v5588
  %v5590 = vpop.f32.mrb[0].mxu0
  %v5591 = vpop.f32.mrb[0].mxu0
  %v5592 = vadd.f32 0.0, %v5591
  %v5593 = vpop.f32.mrb[0].mxu0
  %5594 = vdwg.mxu0
  %v5595 = vadd.f32 %v5485, %v5565
  %v5596 = vadd.f32 %v5486, %v5568
  %v5597 = vadd.f32 %v5487, %v5573
  %v5598 = vadd.f32 %v5488, %v5576
  %v5599 = vadd.f32 %v5489, %v5581
  %v5600 = vadd.f32 %v5490, %v5584
  %v5601 = vadd.f32 %v5491, %v5589
  %v5602 = vadd.f32 %v5492, %v5592
  %v5603 = vld [vmem:[%s6] sm:$0x1]
  %v5605 = vlaneseq
  %v5606 = vshrl.u32 %v5605, 7
  %v5607 = vsub.s32 0, %v5606
  %v5608 = vrot.slane %v5603, %v5607
  %v5610 = vadd.f32 %v5595, %v5608
  %v5611 = vadd.f32 %v5596, %v5608
  %v5612 = vadd.f32 %v5597, %v5608
  %v5613 = vadd.f32 %v5598, %v5608
  %v5614 = vadd.f32 %v5599, %v5608
  %v5615 = vadd.f32 %v5600, %v5608
  %v5616 = vadd.f32 %v5601, %v5608
  %v5617 = vadd.f32 %v5602, %v5608
  %s5618 = scalar_lea.vmem %s9, 64
  %5619 = vst.msk [vmem:[%s5618] sm:$0xff] %vm1344, %v5610
  %5620 = vst.msk [vmem:[%s5618 + $0x8] sm:$0xff] %vm1344, %v5611
  %5621 = vst.msk [vmem:[%s5618 + $0x10] sm:$0xff] %vm1344, %v5612
  %5622 = vst.msk [vmem:[%s5618 + $0x18] sm:$0xff] %vm1344, %v5613
  %5623 = vst.msk [vmem:[%s5618 + $0x20] sm:$0xff] %vm1344, %v5614
  %5624 = vst.msk [vmem:[%s5618 + $0x28] sm:$0xff] %vm1344, %v5615
  %5625 = vst.msk [vmem:[%s5618 + $0x30] sm:$0xff] %vm1344, %v5616
  %5626 = vst.msk [vmem:[%s5618 + $0x38] sm:$0xff] %vm1344, %v5617
  %s5627 = scalar_lea.vmem %s0, 256
  %v5628 = vld [vmem:[%s5627] sm:$0xf]
  %v5629 = vld [vmem:[%s5627 + $0x4] sm:$0xf]
  %v5630 = vld [vmem:[%s5627 + $0x8] sm:$0xf]
  %v5631 = vld [vmem:[%s5627 + $0xc] sm:$0xf]
  %v5632 = vld [vmem:[%s5627 + $0x10] sm:$0xf]
  %v5633 = vld [vmem:[%s5627 + $0x14] sm:$0xf]
  %v5634 = vld [vmem:[%s5627 + $0x18] sm:$0xf]
  %v5635 = vld [vmem:[%s5627 + $0x1c] sm:$0xf]
  %v5636 = vld [vmem:[%s5627 + $0x20] sm:$0xf]
  %v5637 = vld [vmem:[%s5627 + $0x24] sm:$0xf]
  %v5638 = vld [vmem:[%s5627 + $0x28] sm:$0xf]
  %v5639 = vld [vmem:[%s5627 + $0x2c] sm:$0xf]
  %v5640 = vld [vmem:[%s5627 + $0x30] sm:$0xf]
  %v5641 = vld [vmem:[%s5627 + $0x34] sm:$0xf]
  %v5642 = vld [vmem:[%s5627 + $0x38] sm:$0xf]
  %v5643 = vld [vmem:[%s5627 + $0x3c] sm:$0xf]
  %v5644 = vld [vmem:[%s5627 + $0x40] sm:$0xf]
  %v5645 = vld [vmem:[%s5627 + $0x44] sm:$0xf]
  %v5646 = vld [vmem:[%s5627 + $0x48] sm:$0xf]
  %v5647 = vld [vmem:[%s5627 + $0x4c] sm:$0xf]
  %v5648 = vld [vmem:[%s5627 + $0x50] sm:$0xf]
  %v5649 = vld [vmem:[%s5627 + $0x54] sm:$0xf]
  %v5650 = vld [vmem:[%s5627 + $0x58] sm:$0xf]
  %v5651 = vld [vmem:[%s5627 + $0x5c] sm:$0xf]
  %v5652 = vld [vmem:[%s5627 + $0x60] sm:$0xf]
  %v5653 = vld [vmem:[%s5627 + $0x64] sm:$0xf]
  %v5654 = vld [vmem:[%s5627 + $0x68] sm:$0xf]
  %v5655 = vld [vmem:[%s5627 + $0x6c] sm:$0xf]
  %v5656 = vld [vmem:[%s5627 + $0x70] sm:$0xf]
  %v5657 = vld [vmem:[%s5627 + $0x74] sm:$0xf]
  %v5658 = vld [vmem:[%s5627 + $0x78] sm:$0xf]
  %v5659 = vld [vmem:[%s5627 + $0x7c] sm:$0xf]
  %v5660 = vld [vmem:[%s5627 + $0x80] sm:$0xf]
  %v5661 = vld [vmem:[%s5627 + $0x84] sm:$0xf]
  %v5662 = vld [vmem:[%s5627 + $0x88] sm:$0xf]
  %v5663 = vld [vmem:[%s5627 + $0x8c] sm:$0xf]
  %v5664 = vld [vmem:[%s5627 + $0x90] sm:$0xf]
  %v5665 = vld [vmem:[%s5627 + $0x94] sm:$0xf]
  %v5666 = vld [vmem:[%s5627 + $0x98] sm:$0xf]
  %v5667 = vld [vmem:[%s5627 + $0x9c] sm:$0xf]
  %v5668 = vld [vmem:[%s5627 + $0xa0] sm:$0xf]
  %v5669 = vld [vmem:[%s5627 + $0xa4] sm:$0xf]
  %v5670 = vld [vmem:[%s5627 + $0xa8] sm:$0xf]
  %v5671 = vld [vmem:[%s5627 + $0xac] sm:$0xf]
  %v5672 = vld [vmem:[%s5627 + $0xb0] sm:$0xf]
  %v5673 = vld [vmem:[%s5627 + $0xb4] sm:$0xf]
  %v5674 = vld [vmem:[%s5627 + $0xb8] sm:$0xf]
  %v5675 = vld [vmem:[%s5627 + $0xbc] sm:$0xf]
  %v5676 = vld [vmem:[%s5627 + $0xc0] sm:$0xf]
  %v5677 = vld [vmem:[%s5627 + $0xc4] sm:$0xf]
  %v5678 = vld [vmem:[%s5627 + $0xc8] sm:$0xf]
  %v5679 = vld [vmem:[%s5627 + $0xcc] sm:$0xf]
  %v5680 = vld [vmem:[%s5627 + $0xd0] sm:$0xf]
  %v5681 = vld [vmem:[%s5627 + $0xd4] sm:$0xf]
  %v5682 = vld [vmem:[%s5627 + $0xd8] sm:$0xf]
  %v5683 = vld [vmem:[%s5627 + $0xdc] sm:$0xf]
  %v5684 = vld [vmem:[%s5627 + $0xe0] sm:$0xf]
  %v5685 = vld [vmem:[%s5627 + $0xe4] sm:$0xf]
  %v5686 = vld [vmem:[%s5627 + $0xe8] sm:$0xf]
  %v5687 = vld [vmem:[%s5627 + $0xec] sm:$0xf]
  %v5688 = vld [vmem:[%s5627 + $0xf0] sm:$0xf]
  %v5689 = vld [vmem:[%s5627 + $0xf4] sm:$0xf]
  %v5690 = vld [vmem:[%s5627 + $0xf8] sm:$0xf]
  %v5691 = vld [vmem:[%s5627 + $0xfc] sm:$0xf]
  %s5692 = scalar_lea.vmem %s1, 256
  %v5693 = vld [vmem:[%s5692] sm:$0xf]
  %v5694 = vld [vmem:[%s5692 + $0x4] sm:$0xf]
  %v5695 = vld [vmem:[%s5692 + $0x8] sm:$0xf]
  %v5696 = vld [vmem:[%s5692 + $0xc] sm:$0xf]
  %v5697 = vld [vmem:[%s5692 + $0x10] sm:$0xf]
  %v5698 = vld [vmem:[%s5692 + $0x14] sm:$0xf]
  %v5699 = vld [vmem:[%s5692 + $0x18] sm:$0xf]
  %v5700 = vld [vmem:[%s5692 + $0x1c] sm:$0xf]
  %v5701 = vld [vmem:[%s5692 + $0x20] sm:$0xf]
  %v5702 = vld [vmem:[%s5692 + $0x24] sm:$0xf]
  %v5703 = vld [vmem:[%s5692 + $0x28] sm:$0xf]
  %v5704 = vld [vmem:[%s5692 + $0x2c] sm:$0xf]
  %v5705 = vld [vmem:[%s5692 + $0x30] sm:$0xf]
  %v5706 = vld [vmem:[%s5692 + $0x34] sm:$0xf]
  %v5707 = vld [vmem:[%s5692 + $0x38] sm:$0xf]
  %v5708 = vld [vmem:[%s5692 + $0x3c] sm:$0xf]
  %v5709 = vld [vmem:[%s5692 + $0x40] sm:$0xf]
  %v5710 = vld [vmem:[%s5692 + $0x44] sm:$0xf]
  %v5711 = vld [vmem:[%s5692 + $0x48] sm:$0xf]
  %v5712 = vld [vmem:[%s5692 + $0x4c] sm:$0xf]
  %v5713 = vld [vmem:[%s5692 + $0x50] sm:$0xf]
  %v5714 = vld [vmem:[%s5692 + $0x54] sm:$0xf]
  %v5715 = vld [vmem:[%s5692 + $0x58] sm:$0xf]
  %v5716 = vld [vmem:[%s5692 + $0x5c] sm:$0xf]
  %v5717 = vld [vmem:[%s5692 + $0x60] sm:$0xf]
  %v5718 = vld [vmem:[%s5692 + $0x64] sm:$0xf]
  %v5719 = vld [vmem:[%s5692 + $0x68] sm:$0xf]
  %v5720 = vld [vmem:[%s5692 + $0x6c] sm:$0xf]
  %v5721 = vld [vmem:[%s5692 + $0x70] sm:$0xf]
  %v5722 = vld [vmem:[%s5692 + $0x74] sm:$0xf]
  %v5723 = vld [vmem:[%s5692 + $0x78] sm:$0xf]
  %v5724 = vld [vmem:[%s5692 + $0x7c] sm:$0xf]
  %v5725 = vld [vmem:[%s5692 + $0x80] sm:$0xf]
  %v5726 = vld [vmem:[%s5692 + $0x84] sm:$0xf]
  %v5727 = vld [vmem:[%s5692 + $0x88] sm:$0xf]
  %v5728 = vld [vmem:[%s5692 + $0x8c] sm:$0xf]
  %v5729 = vld [vmem:[%s5692 + $0x90] sm:$0xf]
  %v5730 = vld [vmem:[%s5692 + $0x94] sm:$0xf]
  %v5731 = vld [vmem:[%s5692 + $0x98] sm:$0xf]
  %v5732 = vld [vmem:[%s5692 + $0x9c] sm:$0xf]
  %v5733 = vld [vmem:[%s5692 + $0xa0] sm:$0xf]
  %v5734 = vld [vmem:[%s5692 + $0xa4] sm:$0xf]
  %v5735 = vld [vmem:[%s5692 + $0xa8] sm:$0xf]
  %v5736 = vld [vmem:[%s5692 + $0xac] sm:$0xf]
  %v5737 = vld [vmem:[%s5692 + $0xb0] sm:$0xf]
  %v5738 = vld [vmem:[%s5692 + $0xb4] sm:$0xf]
  %v5739 = vld [vmem:[%s5692 + $0xb8] sm:$0xf]
  %v5740 = vld [vmem:[%s5692 + $0xbc] sm:$0xf]
  %v5741 = vld [vmem:[%s5692 + $0xc0] sm:$0xf]
  %v5742 = vld [vmem:[%s5692 + $0xc4] sm:$0xf]
  %v5743 = vld [vmem:[%s5692 + $0xc8] sm:$0xf]
  %v5744 = vld [vmem:[%s5692 + $0xcc] sm:$0xf]
  %v5745 = vld [vmem:[%s5692 + $0xd0] sm:$0xf]
  %v5746 = vld [vmem:[%s5692 + $0xd4] sm:$0xf]
  %v5747 = vld [vmem:[%s5692 + $0xd8] sm:$0xf]
  %v5748 = vld [vmem:[%s5692 + $0xdc] sm:$0xf]
  %v5749 = vld [vmem:[%s5692 + $0xe0] sm:$0xf]
  %v5750 = vld [vmem:[%s5692 + $0xe4] sm:$0xf]
  %v5751 = vld [vmem:[%s5692 + $0xe8] sm:$0xf]
  %v5752 = vld [vmem:[%s5692 + $0xec] sm:$0xf]
  %v5753 = vld [vmem:[%s5692 + $0xf0] sm:$0xf]
  %v5754 = vld [vmem:[%s5692 + $0xf4] sm:$0xf]
  %v5755 = vld [vmem:[%s5692 + $0xf8] sm:$0xf]
  %v5756 = vld [vmem:[%s5692 + $0xfc] sm:$0xf]
  %s5757 = scalar_lea.vmem %s2, 256
  %v5758 = vld [vmem:[%s5757] sm:$0xf]
  %v5759 = vld [vmem:[%s5757 + $0x4] sm:$0xf]
  %v5760 = vld [vmem:[%s5757 + $0x8] sm:$0xf]
  %v5761 = vld [vmem:[%s5757 + $0xc] sm:$0xf]
  %v5762 = vld [vmem:[%s5757 + $0x10] sm:$0xf]
  %v5763 = vld [vmem:[%s5757 + $0x14] sm:$0xf]
  %v5764 = vld [vmem:[%s5757 + $0x18] sm:$0xf]
  %v5765 = vld [vmem:[%s5757 + $0x1c] sm:$0xf]
  %v5766 = vld [vmem:[%s5757 + $0x20] sm:$0xf]
  %v5767 = vld [vmem:[%s5757 + $0x24] sm:$0xf]
  %v5768 = vld [vmem:[%s5757 + $0x28] sm:$0xf]
  %v5769 = vld [vmem:[%s5757 + $0x2c] sm:$0xf]
  %v5770 = vld [vmem:[%s5757 + $0x30] sm:$0xf]
  %v5771 = vld [vmem:[%s5757 + $0x34] sm:$0xf]
  %v5772 = vld [vmem:[%s5757 + $0x38] sm:$0xf]
  %v5773 = vld [vmem:[%s5757 + $0x3c] sm:$0xf]
  %v5774 = vld [vmem:[%s5757 + $0x40] sm:$0xf]
  %v5775 = vld [vmem:[%s5757 + $0x44] sm:$0xf]
  %v5776 = vld [vmem:[%s5757 + $0x48] sm:$0xf]
  %v5777 = vld [vmem:[%s5757 + $0x4c] sm:$0xf]
  %v5778 = vld [vmem:[%s5757 + $0x50] sm:$0xf]
  %v5779 = vld [vmem:[%s5757 + $0x54] sm:$0xf]
  %v5780 = vld [vmem:[%s5757 + $0x58] sm:$0xf]
  %v5781 = vld [vmem:[%s5757 + $0x5c] sm:$0xf]
  %v5782 = vld [vmem:[%s5757 + $0x60] sm:$0xf]
  %v5783 = vld [vmem:[%s5757 + $0x64] sm:$0xf]
  %v5784 = vld [vmem:[%s5757 + $0x68] sm:$0xf]
  %v5785 = vld [vmem:[%s5757 + $0x6c] sm:$0xf]
  %v5786 = vld [vmem:[%s5757 + $0x70] sm:$0xf]
  %v5787 = vld [vmem:[%s5757 + $0x74] sm:$0xf]
  %v5788 = vld [vmem:[%s5757 + $0x78] sm:$0xf]
  %v5789 = vld [vmem:[%s5757 + $0x7c] sm:$0xf]
  %v5790 = vld [vmem:[%s5757 + $0x80] sm:$0xf]
  %v5791 = vld [vmem:[%s5757 + $0x84] sm:$0xf]
  %v5792 = vld [vmem:[%s5757 + $0x88] sm:$0xf]
  %v5793 = vld [vmem:[%s5757 + $0x8c] sm:$0xf]
  %v5794 = vld [vmem:[%s5757 + $0x90] sm:$0xf]
  %v5795 = vld [vmem:[%s5757 + $0x94] sm:$0xf]
  %v5796 = vld [vmem:[%s5757 + $0x98] sm:$0xf]
  %v5797 = vld [vmem:[%s5757 + $0x9c] sm:$0xf]
  %v5798 = vld [vmem:[%s5757 + $0xa0] sm:$0xf]
  %v5799 = vld [vmem:[%s5757 + $0xa4] sm:$0xf]
  %v5800 = vld [vmem:[%s5757 + $0xa8] sm:$0xf]
  %v5801 = vld [vmem:[%s5757 + $0xac] sm:$0xf]
  %v5802 = vld [vmem:[%s5757 + $0xb0] sm:$0xf]
  %v5803 = vld [vmem:[%s5757 + $0xb4] sm:$0xf]
  %v5804 = vld [vmem:[%s5757 + $0xb8] sm:$0xf]
  %v5805 = vld [vmem:[%s5757 + $0xbc] sm:$0xf]
  %v5806 = vld [vmem:[%s5757 + $0xc0] sm:$0xf]
  %v5807 = vld [vmem:[%s5757 + $0xc4] sm:$0xf]
  %v5808 = vld [vmem:[%s5757 + $0xc8] sm:$0xf]
  %v5809 = vld [vmem:[%s5757 + $0xcc] sm:$0xf]
  %v5810 = vld [vmem:[%s5757 + $0xd0] sm:$0xf]
  %v5811 = vld [vmem:[%s5757 + $0xd4] sm:$0xf]
  %v5812 = vld [vmem:[%s5757 + $0xd8] sm:$0xf]
  %v5813 = vld [vmem:[%s5757 + $0xdc] sm:$0xf]
  %v5814 = vld [vmem:[%s5757 + $0xe0] sm:$0xf]
  %v5815 = vld [vmem:[%s5757 + $0xe4] sm:$0xf]
  %v5816 = vld [vmem:[%s5757 + $0xe8] sm:$0xf]
  %v5817 = vld [vmem:[%s5757 + $0xec] sm:$0xf]
  %v5818 = vld [vmem:[%s5757 + $0xf0] sm:$0xf]
  %v5819 = vld [vmem:[%s5757 + $0xf4] sm:$0xf]
  %v5820 = vld [vmem:[%s5757 + $0xf8] sm:$0xf]
  %v5821 = vld [vmem:[%s5757 + $0xfc] sm:$0xf]
  %s5822 = scalar_lea.vmem %s3, 256
  %v5823 = vld [vmem:[%s5822] sm:$0xf]
  %v5824 = vld [vmem:[%s5822 + $0x4] sm:$0xf]
  %v5825 = vld [vmem:[%s5822 + $0x8] sm:$0xf]
  %v5826 = vld [vmem:[%s5822 + $0xc] sm:$0xf]
  %v5827 = vld [vmem:[%s5822 + $0x10] sm:$0xf]
  %v5828 = vld [vmem:[%s5822 + $0x14] sm:$0xf]
  %v5829 = vld [vmem:[%s5822 + $0x18] sm:$0xf]
  %v5830 = vld [vmem:[%s5822 + $0x1c] sm:$0xf]
  %v5831 = vld [vmem:[%s5822 + $0x20] sm:$0xf]
  %v5832 = vld [vmem:[%s5822 + $0x24] sm:$0xf]
  %v5833 = vld [vmem:[%s5822 + $0x28] sm:$0xf]
  %v5834 = vld [vmem:[%s5822 + $0x2c] sm:$0xf]
  %v5835 = vld [vmem:[%s5822 + $0x30] sm:$0xf]
  %v5836 = vld [vmem:[%s5822 + $0x34] sm:$0xf]
  %v5837 = vld [vmem:[%s5822 + $0x38] sm:$0xf]
  %v5838 = vld [vmem:[%s5822 + $0x3c] sm:$0xf]
  %v5839 = vld [vmem:[%s5822 + $0x40] sm:$0xf]
  %v5840 = vld [vmem:[%s5822 + $0x44] sm:$0xf]
  %v5841 = vld [vmem:[%s5822 + $0x48] sm:$0xf]
  %v5842 = vld [vmem:[%s5822 + $0x4c] sm:$0xf]
  %v5843 = vld [vmem:[%s5822 + $0x50] sm:$0xf]
  %v5844 = vld [vmem:[%s5822 + $0x54] sm:$0xf]
  %v5845 = vld [vmem:[%s5822 + $0x58] sm:$0xf]
  %v5846 = vld [vmem:[%s5822 + $0x5c] sm:$0xf]
  %v5847 = vld [vmem:[%s5822 + $0x60] sm:$0xf]
  %v5848 = vld [vmem:[%s5822 + $0x64] sm:$0xf]
  %v5849 = vld [vmem:[%s5822 + $0x68] sm:$0xf]
  %v5850 = vld [vmem:[%s5822 + $0x6c] sm:$0xf]
  %v5851 = vld [vmem:[%s5822 + $0x70] sm:$0xf]
  %v5852 = vld [vmem:[%s5822 + $0x74] sm:$0xf]
  %v5853 = vld [vmem:[%s5822 + $0x78] sm:$0xf]
  %v5854 = vld [vmem:[%s5822 + $0x7c] sm:$0xf]
  %v5855 = vld [vmem:[%s5822 + $0x80] sm:$0xf]
  %v5856 = vld [vmem:[%s5822 + $0x84] sm:$0xf]
  %v5857 = vld [vmem:[%s5822 + $0x88] sm:$0xf]
  %v5858 = vld [vmem:[%s5822 + $0x8c] sm:$0xf]
  %v5859 = vld [vmem:[%s5822 + $0x90] sm:$0xf]
  %v5860 = vld [vmem:[%s5822 + $0x94] sm:$0xf]
  %v5861 = vld [vmem:[%s5822 + $0x98] sm:$0xf]
  %v5862 = vld [vmem:[%s5822 + $0x9c] sm:$0xf]
  %v5863 = vld [vmem:[%s5822 + $0xa0] sm:$0xf]
  %v5864 = vld [vmem:[%s5822 + $0xa4] sm:$0xf]
  %v5865 = vld [vmem:[%s5822 + $0xa8] sm:$0xf]
  %v5866 = vld [vmem:[%s5822 + $0xac] sm:$0xf]
  %v5867 = vld [vmem:[%s5822 + $0xb0] sm:$0xf]
  %v5868 = vld [vmem:[%s5822 + $0xb4] sm:$0xf]
  %v5869 = vld [vmem:[%s5822 + $0xb8] sm:$0xf]
  %v5870 = vld [vmem:[%s5822 + $0xbc] sm:$0xf]
  %v5871 = vld [vmem:[%s5822 + $0xc0] sm:$0xf]
  %v5872 = vld [vmem:[%s5822 + $0xc4] sm:$0xf]
  %v5873 = vld [vmem:[%s5822 + $0xc8] sm:$0xf]
  %v5874 = vld [vmem:[%s5822 + $0xcc] sm:$0xf]
  %v5875 = vld [vmem:[%s5822 + $0xd0] sm:$0xf]
  %v5876 = vld [vmem:[%s5822 + $0xd4] sm:$0xf]
  %v5877 = vld [vmem:[%s5822 + $0xd8] sm:$0xf]
  %v5878 = vld [vmem:[%s5822 + $0xdc] sm:$0xf]
  %v5879 = vld [vmem:[%s5822 + $0xe0] sm:$0xf]
  %v5880 = vld [vmem:[%s5822 + $0xe4] sm:$0xf]
  %v5881 = vld [vmem:[%s5822 + $0xe8] sm:$0xf]
  %v5882 = vld [vmem:[%s5822 + $0xec] sm:$0xf]
  %v5883 = vld [vmem:[%s5822 + $0xf0] sm:$0xf]
  %v5884 = vld [vmem:[%s5822 + $0xf4] sm:$0xf]
  %v5885 = vld [vmem:[%s5822 + $0xf8] sm:$0xf]
  %v5886 = vld [vmem:[%s5822 + $0xfc] sm:$0xf]
  %v5887 = vunpack.c.l.bf16 %v5823
  %v5888 = vunpack.c.l.bf16 %v5824
  %v5889 = vunpack.c.l.bf16 %v5825
  %v5890 = vunpack.c.l.bf16 %v5826
  %v5891 = vunpack.c.l.bf16 %v5827
  %v5892 = vunpack.c.l.bf16 %v5828
  %v5893 = vunpack.c.l.bf16 %v5829
  %v5894 = vunpack.c.l.bf16 %v5830
  %v5895 = vunpack.c.l.bf16 %v5831
  %v5896 = vunpack.c.l.bf16 %v5832
  %v5897 = vunpack.c.l.bf16 %v5833
  %v5898 = vunpack.c.l.bf16 %v5834
  %v5899 = vunpack.c.l.bf16 %v5835
  %v5900 = vunpack.c.l.bf16 %v5836
  %v5901 = vunpack.c.l.bf16 %v5837
  %v5902 = vunpack.c.l.bf16 %v5838
  %v5903 = vunpack.c.l.bf16 %v5839
  %v5904 = vunpack.c.l.bf16 %v5840
  %v5905 = vunpack.c.l.bf16 %v5841
  %v5906 = vunpack.c.l.bf16 %v5842
  %v5907 = vunpack.c.l.bf16 %v5843
  %v5908 = vunpack.c.l.bf16 %v5844
  %v5909 = vunpack.c.l.bf16 %v5845
  %v5910 = vunpack.c.l.bf16 %v5846
  %v5911 = vunpack.c.l.bf16 %v5847
  %v5912 = vunpack.c.l.bf16 %v5848
  %v5913 = vunpack.c.l.bf16 %v5849
  %v5914 = vunpack.c.l.bf16 %v5850
  %v5915 = vunpack.c.l.bf16 %v5851
  %v5916 = vunpack.c.l.bf16 %v5852
  %v5917 = vunpack.c.l.bf16 %v5853
  %v5918 = vunpack.c.l.bf16 %v5854
  %v5919 = vunpack.c.l.bf16 %v5855
  %v5920 = vunpack.c.l.bf16 %v5856
  %v5921 = vunpack.c.l.bf16 %v5857
  %v5922 = vunpack.c.l.bf16 %v5858
  %v5923 = vunpack.c.l.bf16 %v5859
  %v5924 = vunpack.c.l.bf16 %v5860
  %v5925 = vunpack.c.l.bf16 %v5861
  %v5926 = vunpack.c.l.bf16 %v5862
  %v5927 = vunpack.c.l.bf16 %v5863
  %v5928 = vunpack.c.l.bf16 %v5864
  %v5929 = vunpack.c.l.bf16 %v5865
  %v5930 = vunpack.c.l.bf16 %v5866
  %v5931 = vunpack.c.l.bf16 %v5867
  %v5932 = vunpack.c.l.bf16 %v5868
  %v5933 = vunpack.c.l.bf16 %v5869
  %v5934 = vunpack.c.l.bf16 %v5870
  %v5935 = vunpack.c.l.bf16 %v5871
  %v5936 = vunpack.c.l.bf16 %v5872
  %v5937 = vunpack.c.l.bf16 %v5873
  %v5938 = vunpack.c.l.bf16 %v5874
  %v5939 = vunpack.c.l.bf16 %v5875
  %v5940 = vunpack.c.l.bf16 %v5876
  %v5941 = vunpack.c.l.bf16 %v5877
  %v5942 = vunpack.c.l.bf16 %v5878
  %v5943 = vunpack.c.l.bf16 %v5879
  %v5944 = vunpack.c.l.bf16 %v5880
  %v5945 = vunpack.c.l.bf16 %v5881
  %v5946 = vunpack.c.l.bf16 %v5882
  %v5947 = vunpack.c.l.bf16 %v5883
  %v5948 = vunpack.c.l.bf16 %v5884
  %v5949 = vunpack.c.l.bf16 %v5885
  %v5950 = vunpack.c.l.bf16 %v5886
  %v5959 = vunpack.c.l.b16 %v5628
  %v5960 = vunpack.c.l.b16 %v5629
  %v5961 = vunpack.c.l.b16 %v5630
  %v5962 = vunpack.c.l.b16 %v5631
  %v5963 = vunpack.c.l.b16 %v5632
  %v5964 = vunpack.c.l.b16 %v5633
  %v5965 = vunpack.c.l.b16 %v5634
  %v5966 = vunpack.c.l.b16 %v5635
  %v5967 = vpack.c.b16 %v5960, %v5959
  %v5968 = vpack.c.b16 %v5962, %v5961
  %v5969 = vpack.c.b16 %v5964, %v5963
  %v5970 = vpack.c.b16 %v5966, %v5965
  %v5979 = vunpack.c.l.b16 %v5693
  %v5980 = vunpack.c.l.b16 %v5694
  %v5981 = vunpack.c.l.b16 %v5695
  %v5982 = vunpack.c.l.b16 %v5696
  %v5983 = vunpack.c.l.b16 %v5697
  %v5984 = vunpack.c.l.b16 %v5698
  %v5985 = vunpack.c.l.b16 %v5699
  %v5986 = vunpack.c.l.b16 %v5700
  %v5987 = vpack.c.b16 %v5980, %v5979
  %v5988 = vpack.c.b16 %v5982, %v5981
  %v5989 = vpack.c.b16 %v5984, %v5983
  %v5990 = vpack.c.b16 %v5986, %v5985
  %v5992 = vsel %vm1713, %v5967, 0
  %v5995 = vsel %vm1713, %v5968, 0
  %v5998 = vsel %vm1713, %v5969, 0
  %v6001 = vsel %vm1713, %v5970, 0
  %v6004 = vsel %vm1713, %v5987, 0
  %v6007 = vsel %vm1713, %v5988, 0
  %v6010 = vsel %vm1713, %v5989, 0
  %v6013 = vsel %vm1713, %v5990, 0
  %6015 = vmatprep.subr.bf16.mxu0 0
  %6016 = vmatpush1.bf16.xpose.msra.mxu0 %v6004
  %6017 = vmatprep.subr.bf16.mxu0 0
  %6018 = vmatpush1.bf16.xpose.msra.mxu0 %v6007
  %6019 = vmatprep.subr.bf16.mxu0 0
  %6020 = vmatpush1.bf16.xpose.msra.mxu0 %v6010
  %6021 = vmatprep.subr.bf16.mxu0 0
  %6022 = vmatpush1.bf16.xpose.msra.mxu0 %v6013
  %6023 = vmatprep.subr.bf16.mxu0 0
  %6024 = vmatpush1.bf16.xpose.msra.mxu0 0
  %6025 = vmatprep.subr.bf16.mxu0 0
  %6026 = vmatpush1.bf16.xpose.msra.mxu0 0
  %6027 = vmatprep.subr.bf16.mxu0 0
  %6028 = vmatpush1.bf16.xpose.msra.mxu0 0
  %6029 = vmatprep.subr.bf16.mxu0 0
  %6030 = vmatpush1.bf16.xpose.msra.mxu0 0
  %6031 = vmatprep.subr.bf16.mxu0 0
  %6032 = vmatpush1.bf16.xpose.msra.mxu0 0
  %6033 = vmatprep.subr.bf16.mxu0 0
  %6034 = vmatpush1.bf16.xpose.msra.mxu0 0
  %6035 = vmatprep.subr.bf16.mxu0 0
  %6036 = vmatpush1.bf16.xpose.msra.mxu0 0
  %6037 = vmatprep.subr.bf16.mxu0 0
  %6038 = vmatpush1.bf16.xpose.msra.mxu0 0
  %6039 = vmatprep.subr.bf16.mxu0 0
  %6040 = vmatpush1.bf16.xpose.msra.mxu0 0
  %6041 = vmatprep.subr.bf16.mxu0 0
  %6042 = vmatpush1.bf16.xpose.msra.mxu0 0
  %6043 = vmatprep.subr.bf16.mxu0 0
  %6044 = vmatpush1.bf16.xpose.msra.mxu0 0
  %6045 = vmatprep.subr.bf16.mxu0 0
  %6046 = vmatpush1.bf16.xpose.msra.mxu0 0
  %6047 = vmatprep.mubr.bf16.mxu0 0
  %6048 = vmatmul.mubr.bf16.gmra.mrb[0].mxu0 %v5992
  %v6049 = vpop.f32.mrb[0].mxu0
  %v6050 = vadd.f32 %v5887, %v6049
  %v6051 = vpop.f32.mrb[0].mxu0
  %v6052 = vpop.f32.mrb[0].mxu0
  %v6053 = vadd.f32 %v5888, %v6052
  %v6054 = vpop.f32.mrb[0].mxu0
  %6055 = vmatprep.mubr.bf16.mxu0 0
  %6056 = vmatmul.mubr.bf16.gmra.mrb[0].mxu0 %v5995
  %v6057 = vpop.f32.mrb[0].mxu0
  %v6058 = vadd.f32 %v5889, %v6057
  %v6059 = vpop.f32.mrb[0].mxu0
  %v6060 = vpop.f32.mrb[0].mxu0
  %v6061 = vadd.f32 %v5890, %v6060
  %v6062 = vpop.f32.mrb[0].mxu0
  %6063 = vmatprep.mubr.bf16.mxu0 0
  %6064 = vmatmul.mubr.bf16.gmra.mrb[0].mxu0 %v5998
  %v6065 = vpop.f32.mrb[0].mxu0
  %v6066 = vadd.f32 %v5891, %v6065
  %v6067 = vpop.f32.mrb[0].mxu0
  %v6068 = vpop.f32.mrb[0].mxu0
  %v6069 = vadd.f32 %v5892, %v6068
  %v6070 = vpop.f32.mrb[0].mxu0
  %6071 = vmatprep.mubr.bf16.mxu0 0
  %6072 = vmatmul.mubr.bf16.gmra.mrb[0].mxu0 %v6001
  %v6073 = vpop.f32.mrb[0].mxu0
  %v6074 = vadd.f32 %v5893, %v6073
  %v6075 = vpop.f32.mrb[0].mxu0
  %v6076 = vpop.f32.mrb[0].mxu0
  %v6077 = vadd.f32 %v5894, %v6076
  %v6078 = vpop.f32.mrb[0].mxu0
  %6079 = vdwg.mxu0
  %v6088 = vunpack.c.l.b16 %v5636
  %v6089 = vunpack.c.l.b16 %v5637
  %v6090 = vunpack.c.l.b16 %v5638
  %v6091 = vunpack.c.l.b16 %v5639
  %v6092 = vunpack.c.l.b16 %v5640
  %v6093 = vunpack.c.l.b16 %v5641
  %v6094 = vunpack.c.l.b16 %v5642
  %v6095 = vunpack.c.l.b16 %v5643
  %v6096 = vpack.c.b16 %v6089, %v6088
  %v6097 = vpack.c.b16 %v6091, %v6090
  %v6098 = vpack.c.b16 %v6093, %v6092
  %v6099 = vpack.c.b16 %v6095, %v6094
  %v6108 = vunpack.c.l.b16 %v5701
  %v6109 = vunpack.c.l.b16 %v5702
  %v6110 = vunpack.c.l.b16 %v5703
  %v6111 = vunpack.c.l.b16 %v5704
  %v6112 = vunpack.c.l.b16 %v5705
  %v6113 = vunpack.c.l.b16 %v5706
  %v6114 = vunpack.c.l.b16 %v5707
  %v6115 = vunpack.c.l.b16 %v5708
  %v6116 = vpack.c.b16 %v6109, %v6108
  %v6117 = vpack.c.b16 %v6111, %v6110
  %v6118 = vpack.c.b16 %v6113, %v6112
  %v6119 = vpack.c.b16 %v6115, %v6114
  %v6121 = vsel %vm1713, %v6096, 0
  %v6124 = vsel %vm1713, %v6097, 0
  %v6127 = vsel %vm1713, %v6098, 0
  %v6130 = vsel %vm1713, %v6099, 0
  %v6133 = vsel %vm1713, %v6116, 0
  %v6136 = vsel %vm1713, %v6117, 0
  %v6139 = vsel %vm1713, %v6118, 0
  %v6142 = vsel %vm1713, %v6119, 0
  %6144 = vmatprep.subr.bf16.mxu0 0
  %6145 = vmatpush1.bf16.xpose.msra.mxu0 %v6133
  %6146 = vmatprep.subr.bf16.mxu0 0
  %6147 = vmatpush1.bf16.xpose.msra.mxu0 %v6136
  %6148 = vmatprep.subr.bf16.mxu0 0
  %6149 = vmatpush1.bf16.xpose.msra.mxu0 %v6139
  %6150 = vmatprep.subr.bf16.mxu0 0
  %6151 = vmatpush1.bf16.xpose.msra.mxu0 %v6142
  %6152 = vmatprep.subr.bf16.mxu0 0
  %6153 = vmatpush1.bf16.xpose.msra.mxu0 0
  %6154 = vmatprep.subr.bf16.mxu0 0
  %6155 = vmatpush1.bf16.xpose.msra.mxu0 0
  %6156 = vmatprep.subr.bf16.mxu0 0
  %6157 = vmatpush1.bf16.xpose.msra.mxu0 0
  %6158 = vmatprep.subr.bf16.mxu0 0
  %6159 = vmatpush1.bf16.xpose.msra.mxu0 0
  %6160 = vmatprep.subr.bf16.mxu0 0
  %6161 = vmatpush1.bf16.xpose.msra.mxu0 0
  %6162 = vmatprep.subr.bf16.mxu0 0
  %6163 = vmatpush1.bf16.xpose.msra.mxu0 0
  %6164 = vmatprep.subr.bf16.mxu0 0
  %6165 = vmatpush1.bf16.xpose.msra.mxu0 0
  %6166 = vmatprep.subr.bf16.mxu0 0
  %6167 = vmatpush1.bf16.xpose.msra.mxu0 0
  %6168 = vmatprep.subr.bf16.mxu0 0
  %6169 = vmatpush1.bf16.xpose.msra.mxu0 0
  %6170 = vmatprep.subr.bf16.mxu0 0
  %6171 = vmatpush1.bf16.xpose.msra.mxu0 0
  %6172 = vmatprep.subr.bf16.mxu0 0
  %6173 = vmatpush1.bf16.xpose.msra.mxu0 0
  %6174 = vmatprep.subr.bf16.mxu0 0
  %6175 = vmatpush1.bf16.xpose.msra.mxu0 0
  %6176 = vmatprep.mubr.bf16.mxu0 0
  %6177 = vmatmul.mubr.bf16.gmra.mrb[0].mxu0 %v6121
  %v6178 = vpop.f32.mrb[0].mxu0
  %v6179 = vadd.f32 %v5895, %v6178
  %v6180 = vpop.f32.mrb[0].mxu0
  %v6181 = vpop.f32.mrb[0].mxu0
  %v6182 = vadd.f32 %v5896, %v6181
  %v6183 = vpop.f32.mrb[0].mxu0
  %6184 = vmatprep.mubr.bf16.mxu0 0
  %6185 = vmatmul.mubr.bf16.gmra.mrb[0].mxu0 %v6124
  %v6186 = vpop.f32.mrb[0].mxu0
  %v6187 = vadd.f32 %v5897, %v6186
  %v6188 = vpop.f32.mrb[0].mxu0
  %v6189 = vpop.f32.mrb[0].mxu0
  %v6190 = vadd.f32 %v5898, %v6189
  %v6191 = vpop.f32.mrb[0].mxu0
  %6192 = vmatprep.mubr.bf16.mxu0 0
  %6193 = vmatmul.mubr.bf16.gmra.mrb[0].mxu0 %v6127
  %v6194 = vpop.f32.mrb[0].mxu0
  %v6195 = vadd.f32 %v5899, %v6194
  %v6196 = vpop.f32.mrb[0].mxu0
  %v6197 = vpop.f32.mrb[0].mxu0
  %v6198 = vadd.f32 %v5900, %v6197
  %v6199 = vpop.f32.mrb[0].mxu0
  %6200 = vmatprep.mubr.bf16.mxu0 0
  %6201 = vmatmul.mubr.bf16.gmra.mrb[0].mxu0 %v6130
  %v6202 = vpop.f32.mrb[0].mxu0
  %v6203 = vadd.f32 %v5901, %v6202
  %v6204 = vpop.f32.mrb[0].mxu0
  %v6205 = vpop.f32.mrb[0].mxu0
  %v6206 = vadd.f32 %v5902, %v6205
  %v6207 = vpop.f32.mrb[0].mxu0
  %6208 = vdwg.mxu0
  %v6217 = vunpack.c.l.b16 %v5644
  %v6218 = vunpack.c.l.b16 %v5645
  %v6219 = vunpack.c.l.b16 %v5646
  %v6220 = vunpack.c.l.b16 %v5647
  %v6221 = vunpack.c.l.b16 %v5648
  %v6222 = vunpack.c.l.b16 %v5649
  %v6223 = vunpack.c.l.b16 %v5650
  %v6224 = vunpack.c.l.b16 %v5651
  %v6225 = vpack.c.b16 %v6218, %v6217
  %v6226 = vpack.c.b16 %v6220, %v6219
  %v6227 = vpack.c.b16 %v6222, %v6221
  %v6228 = vpack.c.b16 %v6224, %v6223
  %v6237 = vunpack.c.l.b16 %v5709
  %v6238 = vunpack.c.l.b16 %v5710
  %v6239 = vunpack.c.l.b16 %v5711
  %v6240 = vunpack.c.l.b16 %v5712
  %v6241 = vunpack.c.l.b16 %v5713
  %v6242 = vunpack.c.l.b16 %v5714
  %v6243 = vunpack.c.l.b16 %v5715
  %v6244 = vunpack.c.l.b16 %v5716
  %v6245 = vpack.c.b16 %v6238, %v6237
  %v6246 = vpack.c.b16 %v6240, %v6239
  %v6247 = vpack.c.b16 %v6242, %v6241
  %v6248 = vpack.c.b16 %v6244, %v6243
  %v6250 = vsel %vm1713, %v6225, 0
  %v6253 = vsel %vm1713, %v6226, 0
  %v6256 = vsel %vm1713, %v6227, 0
  %v6259 = vsel %vm1713, %v6228, 0
  %v6262 = vsel %vm1713, %v6245, 0
  %v6265 = vsel %vm1713, %v6246, 0
  %v6268 = vsel %vm1713, %v6247, 0
  %v6271 = vsel %vm1713, %v6248, 0
  %6273 = vmatprep.subr.bf16.mxu0 0
  %6274 = vmatpush1.bf16.xpose.msra.mxu0 %v6262
  %6275 = vmatprep.subr.bf16.mxu0 0
  %6276 = vmatpush1.bf16.xpose.msra.mxu0 %v6265
  %6277 = vmatprep.subr.bf16.mxu0 0
  %6278 = vmatpush1.bf16.xpose.msra.mxu0 %v6268
  %6279 = vmatprep.subr.bf16.mxu0 0
  %6280 = vmatpush1.bf16.xpose.msra.mxu0 %v6271
  %6281 = vmatprep.subr.bf16.mxu0 0
  %6282 = vmatpush1.bf16.xpose.msra.mxu0 0
  %6283 = vmatprep.subr.bf16.mxu0 0
  %6284 = vmatpush1.bf16.xpose.msra.mxu0 0
  %6285 = vmatprep.subr.bf16.mxu0 0
  %6286 = vmatpush1.bf16.xpose.msra.mxu0 0
  %6287 = vmatprep.subr.bf16.mxu0 0
  %6288 = vmatpush1.bf16.xpose.msra.mxu0 0
  %6289 = vmatprep.subr.bf16.mxu0 0
  %6290 = vmatpush1.bf16.xpose.msra.mxu0 0
  %6291 = vmatprep.subr.bf16.mxu0 0
  %6292 = vmatpush1.bf16.xpose.msra.mxu0 0
  %6293 = vmatprep.subr.bf16.mxu0 0
  %6294 = vmatpush1.bf16.xpose.msra.mxu0 0
  %6295 = vmatprep.subr.bf16.mxu0 0
  %6296 = vmatpush1.bf16.xpose.msra.mxu0 0
  %6297 = vmatprep.subr.bf16.mxu0 0
  %6298 = vmatpush1.bf16.xpose.msra.mxu0 0
  %6299 = vmatprep.subr.bf16.mxu0 0
  %6300 = vmatpush1.bf16.xpose.msra.mxu0 0
  %6301 = vmatprep.subr.bf16.mxu0 0
  %6302 = vmatpush1.bf16.xpose.msra.mxu0 0
  %6303 = vmatprep.subr.bf16.mxu0 0
  %6304 = vmatpush1.bf16.xpose.msra.mxu0 0
  %6305 = vmatprep.mubr.bf16.mxu0 0
  %6306 = vmatmul.mubr.bf16.gmra.mrb[0].mxu0 %v6250
  %v6307 = vpop.f32.mrb[0].mxu0
  %v6308 = vadd.f32 %v5903, %v6307
  %v6309 = vpop.f32.mrb[0].mxu0
  %v6310 = vpop.f32.mrb[0].mxu0
  %v6311 = vadd.f32 %v5904, %v6310
  %v6312 = vpop.f32.mrb[0].mxu0
  %6313 = vmatprep.mubr.bf16.mxu0 0
  %6314 = vmatmul.mubr.bf16.gmra.mrb[0].mxu0 %v6253
  %v6315 = vpop.f32.mrb[0].mxu0
  %v6316 = vadd.f32 %v5905, %v6315
  %v6317 = vpop.f32.mrb[0].mxu0
  %v6318 = vpop.f32.mrb[0].mxu0
  %v6319 = vadd.f32 %v5906, %v6318
  %v6320 = vpop.f32.mrb[0].mxu0
  %6321 = vmatprep.mubr.bf16.mxu0 0
  %6322 = vmatmul.mubr.bf16.gmra.mrb[0].mxu0 %v6256
  %v6323 = vpop.f32.mrb[0].mxu0
  %v6324 = vadd.f32 %v5907, %v6323
  %v6325 = vpop.f32.mrb[0].mxu0
  %v6326 = vpop.f32.mrb[0].mxu0
  %v6327 = vadd.f32 %v5908, %v6326
  %v6328 = vpop.f32.mrb[0].mxu0
  %6329 = vmatprep.mubr.bf16.mxu0 0
  %6330 = vmatmul.mubr.bf16.gmra.mrb[0].mxu0 %v6259
  %v6331 = vpop.f32.mrb[0].mxu0
  %v6332 = vadd.f32 %v5909, %v6331
  %v6333 = vpop.f32.mrb[0].mxu0
  %v6334 = vpop.f32.mrb[0].mxu0
  %v6335 = vadd.f32 %v5910, %v6334
  %v6336 = vpop.f32.mrb[0].mxu0
  %6337 = vdwg.mxu0
  %v6346 = vunpack.c.l.b16 %v5652
  %v6347 = vunpack.c.l.b16 %v5653
  %v6348 = vunpack.c.l.b16 %v5654
  %v6349 = vunpack.c.l.b16 %v5655
  %v6350 = vunpack.c.l.b16 %v5656
  %v6351 = vunpack.c.l.b16 %v5657
  %v6352 = vunpack.c.l.b16 %v5658
  %v6353 = vunpack.c.l.b16 %v5659
  %v6354 = vpack.c.b16 %v6347, %v6346
  %v6355 = vpack.c.b16 %v6349, %v6348
  %v6356 = vpack.c.b16 %v6351, %v6350
  %v6357 = vpack.c.b16 %v6353, %v6352
  %v6366 = vunpack.c.l.b16 %v5717
  %v6367 = vunpack.c.l.b16 %v5718
  %v6368 = vunpack.c.l.b16 %v5719
  %v6369 = vunpack.c.l.b16 %v5720
  %v6370 = vunpack.c.l.b16 %v5721
  %v6371 = vunpack.c.l.b16 %v5722
  %v6372 = vunpack.c.l.b16 %v5723
  %v6373 = vunpack.c.l.b16 %v5724
  %v6374 = vpack.c.b16 %v6367, %v6366
  %v6375 = vpack.c.b16 %v6369, %v6368
  %v6376 = vpack.c.b16 %v6371, %v6370
  %v6377 = vpack.c.b16 %v6373, %v6372
  %v6379 = vsel %vm1713, %v6354, 0
  %v6382 = vsel %vm1713, %v6355, 0
  %v6385 = vsel %vm1713, %v6356, 0
  %v6388 = vsel %vm1713, %v6357, 0
  %v6391 = vsel %vm1713, %v6374, 0
  %v6394 = vsel %vm1713, %v6375, 0
  %v6397 = vsel %vm1713, %v6376, 0
  %v6400 = vsel %vm1713, %v6377, 0
  %6402 = vmatprep.subr.bf16.mxu0 0
  %6403 = vmatpush1.bf16.xpose.msra.mxu0 %v6391
  %6404 = vmatprep.subr.bf16.mxu0 0
  %6405 = vmatpush1.bf16.xpose.msra.mxu0 %v6394
  %6406 = vmatprep.subr.bf16.mxu0 0
  %6407 = vmatpush1.bf16.xpose.msra.mxu0 %v6397
  %6408 = vmatprep.subr.bf16.mxu0 0
  %6409 = vmatpush1.bf16.xpose.msra.mxu0 %v6400
  %6410 = vmatprep.subr.bf16.mxu0 0
  %6411 = vmatpush1.bf16.xpose.msra.mxu0 0
  %6412 = vmatprep.subr.bf16.mxu0 0
  %6413 = vmatpush1.bf16.xpose.msra.mxu0 0
  %6414 = vmatprep.subr.bf16.mxu0 0
  %6415 = vmatpush1.bf16.xpose.msra.mxu0 0
  %6416 = vmatprep.subr.bf16.mxu0 0
  %6417 = vmatpush1.bf16.xpose.msra.mxu0 0
  %6418 = vmatprep.subr.bf16.mxu0 0
  %6419 = vmatpush1.bf16.xpose.msra.mxu0 0
  %6420 = vmatprep.subr.bf16.mxu0 0
  %6421 = vmatpush1.bf16.xpose.msra.mxu0 0
  %6422 = vmatprep.subr.bf16.mxu0 0
  %6423 = vmatpush1.bf16.xpose.msra.mxu0 0
  %6424 = vmatprep.subr.bf16.mxu0 0
  %6425 = vmatpush1.bf16.xpose.msra.mxu0 0
  %6426 = vmatprep.subr.bf16.mxu0 0
  %6427 = vmatpush1.bf16.xpose.msra.mxu0 0
  %6428 = vmatprep.subr.bf16.mxu0 0
  %6429 = vmatpush1.bf16.xpose.msra.mxu0 0
  %6430 = vmatprep.subr.bf16.mxu0 0
  %6431 = vmatpush1.bf16.xpose.msra.mxu0 0
  %6432 = vmatprep.subr.bf16.mxu0 0
  %6433 = vmatpush1.bf16.xpose.msra.mxu0 0
  %6434 = vmatprep.mubr.bf16.mxu0 0
  %6435 = vmatmul.mubr.bf16.gmra.mrb[0].mxu0 %v6379
  %v6436 = vpop.f32.mrb[0].mxu0
  %v6437 = vadd.f32 %v5911, %v6436
  %v6438 = vpop.f32.mrb[0].mxu0
  %v6439 = vpop.f32.mrb[0].mxu0
  %v6440 = vadd.f32 %v5912, %v6439
  %v6441 = vpop.f32.mrb[0].mxu0
  %6442 = vmatprep.mubr.bf16.mxu0 0
  %6443 = vmatmul.mubr.bf16.gmra.mrb[0].mxu0 %v6382
  %v6444 = vpop.f32.mrb[0].mxu0
  %v6445 = vadd.f32 %v5913, %v6444
  %v6446 = vpop.f32.mrb[0].mxu0
  %v6447 = vpop.f32.mrb[0].mxu0
  %v6448 = vadd.f32 %v5914, %v6447
  %v6449 = vpop.f32.mrb[0].mxu0
  %6450 = vmatprep.mubr.bf16.mxu0 0
  %6451 = vmatmul.mubr.bf16.gmra.mrb[0].mxu0 %v6385
  %v6452 = vpop.f32.mrb[0].mxu0
  %v6453 = vadd.f32 %v5915, %v6452
  %v6454 = vpop.f32.mrb[0].mxu0
  %v6455 = vpop.f32.mrb[0].mxu0
  %v6456 = vadd.f32 %v5916, %v6455
  %v6457 = vpop.f32.mrb[0].mxu0
  %6458 = vmatprep.mubr.bf16.mxu0 0
  %6459 = vmatmul.mubr.bf16.gmra.mrb[0].mxu0 %v6388
  %v6460 = vpop.f32.mrb[0].mxu0
  %v6461 = vadd.f32 %v5917, %v6460
  %v6462 = vpop.f32.mrb[0].mxu0
  %v6463 = vpop.f32.mrb[0].mxu0
  %v6464 = vadd.f32 %v5918, %v6463
  %v6465 = vpop.f32.mrb[0].mxu0
  %6466 = vdwg.mxu0
  %v6475 = vunpack.c.l.b16 %v5660
  %v6476 = vunpack.c.l.b16 %v5661
  %v6477 = vunpack.c.l.b16 %v5662
  %v6478 = vunpack.c.l.b16 %v5663
  %v6479 = vunpack.c.l.b16 %v5664
  %v6480 = vunpack.c.l.b16 %v5665
  %v6481 = vunpack.c.l.b16 %v5666
  %v6482 = vunpack.c.l.b16 %v5667
  %v6483 = vpack.c.b16 %v6476, %v6475
  %v6484 = vpack.c.b16 %v6478, %v6477
  %v6485 = vpack.c.b16 %v6480, %v6479
  %v6486 = vpack.c.b16 %v6482, %v6481
  %v6495 = vunpack.c.l.b16 %v5725
  %v6496 = vunpack.c.l.b16 %v5726
  %v6497 = vunpack.c.l.b16 %v5727
  %v6498 = vunpack.c.l.b16 %v5728
  %v6499 = vunpack.c.l.b16 %v5729
  %v6500 = vunpack.c.l.b16 %v5730
  %v6501 = vunpack.c.l.b16 %v5731
  %v6502 = vunpack.c.l.b16 %v5732
  %v6503 = vpack.c.b16 %v6496, %v6495
  %v6504 = vpack.c.b16 %v6498, %v6497
  %v6505 = vpack.c.b16 %v6500, %v6499
  %v6506 = vpack.c.b16 %v6502, %v6501
  %v6508 = vsel %vm1713, %v6483, 0
  %v6511 = vsel %vm1713, %v6484, 0
  %v6514 = vsel %vm1713, %v6485, 0
  %v6517 = vsel %vm1713, %v6486, 0
  %v6520 = vsel %vm1713, %v6503, 0
  %v6523 = vsel %vm1713, %v6504, 0
  %v6526 = vsel %vm1713, %v6505, 0
  %v6529 = vsel %vm1713, %v6506, 0
  %6531 = vmatprep.subr.bf16.mxu0 0
  %6532 = vmatpush1.bf16.xpose.msra.mxu0 %v6520
  %6533 = vmatprep.subr.bf16.mxu0 0
  %6534 = vmatpush1.bf16.xpose.msra.mxu0 %v6523
  %6535 = vmatprep.subr.bf16.mxu0 0
  %6536 = vmatpush1.bf16.xpose.msra.mxu0 %v6526
  %6537 = vmatprep.subr.bf16.mxu0 0
  %6538 = vmatpush1.bf16.xpose.msra.mxu0 %v6529
  %6539 = vmatprep.subr.bf16.mxu0 0
  %6540 = vmatpush1.bf16.xpose.msra.mxu0 0
  %6541 = vmatprep.subr.bf16.mxu0 0
  %6542 = vmatpush1.bf16.xpose.msra.mxu0 0
  %6543 = vmatprep.subr.bf16.mxu0 0
  %6544 = vmatpush1.bf16.xpose.msra.mxu0 0
  %6545 = vmatprep.subr.bf16.mxu0 0
  %6546 = vmatpush1.bf16.xpose.msra.mxu0 0
  %6547 = vmatprep.subr.bf16.mxu0 0
  %6548 = vmatpush1.bf16.xpose.msra.mxu0 0
  %6549 = vmatprep.subr.bf16.mxu0 0
  %6550 = vmatpush1.bf16.xpose.msra.mxu0 0
  %6551 = vmatprep.subr.bf16.mxu0 0
  %6552 = vmatpush1.bf16.xpose.msra.mxu0 0
  %6553 = vmatprep.subr.bf16.mxu0 0
  %6554 = vmatpush1.bf16.xpose.msra.mxu0 0
  %6555 = vmatprep.subr.bf16.mxu0 0
  %6556 = vmatpush1.bf16.xpose.msra.mxu0 0
  %6557 = vmatprep.subr.bf16.mxu0 0
  %6558 = vmatpush1.bf16.xpose.msra.mxu0 0
  %6559 = vmatprep.subr.bf16.mxu0 0
  %6560 = vmatpush1.bf16.xpose.msra.mxu0 0
  %6561 = vmatprep.subr.bf16.mxu0 0
  %6562 = vmatpush1.bf16.xpose.msra.mxu0 0
  %6563 = vmatprep.mubr.bf16.mxu0 0
  %6564 = vmatmul.mubr.bf16.gmra.mrb[0].mxu0 %v6508
  %v6565 = vpop.f32.mrb[0].mxu0
  %v6566 = vadd.f32 %v5919, %v6565
  %v6567 = vpop.f32.mrb[0].mxu0
  %v6568 = vpop.f32.mrb[0].mxu0
  %v6569 = vadd.f32 %v5920, %v6568
  %v6570 = vpop.f32.mrb[0].mxu0
  %6571 = vmatprep.mubr.bf16.mxu0 0
  %6572 = vmatmul.mubr.bf16.gmra.mrb[0].mxu0 %v6511
  %v6573 = vpop.f32.mrb[0].mxu0
  %v6574 = vadd.f32 %v5921, %v6573
  %v6575 = vpop.f32.mrb[0].mxu0
  %v6576 = vpop.f32.mrb[0].mxu0
  %v6577 = vadd.f32 %v5922, %v6576
  %v6578 = vpop.f32.mrb[0].mxu0
  %6579 = vmatprep.mubr.bf16.mxu0 0
  %6580 = vmatmul.mubr.bf16.gmra.mrb[0].mxu0 %v6514
  %v6581 = vpop.f32.mrb[0].mxu0
  %v6582 = vadd.f32 %v5923, %v6581
  %v6583 = vpop.f32.mrb[0].mxu0
  %v6584 = vpop.f32.mrb[0].mxu0
  %v6585 = vadd.f32 %v5924, %v6584
  %v6586 = vpop.f32.mrb[0].mxu0
  %6587 = vmatprep.mubr.bf16.mxu0 0
  %6588 = vmatmul.mubr.bf16.gmra.mrb[0].mxu0 %v6517
  %v6589 = vpop.f32.mrb[0].mxu0
  %v6590 = vadd.f32 %v5925, %v6589
  %v6591 = vpop.f32.mrb[0].mxu0
  %v6592 = vpop.f32.mrb[0].mxu0
  %v6593 = vadd.f32 %v5926, %v6592
  %v6594 = vpop.f32.mrb[0].mxu0
  %6595 = vdwg.mxu0
  %v6604 = vunpack.c.l.b16 %v5668
  %v6605 = vunpack.c.l.b16 %v5669
  %v6606 = vunpack.c.l.b16 %v5670
  %v6607 = vunpack.c.l.b16 %v5671
  %v6608 = vunpack.c.l.b16 %v5672
  %v6609 = vunpack.c.l.b16 %v5673
  %v6610 = vunpack.c.l.b16 %v5674
  %v6611 = vunpack.c.l.b16 %v5675
  %v6612 = vpack.c.b16 %v6605, %v6604
  %v6613 = vpack.c.b16 %v6607, %v6606
  %v6614 = vpack.c.b16 %v6609, %v6608
  %v6615 = vpack.c.b16 %v6611, %v6610
  %v6624 = vunpack.c.l.b16 %v5733
  %v6625 = vunpack.c.l.b16 %v5734
  %v6626 = vunpack.c.l.b16 %v5735
  %v6627 = vunpack.c.l.b16 %v5736
  %v6628 = vunpack.c.l.b16 %v5737
  %v6629 = vunpack.c.l.b16 %v5738
  %v6630 = vunpack.c.l.b16 %v5739
  %v6631 = vunpack.c.l.b16 %v5740
  %v6632 = vpack.c.b16 %v6625, %v6624
  %v6633 = vpack.c.b16 %v6627, %v6626
  %v6634 = vpack.c.b16 %v6629, %v6628
  %v6635 = vpack.c.b16 %v6631, %v6630
  %v6637 = vsel %vm1713, %v6612, 0
  %v6640 = vsel %vm1713, %v6613, 0
  %v6643 = vsel %vm1713, %v6614, 0
  %v6646 = vsel %vm1713, %v6615, 0
  %v6649 = vsel %vm1713, %v6632, 0
  %v6652 = vsel %vm1713, %v6633, 0
  %v6655 = vsel %vm1713, %v6634, 0
  %v6658 = vsel %vm1713, %v6635, 0
  %6660 = vmatprep.subr.bf16.mxu0 0
  %6661 = vmatpush1.bf16.xpose.msra.mxu0 %v6649
  %6662 = vmatprep.subr.bf16.mxu0 0
  %6663 = vmatpush1.bf16.xpose.msra.mxu0 %v6652
  %6664 = vmatprep.subr.bf16.mxu0 0
  %6665 = vmatpush1.bf16.xpose.msra.mxu0 %v6655
  %6666 = vmatprep.subr.bf16.mxu0 0
  %6667 = vmatpush1.bf16.xpose.msra.mxu0 %v6658
  %6668 = vmatprep.subr.bf16.mxu0 0
  %6669 = vmatpush1.bf16.xpose.msra.mxu0 0
  %6670 = vmatprep.subr.bf16.mxu0 0
  %6671 = vmatpush1.bf16.xpose.msra.mxu0 0
  %6672 = vmatprep.subr.bf16.mxu0 0
  %6673 = vmatpush1.bf16.xpose.msra.mxu0 0
  %6674 = vmatprep.subr.bf16.mxu0 0
  %6675 = vmatpush1.bf16.xpose.msra.mxu0 0
  %6676 = vmatprep.subr.bf16.mxu0 0
  %6677 = vmatpush1.bf16.xpose.msra.mxu0 0
  %6678 = vmatprep.subr.bf16.mxu0 0
  %6679 = vmatpush1.bf16.xpose.msra.mxu0 0
  %6680 = vmatprep.subr.bf16.mxu0 0
  %6681 = vmatpush1.bf16.xpose.msra.mxu0 0
  %6682 = vmatprep.subr.bf16.mxu0 0
  %6683 = vmatpush1.bf16.xpose.msra.mxu0 0
  %6684 = vmatprep.subr.bf16.mxu0 0
  %6685 = vmatpush1.bf16.xpose.msra.mxu0 0
  %6686 = vmatprep.subr.bf16.mxu0 0
  %6687 = vmatpush1.bf16.xpose.msra.mxu0 0
  %6688 = vmatprep.subr.bf16.mxu0 0
  %6689 = vmatpush1.bf16.xpose.msra.mxu0 0
  %6690 = vmatprep.subr.bf16.mxu0 0
  %6691 = vmatpush1.bf16.xpose.msra.mxu0 0
  %6692 = vmatprep.mubr.bf16.mxu0 0
  %6693 = vmatmul.mubr.bf16.gmra.mrb[0].mxu0 %v6637
  %v6694 = vpop.f32.mrb[0].mxu0
  %v6695 = vadd.f32 %v5927, %v6694
  %v6696 = vpop.f32.mrb[0].mxu0
  %v6697 = vpop.f32.mrb[0].mxu0
  %v6698 = vadd.f32 %v5928, %v6697
  %v6699 = vpop.f32.mrb[0].mxu0
  %6700 = vmatprep.mubr.bf16.mxu0 0
  %6701 = vmatmul.mubr.bf16.gmra.mrb[0].mxu0 %v6640
  %v6702 = vpop.f32.mrb[0].mxu0
  %v6703 = vadd.f32 %v5929, %v6702
  %v6704 = vpop.f32.mrb[0].mxu0
  %v6705 = vpop.f32.mrb[0].mxu0
  %v6706 = vadd.f32 %v5930, %v6705
  %v6707 = vpop.f32.mrb[0].mxu0
  %6708 = vmatprep.mubr.bf16.mxu0 0
  %6709 = vmatmul.mubr.bf16.gmra.mrb[0].mxu0 %v6643
  %v6710 = vpop.f32.mrb[0].mxu0
  %v6711 = vadd.f32 %v5931, %v6710
  %v6712 = vpop.f32.mrb[0].mxu0
  %v6713 = vpop.f32.mrb[0].mxu0
  %v6714 = vadd.f32 %v5932, %v6713
  %v6715 = vpop.f32.mrb[0].mxu0
  %6716 = vmatprep.mubr.bf16.mxu0 0
  %6717 = vmatmul.mubr.bf16.gmra.mrb[0].mxu0 %v6646
  %v6718 = vpop.f32.mrb[0].mxu0
  %v6719 = vadd.f32 %v5933, %v6718
  %v6720 = vpop.f32.mrb[0].mxu0
  %v6721 = vpop.f32.mrb[0].mxu0
  %v6722 = vadd.f32 %v5934, %v6721
  %v6723 = vpop.f32.mrb[0].mxu0
  %6724 = vdwg.mxu0
  %v6733 = vunpack.c.l.b16 %v5676
  %v6734 = vunpack.c.l.b16 %v5677
  %v6735 = vunpack.c.l.b16 %v5678
  %v6736 = vunpack.c.l.b16 %v5679
  %v6737 = vunpack.c.l.b16 %v5680
  %v6738 = vunpack.c.l.b16 %v5681
  %v6739 = vunpack.c.l.b16 %v5682
  %v6740 = vunpack.c.l.b16 %v5683
  %v6741 = vpack.c.b16 %v6734, %v6733
  %v6742 = vpack.c.b16 %v6736, %v6735
  %v6743 = vpack.c.b16 %v6738, %v6737
  %v6744 = vpack.c.b16 %v6740, %v6739
  %v6753 = vunpack.c.l.b16 %v5741
  %v6754 = vunpack.c.l.b16 %v5742
  %v6755 = vunpack.c.l.b16 %v5743
  %v6756 = vunpack.c.l.b16 %v5744
  %v6757 = vunpack.c.l.b16 %v5745
  %v6758 = vunpack.c.l.b16 %v5746
  %v6759 = vunpack.c.l.b16 %v5747
  %v6760 = vunpack.c.l.b16 %v5748
  %v6761 = vpack.c.b16 %v6754, %v6753
  %v6762 = vpack.c.b16 %v6756, %v6755
  %v6763 = vpack.c.b16 %v6758, %v6757
  %v6764 = vpack.c.b16 %v6760, %v6759
  %v6766 = vsel %vm1713, %v6741, 0
  %v6769 = vsel %vm1713, %v6742, 0
  %v6772 = vsel %vm1713, %v6743, 0
  %v6775 = vsel %vm1713, %v6744, 0
  %v6778 = vsel %vm1713, %v6761, 0
  %v6781 = vsel %vm1713, %v6762, 0
  %v6784 = vsel %vm1713, %v6763, 0
  %v6787 = vsel %vm1713, %v6764, 0
  %6789 = vmatprep.subr.bf16.mxu0 0
  %6790 = vmatpush1.bf16.xpose.msra.mxu0 %v6778
  %6791 = vmatprep.subr.bf16.mxu0 0
  %6792 = vmatpush1.bf16.xpose.msra.mxu0 %v6781
  %6793 = vmatprep.subr.bf16.mxu0 0
  %6794 = vmatpush1.bf16.xpose.msra.mxu0 %v6784
  %6795 = vmatprep.subr.bf16.mxu0 0
  %6796 = vmatpush1.bf16.xpose.msra.mxu0 %v6787
  %6797 = vmatprep.subr.bf16.mxu0 0
  %6798 = vmatpush1.bf16.xpose.msra.mxu0 0
  %6799 = vmatprep.subr.bf16.mxu0 0
  %6800 = vmatpush1.bf16.xpose.msra.mxu0 0
  %6801 = vmatprep.subr.bf16.mxu0 0
  %6802 = vmatpush1.bf16.xpose.msra.mxu0 0
  %6803 = vmatprep.subr.bf16.mxu0 0
  %6804 = vmatpush1.bf16.xpose.msra.mxu0 0
  %6805 = vmatprep.subr.bf16.mxu0 0
  %6806 = vmatpush1.bf16.xpose.msra.mxu0 0
  %6807 = vmatprep.subr.bf16.mxu0 0
  %6808 = vmatpush1.bf16.xpose.msra.mxu0 0
  %6809 = vmatprep.subr.bf16.mxu0 0
  %6810 = vmatpush1.bf16.xpose.msra.mxu0 0
  %6811 = vmatprep.subr.bf16.mxu0 0
  %6812 = vmatpush1.bf16.xpose.msra.mxu0 0
  %6813 = vmatprep.subr.bf16.mxu0 0
  %6814 = vmatpush1.bf16.xpose.msra.mxu0 0
  %6815 = vmatprep.subr.bf16.mxu0 0
  %6816 = vmatpush1.bf16.xpose.msra.mxu0 0
  %6817 = vmatprep.subr.bf16.mxu0 0
  %6818 = vmatpush1.bf16.xpose.msra.mxu0 0
  %6819 = vmatprep.subr.bf16.mxu0 0
  %6820 = vmatpush1.bf16.xpose.msra.mxu0 0
  %6821 = vmatprep.mubr.bf16.mxu0 0
  %6822 = vmatmul.mubr.bf16.gmra.mrb[0].mxu0 %v6766
  %v6823 = vpop.f32.mrb[0].mxu0
  %v6824 = vadd.f32 %v5935, %v6823
  %v6825 = vpop.f32.mrb[0].mxu0
  %v6826 = vpop.f32.mrb[0].mxu0
  %v6827 = vadd.f32 %v5936, %v6826
  %v6828 = vpop.f32.mrb[0].mxu0
  %6829 = vmatprep.mubr.bf16.mxu0 0
  %6830 = vmatmul.mubr.bf16.gmra.mrb[0].mxu0 %v6769
  %v6831 = vpop.f32.mrb[0].mxu0
  %v6832 = vadd.f32 %v5937, %v6831
  %v6833 = vpop.f32.mrb[0].mxu0
  %v6834 = vpop.f32.mrb[0].mxu0
  %v6835 = vadd.f32 %v5938, %v6834
  %v6836 = vpop.f32.mrb[0].mxu0
  %6837 = vmatprep.mubr.bf16.mxu0 0
  %6838 = vmatmul.mubr.bf16.gmra.mrb[0].mxu0 %v6772
  %v6839 = vpop.f32.mrb[0].mxu0
  %v6840 = vadd.f32 %v5939, %v6839
  %v6841 = vpop.f32.mrb[0].mxu0
  %v6842 = vpop.f32.mrb[0].mxu0
  %v6843 = vadd.f32 %v5940, %v6842
  %v6844 = vpop.f32.mrb[0].mxu0
  %6845 = vmatprep.mubr.bf16.mxu0 0
  %6846 = vmatmul.mubr.bf16.gmra.mrb[0].mxu0 %v6775
  %v6847 = vpop.f32.mrb[0].mxu0
  %v6848 = vadd.f32 %v5941, %v6847
  %v6849 = vpop.f32.mrb[0].mxu0
  %v6850 = vpop.f32.mrb[0].mxu0
  %v6851 = vadd.f32 %v5942, %v6850
  %v6852 = vpop.f32.mrb[0].mxu0
  %6853 = vdwg.mxu0
  %v6862 = vunpack.c.l.b16 %v5684
  %v6863 = vunpack.c.l.b16 %v5685
  %v6864 = vunpack.c.l.b16 %v5686
  %v6865 = vunpack.c.l.b16 %v5687
  %v6866 = vunpack.c.l.b16 %v5688
  %v6867 = vunpack.c.l.b16 %v5689
  %v6868 = vunpack.c.l.b16 %v5690
  %v6869 = vunpack.c.l.b16 %v5691
  %v6870 = vpack.c.b16 %v6863, %v6862
  %v6871 = vpack.c.b16 %v6865, %v6864
  %v6872 = vpack.c.b16 %v6867, %v6866
  %v6873 = vpack.c.b16 %v6869, %v6868
  %v6882 = vunpack.c.l.b16 %v5749
  %v6883 = vunpack.c.l.b16 %v5750
  %v6884 = vunpack.c.l.b16 %v5751
  %v6885 = vunpack.c.l.b16 %v5752
  %v6886 = vunpack.c.l.b16 %v5753
  %v6887 = vunpack.c.l.b16 %v5754
  %v6888 = vunpack.c.l.b16 %v5755
  %v6889 = vunpack.c.l.b16 %v5756
  %v6890 = vpack.c.b16 %v6883, %v6882
  %v6891 = vpack.c.b16 %v6885, %v6884
  %v6892 = vpack.c.b16 %v6887, %v6886
  %v6893 = vpack.c.b16 %v6889, %v6888
  %v6895 = vsel %vm1713, %v6870, 0
  %v6898 = vsel %vm1713, %v6871, 0
  %v6901 = vsel %vm1713, %v6872, 0
  %v6904 = vsel %vm1713, %v6873, 0
  %v6907 = vsel %vm1713, %v6890, 0
  %v6910 = vsel %vm1713, %v6891, 0
  %v6913 = vsel %vm1713, %v6892, 0
  %v6916 = vsel %vm1713, %v6893, 0
  %6918 = vmatprep.subr.bf16.mxu0 0
  %6919 = vmatpush1.bf16.xpose.msra.mxu0 %v6907
  %6920 = vmatprep.subr.bf16.mxu0 0
  %6921 = vmatpush1.bf16.xpose.msra.mxu0 %v6910
  %6922 = vmatprep.subr.bf16.mxu0 0
  %6923 = vmatpush1.bf16.xpose.msra.mxu0 %v6913
  %6924 = vmatprep.subr.bf16.mxu0 0
  %6925 = vmatpush1.bf16.xpose.msra.mxu0 %v6916
  %6926 = vmatprep.subr.bf16.mxu0 0
  %6927 = vmatpush1.bf16.xpose.msra.mxu0 0
  %6928 = vmatprep.subr.bf16.mxu0 0
  %6929 = vmatpush1.bf16.xpose.msra.mxu0 0
  %6930 = vmatprep.subr.bf16.mxu0 0
  %6931 = vmatpush1.bf16.xpose.msra.mxu0 0
  %6932 = vmatprep.subr.bf16.mxu0 0
  %6933 = vmatpush1.bf16.xpose.msra.mxu0 0
  %6934 = vmatprep.subr.bf16.mxu0 0
  %6935 = vmatpush1.bf16.xpose.msra.mxu0 0
  %6936 = vmatprep.subr.bf16.mxu0 0
  %6937 = vmatpush1.bf16.xpose.msra.mxu0 0
  %6938 = vmatprep.subr.bf16.mxu0 0
  %6939 = vmatpush1.bf16.xpose.msra.mxu0 0
  %6940 = vmatprep.subr.bf16.mxu0 0
  %6941 = vmatpush1.bf16.xpose.msra.mxu0 0
  %6942 = vmatprep.subr.bf16.mxu0 0
  %6943 = vmatpush1.bf16.xpose.msra.mxu0 0
  %6944 = vmatprep.subr.bf16.mxu0 0
  %6945 = vmatpush1.bf16.xpose.msra.mxu0 0
  %6946 = vmatprep.subr.bf16.mxu0 0
  %6947 = vmatpush1.bf16.xpose.msra.mxu0 0
  %6948 = vmatprep.subr.bf16.mxu0 0
  %6949 = vmatpush1.bf16.xpose.msra.mxu0 0
  %6950 = vmatprep.mubr.bf16.mxu0 0
  %6951 = vmatmul.mubr.bf16.gmra.mrb[0].mxu0 %v6895
  %v6952 = vpop.f32.mrb[0].mxu0
  %v6953 = vadd.f32 %v5943, %v6952
  %v6954 = vpop.f32.mrb[0].mxu0
  %v6955 = vpop.f32.mrb[0].mxu0
  %v6956 = vadd.f32 %v5944, %v6955
  %v6957 = vpop.f32.mrb[0].mxu0
  %6958 = vmatprep.mubr.bf16.mxu0 0
  %6959 = vmatmul.mubr.bf16.gmra.mrb[0].mxu0 %v6898
  %v6960 = vpop.f32.mrb[0].mxu0
  %v6961 = vadd.f32 %v5945, %v6960
  %v6962 = vpop.f32.mrb[0].mxu0
  %v6963 = vpop.f32.mrb[0].mxu0
  %v6964 = vadd.f32 %v5946, %v6963
  %v6965 = vpop.f32.mrb[0].mxu0
  %6966 = vmatprep.mubr.bf16.mxu0 0
  %6967 = vmatmul.mubr.bf16.gmra.mrb[0].mxu0 %v6901
  %v6968 = vpop.f32.mrb[0].mxu0
  %v6969 = vadd.f32 %v5947, %v6968
  %v6970 = vpop.f32.mrb[0].mxu0
  %v6971 = vpop.f32.mrb[0].mxu0
  %v6972 = vadd.f32 %v5948, %v6971
  %v6973 = vpop.f32.mrb[0].mxu0
  %6974 = vmatprep.mubr.bf16.mxu0 0
  %6975 = vmatmul.mubr.bf16.gmra.mrb[0].mxu0 %v6904
  %v6976 = vpop.f32.mrb[0].mxu0
  %v6977 = vadd.f32 %v5949, %v6976
  %v6978 = vpop.f32.mrb[0].mxu0
  %v6979 = vpop.f32.mrb[0].mxu0
  %v6980 = vadd.f32 %v5950, %v6979
  %v6981 = vpop.f32.mrb[0].mxu0
  %6982 = vdwg.mxu0
  %v6983 = vsel %vm313, %v6050, -inf
  %6984 = vmax.xlane.f32.xlu0 %v6983
  %v6985 = vpop.xlane.xlu0 %6984
  %v6986 = vsel %vm313, %v6053, -inf
  %6987 = vmax.xlane.f32.xlu0 %v6986
  %v6988 = vpop.xlane.xlu0 %6987
  %v6989 = vsel %vm313, %v6058, -inf
  %6990 = vmax.xlane.f32.xlu0 %v6989
  %v6991 = vpop.xlane.xlu0 %6990
  %v6992 = vsel %vm313, %v6061, -inf
  %6993 = vmax.xlane.f32.xlu0 %v6992
  %v6994 = vpop.xlane.xlu0 %6993
  %v6995 = vsel %vm313, %v6066, -inf
  %6996 = vmax.xlane.f32.xlu0 %v6995
  %v6997 = vpop.xlane.xlu0 %6996
  %v6998 = vsel %vm313, %v6069, -inf
  %6999 = vmax.xlane.f32.xlu0 %v6998
  %v7000 = vpop.xlane.xlu0 %6999
  %v7001 = vsel %vm313, %v6074, -inf
  %7002 = vmax.xlane.f32.xlu0 %v7001
  %v7003 = vpop.xlane.xlu0 %7002
  %v7004 = vsel %vm313, %v6077, -inf
  %7005 = vmax.xlane.f32.xlu0 %v7004
  %v7006 = vpop.xlane.xlu0 %7005
  %v7007 = vsel %vm313, %v6179, -inf
  %7008 = vmax.xlane.f32.xlu0 %v7007
  %v7009 = vpop.xlane.xlu0 %7008
  %v7010 = vsel %vm313, %v6182, -inf
  %7011 = vmax.xlane.f32.xlu0 %v7010
  %v7012 = vpop.xlane.xlu0 %7011
  %v7013 = vsel %vm313, %v6187, -inf
  %7014 = vmax.xlane.f32.xlu0 %v7013
  %v7015 = vpop.xlane.xlu0 %7014
  %v7016 = vsel %vm313, %v6190, -inf
  %7017 = vmax.xlane.f32.xlu0 %v7016
  %v7018 = vpop.xlane.xlu0 %7017
  %v7019 = vsel %vm313, %v6195, -inf
  %7020 = vmax.xlane.f32.xlu0 %v7019
  %v7021 = vpop.xlane.xlu0 %7020
  %v7022 = vsel %vm313, %v6198, -inf
  %7023 = vmax.xlane.f32.xlu0 %v7022
  %v7024 = vpop.xlane.xlu0 %7023
  %v7025 = vsel %vm313, %v6203, -inf
  %7026 = vmax.xlane.f32.xlu0 %v7025
  %v7027 = vpop.xlane.xlu0 %7026
  %v7028 = vsel %vm313, %v6206, -inf
  %7029 = vmax.xlane.f32.xlu0 %v7028
  %v7030 = vpop.xlane.xlu0 %7029
  %v7031 = vsel %vm313, %v6308, -inf
  %7032 = vmax.xlane.f32.xlu0 %v7031
  %v7033 = vpop.xlane.xlu0 %7032
  %v7034 = vsel %vm313, %v6311, -inf
  %7035 = vmax.xlane.f32.xlu0 %v7034
  %v7036 = vpop.xlane.xlu0 %7035
  %v7037 = vsel %vm313, %v6316, -inf
  %7038 = vmax.xlane.f32.xlu0 %v7037
  %v7039 = vpop.xlane.xlu0 %7038
  %v7040 = vsel %vm313, %v6319, -inf
  %7041 = vmax.xlane.f32.xlu0 %v7040
  %v7042 = vpop.xlane.xlu0 %7041
  %v7043 = vsel %vm313, %v6324, -inf
  %7044 = vmax.xlane.f32.xlu0 %v7043
  %v7045 = vpop.xlane.xlu0 %7044
  %v7046 = vsel %vm313, %v6327, -inf
  %7047 = vmax.xlane.f32.xlu0 %v7046
  %v7048 = vpop.xlane.xlu0 %7047
  %v7049 = vsel %vm313, %v6332, -inf
  %7050 = vmax.xlane.f32.xlu0 %v7049
  %v7051 = vpop.xlane.xlu0 %7050
  %v7052 = vsel %vm313, %v6335, -inf
  %7053 = vmax.xlane.f32.xlu0 %v7052
  %v7054 = vpop.xlane.xlu0 %7053
  %v7055 = vsel %vm313, %v6437, -inf
  %7056 = vmax.xlane.f32.xlu0 %v7055
  %v7057 = vpop.xlane.xlu0 %7056
  %v7058 = vsel %vm313, %v6440, -inf
  %7059 = vmax.xlane.f32.xlu0 %v7058
  %v7060 = vpop.xlane.xlu0 %7059
  %v7061 = vsel %vm313, %v6445, -inf
  %7062 = vmax.xlane.f32.xlu0 %v7061
  %v7063 = vpop.xlane.xlu0 %7062
  %v7064 = vsel %vm313, %v6448, -inf
  %7065 = vmax.xlane.f32.xlu0 %v7064
  %v7066 = vpop.xlane.xlu0 %7065
  %v7067 = vsel %vm313, %v6453, -inf
  %7068 = vmax.xlane.f32.xlu0 %v7067
  %v7069 = vpop.xlane.xlu0 %7068
  %v7070 = vsel %vm313, %v6456, -inf
  %7071 = vmax.xlane.f32.xlu0 %v7070
  %v7072 = vpop.xlane.xlu0 %7071
  %v7073 = vsel %vm313, %v6461, -inf
  %7074 = vmax.xlane.f32.xlu0 %v7073
  %v7075 = vpop.xlane.xlu0 %7074
  %v7076 = vsel %vm313, %v6464, -inf
  %7077 = vmax.xlane.f32.xlu0 %v7076
  %v7078 = vpop.xlane.xlu0 %7077
  %v7079 = vsel %vm313, %v6566, -inf
  %7080 = vmax.xlane.f32.xlu0 %v7079
  %v7081 = vpop.xlane.xlu0 %7080
  %v7082 = vsel %vm313, %v6569, -inf
  %7083 = vmax.xlane.f32.xlu0 %v7082
  %v7084 = vpop.xlane.xlu0 %7083
  %v7085 = vsel %vm313, %v6574, -inf
  %7086 = vmax.xlane.f32.xlu0 %v7085
  %v7087 = vpop.xlane.xlu0 %7086
  %v7088 = vsel %vm313, %v6577, -inf
  %7089 = vmax.xlane.f32.xlu0 %v7088
  %v7090 = vpop.xlane.xlu0 %7089
  %v7091 = vsel %vm313, %v6582, -inf
  %7092 = vmax.xlane.f32.xlu0 %v7091
  %v7093 = vpop.xlane.xlu0 %7092
  %v7094 = vsel %vm313, %v6585, -inf
  %7095 = vmax.xlane.f32.xlu0 %v7094
  %v7096 = vpop.xlane.xlu0 %7095
  %v7097 = vsel %vm313, %v6590, -inf
  %7098 = vmax.xlane.f32.xlu0 %v7097
  %v7099 = vpop.xlane.xlu0 %7098
  %v7100 = vsel %vm313, %v6593, -inf
  %7101 = vmax.xlane.f32.xlu0 %v7100
  %v7102 = vpop.xlane.xlu0 %7101
  %v7103 = vsel %vm313, %v6695, -inf
  %7104 = vmax.xlane.f32.xlu0 %v7103
  %v7105 = vpop.xlane.xlu0 %7104
  %v7106 = vsel %vm313, %v6698, -inf
  %7107 = vmax.xlane.f32.xlu0 %v7106
  %v7108 = vpop.xlane.xlu0 %7107
  %v7109 = vsel %vm313, %v6703, -inf
  %7110 = vmax.xlane.f32.xlu0 %v7109
  %v7111 = vpop.xlane.xlu0 %7110
  %v7112 = vsel %vm313, %v6706, -inf
  %7113 = vmax.xlane.f32.xlu0 %v7112
  %v7114 = vpop.xlane.xlu0 %7113
  %v7115 = vsel %vm313, %v6711, -inf
  %7116 = vmax.xlane.f32.xlu0 %v7115
  %v7117 = vpop.xlane.xlu0 %7116
  %v7118 = vsel %vm313, %v6714, -inf
  %7119 = vmax.xlane.f32.xlu0 %v7118
  %v7120 = vpop.xlane.xlu0 %7119
  %v7121 = vsel %vm313, %v6719, -inf
  %7122 = vmax.xlane.f32.xlu0 %v7121
  %v7123 = vpop.xlane.xlu0 %7122
  %v7124 = vsel %vm313, %v6722, -inf
  %7125 = vmax.xlane.f32.xlu0 %v7124
  %v7126 = vpop.xlane.xlu0 %7125
  %v7127 = vsel %vm313, %v6824, -inf
  %7128 = vmax.xlane.f32.xlu0 %v7127
  %v7129 = vpop.xlane.xlu0 %7128
  %v7130 = vsel %vm313, %v6827, -inf
  %7131 = vmax.xlane.f32.xlu0 %v7130
  %v7132 = vpop.xlane.xlu0 %7131
  %v7133 = vsel %vm313, %v6832, -inf
  %7134 = vmax.xlane.f32.xlu0 %v7133
  %v7135 = vpop.xlane.xlu0 %7134
  %v7136 = vsel %vm313, %v6835, -inf
  %7137 = vmax.xlane.f32.xlu0 %v7136
  %v7138 = vpop.xlane.xlu0 %7137
  %v7139 = vsel %vm313, %v6840, -inf
  %7140 = vmax.xlane.f32.xlu0 %v7139
  %v7141 = vpop.xlane.xlu0 %7140
  %v7142 = vsel %vm313, %v6843, -inf
  %7143 = vmax.xlane.f32.xlu0 %v7142
  %v7144 = vpop.xlane.xlu0 %7143
  %v7145 = vsel %vm313, %v6848, -inf
  %7146 = vmax.xlane.f32.xlu0 %v7145
  %v7147 = vpop.xlane.xlu0 %7146
  %v7148 = vsel %vm313, %v6851, -inf
  %7149 = vmax.xlane.f32.xlu0 %v7148
  %v7150 = vpop.xlane.xlu0 %7149
  %v7151 = vsel %vm313, %v6953, -inf
  %7152 = vmax.xlane.f32.xlu0 %v7151
  %v7153 = vpop.xlane.xlu0 %7152
  %v7154 = vsel %vm313, %v6956, -inf
  %7155 = vmax.xlane.f32.xlu0 %v7154
  %v7156 = vpop.xlane.xlu0 %7155
  %v7157 = vsel %vm313, %v6961, -inf
  %7158 = vmax.xlane.f32.xlu0 %v7157
  %v7159 = vpop.xlane.xlu0 %7158
  %v7160 = vsel %vm313, %v6964, -inf
  %7161 = vmax.xlane.f32.xlu0 %v7160
  %v7162 = vpop.xlane.xlu0 %7161
  %v7163 = vsel %vm313, %v6969, -inf
  %7164 = vmax.xlane.f32.xlu0 %v7163
  %v7165 = vpop.xlane.xlu0 %7164
  %v7166 = vsel %vm313, %v6972, -inf
  %7167 = vmax.xlane.f32.xlu0 %v7166
  %v7168 = vpop.xlane.xlu0 %7167
  %v7169 = vsel %vm313, %v6977, -inf
  %7170 = vmax.xlane.f32.xlu0 %v7169
  %v7171 = vpop.xlane.xlu0 %7170
  %v7172 = vsel %vm313, %v6980, -inf
  %7173 = vmax.xlane.f32.xlu0 %v7172
  %v7174 = vpop.xlane.xlu0 %7173
  %v7175 = vsub.f32 %v6050, %v6985
  %v7176 = vsub.f32 %v6053, %v6988
  %v7177 = vsub.f32 %v6058, %v6991
  %v7178 = vsub.f32 %v6061, %v6994
  %v7179 = vsub.f32 %v6066, %v6997
  %v7180 = vsub.f32 %v6069, %v7000
  %v7181 = vsub.f32 %v6074, %v7003
  %v7182 = vsub.f32 %v6077, %v7006
  %v7183 = vsub.f32 %v6179, %v7009
  %v7184 = vsub.f32 %v6182, %v7012
  %v7185 = vsub.f32 %v6187, %v7015
  %v7186 = vsub.f32 %v6190, %v7018
  %v7187 = vsub.f32 %v6195, %v7021
  %v7188 = vsub.f32 %v6198, %v7024
  %v7189 = vsub.f32 %v6203, %v7027
  %v7190 = vsub.f32 %v6206, %v7030
  %v7191 = vsub.f32 %v6308, %v7033
  %v7192 = vsub.f32 %v6311, %v7036
  %v7193 = vsub.f32 %v6316, %v7039
  %v7194 = vsub.f32 %v6319, %v7042
  %v7195 = vsub.f32 %v6324, %v7045
  %v7196 = vsub.f32 %v6327, %v7048
  %v7197 = vsub.f32 %v6332, %v7051
  %v7198 = vsub.f32 %v6335, %v7054
  %v7199 = vsub.f32 %v6437, %v7057
  %v7200 = vsub.f32 %v6440, %v7060
  %v7201 = vsub.f32 %v6445, %v7063
  %v7202 = vsub.f32 %v6448, %v7066
  %v7203 = vsub.f32 %v6453, %v7069
  %v7204 = vsub.f32 %v6456, %v7072
  %v7205 = vsub.f32 %v6461, %v7075
  %v7206 = vsub.f32 %v6464, %v7078
  %v7207 = vsub.f32 %v6566, %v7081
  %v7208 = vsub.f32 %v6569, %v7084
  %v7209 = vsub.f32 %v6574, %v7087
  %v7210 = vsub.f32 %v6577, %v7090
  %v7211 = vsub.f32 %v6582, %v7093
  %v7212 = vsub.f32 %v6585, %v7096
  %v7213 = vsub.f32 %v6590, %v7099
  %v7214 = vsub.f32 %v6593, %v7102
  %v7215 = vsub.f32 %v6695, %v7105
  %v7216 = vsub.f32 %v6698, %v7108
  %v7217 = vsub.f32 %v6703, %v7111
  %v7218 = vsub.f32 %v6706, %v7114
  %v7219 = vsub.f32 %v6711, %v7117
  %v7220 = vsub.f32 %v6714, %v7120
  %v7221 = vsub.f32 %v6719, %v7123
  %v7222 = vsub.f32 %v6722, %v7126
  %v7223 = vsub.f32 %v6824, %v7129
  %v7224 = vsub.f32 %v6827, %v7132
  %v7225 = vsub.f32 %v6832, %v7135
  %v7226 = vsub.f32 %v6835, %v7138
  %v7227 = vsub.f32 %v6840, %v7141
  %v7228 = vsub.f32 %v6843, %v7144
  %v7229 = vsub.f32 %v6848, %v7147
  %v7230 = vsub.f32 %v6851, %v7150
  %v7231 = vsub.f32 %v6953, %v7153
  %v7232 = vsub.f32 %v6956, %v7156
  %v7233 = vsub.f32 %v6961, %v7159
  %v7234 = vsub.f32 %v6964, %v7162
  %v7235 = vsub.f32 %v6969, %v7165
  %v7236 = vsub.f32 %v6972, %v7168
  %v7237 = vsub.f32 %v6977, %v7171
  %v7238 = vsub.f32 %v6980, %v7174
  %v7239 = vmul.f32 %v7175, 1.442695
  %v7240 = vpow.pop %v7239
  %v7241 = vmul.f32 %v7176, 1.442695
  %v7242 = vpow.pop %v7241
  %v7243 = vmul.f32 %v7177, 1.442695
  %v7244 = vpow.pop %v7243
  %v7245 = vmul.f32 %v7178, 1.442695
  %v7246 = vpow.pop %v7245
  %v7247 = vmul.f32 %v7179, 1.442695
  %v7248 = vpow.pop %v7247
  %v7249 = vmul.f32 %v7180, 1.442695
  %v7250 = vpow.pop %v7249
  %v7251 = vmul.f32 %v7181, 1.442695
  %v7252 = vpow.pop %v7251
  %v7253 = vmul.f32 %v7182, 1.442695
  %v7254 = vpow.pop %v7253
  %v7255 = vmul.f32 %v7183, 1.442695
  %v7256 = vpow.pop %v7255
  %v7257 = vmul.f32 %v7184, 1.442695
  %v7258 = vpow.pop %v7257
  %v7259 = vmul.f32 %v7185, 1.442695
  %v7260 = vpow.pop %v7259
  %v7261 = vmul.f32 %v7186, 1.442695
  %v7262 = vpow.pop %v7261
  %v7263 = vmul.f32 %v7187, 1.442695
  %v7264 = vpow.pop %v7263
  %v7265 = vmul.f32 %v7188, 1.442695
  %v7266 = vpow.pop %v7265
  %v7267 = vmul.f32 %v7189, 1.442695
  %v7268 = vpow.pop %v7267
  %v7269 = vmul.f32 %v7190, 1.442695
  %v7270 = vpow.pop %v7269
  %v7271 = vmul.f32 %v7191, 1.442695
  %v7272 = vpow.pop %v7271
  %v7273 = vmul.f32 %v7192, 1.442695
  %v7274 = vpow.pop %v7273
  %v7275 = vmul.f32 %v7193, 1.442695
  %v7276 = vpow.pop %v7275
  %v7277 = vmul.f32 %v7194, 1.442695
  %v7278 = vpow.pop %v7277
  %v7279 = vmul.f32 %v7195, 1.442695
  %v7280 = vpow.pop %v7279
  %v7281 = vmul.f32 %v7196, 1.442695
  %v7282 = vpow.pop %v7281
  %v7283 = vmul.f32 %v7197, 1.442695
  %v7284 = vpow.pop %v7283
  %v7285 = vmul.f32 %v7198, 1.442695
  %v7286 = vpow.pop %v7285
  %v7287 = vmul.f32 %v7199, 1.442695
  %v7288 = vpow.pop %v7287
  %v7289 = vmul.f32 %v7200, 1.442695
  %v7290 = vpow.pop %v7289
  %v7291 = vmul.f32 %v7201, 1.442695
  %v7292 = vpow.pop %v7291
  %v7293 = vmul.f32 %v7202, 1.442695
  %v7294 = vpow.pop %v7293
  %v7295 = vmul.f32 %v7203, 1.442695
  %v7296 = vpow.pop %v7295
  %v7297 = vmul.f32 %v7204, 1.442695
  %v7298 = vpow.pop %v7297
  %v7299 = vmul.f32 %v7205, 1.442695
  %v7300 = vpow.pop %v7299
  %v7301 = vmul.f32 %v7206, 1.442695
  %v7302 = vpow.pop %v7301
  %v7303 = vmul.f32 %v7207, 1.442695
  %v7304 = vpow.pop %v7303
  %v7305 = vmul.f32 %v7208, 1.442695
  %v7306 = vpow.pop %v7305
  %v7307 = vmul.f32 %v7209, 1.442695
  %v7308 = vpow.pop %v7307
  %v7309 = vmul.f32 %v7210, 1.442695
  %v7310 = vpow.pop %v7309
  %v7311 = vmul.f32 %v7211, 1.442695
  %v7312 = vpow.pop %v7311
  %v7313 = vmul.f32 %v7212, 1.442695
  %v7314 = vpow.pop %v7313
  %v7315 = vmul.f32 %v7213, 1.442695
  %v7316 = vpow.pop %v7315
  %v7317 = vmul.f32 %v7214, 1.442695
  %v7318 = vpow.pop %v7317
  %v7319 = vmul.f32 %v7215, 1.442695
  %v7320 = vpow.pop %v7319
  %v7321 = vmul.f32 %v7216, 1.442695
  %v7322 = vpow.pop %v7321
  %v7323 = vmul.f32 %v7217, 1.442695
  %v7324 = vpow.pop %v7323
  %v7325 = vmul.f32 %v7218, 1.442695
  %v7326 = vpow.pop %v7325
  %v7327 = vmul.f32 %v7219, 1.442695
  %v7328 = vpow.pop %v7327
  %v7329 = vmul.f32 %v7220, 1.442695
  %v7330 = vpow.pop %v7329
  %v7331 = vmul.f32 %v7221, 1.442695
  %v7332 = vpow.pop %v7331
  %v7333 = vmul.f32 %v7222, 1.442695
  %v7334 = vpow.pop %v7333
  %v7335 = vmul.f32 %v7223, 1.442695
  %v7336 = vpow.pop %v7335
  %v7337 = vmul.f32 %v7224, 1.442695
  %v7338 = vpow.pop %v7337
  %v7339 = vmul.f32 %v7225, 1.442695
  %v7340 = vpow.pop %v7339
  %v7341 = vmul.f32 %v7226, 1.442695
  %v7342 = vpow.pop %v7341
  %v7343 = vmul.f32 %v7227, 1.442695
  %v7344 = vpow.pop %v7343
  %v7345 = vmul.f32 %v7228, 1.442695
  %v7346 = vpow.pop %v7345
  %v7347 = vmul.f32 %v7229, 1.442695
  %v7348 = vpow.pop %v7347
  %v7349 = vmul.f32 %v7230, 1.442695
  %v7350 = vpow.pop %v7349
  %v7351 = vmul.f32 %v7231, 1.442695
  %v7352 = vpow.pop %v7351
  %v7353 = vmul.f32 %v7232, 1.442695
  %v7354 = vpow.pop %v7353
  %v7355 = vmul.f32 %v7233, 1.442695
  %v7356 = vpow.pop %v7355
  %v7357 = vmul.f32 %v7234, 1.442695
  %v7358 = vpow.pop %v7357
  %v7359 = vmul.f32 %v7235, 1.442695
  %v7360 = vpow.pop %v7359
  %v7361 = vmul.f32 %v7236, 1.442695
  %v7362 = vpow.pop %v7361
  %v7363 = vmul.f32 %v7237, 1.442695
  %v7364 = vpow.pop %v7363
  %v7365 = vmul.f32 %v7238, 1.442695
  %v7366 = vpow.pop %v7365
  %v7367 = vsel %vm313, %v7240, 0.0
  %7368 = vadd.xlane.f32.xlu0 %v7367
  %v7369 = vpop.xlane.xlu0 %7368
  %v7370 = vsel %vm313, %v7242, 0.0
  %7371 = vadd.xlane.f32.xlu0 %v7370
  %v7372 = vpop.xlane.xlu0 %7371
  %v7373 = vsel %vm313, %v7244, 0.0
  %7374 = vadd.xlane.f32.xlu0 %v7373
  %v7375 = vpop.xlane.xlu0 %7374
  %v7376 = vsel %vm313, %v7246, 0.0
  %7377 = vadd.xlane.f32.xlu0 %v7376
  %v7378 = vpop.xlane.xlu0 %7377
  %v7379 = vsel %vm313, %v7248, 0.0
  %7380 = vadd.xlane.f32.xlu0 %v7379
  %v7381 = vpop.xlane.xlu0 %7380
  %v7382 = vsel %vm313, %v7250, 0.0
  %7383 = vadd.xlane.f32.xlu0 %v7382
  %v7384 = vpop.xlane.xlu0 %7383
  %v7385 = vsel %vm313, %v7252, 0.0
  %7386 = vadd.xlane.f32.xlu0 %v7385
  %v7387 = vpop.xlane.xlu0 %7386
  %v7388 = vsel %vm313, %v7254, 0.0
  %7389 = vadd.xlane.f32.xlu0 %v7388
  %v7390 = vpop.xlane.xlu0 %7389
  %v7391 = vsel %vm313, %v7256, 0.0
  %7392 = vadd.xlane.f32.xlu0 %v7391
  %v7393 = vpop.xlane.xlu0 %7392
  %v7394 = vsel %vm313, %v7258, 0.0
  %7395 = vadd.xlane.f32.xlu0 %v7394
  %v7396 = vpop.xlane.xlu0 %7395
  %v7397 = vsel %vm313, %v7260, 0.0
  %7398 = vadd.xlane.f32.xlu0 %v7397
  %v7399 = vpop.xlane.xlu0 %7398
  %v7400 = vsel %vm313, %v7262, 0.0
  %7401 = vadd.xlane.f32.xlu0 %v7400
  %v7402 = vpop.xlane.xlu0 %7401
  %v7403 = vsel %vm313, %v7264, 0.0
  %7404 = vadd.xlane.f32.xlu0 %v7403
  %v7405 = vpop.xlane.xlu0 %7404
  %v7406 = vsel %vm313, %v7266, 0.0
  %7407 = vadd.xlane.f32.xlu0 %v7406
  %v7408 = vpop.xlane.xlu0 %7407
  %v7409 = vsel %vm313, %v7268, 0.0
  %7410 = vadd.xlane.f32.xlu0 %v7409
  %v7411 = vpop.xlane.xlu0 %7410
  %v7412 = vsel %vm313, %v7270, 0.0
  %7413 = vadd.xlane.f32.xlu0 %v7412
  %v7414 = vpop.xlane.xlu0 %7413
  %v7415 = vsel %vm313, %v7272, 0.0
  %7416 = vadd.xlane.f32.xlu0 %v7415
  %v7417 = vpop.xlane.xlu0 %7416
  %v7418 = vsel %vm313, %v7274, 0.0
  %7419 = vadd.xlane.f32.xlu0 %v7418
  %v7420 = vpop.xlane.xlu0 %7419
  %v7421 = vsel %vm313, %v7276, 0.0
  %7422 = vadd.xlane.f32.xlu0 %v7421
  %v7423 = vpop.xlane.xlu0 %7422
  %v7424 = vsel %vm313, %v7278, 0.0
  %7425 = vadd.xlane.f32.xlu0 %v7424
  %v7426 = vpop.xlane.xlu0 %7425
  %v7427 = vsel %vm313, %v7280, 0.0
  %7428 = vadd.xlane.f32.xlu0 %v7427
  %v7429 = vpop.xlane.xlu0 %7428
  %v7430 = vsel %vm313, %v7282, 0.0
  %7431 = vadd.xlane.f32.xlu0 %v7430
  %v7432 = vpop.xlane.xlu0 %7431
  %v7433 = vsel %vm313, %v7284, 0.0
  %7434 = vadd.xlane.f32.xlu0 %v7433
  %v7435 = vpop.xlane.xlu0 %7434
  %v7436 = vsel %vm313, %v7286, 0.0
  %7437 = vadd.xlane.f32.xlu0 %v7436
  %v7438 = vpop.xlane.xlu0 %7437
  %v7439 = vsel %vm313, %v7288, 0.0
  %7440 = vadd.xlane.f32.xlu0 %v7439
  %v7441 = vpop.xlane.xlu0 %7440
  %v7442 = vsel %vm313, %v7290, 0.0
  %7443 = vadd.xlane.f32.xlu0 %v7442
  %v7444 = vpop.xlane.xlu0 %7443
  %v7445 = vsel %vm313, %v7292, 0.0
  %7446 = vadd.xlane.f32.xlu0 %v7445
  %v7447 = vpop.xlane.xlu0 %7446
  %v7448 = vsel %vm313, %v7294, 0.0
  %7449 = vadd.xlane.f32.xlu0 %v7448
  %v7450 = vpop.xlane.xlu0 %7449
  %v7451 = vsel %vm313, %v7296, 0.0
  %7452 = vadd.xlane.f32.xlu0 %v7451
  %v7453 = vpop.xlane.xlu0 %7452
  %v7454 = vsel %vm313, %v7298, 0.0
  %7455 = vadd.xlane.f32.xlu0 %v7454
  %v7456 = vpop.xlane.xlu0 %7455
  %v7457 = vsel %vm313, %v7300, 0.0
  %7458 = vadd.xlane.f32.xlu0 %v7457
  %v7459 = vpop.xlane.xlu0 %7458
  %v7460 = vsel %vm313, %v7302, 0.0
  %7461 = vadd.xlane.f32.xlu0 %v7460
  %v7462 = vpop.xlane.xlu0 %7461
  %v7463 = vsel %vm313, %v7304, 0.0
  %7464 = vadd.xlane.f32.xlu0 %v7463
  %v7465 = vpop.xlane.xlu0 %7464
  %v7466 = vsel %vm313, %v7306, 0.0
  %7467 = vadd.xlane.f32.xlu0 %v7466
  %v7468 = vpop.xlane.xlu0 %7467
  %v7469 = vsel %vm313, %v7308, 0.0
  %7470 = vadd.xlane.f32.xlu0 %v7469
  %v7471 = vpop.xlane.xlu0 %7470
  %v7472 = vsel %vm313, %v7310, 0.0
  %7473 = vadd.xlane.f32.xlu0 %v7472
  %v7474 = vpop.xlane.xlu0 %7473
  %v7475 = vsel %vm313, %v7312, 0.0
  %7476 = vadd.xlane.f32.xlu0 %v7475
  %v7477 = vpop.xlane.xlu0 %7476
  %v7478 = vsel %vm313, %v7314, 0.0
  %7479 = vadd.xlane.f32.xlu0 %v7478
  %v7480 = vpop.xlane.xlu0 %7479
  %v7481 = vsel %vm313, %v7316, 0.0
  %7482 = vadd.xlane.f32.xlu0 %v7481
  %v7483 = vpop.xlane.xlu0 %7482
  %v7484 = vsel %vm313, %v7318, 0.0
  %7485 = vadd.xlane.f32.xlu0 %v7484
  %v7486 = vpop.xlane.xlu0 %7485
  %v7487 = vsel %vm313, %v7320, 0.0
  %7488 = vadd.xlane.f32.xlu0 %v7487
  %v7489 = vpop.xlane.xlu0 %7488
  %v7490 = vsel %vm313, %v7322, 0.0
  %7491 = vadd.xlane.f32.xlu0 %v7490
  %v7492 = vpop.xlane.xlu0 %7491
  %v7493 = vsel %vm313, %v7324, 0.0
  %7494 = vadd.xlane.f32.xlu0 %v7493
  %v7495 = vpop.xlane.xlu0 %7494
  %v7496 = vsel %vm313, %v7326, 0.0
  %7497 = vadd.xlane.f32.xlu0 %v7496
  %v7498 = vpop.xlane.xlu0 %7497
  %v7499 = vsel %vm313, %v7328, 0.0
  %7500 = vadd.xlane.f32.xlu0 %v7499
  %v7501 = vpop.xlane.xlu0 %7500
  %v7502 = vsel %vm313, %v7330, 0.0
  %7503 = vadd.xlane.f32.xlu0 %v7502
  %v7504 = vpop.xlane.xlu0 %7503
  %v7505 = vsel %vm313, %v7332, 0.0
  %7506 = vadd.xlane.f32.xlu0 %v7505
  %v7507 = vpop.xlane.xlu0 %7506
  %v7508 = vsel %vm313, %v7334, 0.0
  %7509 = vadd.xlane.f32.xlu0 %v7508
  %v7510 = vpop.xlane.xlu0 %7509
  %v7511 = vsel %vm313, %v7336, 0.0
  %7512 = vadd.xlane.f32.xlu0 %v7511
  %v7513 = vpop.xlane.xlu0 %7512
  %v7514 = vsel %vm313, %v7338, 0.0
  %7515 = vadd.xlane.f32.xlu0 %v7514
  %v7516 = vpop.xlane.xlu0 %7515
  %v7517 = vsel %vm313, %v7340, 0.0
  %7518 = vadd.xlane.f32.xlu0 %v7517
  %v7519 = vpop.xlane.xlu0 %7518
  %v7520 = vsel %vm313, %v7342, 0.0
  %7521 = vadd.xlane.f32.xlu0 %v7520
  %v7522 = vpop.xlane.xlu0 %7521
  %v7523 = vsel %vm313, %v7344, 0.0
  %7524 = vadd.xlane.f32.xlu0 %v7523
  %v7525 = vpop.xlane.xlu0 %7524
  %v7526 = vsel %vm313, %v7346, 0.0
  %7527 = vadd.xlane.f32.xlu0 %v7526
  %v7528 = vpop.xlane.xlu0 %7527
  %v7529 = vsel %vm313, %v7348, 0.0
  %7530 = vadd.xlane.f32.xlu0 %v7529
  %v7531 = vpop.xlane.xlu0 %7530
  %v7532 = vsel %vm313, %v7350, 0.0
  %7533 = vadd.xlane.f32.xlu0 %v7532
  %v7534 = vpop.xlane.xlu0 %7533
  %v7535 = vsel %vm313, %v7352, 0.0
  %7536 = vadd.xlane.f32.xlu0 %v7535
  %v7537 = vpop.xlane.xlu0 %7536
  %v7538 = vsel %vm313, %v7354, 0.0
  %7539 = vadd.xlane.f32.xlu0 %v7538
  %v7540 = vpop.xlane.xlu0 %7539
  %v7541 = vsel %vm313, %v7356, 0.0
  %7542 = vadd.xlane.f32.xlu0 %v7541
  %v7543 = vpop.xlane.xlu0 %7542
  %v7544 = vsel %vm313, %v7358, 0.0
  %7545 = vadd.xlane.f32.xlu0 %v7544
  %v7546 = vpop.xlane.xlu0 %7545
  %v7547 = vsel %vm313, %v7360, 0.0
  %7548 = vadd.xlane.f32.xlu0 %v7547
  %v7549 = vpop.xlane.xlu0 %7548
  %v7550 = vsel %vm313, %v7362, 0.0
  %7551 = vadd.xlane.f32.xlu0 %v7550
  %v7552 = vpop.xlane.xlu0 %7551
  %v7553 = vsel %vm313, %v7364, 0.0
  %7554 = vadd.xlane.f32.xlu0 %v7553
  %v7555 = vpop.xlane.xlu0 %7554
  %v7556 = vsel %vm313, %v7366, 0.0
  %7557 = vadd.xlane.f32.xlu0 %v7556
  %v7558 = vpop.xlane.xlu0 %7557
  %v7559 = vrcp.pop %v7369
  %v7560 = vrcp.pop %v7372
  %v7561 = vrcp.pop %v7375
  %v7562 = vrcp.pop %v7378
  %v7563 = vrcp.pop %v7381
  %v7564 = vrcp.pop %v7384
  %v7565 = vrcp.pop %v7387
  %v7566 = vrcp.pop %v7390
  %v7567 = vrcp.pop %v7393
  %v7568 = vrcp.pop %v7396
  %v7569 = vrcp.pop %v7399
  %v7570 = vrcp.pop %v7402
  %v7571 = vrcp.pop %v7405
  %v7572 = vrcp.pop %v7408
  %v7573 = vrcp.pop %v7411
  %v7574 = vrcp.pop %v7414
  %v7575 = vrcp.pop %v7417
  %v7576 = vrcp.pop %v7420
  %v7577 = vrcp.pop %v7423
  %v7578 = vrcp.pop %v7426
  %v7579 = vrcp.pop %v7429
  %v7580 = vrcp.pop %v7432
  %v7581 = vrcp.pop %v7435
  %v7582 = vrcp.pop %v7438
  %v7583 = vrcp.pop %v7441
  %v7584 = vrcp.pop %v7444
  %v7585 = vrcp.pop %v7447
  %v7586 = vrcp.pop %v7450
  %v7587 = vrcp.pop %v7453
  %v7588 = vrcp.pop %v7456
  %v7589 = vrcp.pop %v7459
  %v7590 = vrcp.pop %v7462
  %v7591 = vrcp.pop %v7465
  %v7592 = vrcp.pop %v7468
  %v7593 = vrcp.pop %v7471
  %v7594 = vrcp.pop %v7474
  %v7595 = vrcp.pop %v7477
  %v7596 = vrcp.pop %v7480
  %v7597 = vrcp.pop %v7483
  %v7598 = vrcp.pop %v7486
  %v7599 = vrcp.pop %v7489
  %v7600 = vrcp.pop %v7492
  %v7601 = vrcp.pop %v7495
  %v7602 = vrcp.pop %v7498
  %v7603 = vrcp.pop %v7501
  %v7604 = vrcp.pop %v7504
  %v7605 = vrcp.pop %v7507
  %v7606 = vrcp.pop %v7510
  %v7607 = vrcp.pop %v7513
  %v7608 = vrcp.pop %v7516
  %v7609 = vrcp.pop %v7519
  %v7610 = vrcp.pop %v7522
  %v7611 = vrcp.pop %v7525
  %v7612 = vrcp.pop %v7528
  %v7613 = vrcp.pop %v7531
  %v7614 = vrcp.pop %v7534
  %v7615 = vrcp.pop %v7537
  %v7616 = vrcp.pop %v7540
  %v7617 = vrcp.pop %v7543
  %v7618 = vrcp.pop %v7546
  %v7619 = vrcp.pop %v7549
  %v7620 = vrcp.pop %v7552
  %v7621 = vrcp.pop %v7555
  %v7622 = vrcp.pop %v7558
  %v7623 = vmul.f32 %v7240, %v7559
  %v7624 = vmul.f32 %v7242, %v7560
  %v7625 = vmul.f32 %v7244, %v7561
  %v7626 = vmul.f32 %v7246, %v7562
  %v7627 = vmul.f32 %v7248, %v7563
  %v7628 = vmul.f32 %v7250, %v7564
  %v7629 = vmul.f32 %v7252, %v7565
  %v7630 = vmul.f32 %v7254, %v7566
  %v7631 = vmul.f32 %v7256, %v7567
  %v7632 = vmul.f32 %v7258, %v7568
  %v7633 = vmul.f32 %v7260, %v7569
  %v7634 = vmul.f32 %v7262, %v7570
  %v7635 = vmul.f32 %v7264, %v7571
  %v7636 = vmul.f32 %v7266, %v7572
  %v7637 = vmul.f32 %v7268, %v7573
  %v7638 = vmul.f32 %v7270, %v7574
  %v7639 = vmul.f32 %v7272, %v7575
  %v7640 = vmul.f32 %v7274, %v7576
  %v7641 = vmul.f32 %v7276, %v7577
  %v7642 = vmul.f32 %v7278, %v7578
  %v7643 = vmul.f32 %v7280, %v7579
  %v7644 = vmul.f32 %v7282, %v7580
  %v7645 = vmul.f32 %v7284, %v7581
  %v7646 = vmul.f32 %v7286, %v7582
  %v7647 = vmul.f32 %v7288, %v7583
  %v7648 = vmul.f32 %v7290, %v7584
  %v7649 = vmul.f32 %v7292, %v7585
  %v7650 = vmul.f32 %v7294, %v7586
  %v7651 = vmul.f32 %v7296, %v7587
  %v7652 = vmul.f32 %v7298, %v7588
  %v7653 = vmul.f32 %v7300, %v7589
  %v7654 = vmul.f32 %v7302, %v7590
  %v7655 = vmul.f32 %v7304, %v7591
  %v7656 = vmul.f32 %v7306, %v7592
  %v7657 = vmul.f32 %v7308, %v7593
  %v7658 = vmul.f32 %v7310, %v7594
  %v7659 = vmul.f32 %v7312, %v7595
  %v7660 = vmul.f32 %v7314, %v7596
  %v7661 = vmul.f32 %v7316, %v7597
  %v7662 = vmul.f32 %v7318, %v7598
  %v7663 = vmul.f32 %v7320, %v7599
  %v7664 = vmul.f32 %v7322, %v7600
  %v7665 = vmul.f32 %v7324, %v7601
  %v7666 = vmul.f32 %v7326, %v7602
  %v7667 = vmul.f32 %v7328, %v7603
  %v7668 = vmul.f32 %v7330, %v7604
  %v7669 = vmul.f32 %v7332, %v7605
  %v7670 = vmul.f32 %v7334, %v7606
  %v7671 = vmul.f32 %v7336, %v7607
  %v7672 = vmul.f32 %v7338, %v7608
  %v7673 = vmul.f32 %v7340, %v7609
  %v7674 = vmul.f32 %v7342, %v7610
  %v7675 = vmul.f32 %v7344, %v7611
  %v7676 = vmul.f32 %v7346, %v7612
  %v7677 = vmul.f32 %v7348, %v7613
  %v7678 = vmul.f32 %v7350, %v7614
  %v7679 = vmul.f32 %v7352, %v7615
  %v7680 = vmul.f32 %v7354, %v7616
  %v7681 = vmul.f32 %v7356, %v7617
  %v7682 = vmul.f32 %v7358, %v7618
  %v7683 = vmul.f32 %v7360, %v7619
  %v7684 = vmul.f32 %v7362, %v7620
  %v7685 = vmul.f32 %v7364, %v7621
  %v7686 = vmul.f32 %v7366, %v7622
  %v7687 = vpack.c.bf16 %v7624, %v7623
  %v7688 = vpack.c.bf16 %v7626, %v7625
  %v7689 = vpack.c.bf16 %v7628, %v7627
  %v7690 = vpack.c.bf16 %v7630, %v7629
  %v7691 = vpack.c.bf16 %v7632, %v7631
  %v7692 = vpack.c.bf16 %v7634, %v7633
  %v7693 = vpack.c.bf16 %v7636, %v7635
  %v7694 = vpack.c.bf16 %v7638, %v7637
  %v7695 = vpack.c.bf16 %v7640, %v7639
  %v7696 = vpack.c.bf16 %v7642, %v7641
  %v7697 = vpack.c.bf16 %v7644, %v7643
  %v7698 = vpack.c.bf16 %v7646, %v7645
  %v7699 = vpack.c.bf16 %v7648, %v7647
  %v7700 = vpack.c.bf16 %v7650, %v7649
  %v7701 = vpack.c.bf16 %v7652, %v7651
  %v7702 = vpack.c.bf16 %v7654, %v7653
  %v7703 = vpack.c.bf16 %v7656, %v7655
  %v7704 = vpack.c.bf16 %v7658, %v7657
  %v7705 = vpack.c.bf16 %v7660, %v7659
  %v7706 = vpack.c.bf16 %v7662, %v7661
  %v7707 = vpack.c.bf16 %v7664, %v7663
  %v7708 = vpack.c.bf16 %v7666, %v7665
  %v7709 = vpack.c.bf16 %v7668, %v7667
  %v7710 = vpack.c.bf16 %v7670, %v7669
  %v7711 = vpack.c.bf16 %v7672, %v7671
  %v7712 = vpack.c.bf16 %v7674, %v7673
  %v7713 = vpack.c.bf16 %v7676, %v7675
  %v7714 = vpack.c.bf16 %v7678, %v7677
  %v7715 = vpack.c.bf16 %v7680, %v7679
  %v7716 = vpack.c.bf16 %v7682, %v7681
  %v7717 = vpack.c.bf16 %v7684, %v7683
  %v7718 = vpack.c.bf16 %v7686, %v7685
  %v7727 = vunpack.c.l.b16 %v5758
  %v7728 = vunpack.c.l.b16 %v5759
  %v7729 = vunpack.c.l.b16 %v5760
  %v7730 = vunpack.c.l.b16 %v5761
  %v7731 = vunpack.c.l.b16 %v5762
  %v7732 = vunpack.c.l.b16 %v5763
  %v7733 = vunpack.c.l.b16 %v5764
  %v7734 = vunpack.c.l.b16 %v5765
  %v7735 = vpack.c.b16 %v7728, %v7727
  %v7736 = vpack.c.b16 %v7730, %v7729
  %v7737 = vpack.c.b16 %v7732, %v7731
  %v7738 = vpack.c.b16 %v7734, %v7733
  %v7744 = vsel %vm313, %v7687, 0
  %v7747 = vsel %vm313, %v7688, 0
  %v7750 = vsel %vm313, %v7689, 0
  %v7753 = vsel %vm313, %v7690, 0
  %7755 = vmatprep.subr.bf16.mxu0 0
  %7756 = vmatpush1.bf16.msra.mxu0 %v7735
  %7757 = vmatprep.subr.bf16.mxu0 0
  %7758 = vmatpush1.bf16.msra.mxu0 %v7736
  %7759 = vmatprep.subr.bf16.mxu0 0
  %7760 = vmatpush1.bf16.msra.mxu0 %v7737
  %7761 = vmatprep.subr.bf16.mxu0 0
  %7762 = vmatpush1.bf16.msra.mxu0 %v7738
  %7763 = vmatprep.subr.bf16.mxu0 0
  %7764 = vmatpush1.bf16.msra.mxu0 0
  %7765 = vmatprep.subr.bf16.mxu0 0
  %7766 = vmatpush1.bf16.msra.mxu0 0
  %7767 = vmatprep.subr.bf16.mxu0 0
  %7768 = vmatpush1.bf16.msra.mxu0 0
  %7769 = vmatprep.subr.bf16.mxu0 0
  %7770 = vmatpush1.bf16.msra.mxu0 0
  %7771 = vmatprep.subr.bf16.mxu0 0
  %7772 = vmatpush1.bf16.msra.mxu0 0
  %7773 = vmatprep.subr.bf16.mxu0 0
  %7774 = vmatpush1.bf16.msra.mxu0 0
  %7775 = vmatprep.subr.bf16.mxu0 0
  %7776 = vmatpush1.bf16.msra.mxu0 0
  %7777 = vmatprep.subr.bf16.mxu0 0
  %7778 = vmatpush1.bf16.msra.mxu0 0
  %7779 = vmatprep.subr.bf16.mxu0 0
  %7780 = vmatpush1.bf16.msra.mxu0 0
  %7781 = vmatprep.subr.bf16.mxu0 0
  %7782 = vmatpush1.bf16.msra.mxu0 0
  %7783 = vmatprep.subr.bf16.mxu0 0
  %7784 = vmatpush1.bf16.msra.mxu0 0
  %7785 = vmatprep.subr.bf16.mxu0 0
  %7786 = vmatpush1.bf16.msra.mxu0 0
  %7787 = vmatprep.mubr.bf16.mxu0 0
  %7788 = vmatmul.mubr.bf16.gmra.mrb[0].mxu0 %v7744
  %v7789 = vpop.f32.mrb[0].mxu0
  %v7790 = vadd.f32 0.0, %v7789
  %v7791 = vpop.f32.mrb[0].mxu0
  %v7792 = vpop.f32.mrb[0].mxu0
  %v7793 = vadd.f32 0.0, %v7792
  %v7794 = vpop.f32.mrb[0].mxu0
  %7795 = vmatprep.mubr.bf16.mxu0 0
  %7796 = vmatmul.mubr.bf16.gmra.mrb[0].mxu0 %v7747
  %v7797 = vpop.f32.mrb[0].mxu0
  %v7798 = vadd.f32 0.0, %v7797
  %v7799 = vpop.f32.mrb[0].mxu0
  %v7800 = vpop.f32.mrb[0].mxu0
  %v7801 = vadd.f32 0.0, %v7800
  %v7802 = vpop.f32.mrb[0].mxu0
  %7803 = vmatprep.mubr.bf16.mxu0 0
  %7804 = vmatmul.mubr.bf16.gmra.mrb[0].mxu0 %v7750
  %v7805 = vpop.f32.mrb[0].mxu0
  %v7806 = vadd.f32 0.0, %v7805
  %v7807 = vpop.f32.mrb[0].mxu0
  %v7808 = vpop.f32.mrb[0].mxu0
  %v7809 = vadd.f32 0.0, %v7808
  %v7810 = vpop.f32.mrb[0].mxu0
  %7811 = vmatprep.mubr.bf16.mxu0 0
  %7812 = vmatmul.mubr.bf16.gmra.mrb[0].mxu0 %v7753
  %v7813 = vpop.f32.mrb[0].mxu0
  %v7814 = vadd.f32 0.0, %v7813
  %v7815 = vpop.f32.mrb[0].mxu0
  %v7816 = vpop.f32.mrb[0].mxu0
  %v7817 = vadd.f32 0.0, %v7816
  %v7818 = vpop.f32.mrb[0].mxu0
  %7819 = vdwg.mxu0
  %v7828 = vunpack.c.l.b16 %v5766
  %v7829 = vunpack.c.l.b16 %v5767
  %v7830 = vunpack.c.l.b16 %v5768
  %v7831 = vunpack.c.l.b16 %v5769
  %v7832 = vunpack.c.l.b16 %v5770
  %v7833 = vunpack.c.l.b16 %v5771
  %v7834 = vunpack.c.l.b16 %v5772
  %v7835 = vunpack.c.l.b16 %v5773
  %v7836 = vpack.c.b16 %v7829, %v7828
  %v7837 = vpack.c.b16 %v7831, %v7830
  %v7838 = vpack.c.b16 %v7833, %v7832
  %v7839 = vpack.c.b16 %v7835, %v7834
  %v7845 = vsel %vm313, %v7691, 0
  %v7848 = vsel %vm313, %v7692, 0
  %v7851 = vsel %vm313, %v7693, 0
  %v7854 = vsel %vm313, %v7694, 0
  %7856 = vmatprep.subr.bf16.mxu0 0
  %7857 = vmatpush1.bf16.msra.mxu0 %v7836
  %7858 = vmatprep.subr.bf16.mxu0 0
  %7859 = vmatpush1.bf16.msra.mxu0 %v7837
  %7860 = vmatprep.subr.bf16.mxu0 0
  %7861 = vmatpush1.bf16.msra.mxu0 %v7838
  %7862 = vmatprep.subr.bf16.mxu0 0
  %7863 = vmatpush1.bf16.msra.mxu0 %v7839
  %7864 = vmatprep.subr.bf16.mxu0 0
  %7865 = vmatpush1.bf16.msra.mxu0 0
  %7866 = vmatprep.subr.bf16.mxu0 0
  %7867 = vmatpush1.bf16.msra.mxu0 0
  %7868 = vmatprep.subr.bf16.mxu0 0
  %7869 = vmatpush1.bf16.msra.mxu0 0
  %7870 = vmatprep.subr.bf16.mxu0 0
  %7871 = vmatpush1.bf16.msra.mxu0 0
  %7872 = vmatprep.subr.bf16.mxu0 0
  %7873 = vmatpush1.bf16.msra.mxu0 0
  %7874 = vmatprep.subr.bf16.mxu0 0
  %7875 = vmatpush1.bf16.msra.mxu0 0
  %7876 = vmatprep.subr.bf16.mxu0 0
  %7877 = vmatpush1.bf16.msra.mxu0 0
  %7878 = vmatprep.subr.bf16.mxu0 0
  %7879 = vmatpush1.bf16.msra.mxu0 0
  %7880 = vmatprep.subr.bf16.mxu0 0
  %7881 = vmatpush1.bf16.msra.mxu0 0
  %7882 = vmatprep.subr.bf16.mxu0 0
  %7883 = vmatpush1.bf16.msra.mxu0 0
  %7884 = vmatprep.subr.bf16.mxu0 0
  %7885 = vmatpush1.bf16.msra.mxu0 0
  %7886 = vmatprep.subr.bf16.mxu0 0
  %7887 = vmatpush1.bf16.msra.mxu0 0
  %7888 = vmatprep.mubr.bf16.mxu0 0
  %7889 = vmatmul.mubr.bf16.gmra.mrb[0].mxu0 %v7845
  %v7890 = vpop.f32.mrb[0].mxu0
  %v7891 = vadd.f32 0.0, %v7890
  %v7892 = vpop.f32.mrb[0].mxu0
  %v7893 = vpop.f32.mrb[0].mxu0
  %v7894 = vadd.f32 0.0, %v7893
  %v7895 = vpop.f32.mrb[0].mxu0
  %7896 = vmatprep.mubr.bf16.mxu0 0
  %7897 = vmatmul.mubr.bf16.gmra.mrb[0].mxu0 %v7848
  %v7898 = vpop.f32.mrb[0].mxu0
  %v7899 = vadd.f32 0.0, %v7898
  %v7900 = vpop.f32.mrb[0].mxu0
  %v7901 = vpop.f32.mrb[0].mxu0
  %v7902 = vadd.f32 0.0, %v7901
  %v7903 = vpop.f32.mrb[0].mxu0
  %7904 = vmatprep.mubr.bf16.mxu0 0
  %7905 = vmatmul.mubr.bf16.gmra.mrb[0].mxu0 %v7851
  %v7906 = vpop.f32.mrb[0].mxu0
  %v7907 = vadd.f32 0.0, %v7906
  %v7908 = vpop.f32.mrb[0].mxu0
  %v7909 = vpop.f32.mrb[0].mxu0
  %v7910 = vadd.f32 0.0, %v7909
  %v7911 = vpop.f32.mrb[0].mxu0
  %7912 = vmatprep.mubr.bf16.mxu0 0
  %7913 = vmatmul.mubr.bf16.gmra.mrb[0].mxu0 %v7854
  %v7914 = vpop.f32.mrb[0].mxu0
  %v7915 = vadd.f32 0.0, %v7914
  %v7916 = vpop.f32.mrb[0].mxu0
  %v7917 = vpop.f32.mrb[0].mxu0
  %v7918 = vadd.f32 0.0, %v7917
  %v7919 = vpop.f32.mrb[0].mxu0
  %7920 = vdwg.mxu0
  %v7929 = vunpack.c.l.b16 %v5774
  %v7930 = vunpack.c.l.b16 %v5775
  %v7931 = vunpack.c.l.b16 %v5776
  %v7932 = vunpack.c.l.b16 %v5777
  %v7933 = vunpack.c.l.b16 %v5778
  %v7934 = vunpack.c.l.b16 %v5779
  %v7935 = vunpack.c.l.b16 %v5780
  %v7936 = vunpack.c.l.b16 %v5781
  %v7937 = vpack.c.b16 %v7930, %v7929
  %v7938 = vpack.c.b16 %v7932, %v7931
  %v7939 = vpack.c.b16 %v7934, %v7933
  %v7940 = vpack.c.b16 %v7936, %v7935
  %v7946 = vsel %vm313, %v7695, 0
  %v7949 = vsel %vm313, %v7696, 0
  %v7952 = vsel %vm313, %v7697, 0
  %v7955 = vsel %vm313, %v7698, 0
  %7957 = vmatprep.subr.bf16.mxu0 0
  %7958 = vmatpush1.bf16.msra.mxu0 %v7937
  %7959 = vmatprep.subr.bf16.mxu0 0
  %7960 = vmatpush1.bf16.msra.mxu0 %v7938
  %7961 = vmatprep.subr.bf16.mxu0 0
  %7962 = vmatpush1.bf16.msra.mxu0 %v7939
  %7963 = vmatprep.subr.bf16.mxu0 0
  %7964 = vmatpush1.bf16.msra.mxu0 %v7940
  %7965 = vmatprep.subr.bf16.mxu0 0
  %7966 = vmatpush1.bf16.msra.mxu0 0
  %7967 = vmatprep.subr.bf16.mxu0 0
  %7968 = vmatpush1.bf16.msra.mxu0 0
  %7969 = vmatprep.subr.bf16.mxu0 0
  %7970 = vmatpush1.bf16.msra.mxu0 0
  %7971 = vmatprep.subr.bf16.mxu0 0
  %7972 = vmatpush1.bf16.msra.mxu0 0
  %7973 = vmatprep.subr.bf16.mxu0 0
  %7974 = vmatpush1.bf16.msra.mxu0 0
  %7975 = vmatprep.subr.bf16.mxu0 0
  %7976 = vmatpush1.bf16.msra.mxu0 0
  %7977 = vmatprep.subr.bf16.mxu0 0
  %7978 = vmatpush1.bf16.msra.mxu0 0
  %7979 = vmatprep.subr.bf16.mxu0 0
  %7980 = vmatpush1.bf16.msra.mxu0 0
  %7981 = vmatprep.subr.bf16.mxu0 0
  %7982 = vmatpush1.bf16.msra.mxu0 0
  %7983 = vmatprep.subr.bf16.mxu0 0
  %7984 = vmatpush1.bf16.msra.mxu0 0
  %7985 = vmatprep.subr.bf16.mxu0 0
  %7986 = vmatpush1.bf16.msra.mxu0 0
  %7987 = vmatprep.subr.bf16.mxu0 0
  %7988 = vmatpush1.bf16.msra.mxu0 0
  %7989 = vmatprep.mubr.bf16.mxu0 0
  %7990 = vmatmul.mubr.bf16.gmra.mrb[0].mxu0 %v7946
  %v7991 = vpop.f32.mrb[0].mxu0
  %v7992 = vadd.f32 0.0, %v7991
  %v7993 = vpop.f32.mrb[0].mxu0
  %v7994 = vpop.f32.mrb[0].mxu0
  %v7995 = vadd.f32 0.0, %v7994
  %v7996 = vpop.f32.mrb[0].mxu0
  %7997 = vmatprep.mubr.bf16.mxu0 0
  %7998 = vmatmul.mubr.bf16.gmra.mrb[0].mxu0 %v7949
  %v7999 = vpop.f32.mrb[0].mxu0
  %v8000 = vadd.f32 0.0, %v7999
  %v8001 = vpop.f32.mrb[0].mxu0
  %v8002 = vpop.f32.mrb[0].mxu0
  %v8003 = vadd.f32 0.0, %v8002
  %v8004 = vpop.f32.mrb[0].mxu0
  %8005 = vmatprep.mubr.bf16.mxu0 0
  %8006 = vmatmul.mubr.bf16.gmra.mrb[0].mxu0 %v7952
  %v8007 = vpop.f32.mrb[0].mxu0
  %v8008 = vadd.f32 0.0, %v8007
  %v8009 = vpop.f32.mrb[0].mxu0
  %v8010 = vpop.f32.mrb[0].mxu0
  %v8011 = vadd.f32 0.0, %v8010
  %v8012 = vpop.f32.mrb[0].mxu0
  %8013 = vmatprep.mubr.bf16.mxu0 0
  %8014 = vmatmul.mubr.bf16.gmra.mrb[0].mxu0 %v7955
  %v8015 = vpop.f32.mrb[0].mxu0
  %v8016 = vadd.f32 0.0, %v8015
  %v8017 = vpop.f32.mrb[0].mxu0
  %v8018 = vpop.f32.mrb[0].mxu0
  %v8019 = vadd.f32 0.0, %v8018
  %v8020 = vpop.f32.mrb[0].mxu0
  %8021 = vdwg.mxu0
  %v8030 = vunpack.c.l.b16 %v5782
  %v8031 = vunpack.c.l.b16 %v5783
  %v8032 = vunpack.c.l.b16 %v5784
  %v8033 = vunpack.c.l.b16 %v5785
  %v8034 = vunpack.c.l.b16 %v5786
  %v8035 = vunpack.c.l.b16 %v5787
  %v8036 = vunpack.c.l.b16 %v5788
  %v8037 = vunpack.c.l.b16 %v5789
  %v8038 = vpack.c.b16 %v8031, %v8030
  %v8039 = vpack.c.b16 %v8033, %v8032
  %v8040 = vpack.c.b16 %v8035, %v8034
  %v8041 = vpack.c.b16 %v8037, %v8036
  %v8047 = vsel %vm313, %v7699, 0
  %v8050 = vsel %vm313, %v7700, 0
  %v8053 = vsel %vm313, %v7701, 0
  %v8056 = vsel %vm313, %v7702, 0
  %8058 = vmatprep.subr.bf16.mxu0 0
  %8059 = vmatpush1.bf16.msra.mxu0 %v8038
  %8060 = vmatprep.subr.bf16.mxu0 0
  %8061 = vmatpush1.bf16.msra.mxu0 %v8039
  %8062 = vmatprep.subr.bf16.mxu0 0
  %8063 = vmatpush1.bf16.msra.mxu0 %v8040
  %8064 = vmatprep.subr.bf16.mxu0 0
  %8065 = vmatpush1.bf16.msra.mxu0 %v8041
  %8066 = vmatprep.subr.bf16.mxu0 0
  %8067 = vmatpush1.bf16.msra.mxu0 0
  %8068 = vmatprep.subr.bf16.mxu0 0
  %8069 = vmatpush1.bf16.msra.mxu0 0
  %8070 = vmatprep.subr.bf16.mxu0 0
  %8071 = vmatpush1.bf16.msra.mxu0 0
  %8072 = vmatprep.subr.bf16.mxu0 0
  %8073 = vmatpush1.bf16.msra.mxu0 0
  %8074 = vmatprep.subr.bf16.mxu0 0
  %8075 = vmatpush1.bf16.msra.mxu0 0
  %8076 = vmatprep.subr.bf16.mxu0 0
  %8077 = vmatpush1.bf16.msra.mxu0 0
  %8078 = vmatprep.subr.bf16.mxu0 0
  %8079 = vmatpush1.bf16.msra.mxu0 0
  %8080 = vmatprep.subr.bf16.mxu0 0
  %8081 = vmatpush1.bf16.msra.mxu0 0
  %8082 = vmatprep.subr.bf16.mxu0 0
  %8083 = vmatpush1.bf16.msra.mxu0 0
  %8084 = vmatprep.subr.bf16.mxu0 0
  %8085 = vmatpush1.bf16.msra.mxu0 0
  %8086 = vmatprep.subr.bf16.mxu0 0
  %8087 = vmatpush1.bf16.msra.mxu0 0
  %8088 = vmatprep.subr.bf16.mxu0 0
  %8089 = vmatpush1.bf16.msra.mxu0 0
  %8090 = vmatprep.mubr.bf16.mxu0 0
  %8091 = vmatmul.mubr.bf16.gmra.mrb[0].mxu0 %v8047
  %v8092 = vpop.f32.mrb[0].mxu0
  %v8093 = vadd.f32 0.0, %v8092
  %v8094 = vpop.f32.mrb[0].mxu0
  %v8095 = vpop.f32.mrb[0].mxu0
  %v8096 = vadd.f32 0.0, %v8095
  %v8097 = vpop.f32.mrb[0].mxu0
  %8098 = vmatprep.mubr.bf16.mxu0 0
  %8099 = vmatmul.mubr.bf16.gmra.mrb[0].mxu0 %v8050
  %v8100 = vpop.f32.mrb[0].mxu0
  %v8101 = vadd.f32 0.0, %v8100
  %v8102 = vpop.f32.mrb[0].mxu0
  %v8103 = vpop.f32.mrb[0].mxu0
  %v8104 = vadd.f32 0.0, %v8103
  %v8105 = vpop.f32.mrb[0].mxu0
  %8106 = vmatprep.mubr.bf16.mxu0 0
  %8107 = vmatmul.mubr.bf16.gmra.mrb[0].mxu0 %v8053
  %v8108 = vpop.f32.mrb[0].mxu0
  %v8109 = vadd.f32 0.0, %v8108
  %v8110 = vpop.f32.mrb[0].mxu0
  %v8111 = vpop.f32.mrb[0].mxu0
  %v8112 = vadd.f32 0.0, %v8111
  %v8113 = vpop.f32.mrb[0].mxu0
  %8114 = vmatprep.mubr.bf16.mxu0 0
  %8115 = vmatmul.mubr.bf16.gmra.mrb[0].mxu0 %v8056
  %v8116 = vpop.f32.mrb[0].mxu0
  %v8117 = vadd.f32 0.0, %v8116
  %v8118 = vpop.f32.mrb[0].mxu0
  %v8119 = vpop.f32.mrb[0].mxu0
  %v8120 = vadd.f32 0.0, %v8119
  %v8121 = vpop.f32.mrb[0].mxu0
  %8122 = vdwg.mxu0
  %v8131 = vunpack.c.l.b16 %v5790
  %v8132 = vunpack.c.l.b16 %v5791
  %v8133 = vunpack.c.l.b16 %v5792
  %v8134 = vunpack.c.l.b16 %v5793
  %v8135 = vunpack.c.l.b16 %v5794
  %v8136 = vunpack.c.l.b16 %v5795
  %v8137 = vunpack.c.l.b16 %v5796
  %v8138 = vunpack.c.l.b16 %v5797
  %v8139 = vpack.c.b16 %v8132, %v8131
  %v8140 = vpack.c.b16 %v8134, %v8133
  %v8141 = vpack.c.b16 %v8136, %v8135
  %v8142 = vpack.c.b16 %v8138, %v8137
  %v8148 = vsel %vm313, %v7703, 0
  %v8151 = vsel %vm313, %v7704, 0
  %v8154 = vsel %vm313, %v7705, 0
  %v8157 = vsel %vm313, %v7706, 0
  %8159 = vmatprep.subr.bf16.mxu0 0
  %8160 = vmatpush1.bf16.msra.mxu0 %v8139
  %8161 = vmatprep.subr.bf16.mxu0 0
  %8162 = vmatpush1.bf16.msra.mxu0 %v8140
  %8163 = vmatprep.subr.bf16.mxu0 0
  %8164 = vmatpush1.bf16.msra.mxu0 %v8141
  %8165 = vmatprep.subr.bf16.mxu0 0
  %8166 = vmatpush1.bf16.msra.mxu0 %v8142
  %8167 = vmatprep.subr.bf16.mxu0 0
  %8168 = vmatpush1.bf16.msra.mxu0 0
  %8169 = vmatprep.subr.bf16.mxu0 0
  %8170 = vmatpush1.bf16.msra.mxu0 0
  %8171 = vmatprep.subr.bf16.mxu0 0
  %8172 = vmatpush1.bf16.msra.mxu0 0
  %8173 = vmatprep.subr.bf16.mxu0 0
  %8174 = vmatpush1.bf16.msra.mxu0 0
  %8175 = vmatprep.subr.bf16.mxu0 0
  %8176 = vmatpush1.bf16.msra.mxu0 0
  %8177 = vmatprep.subr.bf16.mxu0 0
  %8178 = vmatpush1.bf16.msra.mxu0 0
  %8179 = vmatprep.subr.bf16.mxu0 0
  %8180 = vmatpush1.bf16.msra.mxu0 0
  %8181 = vmatprep.subr.bf16.mxu0 0
  %8182 = vmatpush1.bf16.msra.mxu0 0
  %8183 = vmatprep.subr.bf16.mxu0 0
  %8184 = vmatpush1.bf16.msra.mxu0 0
  %8185 = vmatprep.subr.bf16.mxu0 0
  %8186 = vmatpush1.bf16.msra.mxu0 0
  %8187 = vmatprep.subr.bf16.mxu0 0
  %8188 = vmatpush1.bf16.msra.mxu0 0
  %8189 = vmatprep.subr.bf16.mxu0 0
  %8190 = vmatpush1.bf16.msra.mxu0 0
  %8191 = vmatprep.mubr.bf16.mxu0 0
  %8192 = vmatmul.mubr.bf16.gmra.mrb[0].mxu0 %v8148
  %v8193 = vpop.f32.mrb[0].mxu0
  %v8194 = vadd.f32 0.0, %v8193
  %v8195 = vpop.f32.mrb[0].mxu0
  %v8196 = vpop.f32.mrb[0].mxu0
  %v8197 = vadd.f32 0.0, %v8196
  %v8198 = vpop.f32.mrb[0].mxu0
  %8199 = vmatprep.mubr.bf16.mxu0 0
  %8200 = vmatmul.mubr.bf16.gmra.mrb[0].mxu0 %v8151
  %v8201 = vpop.f32.mrb[0].mxu0
  %v8202 = vadd.f32 0.0, %v8201
  %v8203 = vpop.f32.mrb[0].mxu0
  %v8204 = vpop.f32.mrb[0].mxu0
  %v8205 = vadd.f32 0.0, %v8204
  %v8206 = vpop.f32.mrb[0].mxu0
  %8207 = vmatprep.mubr.bf16.mxu0 0
  %8208 = vmatmul.mubr.bf16.gmra.mrb[0].mxu0 %v8154
  %v8209 = vpop.f32.mrb[0].mxu0
  %v8210 = vadd.f32 0.0, %v8209
  %v8211 = vpop.f32.mrb[0].mxu0
  %v8212 = vpop.f32.mrb[0].mxu0
  %v8213 = vadd.f32 0.0, %v8212
  %v8214 = vpop.f32.mrb[0].mxu0
  %8215 = vmatprep.mubr.bf16.mxu0 0
  %8216 = vmatmul.mubr.bf16.gmra.mrb[0].mxu0 %v8157
  %v8217 = vpop.f32.mrb[0].mxu0
  %v8218 = vadd.f32 0.0, %v8217
  %v8219 = vpop.f32.mrb[0].mxu0
  %v8220 = vpop.f32.mrb[0].mxu0
  %v8221 = vadd.f32 0.0, %v8220
  %v8222 = vpop.f32.mrb[0].mxu0
  %8223 = vdwg.mxu0
  %v8232 = vunpack.c.l.b16 %v5798
  %v8233 = vunpack.c.l.b16 %v5799
  %v8234 = vunpack.c.l.b16 %v5800
  %v8235 = vunpack.c.l.b16 %v5801
  %v8236 = vunpack.c.l.b16 %v5802
  %v8237 = vunpack.c.l.b16 %v5803
  %v8238 = vunpack.c.l.b16 %v5804
  %v8239 = vunpack.c.l.b16 %v5805
  %v8240 = vpack.c.b16 %v8233, %v8232
  %v8241 = vpack.c.b16 %v8235, %v8234
  %v8242 = vpack.c.b16 %v8237, %v8236
  %v8243 = vpack.c.b16 %v8239, %v8238
  %v8249 = vsel %vm313, %v7707, 0
  %v8252 = vsel %vm313, %v7708, 0
  %v8255 = vsel %vm313, %v7709, 0
  %v8258 = vsel %vm313, %v7710, 0
  %8260 = vmatprep.subr.bf16.mxu0 0
  %8261 = vmatpush1.bf16.msra.mxu0 %v8240
  %8262 = vmatprep.subr.bf16.mxu0 0
  %8263 = vmatpush1.bf16.msra.mxu0 %v8241
  %8264 = vmatprep.subr.bf16.mxu0 0
  %8265 = vmatpush1.bf16.msra.mxu0 %v8242
  %8266 = vmatprep.subr.bf16.mxu0 0
  %8267 = vmatpush1.bf16.msra.mxu0 %v8243
  %8268 = vmatprep.subr.bf16.mxu0 0
  %8269 = vmatpush1.bf16.msra.mxu0 0
  %8270 = vmatprep.subr.bf16.mxu0 0
  %8271 = vmatpush1.bf16.msra.mxu0 0
  %8272 = vmatprep.subr.bf16.mxu0 0
  %8273 = vmatpush1.bf16.msra.mxu0 0
  %8274 = vmatprep.subr.bf16.mxu0 0
  %8275 = vmatpush1.bf16.msra.mxu0 0
  %8276 = vmatprep.subr.bf16.mxu0 0
  %8277 = vmatpush1.bf16.msra.mxu0 0
  %8278 = vmatprep.subr.bf16.mxu0 0
  %8279 = vmatpush1.bf16.msra.mxu0 0
  %8280 = vmatprep.subr.bf16.mxu0 0
  %8281 = vmatpush1.bf16.msra.mxu0 0
  %8282 = vmatprep.subr.bf16.mxu0 0
  %8283 = vmatpush1.bf16.msra.mxu0 0
  %8284 = vmatprep.subr.bf16.mxu0 0
  %8285 = vmatpush1.bf16.msra.mxu0 0
  %8286 = vmatprep.subr.bf16.mxu0 0
  %8287 = vmatpush1.bf16.msra.mxu0 0
  %8288 = vmatprep.subr.bf16.mxu0 0
  %8289 = vmatpush1.bf16.msra.mxu0 0
  %8290 = vmatprep.subr.bf16.mxu0 0
  %8291 = vmatpush1.bf16.msra.mxu0 0
  %8292 = vmatprep.mubr.bf16.mxu0 0
  %8293 = vmatmul.mubr.bf16.gmra.mrb[0].mxu0 %v8249
  %v8294 = vpop.f32.mrb[0].mxu0
  %v8295 = vadd.f32 0.0, %v8294
  %v8296 = vpop.f32.mrb[0].mxu0
  %v8297 = vpop.f32.mrb[0].mxu0
  %v8298 = vadd.f32 0.0, %v8297
  %v8299 = vpop.f32.mrb[0].mxu0
  %8300 = vmatprep.mubr.bf16.mxu0 0
  %8301 = vmatmul.mubr.bf16.gmra.mrb[0].mxu0 %v8252
  %v8302 = vpop.f32.mrb[0].mxu0
  %v8303 = vadd.f32 0.0, %v8302
  %v8304 = vpop.f32.mrb[0].mxu0
  %v8305 = vpop.f32.mrb[0].mxu0
  %v8306 = vadd.f32 0.0, %v8305
  %v8307 = vpop.f32.mrb[0].mxu0
  %8308 = vmatprep.mubr.bf16.mxu0 0
  %8309 = vmatmul.mubr.bf16.gmra.mrb[0].mxu0 %v8255
  %v8310 = vpop.f32.mrb[0].mxu0
  %v8311 = vadd.f32 0.0, %v8310
  %v8312 = vpop.f32.mrb[0].mxu0
  %v8313 = vpop.f32.mrb[0].mxu0
  %v8314 = vadd.f32 0.0, %v8313
  %v8315 = vpop.f32.mrb[0].mxu0
  %8316 = vmatprep.mubr.bf16.mxu0 0
  %8317 = vmatmul.mubr.bf16.gmra.mrb[0].mxu0 %v8258
  %v8318 = vpop.f32.mrb[0].mxu0
  %v8319 = vadd.f32 0.0, %v8318
  %v8320 = vpop.f32.mrb[0].mxu0
  %v8321 = vpop.f32.mrb[0].mxu0
  %v8322 = vadd.f32 0.0, %v8321
  %v8323 = vpop.f32.mrb[0].mxu0
  %8324 = vdwg.mxu0
  %v8333 = vunpack.c.l.b16 %v5806
  %v8334 = vunpack.c.l.b16 %v5807
  %v8335 = vunpack.c.l.b16 %v5808
  %v8336 = vunpack.c.l.b16 %v5809
  %v8337 = vunpack.c.l.b16 %v5810
  %v8338 = vunpack.c.l.b16 %v5811
  %v8339 = vunpack.c.l.b16 %v5812
  %v8340 = vunpack.c.l.b16 %v5813
  %v8341 = vpack.c.b16 %v8334, %v8333
  %v8342 = vpack.c.b16 %v8336, %v8335
  %v8343 = vpack.c.b16 %v8338, %v8337
  %v8344 = vpack.c.b16 %v8340, %v8339
  %v8350 = vsel %vm313, %v7711, 0
  %v8353 = vsel %vm313, %v7712, 0
  %v8356 = vsel %vm313, %v7713, 0
  %v8359 = vsel %vm313, %v7714, 0
  %8361 = vmatprep.subr.bf16.mxu0 0
  %8362 = vmatpush1.bf16.msra.mxu0 %v8341
  %8363 = vmatprep.subr.bf16.mxu0 0
  %8364 = vmatpush1.bf16.msra.mxu0 %v8342
  %8365 = vmatprep.subr.bf16.mxu0 0
  %8366 = vmatpush1.bf16.msra.mxu0 %v8343
  %8367 = vmatprep.subr.bf16.mxu0 0
  %8368 = vmatpush1.bf16.msra.mxu0 %v8344
  %8369 = vmatprep.subr.bf16.mxu0 0
  %8370 = vmatpush1.bf16.msra.mxu0 0
  %8371 = vmatprep.subr.bf16.mxu0 0
  %8372 = vmatpush1.bf16.msra.mxu0 0
  %8373 = vmatprep.subr.bf16.mxu0 0
  %8374 = vmatpush1.bf16.msra.mxu0 0
  %8375 = vmatprep.subr.bf16.mxu0 0
  %8376 = vmatpush1.bf16.msra.mxu0 0
  %8377 = vmatprep.subr.bf16.mxu0 0
  %8378 = vmatpush1.bf16.msra.mxu0 0
  %8379 = vmatprep.subr.bf16.mxu0 0
  %8380 = vmatpush1.bf16.msra.mxu0 0
  %8381 = vmatprep.subr.bf16.mxu0 0
  %8382 = vmatpush1.bf16.msra.mxu0 0
  %8383 = vmatprep.subr.bf16.mxu0 0
  %8384 = vmatpush1.bf16.msra.mxu0 0
  %8385 = vmatprep.subr.bf16.mxu0 0
  %8386 = vmatpush1.bf16.msra.mxu0 0
  %8387 = vmatprep.subr.bf16.mxu0 0
  %8388 = vmatpush1.bf16.msra.mxu0 0
  %8389 = vmatprep.subr.bf16.mxu0 0
  %8390 = vmatpush1.bf16.msra.mxu0 0
  %8391 = vmatprep.subr.bf16.mxu0 0
  %8392 = vmatpush1.bf16.msra.mxu0 0
  %8393 = vmatprep.mubr.bf16.mxu0 0
  %8394 = vmatmul.mubr.bf16.gmra.mrb[0].mxu0 %v8350
  %v8395 = vpop.f32.mrb[0].mxu0
  %v8396 = vadd.f32 0.0, %v8395
  %v8397 = vpop.f32.mrb[0].mxu0
  %v8398 = vpop.f32.mrb[0].mxu0
  %v8399 = vadd.f32 0.0, %v8398
  %v8400 = vpop.f32.mrb[0].mxu0
  %8401 = vmatprep.mubr.bf16.mxu0 0
  %8402 = vmatmul.mubr.bf16.gmra.mrb[0].mxu0 %v8353
  %v8403 = vpop.f32.mrb[0].mxu0
  %v8404 = vadd.f32 0.0, %v8403
  %v8405 = vpop.f32.mrb[0].mxu0
  %v8406 = vpop.f32.mrb[0].mxu0
  %v8407 = vadd.f32 0.0, %v8406
  %v8408 = vpop.f32.mrb[0].mxu0
  %8409 = vmatprep.mubr.bf16.mxu0 0
  %8410 = vmatmul.mubr.bf16.gmra.mrb[0].mxu0 %v8356
  %v8411 = vpop.f32.mrb[0].mxu0
  %v8412 = vadd.f32 0.0, %v8411
  %v8413 = vpop.f32.mrb[0].mxu0
  %v8414 = vpop.f32.mrb[0].mxu0
  %v8415 = vadd.f32 0.0, %v8414
  %v8416 = vpop.f32.mrb[0].mxu0
  %8417 = vmatprep.mubr.bf16.mxu0 0
  %8418 = vmatmul.mubr.bf16.gmra.mrb[0].mxu0 %v8359
  %v8419 = vpop.f32.mrb[0].mxu0
  %v8420 = vadd.f32 0.0, %v8419
  %v8421 = vpop.f32.mrb[0].mxu0
  %v8422 = vpop.f32.mrb[0].mxu0
  %v8423 = vadd.f32 0.0, %v8422
  %v8424 = vpop.f32.mrb[0].mxu0
  %8425 = vdwg.mxu0
  %v8434 = vunpack.c.l.b16 %v5814
  %v8435 = vunpack.c.l.b16 %v5815
  %v8436 = vunpack.c.l.b16 %v5816
  %v8437 = vunpack.c.l.b16 %v5817
  %v8438 = vunpack.c.l.b16 %v5818
  %v8439 = vunpack.c.l.b16 %v5819
  %v8440 = vunpack.c.l.b16 %v5820
  %v8441 = vunpack.c.l.b16 %v5821
  %v8442 = vpack.c.b16 %v8435, %v8434
  %v8443 = vpack.c.b16 %v8437, %v8436
  %v8444 = vpack.c.b16 %v8439, %v8438
  %v8445 = vpack.c.b16 %v8441, %v8440
  %v8451 = vsel %vm313, %v7715, 0
  %v8454 = vsel %vm313, %v7716, 0
  %v8457 = vsel %vm313, %v7717, 0
  %v8460 = vsel %vm313, %v7718, 0
  %8462 = vmatprep.subr.bf16.mxu0 0
  %8463 = vmatpush1.bf16.msra.mxu0 %v8442
  %8464 = vmatprep.subr.bf16.mxu0 0
  %8465 = vmatpush1.bf16.msra.mxu0 %v8443
  %8466 = vmatprep.subr.bf16.mxu0 0
  %8467 = vmatpush1.bf16.msra.mxu0 %v8444
  %8468 = vmatprep.subr.bf16.mxu0 0
  %8469 = vmatpush1.bf16.msra.mxu0 %v8445
  %8470 = vmatprep.subr.bf16.mxu0 0
  %8471 = vmatpush1.bf16.msra.mxu0 0
  %8472 = vmatprep.subr.bf16.mxu0 0
  %8473 = vmatpush1.bf16.msra.mxu0 0
  %8474 = vmatprep.subr.bf16.mxu0 0
  %8475 = vmatpush1.bf16.msra.mxu0 0
  %8476 = vmatprep.subr.bf16.mxu0 0
  %8477 = vmatpush1.bf16.msra.mxu0 0
  %8478 = vmatprep.subr.bf16.mxu0 0
  %8479 = vmatpush1.bf16.msra.mxu0 0
  %8480 = vmatprep.subr.bf16.mxu0 0
  %8481 = vmatpush1.bf16.msra.mxu0 0
  %8482 = vmatprep.subr.bf16.mxu0 0
  %8483 = vmatpush1.bf16.msra.mxu0 0
  %8484 = vmatprep.subr.bf16.mxu0 0
  %8485 = vmatpush1.bf16.msra.mxu0 0
  %8486 = vmatprep.subr.bf16.mxu0 0
  %8487 = vmatpush1.bf16.msra.mxu0 0
  %8488 = vmatprep.subr.bf16.mxu0 0
  %8489 = vmatpush1.bf16.msra.mxu0 0
  %8490 = vmatprep.subr.bf16.mxu0 0
  %8491 = vmatpush1.bf16.msra.mxu0 0
  %8492 = vmatprep.subr.bf16.mxu0 0
  %8493 = vmatpush1.bf16.msra.mxu0 0
  %8494 = vmatprep.mubr.bf16.mxu0 0
  %8495 = vmatmul.mubr.bf16.gmra.mrb[0].mxu0 %v8451
  %v8496 = vpop.f32.mrb[0].mxu0
  %v8497 = vadd.f32 0.0, %v8496
  %v8498 = vpop.f32.mrb[0].mxu0
  %v8499 = vpop.f32.mrb[0].mxu0
  %v8500 = vadd.f32 0.0, %v8499
  %v8501 = vpop.f32.mrb[0].mxu0
  %8502 = vmatprep.mubr.bf16.mxu0 0
  %8503 = vmatmul.mubr.bf16.gmra.mrb[0].mxu0 %v8454
  %v8504 = vpop.f32.mrb[0].mxu0
  %v8505 = vadd.f32 0.0, %v8504
  %v8506 = vpop.f32.mrb[0].mxu0
  %v8507 = vpop.f32.mrb[0].mxu0
  %v8508 = vadd.f32 0.0, %v8507
  %v8509 = vpop.f32.mrb[0].mxu0
  %8510 = vmatprep.mubr.bf16.mxu0 0
  %8511 = vmatmul.mubr.bf16.gmra.mrb[0].mxu0 %v8457
  %v8512 = vpop.f32.mrb[0].mxu0
  %v8513 = vadd.f32 0.0, %v8512
  %v8514 = vpop.f32.mrb[0].mxu0
  %v8515 = vpop.f32.mrb[0].mxu0
  %v8516 = vadd.f32 0.0, %v8515
  %v8517 = vpop.f32.mrb[0].mxu0
  %8518 = vmatprep.mubr.bf16.mxu0 0
  %8519 = vmatmul.mubr.bf16.gmra.mrb[0].mxu0 %v8460
  %v8520 = vpop.f32.mrb[0].mxu0
  %v8521 = vadd.f32 0.0, %v8520
  %v8522 = vpop.f32.mrb[0].mxu0
  %v8523 = vpop.f32.mrb[0].mxu0
  %v8524 = vadd.f32 0.0, %v8523
  %v8525 = vpop.f32.mrb[0].mxu0
  %8526 = vdwg.mxu0
  %s8527 = scalar_lea.vmem %s10, 512
  %8528 = vst.msk [vmem:[%s8527] sm:$0xff] %vm4250, %v7790
  %8529 = vst.msk [vmem:[%s8527 + $0x8] sm:$0xff] %vm4250, %v7793
  %8530 = vst.msk [vmem:[%s8527 + $0x10] sm:$0xff] %vm4250, %v7798
  %8531 = vst.msk [vmem:[%s8527 + $0x18] sm:$0xff] %vm4250, %v7801
  %8532 = vst.msk [vmem:[%s8527 + $0x20] sm:$0xff] %vm4250, %v7806
  %8533 = vst.msk [vmem:[%s8527 + $0x28] sm:$0xff] %vm4250, %v7809
  %8534 = vst.msk [vmem:[%s8527 + $0x30] sm:$0xff] %vm4250, %v7814
  %8535 = vst.msk [vmem:[%s8527 + $0x38] sm:$0xff] %vm4250, %v7817
  %8536 = vst.msk [vmem:[%s8527 + $0x40] sm:$0xff] %vm4250, %v7891
  %8537 = vst.msk [vmem:[%s8527 + $0x48] sm:$0xff] %vm4250, %v7894
  %8538 = vst.msk [vmem:[%s8527 + $0x50] sm:$0xff] %vm4250, %v7899
  %8539 = vst.msk [vmem:[%s8527 + $0x58] sm:$0xff] %vm4250, %v7902
  %8540 = vst.msk [vmem:[%s8527 + $0x60] sm:$0xff] %vm4250, %v7907
  %8541 = vst.msk [vmem:[%s8527 + $0x68] sm:$0xff] %vm4250, %v7910
  %8542 = vst.msk [vmem:[%s8527 + $0x70] sm:$0xff] %vm4250, %v7915
  %8543 = vst.msk [vmem:[%s8527 + $0x78] sm:$0xff] %vm4250, %v7918
  %8544 = vst.msk [vmem:[%s8527 + $0x80] sm:$0xff] %vm4250, %v7992
  %8545 = vst.msk [vmem:[%s8527 + $0x88] sm:$0xff] %vm4250, %v7995
  %8546 = vst.msk [vmem:[%s8527 + $0x90] sm:$0xff] %vm4250, %v8000
  %8547 = vst.msk [vmem:[%s8527 + $0x98] sm:$0xff] %vm4250, %v8003
  %8548 = vst.msk [vmem:[%s8527 + $0xa0] sm:$0xff] %vm4250, %v8008
  %8549 = vst.msk [vmem:[%s8527 + $0xa8] sm:$0xff] %vm4250, %v8011
  %8550 = vst.msk [vmem:[%s8527 + $0xb0] sm:$0xff] %vm4250, %v8016
  %8551 = vst.msk [vmem:[%s8527 + $0xb8] sm:$0xff] %vm4250, %v8019
  %8552 = vst.msk [vmem:[%s8527 + $0xc0] sm:$0xff] %vm4250, %v8093
  %8553 = vst.msk [vmem:[%s8527 + $0xc8] sm:$0xff] %vm4250, %v8096
  %8554 = vst.msk [vmem:[%s8527 + $0xd0] sm:$0xff] %vm4250, %v8101
  %8555 = vst.msk [vmem:[%s8527 + $0xd8] sm:$0xff] %vm4250, %v8104
  %8556 = vst.msk [vmem:[%s8527 + $0xe0] sm:$0xff] %vm4250, %v8109
  %8557 = vst.msk [vmem:[%s8527 + $0xe8] sm:$0xff] %vm4250, %v8112
  %8558 = vst.msk [vmem:[%s8527 + $0xf0] sm:$0xff] %vm4250, %v8117
  %8559 = vst.msk [vmem:[%s8527 + $0xf8] sm:$0xff] %vm4250, %v8120
  %8560 = vst.msk [vmem:[%s8527 + $0x100] sm:$0xff] %vm4250, %v8194
  %8561 = vst.msk [vmem:[%s8527 + $0x108] sm:$0xff] %vm4250, %v8197
  %8562 = vst.msk [vmem:[%s8527 + $0x110] sm:$0xff] %vm4250, %v8202
  %8563 = vst.msk [vmem:[%s8527 + $0x118] sm:$0xff] %vm4250, %v8205
  %8564 = vst.msk [vmem:[%s8527 + $0x120] sm:$0xff] %vm4250, %v8210
  %8565 = vst.msk [vmem:[%s8527 + $0x128] sm:$0xff] %vm4250, %v8213
  %8566 = vst.msk [vmem:[%s8527 + $0x130] sm:$0xff] %vm4250, %v8218
  %8567 = vst.msk [vmem:[%s8527 + $0x138] sm:$0xff] %vm4250, %v8221
  %8568 = vst.msk [vmem:[%s8527 + $0x140] sm:$0xff] %vm4250, %v8295
  %8569 = vst.msk [vmem:[%s8527 + $0x148] sm:$0xff] %vm4250, %v8298
  %8570 = vst.msk [vmem:[%s8527 + $0x150] sm:$0xff] %vm4250, %v8303
  %8571 = vst.msk [vmem:[%s8527 + $0x158] sm:$0xff] %vm4250, %v8306
  %8572 = vst.msk [vmem:[%s8527 + $0x160] sm:$0xff] %vm4250, %v8311
  %8573 = vst.msk [vmem:[%s8527 + $0x168] sm:$0xff] %vm4250, %v8314
  %8574 = vst.msk [vmem:[%s8527 + $0x170] sm:$0xff] %vm4250, %v8319
  %8575 = vst.msk [vmem:[%s8527 + $0x178] sm:$0xff] %vm4250, %v8322
  %8576 = vst.msk [vmem:[%s8527 + $0x180] sm:$0xff] %vm4250, %v8396
  %8577 = vst.msk [vmem:[%s8527 + $0x188] sm:$0xff] %vm4250, %v8399
  %8578 = vst.msk [vmem:[%s8527 + $0x190] sm:$0xff] %vm4250, %v8404
  %8579 = vst.msk [vmem:[%s8527 + $0x198] sm:$0xff] %vm4250, %v8407
  %8580 = vst.msk [vmem:[%s8527 + $0x1a0] sm:$0xff] %vm4250, %v8412
  %8581 = vst.msk [vmem:[%s8527 + $0x1a8] sm:$0xff] %vm4250, %v8415
  %8582 = vst.msk [vmem:[%s8527 + $0x1b0] sm:$0xff] %vm4250, %v8420
  %8583 = vst.msk [vmem:[%s8527 + $0x1b8] sm:$0xff] %vm4250, %v8423
  %8584 = vst.msk [vmem:[%s8527 + $0x1c0] sm:$0xff] %vm4250, %v8497
  %8585 = vst.msk [vmem:[%s8527 + $0x1c8] sm:$0xff] %vm4250, %v8500
  %8586 = vst.msk [vmem:[%s8527 + $0x1d0] sm:$0xff] %vm4250, %v8505
  %8587 = vst.msk [vmem:[%s8527 + $0x1d8] sm:$0xff] %vm4250, %v8508
  %8588 = vst.msk [vmem:[%s8527 + $0x1e0] sm:$0xff] %vm4250, %v8513
  %8589 = vst.msk [vmem:[%s8527 + $0x1e8] sm:$0xff] %vm4250, %v8516
  %8590 = vst.msk [vmem:[%s8527 + $0x1f0] sm:$0xff] %vm4250, %v8521
  %8591 = vst.msk [vmem:[%s8527 + $0x1f8] sm:$0xff] %vm4250, %v8524
  // Predicated region
  $region38: #{aacn_vgg_forward.4} parent=0 // pred_check
    _
  $region39: #{aacn_vgg_forward.4} parent=0 // pred_check_branch
    %8593 = sbr.rel (0) target = $region41
  $region40: #{aacn_vgg_forward.4} parent=0 // pred_region
    _
  $region41: #{aacn_vgg_forward.4} parent=0 // pred_fallthru
    _
  // Predicated region
  $region42: #{aacn_vgg_forward.4} parent=0 // pred_check
    _
  $region43: #{aacn_vgg_forward.4} parent=0 // pred_check_branch
    %8595 = sbr.rel (0) target = $region45
  $region44: #{aacn_vgg_forward.4} parent=0 // pred_region
    _
  $region45: #{aacn_vgg_forward.4} parent=0 // pred_fallthru
    _
  // Predicated region
  $region46: #{aacn_vgg_forward.4} parent=0 // pred_check
    _
  $region47: #{aacn_vgg_forward.4} parent=0 // pred_check_branch
    %8597 = sbr.rel (0) target = $region49
  $region48: #{aacn_vgg_forward.4} parent=0 // pred_region
    _
  $region49: #{aacn_vgg_forward.4} parent=0 // pred_fallthru
    _
  // Predicated region
  $region50: #{aacn_vgg_forward.4} parent=0 // pred_check
    _
  $region51: #{aacn_vgg_forward.4} parent=0 // pred_check_branch
    %8599 = sbr.rel (0) target = $region53
  $region52: #{aacn_vgg_forward.4} parent=0 // pred_region
    _
  $region53: #{aacn_vgg_forward.4} parent=0 // pred_fallthru
    _

</llo_original>
